<compile_context>
chip_gen: v6e
topology: v6e:2x2x1
jax: 0.10.0
libtpu: 0.0.40
codegen_flags: <defaults>
</compile_context>

<pallas_src>
import functools
import math

import jax
import jax.numpy as jnp
from jax.experimental import pallas as pl
from jax.experimental.pallas import tpu as pltpu


# ----------------------------------------------------------------------------
# Shared in-kernel helpers
# ----------------------------------------------------------------------------

def _lstm_gates(gates, c_prev, hidden):
    # PyTorch LSTM cell: gate order (i, f, g, o); bias already = b_ih + b_hh.
    i = jax.nn.sigmoid(gates[:, 0 * hidden:1 * hidden])
    f = jax.nn.sigmoid(gates[:, 1 * hidden:2 * hidden])
    g = jnp.tanh(gates[:, 2 * hidden:3 * hidden])
    o = jax.nn.sigmoid(gates[:, 3 * hidden:4 * hidden])
    c_new = f * c_prev + i * g
    h_new = o * jnp.tanh(c_new)
    return h_new, c_new


# ----------------------------------------------------------------------------
# Fused encoder kernel (single launch): MLP + multi-layer LSTM over S steps
# ----------------------------------------------------------------------------

def _encoder_kernel(*refs, S, B, D, H, L, max_len):
    x_ref, w1_ref, b1_ref, w2_ref, b2_ref = refs[:5]
    idx = 5
    lstm_refs = []
    for _ in range(L):
        lstm_refs.append((refs[idx], refs[idx + 1], refs[idx + 2]))
        idx += 3
    enc_ref, h_ref, c_ref = refs[idx], refs[idx + 1], refs[idx + 2]

    f32 = jnp.float32
    x = x_ref[...].astype(f32)                                                 # (S*B, D)
    y = jnp.maximum(jnp.dot(x, w1_ref[...], preferred_element_type=f32) + b1_ref[...], 0.0)
    x = jnp.maximum(jnp.dot(y, w2_ref[...], preferred_element_type=f32) + b2_ref[...], 0.0)

    # Load LSTM weights once; they stay resident for the whole recurrence.
    lstm_w = [(w[...], u[...], b[...]) for (w, u, b) in lstm_refs]
    wih0, whh0, b0 = lstm_w[0]

    # Hoisted layer-0 input projection for ALL timesteps in one matmul.
    gx0 = jnp.dot(x, wih0, preferred_element_type=f32) + b0                    # (S*B, 4H)

    h = [jnp.zeros((B, H), f32) for _ in range(L)]
    c = [jnp.zeros((B, H), f32) for _ in range(L)]

    pad = max_len - S
    for t in range(pad):                                                       # attention zero-padding rows
        enc_ref[t] = jnp.zeros((B, H), enc_ref.dtype)

    for t in range(S):
        gates = gx0[t * B:(t + 1) * B, :] + jnp.dot(h[0], whh0, preferred_element_type=f32)
        h[0], c[0] = _lstm_gates(gates, c[0], H)
        layer_in = h[0]
        for l in range(1, L):
            wih, whh, b = lstm_w[l]
            gates = (jnp.dot(layer_in, wih, preferred_element_type=f32)
                     + jnp.dot(h[l], whh, preferred_element_type=f32) + b)
            h[l], c[l] = _lstm_gates(gates, c[l], H)
            layer_in = h[l]
        enc_ref[pad + t] = layer_in.astype(enc_ref.dtype)

    for l in range(L):
        h_ref[l] = h[l].astype(h_ref.dtype)
        c_ref[l] = c[l].astype(c_ref.dtype)


def _encoder_call(enc_p, input_data, max_len):
    S, B, D = input_data.shape
    L = len(enc_p["lstm"])
    H = enc_p["lstm"][0]["whh_t"].shape[0]
    x_flat = input_data.reshape(S * B, D)

    args = [x_flat, enc_p["w1t"], enc_p["b1"], enc_p["w2t"], enc_p["b2"]]
    for layer in enc_p["lstm"]:
        args += [layer["wih_t"], layer["whh_t"], layer["b"]]

    kernel = functools.partial(_encoder_kernel, S=S, B=B, D=D, H=H, L=L, max_len=max_len)
    enc_out, h, c = pl.pallas_call(
        kernel,
        out_shape=(jax.ShapeDtypeStruct((max_len, B, H), jnp.float32),   # padded encoder output
                   jax.ShapeDtypeStruct((L, B, H), jnp.float32),         # final h
                   jax.ShapeDtypeStruct((L, B, H), jnp.float32)),        # final c
    )(*args)
    return enc_out, h, c


# ----------------------------------------------------------------------------
# Fused decoder kernel (single launch): full prediction loop for one direction;
# grid=(2,) "parallel" runs the forward and backward decoders independently.
# ----------------------------------------------------------------------------

def _decoder_kernel(*refs, T, B, D, H, L, max_len):
    (enc_ref, x0_ref, h0_ref, c0_ref,
     we_ref, be_ref, wae_ref, wah_ref, ba_ref,
     wce_ref, wcc_ref, bc_ref) = refs[:12]
    idx = 12
    lstm_refs = []
    for _ in range(L):
        lstm_refs.append((refs[idx], refs[idx + 1], refs[idx + 2]))
        idx += 3
    mlp_refs = refs[idx:idx + 8]
    out_ref = refs[idx + 8]

    f32 = jnp.float32
    # Per-direction weights: drop the size-1 stacked direction block axis once.
    we, be = we_ref[0], be_ref[0]
    wae, wah, ba = wae_ref[0], wah_ref[0], ba_ref[0]
    wce, wcc, bc = wce_ref[0], wcc_ref[0], bc_ref[0]
    lstm_w = [(w[0], u[0], b[0]) for (w, u, b) in lstm_refs]
    m1, mb1, m2, mb2, m3, mb3, m4, mb4 = [r[0] for r in mlp_refs]

    enc = enc_ref[...].astype(f32)                 # (B, max_len, H)
    x = x0_ref[...].astype(f32)                    # (B, D) : last input frame
    h = [h0_ref[l].astype(f32) for l in range(L)]  # encoder final hidden state
    c = [c0_ref[l].astype(f32) for l in range(L)]

    for t in range(T):
        # embedder
        emb = jnp.dot(x, we, preferred_element_type=f32) + be                         # (B, H)
        # attention weights over (padded) encoder outputs
        scores = (jnp.dot(emb, wae, preferred_element_type=f32)
                  + jnp.dot(h[0], wah, preferred_element_type=f32) + ba)              # (B, max_len)
        scores = scores - jnp.max(scores, axis=-1, keepdims=True)
        e = jnp.exp(scores)
        attn = e * pl.reciprocal(jnp.sum(e, axis=-1, keepdims=True), approx=True)
        ctx = jnp.sum(attn[:, :, None] * enc, axis=1)                                 # (B, H)
        # attn_combine over concat([emb, ctx]) done as two matmuls (no lane concat)
        layer_in = (jnp.dot(emb, wce, preferred_element_type=f32)
                    + jnp.dot(ctx, wcc, preferred_element_type=f32) + bc)             # (B, D)
        # multi-layer LSTM (single timestep)
        for l in range(L):
            wih, whh, b = lstm_w[l]
            gates = (jnp.dot(layer_in, wih, preferred_element_type=f32)
                     + jnp.dot(h[l], whh, preferred_element_type=f32) + b)
            h[l], c[l] = _lstm_gates(gates, c[l], H)
            layer_in = h[l]
        # 4-layer MLP head (ReLU on first three, Dropout eval = identity)
        y = jnp.maximum(jnp.dot(layer_in, m1, preferred_element_type=f32) + mb1, 0.0)
        y = jnp.maximum(jnp.dot(y, m2, preferred_element_type=f32) + mb2, 0.0)
        y = jnp.maximum(jnp.dot(y, m3, preferred_element_type=f32) + mb3, 0.0)
        y = jnp.dot(y, m4, preferred_element_type=f32) + mb4                          # (B, D)

        out_ref[0, t] = y.astype(out_ref.dtype)
        x = y                                                                         # feed prediction back


def _decoder_call(dec_p, enc_bth, x0, h0, c0, num_predictions):
    B, max_len, H = enc_bth.shape
    D = x0.shape[-1]
    L = len(dec_p["lstm"])
    T = num_predictions

    def shared(shape):
        n = len(shape)
        return pl.BlockSpec(tuple(shape), lambda d, n=n: (0,) * n)

    def perdir(shape):
        n = len(shape)
        return pl.BlockSpec((1,) + tuple(shape), lambda d, n=n: (d,) + (0,) * n)

    args = [enc_bth, x0, h0, c0,
            dec_p["we_t"], dec_p["be"],
            dec_p["wae_t"], dec_p["wah_t"], dec_p["ba"],
            dec_p["wce_t"], dec_p["wcc_t"], dec_p["bc"]]
    in_specs = [shared((B, max_len, H)), shared((B, D)),
                shared((L, B, H)), shared((L, B, H)),
                perdir((D, H)), perdir((1, H)),
                perdir((H, max_len)), perdir((H, max_len)), perdir((1, max_len)),
                perdir((H, D)), perdir((H, D)), perdir((1, D))]
    for layer in dec_p["lstm"]:
        args += [layer["wih_t"], layer["whh_t"], layer["b"]]
        in_dim = layer["wih_t"].shape[1]
        in_specs += [perdir((in_dim, 4 * H)), perdir((H, 4 * H)), perdir((1, 4 * H))]
    args += [dec_p["m1_t"], dec_p["mb1"], dec_p["m2_t"], dec_p["mb2"],
             dec_p["m3_t"], dec_p["mb3"], dec_p["m4_t"], dec_p["mb4"]]
    in_specs += [perdir((H, H)), perdir((1, H)), perdir((H, H)), perdir((1, H)),
                 perdir((H, H)), perdir((1, H)), perdir((H, D)), perdir((1, D))]

    kernel = functools.partial(_decoder_kernel, T=T, B=B, D=D, H=H, L=L, max_len=max_len)
    preds = pl.pallas_call(
        kernel,
        grid=(2,),  # direction axis: 0 = forward decoder, 1 = backward decoder
        in_specs=in_specs,
        out_specs=pl.BlockSpec((1, T, B, D), lambda d: (d, 0, 0, 0)),
        out_shape=jax.ShapeDtypeStruct((2, T, B, D), jnp.float32),
        compiler_params=pltpu.CompilerParams(dimension_semantics=("parallel",)),
    )(*args)
    return preds


# ----------------------------------------------------------------------------
# Full forward (mirrors EncoderDecoder.forward, teacher_data=None)
# ----------------------------------------------------------------------------

@functools.partial(jax.jit, static_argnums=(2,))
def encoder_decoder_forward(prep, input_data, num_predictions):
    S, B, D = input_data.shape
    max_len = prep["decoder"]["wae_t"].shape[-1]        # attn Linear output width

    enc_out, h, c = _encoder_call(prep["encoder"], input_data, max_len)   # (max_len,B,H), (L,B,H)x2
    enc_bth = jnp.transpose(enc_out, (1, 0, 2))                            # (B, max_len, H)
    x0 = input_data[-1]                                                    # (B, D) last input frame

    preds = _decoder_call(prep["decoder"], enc_bth, x0, h, c, num_predictions)  # (2, T, B, D)

    fwd = jnp.transpose(preds[0], (1, 2, 0))                               # (B, D, T)
    bwd = jnp.transpose(preds[1], (1, 2, 0))[:, :, :S]                     # (B, D, min(T, S))
    return fwd, bwd


# ----------------------------------------------------------------------------
# Parameter init (PyTorch default U(-1/sqrt(fan_in), +)) and one-time prep
# (weight transposes / per-direction stacking hoisted out of the hot path)
# ----------------------------------------------------------------------------

def init_linear(key, out_dim, in_dim, dtype=jnp.float32):
    k1, k2 = jax.random.split(key)
    bound = 1.0 / math.sqrt(in_dim)
    w = jax.random.uniform(k1, (out_dim, in_dim), dtype, -bound, bound)
    b = jax.random.uniform(k2, (out_dim,), dtype, -bound, bound)
    return w, b


def init_lstm(key, in_dim, hidden, num_layers, dtype=jnp.float32):
    layers = []
    bound = 1.0 / math.sqrt(hidden)
    for l in range(num_layers):
        key, k1, k2, k3, k4 = jax.random.split(key, 5)
        d_in = in_dim if l == 0 else hidden
        w_ih = jax.random.uniform(k1, (4 * hidden, d_in), dtype, -bound, bound)
        w_hh = jax.random.uniform(k2, (4 * hidden, hidden), dtype, -bound, bound)
        b_ih = jax.random.uniform(k3, (4 * hidden,), dtype, -bound, bound)
        b_hh = jax.random.uniform(k4, (4 * hidden,), dtype, -bound, bound)
        layers.append(dict(w_ih=w_ih, w_hh=w_hh, b=b_ih + b_hh))
    return layers


def init_decoder(key, D, H, L, max_len):
    ks = jax.random.split(key, 8)
    return {
        "lstm": init_lstm(ks[0], D, H, L),
        "mlp": [init_linear(ks[1], H, H), init_linear(ks[2], H, H),
                init_linear(ks[3], H, H), init_linear(ks[4], D, H)],
        "attn": init_linear(ks[5], max_len, 2 * H),
        "attn_combine": init_linear(ks[6], D, 2 * H),
        "embedder": init_linear(ks[7], H, D),
    }


def init_params(key, D, H, L, max_len):
    k1, k2, k3, k4, k5 = jax.random.split(key, 5)
    return {
        "encoder": {
            "mlp": [init_linear(k1, H, D), init_linear(k2, D, H)],
            "lstm": init_lstm(k3, D, H, L),
        },
        "decoder_forward": init_decoder(k4, D, H, L, max_len),
        "decoder_backward": init_decoder(k5, D, H, L, max_len),
    }


def _prep_lstm(layers):
    return [dict(wih_t=l["w_ih"].T, whh_t=l["w_hh"].T, b=l["b"][None, :]) for l in layers]


def _prep_decoder(p, H):
    we, be = p["embedder"]
    wa, ba = p["attn"]                 # applied to cat([embedded, hidden[0][0]])
    wc, bc = p["attn_combine"]         # applied to cat([embedded, context])
    (w1, b1), (w2, b2), (w3, b3), (w4, b4) = p["mlp"]
    return dict(
        we_t=we.T, be=be[None, :],
        wae_t=wa[:, :H].T, wah_t=wa[:, H:].T, ba=ba[None, :],
        wce_t=wc[:, :H].T, wcc_t=wc[:, H:].T, bc=bc[None, :],
        m1_t=w1.T, mb1=b1[None, :], m2_t=w2.T, mb2=b2[None, :],
        m3_t=w3.T, mb3=b3[None, :], m4_t=w4.T, mb4=b4[None, :],
        lstm=_prep_lstm(p["lstm"]),
    )


def prepare_params(params, H):
    (w1, b1), (w2, b2) = params["encoder"]["mlp"]
    enc = dict(w1t=w1.T, b1=b1[None, :], w2t=w2.T, b2=b2[None, :],
               lstm=_prep_lstm(params["encoder"]["lstm"]))
    df = _prep_decoder(params["decoder_forward"], H)
    db = _prep_decoder(params["decoder_backward"], H)
    dec = jax.tree.map(lambda a, b: jnp.stack([a, b], axis=0), df, db)  # leading dir axis (2, ...)
    return dict(encoder=enc, decoder=dec)


# ----------------------------------------------------------------------------
# Main
# ----------------------------------------------------------------------------

if __name__ == "__main__":
    # num_strains D=8, hidden_dim H=32, num_lstms L=2, batch B=4,
    # input seq len S=8, otu_handler.min_len (max_len)=8, num_predictions T=5.
    D, H, L, B, S, MAX_LEN, NUM_PRED = 8, 32, 2, 4, 8, 8, 5

    key = jax.random.PRNGKey(0)
    k_in, k_params = jax.random.split(key)
    input_data = jax.random.normal(k_in, (S, B, D), jnp.float32)   # time-major like nn.LSTM
    params = init_params(k_params, D, H, L, MAX_LEN)
    prep = prepare_params(params, H)                               # one-time transposes / stacking

    fwd, bwd = encoder_decoder_forward(prep, input_data, NUM_PRED)
    fwd, bwd = jax.block_until_ready((fwd, bwd))

    assert fwd.shape == (B, D, NUM_PRED), fwd.shape
    assert bwd.shape == (B, D, min(NUM_PRED, S)), bwd.shape
    assert bool(jnp.all(jnp.isfinite(fwd))) and bool(jnp.all(jnp.isfinite(bwd)))
    print("KERNEL_OK")
</pallas_src>

<mosaic_0001>
module attributes {stable_mosaic.version = 11 : i64} {
  func.func @_encoder_kernel(%arg0: memref<32x8xf32, #tpu.memory_space<vmem>>, %arg1: memref<8x32xf32, #tpu.memory_space<vmem>>, %arg2: memref<1x32xf32, #tpu.memory_space<vmem>>, %arg3: memref<32x8xf32, #tpu.memory_space<vmem>>, %arg4: memref<1x8xf32, #tpu.memory_space<vmem>>, %arg5: memref<8x128xf32, #tpu.memory_space<vmem>>, %arg6: memref<32x128xf32, #tpu.memory_space<vmem>>, %arg7: memref<1x128xf32, #tpu.memory_space<vmem>>, %arg8: memref<32x128xf32, #tpu.memory_space<vmem>>, %arg9: memref<32x128xf32, #tpu.memory_space<vmem>>, %arg10: memref<1x128xf32, #tpu.memory_space<vmem>>, %arg11: memref<8x4x32xf32, #tpu.memory_space<vmem>>, %arg12: memref<2x4x32xf32, #tpu.memory_space<vmem>>, %arg13: memref<2x4x32xf32, #tpu.memory_space<vmem>>) attributes {dimension_semantics = [], scalar_prefetch = 0 : i64, scratch_operands = 0 : i64, tpu.core_type = #tpu.core_type<tc>} {
    %c0 = arith.constant 0 : index
    %c0_0 = arith.constant 0 : index
    %0 = vector.load %arg0[%c0, %c0_0] : memref<32x8xf32, #tpu.memory_space<vmem>>, vector<32x8xf32>
    %c0_1 = arith.constant 0 : index
    %c0_2 = arith.constant 0 : index
    %1 = vector.load %arg1[%c0_1, %c0_2] : memref<8x32xf32, #tpu.memory_space<vmem>>, vector<8x32xf32>
    %cst = arith.constant dense<0.000000e+00> : vector<32x32xf32>
    %2 = tpu.matmul %0, %1, %cst {dimension_numbers = #tpu.dot_dimension_numbers<[1], [0], [0], [1], [0, 0, 1, 1], [], []>} : vector<32x8xf32>, vector<8x32xf32>, vector<32x32xf32> -> vector<32x32xf32>
    %c0_3 = arith.constant 0 : index
    %c0_4 = arith.constant 0 : index
    %3 = vector.load %arg2[%c0_3, %c0_4] : memref<1x32xf32, #tpu.memory_space<vmem>>, vector<1x32xf32>
    %4 = vector.broadcast %3 : vector<1x32xf32> to vector<32x32xf32>
    %5 = arith.addf %2, %4 : vector<32x32xf32>
    %cst_5 = arith.constant 0.000000e+00 : f32
    %6 = vector.broadcast %cst_5 : f32 to vector<32x32xf32>
    %7 = arith.maximumf %5, %6 : vector<32x32xf32>
    %c0_6 = arith.constant 0 : index
    %c0_7 = arith.constant 0 : index
    %8 = vector.load %arg3[%c0_6, %c0_7] : memref<32x8xf32, #tpu.memory_space<vmem>>, vector<32x8xf32>
    %cst_8 = arith.constant dense<0.000000e+00> : vector<32x8xf32>
    %9 = tpu.matmul %7, %8, %cst_8 {dimension_numbers = #tpu.dot_dimension_numbers<[1], [0], [0], [1], [0, 0, 1, 1], [], []>} : vector<32x32xf32>, vector<32x8xf32>, vector<32x8xf32> -> vector<32x8xf32>
    %c0_9 = arith.constant 0 : index
    %c0_10 = arith.constant 0 : index
    %10 = vector.load %arg4[%c0_9, %c0_10] : memref<1x8xf32, #tpu.memory_space<vmem>>, vector<1x8xf32>
    %11 = vector.broadcast %10 : vector<1x8xf32> to vector<32x8xf32>
    %12 = arith.addf %9, %11 : vector<32x8xf32>
    %cst_11 = arith.constant 0.000000e+00 : f32
    %13 = vector.broadcast %cst_11 : f32 to vector<32x8xf32>
    %14 = arith.maximumf %12, %13 : vector<32x8xf32>
    %c0_12 = arith.constant 0 : index
    %c0_13 = arith.constant 0 : index
    %15 = vector.load %arg5[%c0_12, %c0_13] : memref<8x128xf32, #tpu.memory_space<vmem>>, vector<8x128xf32>
    %c0_14 = arith.constant 0 : index
    %c0_15 = arith.constant 0 : index
    %16 = vector.load %arg6[%c0_14, %c0_15] : memref<32x128xf32, #tpu.memory_space<vmem>>, vector<32x128xf32>
    %c0_16 = arith.constant 0 : index
    %c0_17 = arith.constant 0 : index
    %17 = vector.load %arg7[%c0_16, %c0_17] : memref<1x128xf32, #tpu.memory_space<vmem>>, vector<1x128xf32>
    %c0_18 = arith.constant 0 : index
    %c0_19 = arith.constant 0 : index
    %18 = vector.load %arg8[%c0_18, %c0_19] : memref<32x128xf32, #tpu.memory_space<vmem>>, vector<32x128xf32>
    %c0_20 = arith.constant 0 : index
    %c0_21 = arith.constant 0 : index
    %19 = vector.load %arg9[%c0_20, %c0_21] : memref<32x128xf32, #tpu.memory_space<vmem>>, vector<32x128xf32>
    %c0_22 = arith.constant 0 : index
    %c0_23 = arith.constant 0 : index
    %20 = vector.load %arg10[%c0_22, %c0_23] : memref<1x128xf32, #tpu.memory_space<vmem>>, vector<1x128xf32>
    %cst_24 = arith.constant dense<0.000000e+00> : vector<32x128xf32>
    %21 = tpu.matmul %14, %15, %cst_24 {dimension_numbers = #tpu.dot_dimension_numbers<[1], [0], [0], [1], [0, 0, 1, 1], [], []>} : vector<32x8xf32>, vector<8x128xf32>, vector<32x128xf32> -> vector<32x128xf32>
    %22 = vector.broadcast %17 : vector<1x128xf32> to vector<32x128xf32>
    %23 = arith.addf %21, %22 : vector<32x128xf32>
    %cst_25 = arith.constant 0.000000e+00 : f32
    %24 = vector.broadcast %cst_25 : f32 to vector<4x32xf32>
    %cst_26 = arith.constant 0.000000e+00 : f32
    %25 = vector.broadcast %cst_26 : f32 to vector<4x32xf32>
    %cst_27 = arith.constant 0.000000e+00 : f32
    %26 = vector.broadcast %cst_27 : f32 to vector<4x32xf32>
    %cst_28 = arith.constant 0.000000e+00 : f32
    %27 = vector.broadcast %cst_28 : f32 to vector<4x32xf32>
    %28 = vector.extract_strided_slice %23 {offsets = [0, 0], sizes = [4, 128], strides = [1, 1]} : vector<32x128xf32> to vector<4x128xf32>
    %cst_29 = arith.constant dense<0.000000e+00> : vector<4x128xf32>
    %29 = tpu.matmul %24, %16, %cst_29 {dimension_numbers = #tpu.dot_dimension_numbers<[1], [0], [0], [1], [0, 0, 1, 1], [], []>} : vector<4x32xf32>, vector<32x128xf32>, vector<4x128xf32> -> vector<4x128xf32>
    %30 = arith.addf %28, %29 : vector<4x128xf32>
    %31 = vector.extract_strided_slice %30 {offsets = [0, 0], sizes = [4, 32], strides = [1, 1]} : vector<4x128xf32> to vector<4x32xf32>
    %32 = arith.negf %31 : vector<4x32xf32>
    %33 = math.exp %32 : vector<4x32xf32>
    %cst_30 = arith.constant 1.000000e+00 : f32
    %34 = vector.broadcast %cst_30 : f32 to vector<4x32xf32>
    %35 = arith.addf %34, %33 : vector<4x32xf32>
    %36 = arith.divf %34, %35 : vector<4x32xf32>
    %37 = vector.extract_strided_slice %30 {offsets = [0, 32], sizes = [4, 32], strides = [1, 1]} : vector<4x128xf32> to vector<4x32xf32>
    %38 = arith.negf %37 : vector<4x32xf32>
    %39 = math.exp %38 : vector<4x32xf32>
    %cst_31 = arith.constant 1.000000e+00 : f32
    %40 = vector.broadcast %cst_31 : f32 to vector<4x32xf32>
    %41 = arith.addf %40, %39 : vector<4x32xf32>
    %42 = arith.divf %40, %41 : vector<4x32xf32>
    %43 = vector.extract_strided_slice %30 {offsets = [0, 64], sizes = [4, 32], strides = [1, 1]} : vector<4x128xf32> to vector<4x32xf32>
    %44 = math.tanh %43 : vector<4x32xf32>
    %45 = vector.extract_strided_slice %30 {offsets = [0, 96], sizes = [4, 32], strides = [1, 1]} : vector<4x128xf32> to vector<4x32xf32>
    %46 = arith.negf %45 : vector<4x32xf32>
    %47 = math.exp %46 : vector<4x32xf32>
    %cst_32 = arith.constant 1.000000e+00 : f32
    %48 = vector.broadcast %cst_32 : f32 to vector<4x32xf32>
    %49 = arith.addf %48, %47 : vector<4x32xf32>
    %50 = arith.divf %48, %49 : vector<4x32xf32>
    %51 = arith.mulf %42, %26 : vector<4x32xf32>
    %52 = arith.mulf %36, %44 : vector<4x32xf32>
    %53 = arith.addf %51, %52 : vector<4x32xf32>
    %54 = math.tanh %53 : vector<4x32xf32>
    %55 = arith.mulf %50, %54 : vector<4x32xf32>
    %cst_33 = arith.constant dense<0.000000e+00> : vector<4x128xf32>
    %56 = tpu.matmul %55, %18, %cst_33 {dimension_numbers = #tpu.dot_dimension_numbers<[1], [0], [0], [1], [0, 0, 1, 1], [], []>} : vector<4x32xf32>, vector<32x128xf32>, vector<4x128xf32> -> vector<4x128xf32>
    %cst_34 = arith.constant dense<0.000000e+00> : vector<4x128xf32>
    %57 = tpu.matmul %25, %19, %cst_34 {dimension_numbers = #tpu.dot_dimension_numbers<[1], [0], [0], [1], [0, 0, 1, 1], [], []>} : vector<4x32xf32>, vector<32x128xf32>, vector<4x128xf32> -> vector<4x128xf32>
    %58 = arith.addf %56, %57 : vector<4x128xf32>
    %59 = vector.broadcast %20 : vector<1x128xf32> to vector<4x128xf32>
    %60 = arith.addf %58, %59 : vector<4x128xf32>
    %61 = vector.extract_strided_slice %60 {offsets = [0, 0], sizes = [4, 32], strides = [1, 1]} : vector<4x128xf32> to vector<4x32xf32>
    %62 = arith.negf %61 : vector<4x32xf32>
    %63 = math.exp %62 : vector<4x32xf32>
    %cst_35 = arith.constant 1.000000e+00 : f32
    %64 = vector.broadcast %cst_35 : f32 to vector<4x32xf32>
    %65 = arith.addf %64, %63 : vector<4x32xf32>
    %66 = arith.divf %64, %65 : vector<4x32xf32>
    %67 = vector.extract_strided_slice %60 {offsets = [0, 32], sizes = [4, 32], strides = [1, 1]} : vector<4x128xf32> to vector<4x32xf32>
    %68 = arith.negf %67 : vector<4x32xf32>
    %69 = math.exp %68 : vector<4x32xf32>
    %cst_36 = arith.constant 1.000000e+00 : f32
    %70 = vector.broadcast %cst_36 : f32 to vector<4x32xf32>
    %71 = arith.addf %70, %69 : vector<4x32xf32>
    %72 = arith.divf %70, %71 : vector<4x32xf32>
    %73 = vector.extract_strided_slice %60 {offsets = [0, 64], sizes = [4, 32], strides = [1, 1]} : vector<4x128xf32> to vector<4x32xf32>
    %74 = math.tanh %73 : vector<4x32xf32>
    %75 = vector.extract_strided_slice %60 {offsets = [0, 96], sizes = [4, 32], strides = [1, 1]} : vector<4x128xf32> to vector<4x32xf32>
    %76 = arith.negf %75 : vector<4x32xf32>
    %77 = math.exp %76 : vector<4x32xf32>
    %cst_37 = arith.constant 1.000000e+00 : f32
    %78 = vector.broadcast %cst_37 : f32 to vector<4x32xf32>
    %79 = arith.addf %78, %77 : vector<4x32xf32>
    %80 = arith.divf %78, %79 : vector<4x32xf32>
    %81 = arith.mulf %72, %27 : vector<4x32xf32>
    %82 = arith.mulf %66, %74 : vector<4x32xf32>
    %83 = arith.addf %81, %82 : vector<4x32xf32>
    %84 = math.tanh %83 : vector<4x32xf32>
    %85 = arith.mulf %80, %84 : vector<4x32xf32>
    %c0_38 = arith.constant 0 : index
    %c0_39 = arith.constant 0 : index
    %c0_40 = arith.constant 0 : index
    %86 = vector.load %arg11[%c0_38, %c0_39, %c0_40] : memref<8x4x32xf32, #tpu.memory_space<vmem>>, vector<1x4x32xf32>
    %87 = vector.shape_cast %86 : vector<1x4x32xf32> to vector<4x32xf32>
    %88 = vector.shape_cast %85 : vector<4x32xf32> to vector<1x4x32xf32>
    tpu.vector_store %arg11[%c0_38, %c0_39, %c0_40], %88 {strides = array<i32>} : memref<8x4x32xf32, #tpu.memory_space<vmem>>, vector<1x4x32xf32>,
    %89 = vector.extract_strided_slice %23 {offsets = [4, 0], sizes = [4, 128], strides = [1, 1]} : vector<32x128xf32> to vector<4x128xf32>
    %cst_41 = arith.constant dense<0.000000e+00> : vector<4x128xf32>
    %90 = tpu.matmul %55, %16, %cst_41 {dimension_numbers = #tpu.dot_dimension_numbers<[1], [0], [0], [1], [0, 0, 1, 1], [], []>} : vector<4x32xf32>, vector<32x128xf32>, vector<4x128xf32> -> vector<4x128xf32>
    %91 = arith.addf %89, %90 : vector<4x128xf32>
    %92 = vector.extract_strided_slice %91 {offsets = [0, 0], sizes = [4, 32], strides = [1, 1]} : vector<4x128xf32> to vector<4x32xf32>
    %93 = arith.negf %92 : vector<4x32xf32>
    %94 = math.exp %93 : vector<4x32xf32>
    %cst_42 = arith.constant 1.000000e+00 : f32
    %95 = vector.broadcast %cst_42 : f32 to vector<4x32xf32>
    %96 = arith.addf %95, %94 : vector<4x32xf32>
    %97 = arith.divf %95, %96 : vector<4x32xf32>
    %98 = vector.extract_strided_slice %91 {offsets = [0, 32], sizes = [4, 32], strides = [1, 1]} : vector<4x128xf32> to vector<4x32xf32>
    %99 = arith.negf %98 : vector<4x32xf32>
    %100 = math.exp %99 : vector<4x32xf32>
    %cst_43 = arith.constant 1.000000e+00 : f32
    %101 = vector.broadcast %cst_43 : f32 to vector<4x32xf32>
    %102 = arith.addf %101, %100 : vector<4x32xf32>
    %103 = arith.divf %101, %102 : vector<4x32xf32>
    %104 = vector.extract_strided_slice %91 {offsets = [0, 64], sizes = [4, 32], strides = [1, 1]} : vector<4x128xf32> to vector<4x32xf32>
    %105 = math.tanh %104 : vector<4x32xf32>
    %106 = vector.extract_strided_slice %91 {offsets = [0, 96], sizes = [4, 32], strides = [1, 1]} : vector<4x128xf32> to vector<4x32xf32>
    %107 = arith.negf %106 : vector<4x32xf32>
    %108 = math.exp %107 : vector<4x32xf32>
    %cst_44 = arith.constant 1.000000e+00 : f32
    %109 = vector.broadcast %cst_44 : f32 to vector<4x32xf32>
    %110 = arith.addf %109, %108 : vector<4x32xf32>
    %111 = arith.divf %109, %110 : vector<4x32xf32>
    %112 = arith.mulf %103, %53 : vector<4x32xf32>
    %113 = arith.mulf %97, %105 : vector<4x32xf32>
    %114 = arith.addf %112, %113 : vector<4x32xf32>
    %115 = math.tanh %114 : vector<4x32xf32>
    %116 = arith.mulf %111, %115 : vector<4x32xf32>
    %cst_45 = arith.constant dense<0.000000e+00> : vector<4x128xf32>
    %117 = tpu.matmul %116, %18, %cst_45 {dimension_numbers = #tpu.dot_dimension_numbers<[1], [0], [0], [1], [0, 0, 1, 1], [], []>} : vector<4x32xf32>, vector<32x128xf32>, vector<4x128xf32> -> vector<4x128xf32>
    %cst_46 = arith.constant dense<0.000000e+00> : vector<4x128xf32>
    %118 = tpu.matmul %85, %19, %cst_46 {dimension_numbers = #tpu.dot_dimension_numbers<[1], [0], [0], [1], [0, 0, 1, 1], [], []>} : vector<4x32xf32>, vector<32x128xf32>, vector<4x128xf32> -> vector<4x128xf32>
    %119 = arith.addf %117, %118 : vector<4x128xf32>
    %120 = vector.broadcast %20 : vector<1x128xf32> to vector<4x128xf32>
    %121 = arith.addf %119, %120 : vector<4x128xf32>
    %122 = vector.extract_strided_slice %121 {offsets = [0, 0], sizes = [4, 32], strides = [1, 1]} : vector<4x128xf32> to vector<4x32xf32>
    %123 = arith.negf %122 : vector<4x32xf32>
    %124 = math.exp %123 : vector<4x32xf32>
    %cst_47 = arith.constant 1.000000e+00 : f32
    %125 = vector.broadcast %cst_47 : f32 to vector<4x32xf32>
    %126 = arith.addf %125, %124 : vector<4x32xf32>
    %127 = arith.divf %125, %126 : vector<4x32xf32>
    %128 = vector.extract_strided_slice %121 {offsets = [0, 32], sizes = [4, 32], strides = [1, 1]} : vector<4x128xf32> to vector<4x32xf32>
    %129 = arith.negf %128 : vector<4x32xf32>
    %130 = math.exp %129 : vector<4x32xf32>
    %cst_48 = arith.constant 1.000000e+00 : f32
    %131 = vector.broadcast %cst_48 : f32 to vector<4x32xf32>
    %132 = arith.addf %131, %130 : vector<4x32xf32>
    %133 = arith.divf %131, %132 : vector<4x32xf32>
    %134 = vector.extract_strided_slice %121 {offsets = [0, 64], sizes = [4, 32], strides = [1, 1]} : vector<4x128xf32> to vector<4x32xf32>
    %135 = math.tanh %134 : vector<4x32xf32>
    %136 = vector.extract_strided_slice %121 {offsets = [0, 96], sizes = [4, 32], strides = [1, 1]} : vector<4x128xf32> to vector<4x32xf32>
    %137 = arith.negf %136 : vector<4x32xf32>
    %138 = math.exp %137 : vector<4x32xf32>
    %cst_49 = arith.constant 1.000000e+00 : f32
    %139 = vector.broadcast %cst_49 : f32 to vector<4x32xf32>
    %140 = arith.addf %139, %138 : vector<4x32xf32>
    %141 = arith.divf %139, %140 : vector<4x32xf32>
    %142 = arith.mulf %133, %83 : vector<4x32xf32>
    %143 = arith.mulf %127, %135 : vector<4x32xf32>
    %144 = arith.addf %142, %143 : vector<4x32xf32>
    %145 = math.tanh %144 : vector<4x32xf32>
    %146 = arith.mulf %141, %145 : vector<4x32xf32>
    %c1 = arith.constant 1 : index
    %c0_50 = arith.constant 0 : index
    %c0_51 = arith.constant 0 : index
    %147 = vector.load %arg11[%c1, %c0_50, %c0_51] : memref<8x4x32xf32, #tpu.memory_space<vmem>>, vector<1x4x32xf32>
    %148 = vector.shape_cast %147 : vector<1x4x32xf32> to vector<4x32xf32>
    %149 = vector.shape_cast %146 : vector<4x32xf32> to vector<1x4x32xf32>
    tpu.vector_store %arg11[%c1, %c0_50, %c0_51], %149 {strides = array<i32>} : memref<8x4x32xf32, #tpu.memory_space<vmem>>, vector<1x4x32xf32>,
    %150 = vector.extract_strided_slice %23 {offsets = [8, 0], sizes = [4, 128], strides = [1, 1]} : vector<32x128xf32> to vector<4x128xf32>
    %cst_52 = arith.constant dense<0.000000e+00> : vector<4x128xf32>
    %151 = tpu.matmul %116, %16, %cst_52 {dimension_numbers = #tpu.dot_dimension_numbers<[1], [0], [0], [1], [0, 0, 1, 1], [], []>} : vector<4x32xf32>, vector<32x128xf32>, vector<4x128xf32> -> vector<4x128xf32>
    %152 = arith.addf %150, %151 : vector<4x128xf32>
    %153 = vector.extract_strided_slice %152 {offsets = [0, 0], sizes = [4, 32], strides = [1, 1]} : vector<4x128xf32> to vector<4x32xf32>
    %154 = arith.negf %153 : vector<4x32xf32>
    %155 = math.exp %154 : vector<4x32xf32>
    %cst_53 = arith.constant 1.000000e+00 : f32
    %156 = vector.broadcast %cst_53 : f32 to vector<4x32xf32>
    %157 = arith.addf %156, %155 : vector<4x32xf32>
    %158 = arith.divf %156, %157 : vector<4x32xf32>
    %159 = vector.extract_strided_slice %152 {offsets = [0, 32], sizes = [4, 32], strides = [1, 1]} : vector<4x128xf32> to vector<4x32xf32>
    %160 = arith.negf %159 : vector<4x32xf32>
    %161 = math.exp %160 : vector<4x32xf32>
    %cst_54 = arith.constant 1.000000e+00 : f32
    %162 = vector.broadcast %cst_54 : f32 to vector<4x32xf32>
    %163 = arith.addf %162, %161 : vector<4x32xf32>
    %164 = arith.divf %162, %163 : vector<4x32xf32>
    %165 = vector.extract_strided_slice %152 {offsets = [0, 64], sizes = [4, 32], strides = [1, 1]} : vector<4x128xf32> to vector<4x32xf32>
    %166 = math.tanh %165 : vector<4x32xf32>
    %167 = vector.extract_strided_slice %152 {offsets = [0, 96], sizes = [4, 32], strides = [1, 1]} : vector<4x128xf32> to vector<4x32xf32>
    %168 = arith.negf %167 : vector<4x32xf32>
    %169 = math.exp %168 : vector<4x32xf32>
    %cst_55 = arith.constant 1.000000e+00 : f32
    %170 = vector.broadcast %cst_55 : f32 to vector<4x32xf32>
    %171 = arith.addf %170, %169 : vector<4x32xf32>
    %172 = arith.divf %170, %171 : vector<4x32xf32>
    %173 = arith.mulf %164, %114 : vector<4x32xf32>
    %174 = arith.mulf %158, %166 : vector<4x32xf32>
    %175 = arith.addf %173, %174 : vector<4x32xf32>
    %176 = math.tanh %175 : vector<4x32xf32>
    %177 = arith.mulf %172, %176 : vector<4x32xf32>
    %cst_56 = arith.constant dense<0.000000e+00> : vector<4x128xf32>
    %178 = tpu.matmul %177, %18, %cst_56 {dimension_numbers = #tpu.dot_dimension_numbers<[1], [0], [0], [1], [0, 0, 1, 1], [], []>} : vector<4x32xf32>, vector<32x128xf32>, vector<4x128xf32> -> vector<4x128xf32>
    %cst_57 = arith.constant dense<0.000000e+00> : vector<4x128xf32>
    %179 = tpu.matmul %146, %19, %cst_57 {dimension_numbers = #tpu.dot_dimension_numbers<[1], [0], [0], [1], [0, 0, 1, 1], [], []>} : vector<4x32xf32>, vector<32x128xf32>, vector<4x128xf32> -> vector<4x128xf32>
    %180 = arith.addf %178, %179 : vector<4x128xf32>
    %181 = vector.broadcast %20 : vector<1x128xf32> to vector<4x128xf32>
    %182 = arith.addf %180, %181 : vector<4x128xf32>
    %183 = vector.extract_strided_slice %182 {offsets = [0, 0], sizes = [4, 32], strides = [1, 1]} : vector<4x128xf32> to vector<4x32xf32>
    %184 = arith.negf %183 : vector<4x32xf32>
    %185 = math.exp %184 : vector<4x32xf32>
    %cst_58 = arith.constant 1.000000e+00 : f32
    %186 = vector.broadcast %cst_58 : f32 to vector<4x32xf32>
    %187 = arith.addf %186, %185 : vector<4x32xf32>
    %188 = arith.divf %186, %187 : vector<4x32xf32>
    %189 = vector.extract_strided_slice %182 {offsets = [0, 32], sizes = [4, 32], strides = [1, 1]} : vector<4x128xf32> to vector<4x32xf32>
    %190 = arith.negf %189 : vector<4x32xf32>
    %191 = math.exp %190 : vector<4x32xf32>
    %cst_59 = arith.constant 1.000000e+00 : f32
    %192 = vector.broadcast %cst_59 : f32 to vector<4x32xf32>
    %193 = arith.addf %192, %191 : vector<4x32xf32>
    %194 = arith.divf %192, %193 : vector<4x32xf32>
    %195 = vector.extract_strided_slice %182 {offsets = [0, 64], sizes = [4, 32], strides = [1, 1]} : vector<4x128xf32> to vector<4x32xf32>
    %196 = math.tanh %195 : vector<4x32xf32>
    %197 = vector.extract_strided_slice %182 {offsets = [0, 96], sizes = [4, 32], strides = [1, 1]} : vector<4x128xf32> to vector<4x32xf32>
    %198 = arith.negf %197 : vector<4x32xf32>
    %199 = math.exp %198 : vector<4x32xf32>
    %cst_60 = arith.constant 1.000000e+00 : f32
    %200 = vector.broadcast %cst_60 : f32 to vector<4x32xf32>
    %201 = arith.addf %200, %199 : vector<4x32xf32>
    %202 = arith.divf %200, %201 : vector<4x32xf32>
    %203 = arith.mulf %194, %144 : vector<4x32xf32>
    %204 = arith.mulf %188, %196 : vector<4x32xf32>
    %205 = arith.addf %203, %204 : vector<4x32xf32>
    %206 = math.tanh %205 : vector<4x32xf32>
    %207 = arith.mulf %202, %206 : vector<4x32xf32>
    %c2 = arith.constant 2 : index
    %c0_61 = arith.constant 0 : index
    %c0_62 = arith.constant 0 : index
    %208 = vector.load %arg11[%c2, %c0_61, %c0_62] : memref<8x4x32xf32, #tpu.memory_space<vmem>>, vector<1x4x32xf32>
    %209 = vector.shape_cast %208 : vector<1x4x32xf32> to vector<4x32xf32>
    %210 = vector.shape_cast %207 : vector<4x32xf32> to vector<1x4x32xf32>
    tpu.vector_store %arg11[%c2, %c0_61, %c0_62], %210 {strides = array<i32>} : memref<8x4x32xf32, #tpu.memory_space<vmem>>, vector<1x4x32xf32>,
    %211 = vector.extract_strided_slice %23 {offsets = [12, 0], sizes = [4, 128], strides = [1, 1]} : vector<32x128xf32> to vector<4x128xf32>
    %cst_63 = arith.constant dense<0.000000e+00> : vector<4x128xf32>
    %212 = tpu.matmul %177, %16, %cst_63 {dimension_numbers = #tpu.dot_dimension_numbers<[1], [0], [0], [1], [0, 0, 1, 1], [], []>} : vector<4x32xf32>, vector<32x128xf32>, vector<4x128xf32> -> vector<4x128xf32>
    %213 = arith.addf %211, %212 : vector<4x128xf32>
    %214 = vector.extract_strided_slice %213 {offsets = [0, 0], sizes = [4, 32], strides = [1, 1]} : vector<4x128xf32> to vector<4x32xf32>
    %215 = arith.negf %214 : vector<4x32xf32>
    %216 = math.exp %215 : vector<4x32xf32>
    %cst_64 = arith.constant 1.000000e+00 : f32
    %217 = vector.broadcast %cst_64 : f32 to vector<4x32xf32>
    %218 = arith.addf %217, %216 : vector<4x32xf32>
    %219 = arith.divf %217, %218 : vector<4x32xf32>
    %220 = vector.extract_strided_slice %213 {offsets = [0, 32], sizes = [4, 32], strides = [1, 1]} : vector<4x128xf32> to vector<4x32xf32>
    %221 = arith.negf %220 : vector<4x32xf32>
    %222 = math.exp %221 : vector<4x32xf32>
    %cst_65 = arith.constant 1.000000e+00 : f32
    %223 = vector.broadcast %cst_65 : f32 to vector<4x32xf32>
    %224 = arith.addf %223, %222 : vector<4x32xf32>
    %225 = arith.divf %223, %224 : vector<4x32xf32>
    %226 = vector.extract_strided_slice %213 {offsets = [0, 64], sizes = [4, 32], strides = [1, 1]} : vector<4x128xf32> to vector<4x32xf32>
    %227 = math.tanh %226 : vector<4x32xf32>
    %228 = vector.extract_strided_slice %213 {offsets = [0, 96], sizes = [4, 32], strides = [1, 1]} : vector<4x128xf32> to vector<4x32xf32>
    %229 = arith.negf %228 : vector<4x32xf32>
    %230 = math.exp %229 : vector<4x32xf32>
    %cst_66 = arith.constant 1.000000e+00 : f32
    %231 = vector.broadcast %cst_66 : f32 to vector<4x32xf32>
    %232 = arith.addf %231, %230 : vector<4x32xf32>
    %233 = arith.divf %231, %232 : vector<4x32xf32>
    %234 = arith.mulf %225, %175 : vector<4x32xf32>
    %235 = arith.mulf %219, %227 : vector<4x32xf32>
    %236 = arith.addf %234, %235 : vector<4x32xf32>
    %237 = math.tanh %236 : vector<4x32xf32>
    %238 = arith.mulf %233, %237 : vector<4x32xf32>
    %cst_67 = arith.constant dense<0.000000e+00> : vector<4x128xf32>
    %239 = tpu.matmul %238, %18, %cst_67 {dimension_numbers = #tpu.dot_dimension_numbers<[1], [0], [0], [1], [0, 0, 1, 1], [], []>} : vector<4x32xf32>, vector<32x128xf32>, vector<4x128xf32> -> vector<4x128xf32>
    %cst_68 = arith.constant dense<0.000000e+00> : vector<4x128xf32>
    %240 = tpu.matmul %207, %19, %cst_68 {dimension_numbers = #tpu.dot_dimension_numbers<[1], [0], [0], [1], [0, 0, 1, 1], [], []>} : vector<4x32xf32>, vector<32x128xf32>, vector<4x128xf32> -> vector<4x128xf32>
    %241 = arith.addf %239, %240 : vector<4x128xf32>
    %242 = vector.broadcast %20 : vector<1x128xf32> to vector<4x128xf32>
    %243 = arith.addf %241, %242 : vector<4x128xf32>
    %244 = vector.extract_strided_slice %243 {offsets = [0, 0], sizes = [4, 32], strides = [1, 1]} : vector<4x128xf32> to vector<4x32xf32>
    %245 = arith.negf %244 : vector<4x32xf32>
    %246 = math.exp %245 : vector<4x32xf32>
    %cst_69 = arith.constant 1.000000e+00 : f32
    %247 = vector.broadcast %cst_69 : f32 to vector<4x32xf32>
    %248 = arith.addf %247, %246 : vector<4x32xf32>
    %249 = arith.divf %247, %248 : vector<4x32xf32>
    %250 = vector.extract_strided_slice %243 {offsets = [0, 32], sizes = [4, 32], strides = [1, 1]} : vector<4x128xf32> to vector<4x32xf32>
    %251 = arith.negf %250 : vector<4x32xf32>
    %252 = math.exp %251 : vector<4x32xf32>
    %cst_70 = arith.constant 1.000000e+00 : f32
    %253 = vector.broadcast %cst_70 : f32 to vector<4x32xf32>
    %254 = arith.addf %253, %252 : vector<4x32xf32>
    %255 = arith.divf %253, %254 : vector<4x32xf32>
    %256 = vector.extract_strided_slice %243 {offsets = [0, 64], sizes = [4, 32], strides = [1, 1]} : vector<4x128xf32> to vector<4x32xf32>
    %257 = math.tanh %256 : vector<4x32xf32>
    %258 = vector.extract_strided_slice %243 {offsets = [0, 96], sizes = [4, 32], strides = [1, 1]} : vector<4x128xf32> to vector<4x32xf32>
    %259 = arith.negf %258 : vector<4x32xf32>
    %260 = math.exp %259 : vector<4x32xf32>
    %cst_71 = arith.constant 1.000000e+00 : f32
    %261 = vector.broadcast %cst_71 : f32 to vector<4x32xf32>
    %262 = arith.addf %261, %260 : vector<4x32xf32>
    %263 = arith.divf %261, %262 : vector<4x32xf32>
    %264 = arith.mulf %255, %205 : vector<4x32xf32>
    %265 = arith.mulf %249, %257 : vector<4x32xf32>
    %266 = arith.addf %264, %265 : vector<4x32xf32>
    %267 = math.tanh %266 : vector<4x32xf32>
    %268 = arith.mulf %263, %267 : vector<4x32xf32>
    %c3 = arith.constant 3 : index
    %c0_72 = arith.constant 0 : index
    %c0_73 = arith.constant 0 : index
    %269 = vector.load %arg11[%c3, %c0_72, %c0_73] : memref<8x4x32xf32, #tpu.memory_space<vmem>>, vector<1x4x32xf32>
    %270 = vector.shape_cast %269 : vector<1x4x32xf32> to vector<4x32xf32>
    %271 = vector.shape_cast %268 : vector<4x32xf32> to vector<1x4x32xf32>
    tpu.vector_store %arg11[%c3, %c0_72, %c0_73], %271 {strides = array<i32>} : memref<8x4x32xf32, #tpu.memory_space<vmem>>, vector<1x4x32xf32>,
    %272 = vector.extract_strided_slice %23 {offsets = [16, 0], sizes = [4, 128], strides = [1, 1]} : vector<32x128xf32> to vector<4x128xf32>
    %cst_74 = arith.constant dense<0.000000e+00> : vector<4x128xf32>
    %273 = tpu.matmul %238, %16, %cst_74 {dimension_numbers = #tpu.dot_dimension_numbers<[1], [0], [0], [1], [0, 0, 1, 1], [], []>} : vector<4x32xf32>, vector<32x128xf32>, vector<4x128xf32> -> vector<4x128xf32>
    %274 = arith.addf %272, %273 : vector<4x128xf32>
    %275 = vector.extract_strided_slice %274 {offsets = [0, 0], sizes = [4, 32], strides = [1, 1]} : vector<4x128xf32> to vector<4x32xf32>
    %276 = arith.negf %275 : vector<4x32xf32>
    %277 = math.exp %276 : vector<4x32xf32>
    %cst_75 = arith.constant 1.000000e+00 : f32
    %278 = vector.broadcast %cst_75 : f32 to vector<4x32xf32>
    %279 = arith.addf %278, %277 : vector<4x32xf32>
    %280 = arith.divf %278, %279 : vector<4x32xf32>
    %281 = vector.extract_strided_slice %274 {offsets = [0, 32], sizes = [4, 32], strides = [1, 1]} : vector<4x128xf32> to vector<4x32xf32>
    %282 = arith.negf %281 : vector<4x32xf32>
    %283 = math.exp %282 : vector<4x32xf32>
    %cst_76 = arith.constant 1.000000e+00 : f32
    %284 = vector.broadcast %cst_76 : f32 to vector<4x32xf32>
    %285 = arith.addf %284, %283 : vector<4x32xf32>
    %286 = arith.divf %284, %285 : vector<4x32xf32>
    %287 = vector.extract_strided_slice %274 {offsets = [0, 64], sizes = [4, 32], strides = [1, 1]} : vector<4x128xf32> to vector<4x32xf32>
    %288 = math.tanh %287 : vector<4x32xf32>
    %289 = vector.extract_strided_slice %274 {offsets = [0, 96], sizes = [4, 32], strides = [1, 1]} : vector<4x128xf32> to vector<4x32xf32>
    %290 = arith.negf %289 : vector<4x32xf32>
    %291 = math.exp %290 : vector<4x32xf32>
    %cst_77 = arith.constant 1.000000e+00 : f32
    %292 = vector.broadcast %cst_77 : f32 to vector<4x32xf32>
    %293 = arith.addf %292, %291 : vector<4x32xf32>
    %294 = arith.divf %292, %293 : vector<4x32xf32>
    %295 = arith.mulf %286, %236 : vector<4x32xf32>
    %296 = arith.mulf %280, %288 : vector<4x32xf32>
    %297 = arith.addf %295, %296 : vector<4x32xf32>
    %298 = math.tanh %297 : vector<4x32xf32>
    %299 = arith.mulf %294, %298 : vector<4x32xf32>
    %cst_78 = arith.constant dense<0.000000e+00> : vector<4x128xf32>
    %300 = tpu.matmul %299, %18, %cst_78 {dimension_numbers = #tpu.dot_dimension_numbers<[1], [0], [0], [1], [0, 0, 1, 1], [], []>} : vector<4x32xf32>, vector<32x128xf32>, vector<4x128xf32> -> vector<4x128xf32>
    %cst_79 = arith.constant dense<0.000000e+00> : vector<4x128xf32>
    %301 = tpu.matmul %268, %19, %cst_79 {dimension_numbers = #tpu.dot_dimension_numbers<[1], [0], [0], [1], [0, 0, 1, 1], [], []>} : vector<4x32xf32>, vector<32x128xf32>, vector<4x128xf32> -> vector<4x128xf32>
    %302 = arith.addf %300, %301 : vector<4x128xf32>
    %303 = vector.broadcast %20 : vector<1x128xf32> to vector<4x128xf32>
    %304 = arith.addf %302, %303 : vector<4x128xf32>
    %305 = vector.extract_strided_slice %304 {offsets = [0, 0], sizes = [4, 32], strides = [1, 1]} : vector<4x128xf32> to vector<4x32xf32>
    %306 = arith.negf %305 : vector<4x32xf32>
    %307 = math.exp %306 : vector<4x32xf32>
    %cst_80 = arith.constant 1.000000e+00 : f32
    %308 = vector.broadcast %cst_80 : f32 to vector<4x32xf32>
    %309 = arith.addf %308, %307 : vector<4x32xf32>
    %310 = arith.divf %308, %309 : vector<4x32xf32>
    %311 = vector.extract_strided_slice %304 {offsets = [0, 32], sizes = [4, 32], strides = [1, 1]} : vector<4x128xf32> to vector<4x32xf32>
    %312 = arith.negf %311 : vector<4x32xf32>
    %313 = math.exp %312 : vector<4x32xf32>
    %cst_81 = arith.constant 1.000000e+00 : f32
    %314 = vector.broadcast %cst_81 : f32 to vector<4x32xf32>
    %315 = arith.addf %314, %313 : vector<4x32xf32>
    %316 = arith.divf %314, %315 : vector<4x32xf32>
    %317 = vector.extract_strided_slice %304 {offsets = [0, 64], sizes = [4, 32], strides = [1, 1]} : vector<4x128xf32> to vector<4x32xf32>
    %318 = math.tanh %317 : vector<4x32xf32>
    %319 = vector.extract_strided_slice %304 {offsets = [0, 96], sizes = [4, 32], strides = [1, 1]} : vector<4x128xf32> to vector<4x32xf32>
    %320 = arith.negf %319 : vector<4x32xf32>
    %321 = math.exp %320 : vector<4x32xf32>
    %cst_82 = arith.constant 1.000000e+00 : f32
    %322 = vector.broadcast %cst_82 : f32 to vector<4x32xf32>
    %323 = arith.addf %322, %321 : vector<4x32xf32>
    %324 = arith.divf %322, %323 : vector<4x32xf32>
    %325 = arith.mulf %316, %266 : vector<4x32xf32>
    %326 = arith.mulf %310, %318 : vector<4x32xf32>
    %327 = arith.addf %325, %326 : vector<4x32xf32>
    %328 = math.tanh %327 : vector<4x32xf32>
    %329 = arith.mulf %324, %328 : vector<4x32xf32>
    %c4 = arith.constant 4 : index
    %c0_83 = arith.constant 0 : index
    %c0_84 = arith.constant 0 : index
    %330 = vector.load %arg11[%c4, %c0_83, %c0_84] : memref<8x4x32xf32, #tpu.memory_space<vmem>>, vector<1x4x32xf32>
    %331 = vector.shape_cast %330 : vector<1x4x32xf32> to vector<4x32xf32>
    %332 = vector.shape_cast %329 : vector<4x32xf32> to vector<1x4x32xf32>
    tpu.vector_store %arg11[%c4, %c0_83, %c0_84], %332 {strides = array<i32>} : memref<8x4x32xf32, #tpu.memory_space<vmem>>, vector<1x4x32xf32>,
    %333 = vector.extract_strided_slice %23 {offsets = [20, 0], sizes = [4, 128], strides = [1, 1]} : vector<32x128xf32> to vector<4x128xf32>
    %cst_85 = arith.constant dense<0.000000e+00> : vector<4x128xf32>
    %334 = tpu.matmul %299, %16, %cst_85 {dimension_numbers = #tpu.dot_dimension_numbers<[1], [0], [0], [1], [0, 0, 1, 1], [], []>} : vector<4x32xf32>, vector<32x128xf32>, vector<4x128xf32> -> vector<4x128xf32>
    %335 = arith.addf %333, %334 : vector<4x128xf32>
    %336 = vector.extract_strided_slice %335 {offsets = [0, 0], sizes = [4, 32], strides = [1, 1]} : vector<4x128xf32> to vector<4x32xf32>
    %337 = arith.negf %336 : vector<4x32xf32>
    %338 = math.exp %337 : vector<4x32xf32>
    %cst_86 = arith.constant 1.000000e+00 : f32
    %339 = vector.broadcast %cst_86 : f32 to vector<4x32xf32>
    %340 = arith.addf %339, %338 : vector<4x32xf32>
    %341 = arith.divf %339, %340 : vector<4x32xf32>
    %342 = vector.extract_strided_slice %335 {offsets = [0, 32], sizes = [4, 32], strides = [1, 1]} : vector<4x128xf32> to vector<4x32xf32>
    %343 = arith.negf %342 : vector<4x32xf32>
    %344 = math.exp %343 : vector<4x32xf32>
    %cst_87 = arith.constant 1.000000e+00 : f32
    %345 = vector.broadcast %cst_87 : f32 to vector<4x32xf32>
    %346 = arith.addf %345, %344 : vector<4x32xf32>
    %347 = arith.divf %345, %346 : vector<4x32xf32>
    %348 = vector.extract_strided_slice %335 {offsets = [0, 64], sizes = [4, 32], strides = [1, 1]} : vector<4x128xf32> to vector<4x32xf32>
    %349 = math.tanh %348 : vector<4x32xf32>
    %350 = vector.extract_strided_slice %335 {offsets = [0, 96], sizes = [4, 32], strides = [1, 1]} : vector<4x128xf32> to vector<4x32xf32>
    %351 = arith.negf %350 : vector<4x32xf32>
    %352 = math.exp %351 : vector<4x32xf32>
    %cst_88 = arith.constant 1.000000e+00 : f32
    %353 = vector.broadcast %cst_88 : f32 to vector<4x32xf32>
    %354 = arith.addf %353, %352 : vector<4x32xf32>
    %355 = arith.divf %353, %354 : vector<4x32xf32>
    %356 = arith.mulf %347, %297 : vector<4x32xf32>
    %357 = arith.mulf %341, %349 : vector<4x32xf32>
    %358 = arith.addf %356, %357 : vector<4x32xf32>
    %359 = math.tanh %358 : vector<4x32xf32>
    %360 = arith.mulf %355, %359 : vector<4x32xf32>
    %cst_89 = arith.constant dense<0.000000e+00> : vector<4x128xf32>
    %361 = tpu.matmul %360, %18, %cst_89 {dimension_numbers = #tpu.dot_dimension_numbers<[1], [0], [0], [1], [0, 0, 1, 1], [], []>} : vector<4x32xf32>, vector<32x128xf32>, vector<4x128xf32> -> vector<4x128xf32>
    %cst_90 = arith.constant dense<0.000000e+00> : vector<4x128xf32>
    %362 = tpu.matmul %329, %19, %cst_90 {dimension_numbers = #tpu.dot_dimension_numbers<[1], [0], [0], [1], [0, 0, 1, 1], [], []>} : vector<4x32xf32>, vector<32x128xf32>, vector<4x128xf32> -> vector<4x128xf32>
    %363 = arith.addf %361, %362 : vector<4x128xf32>
    %364 = vector.broadcast %20 : vector<1x128xf32> to vector<4x128xf32>
    %365 = arith.addf %363, %364 : vector<4x128xf32>
    %366 = vector.extract_strided_slice %365 {offsets = [0, 0], sizes = [4, 32], strides = [1, 1]} : vector<4x128xf32> to vector<4x32xf32>
    %367 = arith.negf %366 : vector<4x32xf32>
    %368 = math.exp %367 : vector<4x32xf32>
    %cst_91 = arith.constant 1.000000e+00 : f32
    %369 = vector.broadcast %cst_91 : f32 to vector<4x32xf32>
    %370 = arith.addf %369, %368 : vector<4x32xf32>
    %371 = arith.divf %369, %370 : vector<4x32xf32>
    %372 = vector.extract_strided_slice %365 {offsets = [0, 32], sizes = [4, 32], strides = [1, 1]} : vector<4x128xf32> to vector<4x32xf32>
    %373 = arith.negf %372 : vector<4x32xf32>
    %374 = math.exp %373 : vector<4x32xf32>
    %cst_92 = arith.constant 1.000000e+00 : f32
    %375 = vector.broadcast %cst_92 : f32 to vector<4x32xf32>
    %376 = arith.addf %375, %374 : vector<4x32xf32>
    %377 = arith.divf %375, %376 : vector<4x32xf32>
    %378 = vector.extract_strided_slice %365 {offsets = [0, 64], sizes = [4, 32], strides = [1, 1]} : vector<4x128xf32> to vector<4x32xf32>
    %379 = math.tanh %378 : vector<4x32xf32>
    %380 = vector.extract_strided_slice %365 {offsets = [0, 96], sizes = [4, 32], strides = [1, 1]} : vector<4x128xf32> to vector<4x32xf32>
    %381 = arith.negf %380 : vector<4x32xf32>
    %382 = math.exp %381 : vector<4x32xf32>
    %cst_93 = arith.constant 1.000000e+00 : f32
    %383 = vector.broadcast %cst_93 : f32 to vector<4x32xf32>
    %384 = arith.addf %383, %382 : vector<4x32xf32>
    %385 = arith.divf %383, %384 : vector<4x32xf32>
    %386 = arith.mulf %377, %327 : vector<4x32xf32>
    %387 = arith.mulf %371, %379 : vector<4x32xf32>
    %388 = arith.addf %386, %387 : vector<4x32xf32>
    %389 = math.tanh %388 : vector<4x32xf32>
    %390 = arith.mulf %385, %389 : vector<4x32xf32>
    %c5 = arith.constant 5 : index
    %c0_94 = arith.constant 0 : index
    %c0_95 = arith.constant 0 : index
    %391 = vector.load %arg11[%c5, %c0_94, %c0_95] : memref<8x4x32xf32, #tpu.memory_space<vmem>>, vector<1x4x32xf32>
    %392 = vector.shape_cast %391 : vector<1x4x32xf32> to vector<4x32xf32>
    %393 = vector.shape_cast %390 : vector<4x32xf32> to vector<1x4x32xf32>
    tpu.vector_store %arg11[%c5, %c0_94, %c0_95], %393 {strides = array<i32>} : memref<8x4x32xf32, #tpu.memory_space<vmem>>, vector<1x4x32xf32>,
    %394 = vector.extract_strided_slice %23 {offsets = [24, 0], sizes = [4, 128], strides = [1, 1]} : vector<32x128xf32> to vector<4x128xf32>
    %cst_96 = arith.constant dense<0.000000e+00> : vector<4x128xf32>
    %395 = tpu.matmul %360, %16, %cst_96 {dimension_numbers = #tpu.dot_dimension_numbers<[1], [0], [0], [1], [0, 0, 1, 1], [], []>} : vector<4x32xf32>, vector<32x128xf32>, vector<4x128xf32> -> vector<4x128xf32>
    %396 = arith.addf %394, %395 : vector<4x128xf32>
    %397 = vector.extract_strided_slice %396 {offsets = [0, 0], sizes = [4, 32], strides = [1, 1]} : vector<4x128xf32> to vector<4x32xf32>
    %398 = arith.negf %397 : vector<4x32xf32>
    %399 = math.exp %398 : vector<4x32xf32>
    %cst_97 = arith.constant 1.000000e+00 : f32
    %400 = vector.broadcast %cst_97 : f32 to vector<4x32xf32>
    %401 = arith.addf %400, %399 : vector<4x32xf32>
    %402 = arith.divf %400, %401 : vector<4x32xf32>
    %403 = vector.extract_strided_slice %396 {offsets = [0, 32], sizes = [4, 32], strides = [1, 1]} : vector<4x128xf32> to vector<4x32xf32>
    %404 = arith.negf %403 : vector<4x32xf32>
    %405 = math.exp %404 : vector<4x32xf32>
    %cst_98 = arith.constant 1.000000e+00 : f32
    %406 = vector.broadcast %cst_98 : f32 to vector<4x32xf32>
    %407 = arith.addf %406, %405 : vector<4x32xf32>
    %408 = arith.divf %406, %407 : vector<4x32xf32>
    %409 = vector.extract_strided_slice %396 {offsets = [0, 64], sizes = [4, 32], strides = [1, 1]} : vector<4x128xf32> to vector<4x32xf32>
    %410 = math.tanh %409 : vector<4x32xf32>
    %411 = vector.extract_strided_slice %396 {offsets = [0, 96], sizes = [4, 32], strides = [1, 1]} : vector<4x128xf32> to vector<4x32xf32>
    %412 = arith.negf %411 : vector<4x32xf32>
    %413 = math.exp %412 : vector<4x32xf32>
    %cst_99 = arith.constant 1.000000e+00 : f32
    %414 = vector.broadcast %cst_99 : f32 to vector<4x32xf32>
    %415 = arith.addf %414, %413 : vector<4x32xf32>
    %416 = arith.divf %414, %415 : vector<4x32xf32>
    %417 = arith.mulf %408, %358 : vector<4x32xf32>
    %418 = arith.mulf %402, %410 : vector<4x32xf32>
    %419 = arith.addf %417, %418 : vector<4x32xf32>
    %420 = math.tanh %419 : vector<4x32xf32>
    %421 = arith.mulf %416, %420 : vector<4x32xf32>
    %cst_100 = arith.constant dense<0.000000e+00> : vector<4x128xf32>
    %422 = tpu.matmul %421, %18, %cst_100 {dimension_numbers = #tpu.dot_dimension_numbers<[1], [0], [0], [1], [0, 0, 1, 1], [], []>} : vector<4x32xf32>, vector<32x128xf32>, vector<4x128xf32> -> vector<4x128xf32>
    %cst_101 = arith.constant dense<0.000000e+00> : vector<4x128xf32>
    %423 = tpu.matmul %390, %19, %cst_101 {dimension_numbers = #tpu.dot_dimension_numbers<[1], [0], [0], [1], [0, 0, 1, 1], [], []>} : vector<4x32xf32>, vector<32x128xf32>, vector<4x128xf32> -> vector<4x128xf32>
    %424 = arith.addf %422, %423 : vector<4x128xf32>
    %425 = vector.broadcast %20 : vector<1x128xf32> to vector<4x128xf32>
    %426 = arith.addf %424, %425 : vector<4x128xf32>
    %427 = vector.extract_strided_slice %426 {offsets = [0, 0], sizes = [4, 32], strides = [1, 1]} : vector<4x128xf32> to vector<4x32xf32>
    %428 = arith.negf %427 : vector<4x32xf32>
    %429 = math.exp %428 : vector<4x32xf32>
    %cst_102 = arith.constant 1.000000e+00 : f32
    %430 = vector.broadcast %cst_102 : f32 to vector<4x32xf32>
    %431 = arith.addf %430, %429 : vector<4x32xf32>
    %432 = arith.divf %430, %431 : vector<4x32xf32>
    %433 = vector.extract_strided_slice %426 {offsets = [0, 32], sizes = [4, 32], strides = [1, 1]} : vector<4x128xf32> to vector<4x32xf32>
    %434 = arith.negf %433 : vector<4x32xf32>
    %435 = math.exp %434 : vector<4x32xf32>
    %cst_103 = arith.constant 1.000000e+00 : f32
    %436 = vector.broadcast %cst_103 : f32 to vector<4x32xf32>
    %437 = arith.addf %436, %435 : vector<4x32xf32>
    %438 = arith.divf %436, %437 : vector<4x32xf32>
    %439 = vector.extract_strided_slice %426 {offsets = [0, 64], sizes = [4, 32], strides = [1, 1]} : vector<4x128xf32> to vector<4x32xf32>
    %440 = math.tanh %439 : vector<4x32xf32>
    %441 = vector.extract_strided_slice %426 {offsets = [0, 96], sizes = [4, 32], strides = [1, 1]} : vector<4x128xf32> to vector<4x32xf32>
    %442 = arith.negf %441 : vector<4x32xf32>
    %443 = math.exp %442 : vector<4x32xf32>
    %cst_104 = arith.constant 1.000000e+00 : f32
    %444 = vector.broadcast %cst_104 : f32 to vector<4x32xf32>
    %445 = arith.addf %444, %443 : vector<4x32xf32>
    %446 = arith.divf %444, %445 : vector<4x32xf32>
    %447 = arith.mulf %438, %388 : vector<4x32xf32>
    %448 = arith.mulf %432, %440 : vector<4x32xf32>
    %449 = arith.addf %447, %448 : vector<4x32xf32>
    %450 = math.tanh %449 : vector<4x32xf32>
    %451 = arith.mulf %446, %450 : vector<4x32xf32>
    %c6 = arith.constant 6 : index
    %c0_105 = arith.constant 0 : index
    %c0_106 = arith.constant 0 : index
    %452 = vector.load %arg11[%c6, %c0_105, %c0_106] : memref<8x4x32xf32, #tpu.memory_space<vmem>>, vector<1x4x32xf32>
    %453 = vector.shape_cast %452 : vector<1x4x32xf32> to vector<4x32xf32>
    %454 = vector.shape_cast %451 : vector<4x32xf32> to vector<1x4x32xf32>
    tpu.vector_store %arg11[%c6, %c0_105, %c0_106], %454 {strides = array<i32>} : memref<8x4x32xf32, #tpu.memory_space<vmem>>, vector<1x4x32xf32>,
    %455 = vector.extract_strided_slice %23 {offsets = [28, 0], sizes = [4, 128], strides = [1, 1]} : vector<32x128xf32> to vector<4x128xf32>
    %cst_107 = arith.constant dense<0.000000e+00> : vector<4x128xf32>
    %456 = tpu.matmul %421, %16, %cst_107 {dimension_numbers = #tpu.dot_dimension_numbers<[1], [0], [0], [1], [0, 0, 1, 1], [], []>} : vector<4x32xf32>, vector<32x128xf32>, vector<4x128xf32> -> vector<4x128xf32>
    %457 = arith.addf %455, %456 : vector<4x128xf32>
    %458 = vector.extract_strided_slice %457 {offsets = [0, 0], sizes = [4, 32], strides = [1, 1]} : vector<4x128xf32> to vector<4x32xf32>
    %459 = arith.negf %458 : vector<4x32xf32>
    %460 = math.exp %459 : vector<4x32xf32>
    %cst_108 = arith.constant 1.000000e+00 : f32
    %461 = vector.broadcast %cst_108 : f32 to vector<4x32xf32>
    %462 = arith.addf %461, %460 : vector<4x32xf32>
    %463 = arith.divf %461, %462 : vector<4x32xf32>
    %464 = vector.extract_strided_slice %457 {offsets = [0, 32], sizes = [4, 32], strides = [1, 1]} : vector<4x128xf32> to vector<4x32xf32>
    %465 = arith.negf %464 : vector<4x32xf32>
    %466 = math.exp %465 : vector<4x32xf32>
    %cst_109 = arith.constant 1.000000e+00 : f32
    %467 = vector.broadcast %cst_109 : f32 to vector<4x32xf32>
    %468 = arith.addf %467, %466 : vector<4x32xf32>
    %469 = arith.divf %467, %468 : vector<4x32xf32>
    %470 = vector.extract_strided_slice %457 {offsets = [0, 64], sizes = [4, 32], strides = [1, 1]} : vector<4x128xf32> to vector<4x32xf32>
    %471 = math.tanh %470 : vector<4x32xf32>
    %472 = vector.extract_strided_slice %457 {offsets = [0, 96], sizes = [4, 32], strides = [1, 1]} : vector<4x128xf32> to vector<4x32xf32>
    %473 = arith.negf %472 : vector<4x32xf32>
    %474 = math.exp %473 : vector<4x32xf32>
    %cst_110 = arith.constant 1.000000e+00 : f32
    %475 = vector.broadcast %cst_110 : f32 to vector<4x32xf32>
    %476 = arith.addf %475, %474 : vector<4x32xf32>
    %477 = arith.divf %475, %476 : vector<4x32xf32>
    %478 = arith.mulf %469, %419 : vector<4x32xf32>
    %479 = arith.mulf %463, %471 : vector<4x32xf32>
    %480 = arith.addf %478, %479 : vector<4x32xf32>
    %481 = math.tanh %480 : vector<4x32xf32>
    %482 = arith.mulf %477, %481 : vector<4x32xf32>
    %cst_111 = arith.constant dense<0.000000e+00> : vector<4x128xf32>
    %483 = tpu.matmul %482, %18, %cst_111 {dimension_numbers = #tpu.dot_dimension_numbers<[1], [0], [0], [1], [0, 0, 1, 1], [], []>} : vector<4x32xf32>, vector<32x128xf32>, vector<4x128xf32> -> vector<4x128xf32>
    %cst_112 = arith.constant dense<0.000000e+00> : vector<4x128xf32>
    %484 = tpu.matmul %451, %19, %cst_112 {dimension_numbers = #tpu.dot_dimension_numbers<[1], [0], [0], [1], [0, 0, 1, 1], [], []>} : vector<4x32xf32>, vector<32x128xf32>, vector<4x128xf32> -> vector<4x128xf32>
    %485 = arith.addf %483, %484 : vector<4x128xf32>
    %486 = vector.broadcast %20 : vector<1x128xf32> to vector<4x128xf32>
    %487 = arith.addf %485, %486 : vector<4x128xf32>
    %488 = vector.extract_strided_slice %487 {offsets = [0, 0], sizes = [4, 32], strides = [1, 1]} : vector<4x128xf32> to vector<4x32xf32>
    %489 = arith.negf %488 : vector<4x32xf32>
    %490 = math.exp %489 : vector<4x32xf32>
    %cst_113 = arith.constant 1.000000e+00 : f32
    %491 = vector.broadcast %cst_113 : f32 to vector<4x32xf32>
    %492 = arith.addf %491, %490 : vector<4x32xf32>
    %493 = arith.divf %491, %492 : vector<4x32xf32>
    %494 = vector.extract_strided_slice %487 {offsets = [0, 32], sizes = [4, 32], strides = [1, 1]} : vector<4x128xf32> to vector<4x32xf32>
    %495 = arith.negf %494 : vector<4x32xf32>
    %496 = math.exp %495 : vector<4x32xf32>
    %cst_114 = arith.constant 1.000000e+00 : f32
    %497 = vector.broadcast %cst_114 : f32 to vector<4x32xf32>
    %498 = arith.addf %497, %496 : vector<4x32xf32>
    %499 = arith.divf %497, %498 : vector<4x32xf32>
    %500 = vector.extract_strided_slice %487 {offsets = [0, 64], sizes = [4, 32], strides = [1, 1]} : vector<4x128xf32> to vector<4x32xf32>
    %501 = math.tanh %500 : vector<4x32xf32>
    %502 = vector.extract_strided_slice %487 {offsets = [0, 96], sizes = [4, 32], strides = [1, 1]} : vector<4x128xf32> to vector<4x32xf32>
    %503 = arith.negf %502 : vector<4x32xf32>
    %504 = math.exp %503 : vector<4x32xf32>
    %cst_115 = arith.constant 1.000000e+00 : f32
    %505 = vector.broadcast %cst_115 : f32 to vector<4x32xf32>
    %506 = arith.addf %505, %504 : vector<4x32xf32>
    %507 = arith.divf %505, %506 : vector<4x32xf32>
    %508 = arith.mulf %499, %449 : vector<4x32xf32>
    %509 = arith.mulf %493, %501 : vector<4x32xf32>
    %510 = arith.addf %508, %509 : vector<4x32xf32>
    %511 = math.tanh %510 : vector<4x32xf32>
    %512 = arith.mulf %507, %511 : vector<4x32xf32>
    %c7 = arith.constant 7 : index
    %c0_116 = arith.constant 0 : index
    %c0_117 = arith.constant 0 : index
    %513 = vector.load %arg11[%c7, %c0_116, %c0_117] : memref<8x4x32xf32, #tpu.memory_space<vmem>>, vector<1x4x32xf32>
    %514 = vector.shape_cast %513 : vector<1x4x32xf32> to vector<4x32xf32>
    %515 = vector.shape_cast %512 : vector<4x32xf32> to vector<1x4x32xf32>
    tpu.vector_store %arg11[%c7, %c0_116, %c0_117], %515 {strides = array<i32>} : memref<8x4x32xf32, #tpu.memory_space<vmem>>, vector<1x4x32xf32>,
    %c0_118 = arith.constant 0 : index
    %c0_119 = arith.constant 0 : index
    %c0_120 = arith.constant 0 : index
    %516 = vector.load %arg12[%c0_118, %c0_119, %c0_120] : memref<2x4x32xf32, #tpu.memory_space<vmem>>, vector<1x4x32xf32>
    %517 = vector.shape_cast %516 : vector<1x4x32xf32> to vector<4x32xf32>
    %518 = vector.shape_cast %482 : vector<4x32xf32> to vector<1x4x32xf32>
    tpu.vector_store %arg12[%c0_118, %c0_119, %c0_120], %518 {strides = array<i32>} : memref<2x4x32xf32, #tpu.memory_space<vmem>>, vector<1x4x32xf32>,
    %c0_121 = arith.constant 0 : index
    %c0_122 = arith.constant 0 : index
    %c0_123 = arith.constant 0 : index
    %519 = vector.load %arg13[%c0_121, %c0_122, %c0_123] : memref<2x4x32xf32, #tpu.memory_space<vmem>>, vector<1x4x32xf32>
    %520 = vector.shape_cast %519 : vector<1x4x32xf32> to vector<4x32xf32>
    %521 = vector.shape_cast %480 : vector<4x32xf32> to vector<1x4x32xf32>
    tpu.vector_store %arg13[%c0_121, %c0_122, %c0_123], %521 {strides = array<i32>} : memref<2x4x32xf32, #tpu.memory_space<vmem>>, vector<1x4x32xf32>,
    %c1_124 = arith.constant 1 : index
    %c0_125 = arith.constant 0 : index
    %c0_126 = arith.constant 0 : index
    %522 = vector.load %arg12[%c1_124, %c0_125, %c0_126] : memref<2x4x32xf32, #tpu.memory_space<vmem>>, vector<1x4x32xf32>
    %523 = vector.shape_cast %522 : vector<1x4x32xf32> to vector<4x32xf32>
    %524 = vector.shape_cast %512 : vector<4x32xf32> to vector<1x4x32xf32>
    tpu.vector_store %arg12[%c1_124, %c0_125, %c0_126], %524 {strides = array<i32>} : memref<2x4x32xf32, #tpu.memory_space<vmem>>, vector<1x4x32xf32>,
    %c1_127 = arith.constant 1 : index
    %c0_128 = arith.constant 0 : index
    %c0_129 = arith.constant 0 : index
    %525 = vector.load %arg13[%c1_127, %c0_128, %c0_129] : memref<2x4x32xf32, #tpu.memory_space<vmem>>, vector<1x4x32xf32>
    %526 = vector.shape_cast %525 : vector<1x4x32xf32> to vector<4x32xf32>
    %527 = vector.shape_cast %510 : vector<4x32xf32> to vector<1x4x32xf32>
    tpu.vector_store %arg13[%c1_127, %c0_128, %c0_129], %527 {strides = array<i32>} : memref<2x4x32xf32, #tpu.memory_space<vmem>>, vector<1x4x32xf32>,
    return
  }
}

module attributes {stable_mosaic.version = 11 : i64} {
  func.func @_decoder_kernel(%arg0: i32, %arg1: memref<4x8x32xf32, #tpu.memory_space<vmem>>, %arg2: memref<4x8xf32, #tpu.memory_space<vmem>>, %arg3: memref<2x4x32xf32, #tpu.memory_space<vmem>>, %arg4: memref<2x4x32xf32, #tpu.memory_space<vmem>>, %arg5: memref<1x8x32xf32, #tpu.memory_space<vmem>>, %arg6: memref<1x1x32xf32, #tpu.memory_space<vmem>>, %arg7: memref<1x32x8xf32, #tpu.memory_space<vmem>>, %arg8: memref<1x32x8xf32, #tpu.memory_space<vmem>>, %arg9: memref<1x1x8xf32, #tpu.memory_space<vmem>>, %arg10: memref<1x32x8xf32, #tpu.memory_space<vmem>>, %arg11: memref<1x32x8xf32, #tpu.memory_space<vmem>>, %arg12: memref<1x1x8xf32, #tpu.memory_space<vmem>>, %arg13: memref<1x8x128xf32, #tpu.memory_space<vmem>>, %arg14: memref<1x32x128xf32, #tpu.memory_space<vmem>>, %arg15: memref<1x1x128xf32, #tpu.memory_space<vmem>>, %arg16: memref<1x32x128xf32, #tpu.memory_space<vmem>>, %arg17: memref<1x32x128xf32, #tpu.memory_space<vmem>>, %arg18: memref<1x1x128xf32, #tpu.memory_space<vmem>>, %arg19: memref<1x32x32xf32, #tpu.memory_space<vmem>>, %arg20: memref<1x1x32xf32, #tpu.memory_space<vmem>>, %arg21: memref<1x32x32xf32, #tpu.memory_space<vmem>>, %arg22: memref<1x1x32xf32, #tpu.memory_space<vmem>>, %arg23: memref<1x32x32xf32, #tpu.memory_space<vmem>>, %arg24: memref<1x1x32xf32, #tpu.memory_space<vmem>>, %arg25: memref<1x32x8xf32, #tpu.memory_space<vmem>>, %arg26: memref<1x1x8xf32, #tpu.memory_space<vmem>>, %arg27: memref<1x5x4x8xf32, #tpu.memory_space<vmem>>) attributes {dimension_semantics = [#tpu.dimension_semantics<parallel>], iteration_bounds = array<i64: 2>, scalar_prefetch = 0 : i64, scratch_operands = 0 : i64, tpu.core_type = #tpu.core_type<tc>, window_params = [{pipeline_mode = #tpu.pipeline_mode<synchronous>, transform_indices = @transform_0, window_bounds = array<i64: 4, 8, 32>}, {pipeline_mode = #tpu.pipeline_mode<synchronous>, transform_indices = @transform_1, window_bounds = array<i64: 4, 8>}, {pipeline_mode = #tpu.pipeline_mode<synchronous>, transform_indices = @transform_2, window_bounds = array<i64: 2, 4, 32>}, {pipeline_mode = #tpu.pipeline_mode<synchronous>, transform_indices = @transform_3, window_bounds = array<i64: 2, 4, 32>}, {transform_indices = @transform_4, window_bounds = array<i64: 1, 8, 32>}, {transform_indices = @transform_5, window_bounds = array<i64: 1, 1, 32>}, {transform_indices = @transform_6, window_bounds = array<i64: 1, 32, 8>}, {transform_indices = @transform_7, window_bounds = array<i64: 1, 32, 8>}, {transform_indices = @transform_8, window_bounds = array<i64: 1, 1, 8>}, {transform_indices = @transform_9, window_bounds = array<i64: 1, 32, 8>}, {transform_indices = @transform_10, window_bounds = array<i64: 1, 32, 8>}, {transform_indices = @transform_11, window_bounds = array<i64: 1, 1, 8>}, {transform_indices = @transform_12, window_bounds = array<i64: 1, 8, 128>}, {transform_indices = @transform_13, window_bounds = array<i64: 1, 32, 128>}, {transform_indices = @transform_14, window_bounds = array<i64: 1, 1, 128>}, {transform_indices = @transform_15, window_bounds = array<i64: 1, 32, 128>}, {transform_indices = @transform_16, window_bounds = array<i64: 1, 32, 128>}, {transform_indices = @transform_17, window_bounds = array<i64: 1, 1, 128>}, {transform_indices = @transform_18, window_bounds = array<i64: 1, 32, 32>}, {transform_indices = @transform_19, window_bounds = array<i64: 1, 1, 32>}, {transform_indices = @transform_20, window_bounds = array<i64: 1, 32, 32>}, {transform_indices = @transform_21, window_bounds = array<i64: 1, 1, 32>}, {transform_indices = @transform_22, window_bounds = array<i64: 1, 32, 32>}, {transform_indices = @transform_23, window_bounds = array<i64: 1, 1, 32>}, {transform_indices = @transform_24, window_bounds = array<i64: 1, 32, 8>}, {transform_indices = @transform_25, window_bounds = array<i64: 1, 1, 8>}, {transform_indices = @transform_26, window_bounds = array<i64: 1, 5, 4, 8>}]} {
    %c0 = arith.constant 0 : index
    %c0_0 = arith.constant 0 : index
    %c0_1 = arith.constant 0 : index
    %0 = vector.load %arg5[%c0, %c0_0, %c0_1] : memref<1x8x32xf32, #tpu.memory_space<vmem>>, vector<1x8x32xf32>
    %1 = vector.shape_cast %0 : vector<1x8x32xf32> to vector<8x32xf32>
    %c0_2 = arith.constant 0 : index
    %c0_3 = arith.constant 0 : index
    %c0_4 = arith.constant 0 : index
    %2 = vector.load %arg6[%c0_2, %c0_3, %c0_4] : memref<1x1x32xf32, #tpu.memory_space<vmem>>, vector<1x1x32xf32>
    %3 = vector.shape_cast %2 : vector<1x1x32xf32> to vector<1x32xf32>
    %c0_5 = arith.constant 0 : index
    %c0_6 = arith.constant 0 : index
    %c0_7 = arith.constant 0 : index
    %4 = vector.load %arg7[%c0_5, %c0_6, %c0_7] : memref<1x32x8xf32, #tpu.memory_space<vmem>>, vector<1x32x8xf32>
    %5 = vector.shape_cast %4 : vector<1x32x8xf32> to vector<32x8xf32>
    %c0_8 = arith.constant 0 : index
    %c0_9 = arith.constant 0 : index
    %c0_10 = arith.constant 0 : index
    %6 = vector.load %arg8[%c0_8, %c0_9, %c0_10] : memref<1x32x8xf32, #tpu.memory_space<vmem>>, vector<1x32x8xf32>
    %7 = vector.shape_cast %6 : vector<1x32x8xf32> to vector<32x8xf32>
    %c0_11 = arith.constant 0 : index
    %c0_12 = arith.constant 0 : index
    %c0_13 = arith.constant 0 : index
    %8 = vector.load %arg9[%c0_11, %c0_12, %c0_13] : memref<1x1x8xf32, #tpu.memory_space<vmem>>, vector<1x1x8xf32>
    %9 = vector.shape_cast %8 : vector<1x1x8xf32> to vector<1x8xf32>
    %c0_14 = arith.constant 0 : index
    %c0_15 = arith.constant 0 : index
    %c0_16 = arith.constant 0 : index
    %10 = vector.load %arg10[%c0_14, %c0_15, %c0_16] : memref<1x32x8xf32, #tpu.memory_space<vmem>>, vector<1x32x8xf32>
    %11 = vector.shape_cast %10 : vector<1x32x8xf32> to vector<32x8xf32>
    %c0_17 = arith.constant 0 : index
    %c0_18 = arith.constant 0 : index
    %c0_19 = arith.constant 0 : index
    %12 = vector.load %arg11[%c0_17, %c0_18, %c0_19] : memref<1x32x8xf32, #tpu.memory_space<vmem>>, vector<1x32x8xf32>
    %13 = vector.shape_cast %12 : vector<1x32x8xf32> to vector<32x8xf32>
    %c0_20 = arith.constant 0 : index
    %c0_21 = arith.constant 0 : index
    %c0_22 = arith.constant 0 : index
    %14 = vector.load %arg12[%c0_20, %c0_21, %c0_22] : memref<1x1x8xf32, #tpu.memory_space<vmem>>, vector<1x1x8xf32>
    %15 = vector.shape_cast %14 : vector<1x1x8xf32> to vector<1x8xf32>
    %c0_23 = arith.constant 0 : index
    %c0_24 = arith.constant 0 : index
    %c0_25 = arith.constant 0 : index
    %16 = vector.load %arg13[%c0_23, %c0_24, %c0_25] : memref<1x8x128xf32, #tpu.memory_space<vmem>>, vector<1x8x128xf32>
    %17 = vector.shape_cast %16 : vector<1x8x128xf32> to vector<8x128xf32>
    %c0_26 = arith.constant 0 : index
    %c0_27 = arith.constant 0 : index
    %c0_28 = arith.constant 0 : index
    %18 = vector.load %arg14[%c0_26, %c0_27, %c0_28] : memref<1x32x128xf32, #tpu.memory_space<vmem>>, vector<1x32x128xf32>
    %19 = vector.shape_cast %18 : vector<1x32x128xf32> to vector<32x128xf32>
    %c0_29 = arith.constant 0 : index
    %c0_30 = arith.constant 0 : index
    %c0_31 = arith.constant 0 : index
    %20 = vector.load %arg15[%c0_29, %c0_30, %c0_31] : memref<1x1x128xf32, #tpu.memory_space<vmem>>, vector<1x1x128xf32>
    %21 = vector.shape_cast %20 : vector<1x1x128xf32> to vector<1x128xf32>
    %c0_32 = arith.constant 0 : index
    %c0_33 = arith.constant 0 : index
    %c0_34 = arith.constant 0 : index
    %22 = vector.load %arg16[%c0_32, %c0_33, %c0_34] : memref<1x32x128xf32, #tpu.memory_space<vmem>>, vector<1x32x128xf32>
    %23 = vector.shape_cast %22 : vector<1x32x128xf32> to vector<32x128xf32>
    %c0_35 = arith.constant 0 : index
    %c0_36 = arith.constant 0 : index
    %c0_37 = arith.constant 0 : index
    %24 = vector.load %arg17[%c0_35, %c0_36, %c0_37] : memref<1x32x128xf32, #tpu.memory_space<vmem>>, vector<1x32x128xf32>
    %25 = vector.shape_cast %24 : vector<1x32x128xf32> to vector<32x128xf32>
    %c0_38 = arith.constant 0 : index
    %c0_39 = arith.constant 0 : index
    %c0_40 = arith.constant 0 : index
    %26 = vector.load %arg18[%c0_38, %c0_39, %c0_40] : memref<1x1x128xf32, #tpu.memory_space<vmem>>, vector<1x1x128xf32>
    %27 = vector.shape_cast %26 : vector<1x1x128xf32> to vector<1x128xf32>
    %c0_41 = arith.constant 0 : index
    %c0_42 = arith.constant 0 : index
    %c0_43 = arith.constant 0 : index
    %28 = vector.load %arg19[%c0_41, %c0_42, %c0_43] : memref<1x32x32xf32, #tpu.memory_space<vmem>>, vector<1x32x32xf32>
    %29 = vector.shape_cast %28 : vector<1x32x32xf32> to vector<32x32xf32>
    %c0_44 = arith.constant 0 : index
    %c0_45 = arith.constant 0 : index
    %c0_46 = arith.constant 0 : index
    %30 = vector.load %arg20[%c0_44, %c0_45, %c0_46] : memref<1x1x32xf32, #tpu.memory_space<vmem>>, vector<1x1x32xf32>
    %31 = vector.shape_cast %30 : vector<1x1x32xf32> to vector<1x32xf32>
    %c0_47 = arith.constant 0 : index
    %c0_48 = arith.constant 0 : index
    %c0_49 = arith.constant 0 : index
    %32 = vector.load %arg21[%c0_47, %c0_48, %c0_49] : memref<1x32x32xf32, #tpu.memory_space<vmem>>, vector<1x32x32xf32>
    %33 = vector.shape_cast %32 : vector<1x32x32xf32> to vector<32x32xf32>
    %c0_50 = arith.constant 0 : index
    %c0_51 = arith.constant 0 : index
    %c0_52 = arith.constant 0 : index
    %34 = vector.load %arg22[%c0_50, %c0_51, %c0_52] : memref<1x1x32xf32, #tpu.memory_space<vmem>>, vector<1x1x32xf32>
    %35 = vector.shape_cast %34 : vector<1x1x32xf32> to vector<1x32xf32>
    %c0_53 = arith.constant 0 : index
    %c0_54 = arith.constant 0 : index
    %c0_55 = arith.constant 0 : index
    %36 = vector.load %arg23[%c0_53, %c0_54, %c0_55] : memref<1x32x32xf32, #tpu.memory_space<vmem>>, vector<1x32x32xf32>
    %37 = vector.shape_cast %36 : vector<1x32x32xf32> to vector<32x32xf32>
    %c0_56 = arith.constant 0 : index
    %c0_57 = arith.constant 0 : index
    %c0_58 = arith.constant 0 : index
    %38 = vector.load %arg24[%c0_56, %c0_57, %c0_58] : memref<1x1x32xf32, #tpu.memory_space<vmem>>, vector<1x1x32xf32>
    %39 = vector.shape_cast %38 : vector<1x1x32xf32> to vector<1x32xf32>
    %c0_59 = arith.constant 0 : index
    %c0_60 = arith.constant 0 : index
    %c0_61 = arith.constant 0 : index
    %40 = vector.load %arg25[%c0_59, %c0_60, %c0_61] : memref<1x32x8xf32, #tpu.memory_space<vmem>>, vector<1x32x8xf32>
    %41 = vector.shape_cast %40 : vector<1x32x8xf32> to vector<32x8xf32>
    %c0_62 = arith.constant 0 : index
    %c0_63 = arith.constant 0 : index
    %c0_64 = arith.constant 0 : index
    %42 = vector.load %arg26[%c0_62, %c0_63, %c0_64] : memref<1x1x8xf32, #tpu.memory_space<vmem>>, vector<1x1x8xf32>
    %43 = vector.shape_cast %42 : vector<1x1x8xf32> to vector<1x8xf32>
    %c0_65 = arith.constant 0 : index
    %c0_66 = arith.constant 0 : index
    %c0_67 = arith.constant 0 : index
    %44 = vector.load %arg1[%c0_65, %c0_66, %c0_67] : memref<4x8x32xf32, #tpu.memory_space<vmem>>, vector<4x8x32xf32>
    %c0_68 = arith.constant 0 : index
    %c0_69 = arith.constant 0 : index
    %45 = vector.load %arg2[%c0_68, %c0_69] : memref<4x8xf32, #tpu.memory_space<vmem>>, vector<4x8xf32>
    %c0_70 = arith.constant 0 : index
    %c0_71 = arith.constant 0 : index
    %c0_72 = arith.constant 0 : index
    %46 = vector.load %arg3[%c0_70, %c0_71, %c0_72] : memref<2x4x32xf32, #tpu.memory_space<vmem>>, vector<1x4x32xf32>
    %47 = vector.shape_cast %46 : vector<1x4x32xf32> to vector<4x32xf32>
    %c1 = arith.constant 1 : index
    %c0_73 = arith.constant 0 : index
    %c0_74 = arith.constant 0 : index
    %48 = vector.load %arg3[%c1, %c0_73, %c0_74] : memref<2x4x32xf32, #tpu.memory_space<vmem>>, vector<1x4x32xf32>
    %49 = vector.shape_cast %48 : vector<1x4x32xf32> to vector<4x32xf32>
    %c0_75 = arith.constant 0 : index
    %c0_76 = arith.constant 0 : index
    %c0_77 = arith.constant 0 : index
    %50 = vector.load %arg4[%c0_75, %c0_76, %c0_77] : memref<2x4x32xf32, #tpu.memory_space<vmem>>, vector<1x4x32xf32>
    %51 = vector.shape_cast %50 : vector<1x4x32xf32> to vector<4x32xf32>
    %c1_78 = arith.constant 1 : index
    %c0_79 = arith.constant 0 : index
    %c0_80 = arith.constant 0 : index
    %52 = vector.load %arg4[%c1_78, %c0_79, %c0_80] : memref<2x4x32xf32, #tpu.memory_space<vmem>>, vector<1x4x32xf32>
    %53 = vector.shape_cast %52 : vector<1x4x32xf32> to vector<4x32xf32>
    %cst = arith.constant dense<0.000000e+00> : vector<4x32xf32>
    %54 = tpu.matmul %45, %1, %cst {dimension_numbers = #tpu.dot_dimension_numbers<[1], [0], [0], [1], [0, 0, 1, 1], [], []>} : vector<4x8xf32>, vector<8x32xf32>, vector<4x32xf32> -> vector<4x32xf32>
    %55 = vector.broadcast %3 : vector<1x32xf32> to vector<4x32xf32>
    %56 = arith.addf %54, %55 : vector<4x32xf32>
    %cst_81 = arith.constant dense<0.000000e+00> : vector<4x8xf32>
    %57 = tpu.matmul %56, %5, %cst_81 {dimension_numbers = #tpu.dot_dimension_numbers<[1], [0], [0], [1], [0, 0, 1, 1], [], []>} : vector<4x32xf32>, vector<32x8xf32>, vector<4x8xf32> -> vector<4x8xf32>
    %cst_82 = arith.constant dense<0.000000e+00> : vector<4x8xf32>
    %58 = tpu.matmul %47, %7, %cst_82 {dimension_numbers = #tpu.dot_dimension_numbers<[1], [0], [0], [1], [0, 0, 1, 1], [], []>} : vector<4x32xf32>, vector<32x8xf32>, vector<4x8xf32> -> vector<4x8xf32>
    %59 = arith.addf %57, %58 : vector<4x8xf32>
    %60 = vector.broadcast %9 : vector<1x8xf32> to vector<4x8xf32>
    %61 = arith.addf %59, %60 : vector<4x8xf32>
    %cst_83 = arith.constant dense<0xFF800000> : vector<4xf32>
    %62 = vector.multi_reduction <maximumf>, %61, %cst_83 [1] : vector<4x8xf32> to vector<4xf32>
    %63 = vector.shape_cast %62 : vector<4xf32> to vector<4x1xf32>
    %64 = vector.broadcast %63 : vector<4x1xf32> to vector<4x8xf32>
    %65 = arith.subf %61, %64 : vector<4x8xf32>
    %66 = math.exp %65 : vector<4x8xf32>
    %cst_84 = arith.constant dense<0.000000e+00> : vector<4xf32>
    %67 = vector.multi_reduction <add>, %66, %cst_84 [1] : vector<4x8xf32> to vector<4xf32>
    %68 = vector.shape_cast %67 : vector<4xf32> to vector<4x1xf32>
    %69 = tpu.reciprocal %68 {approx = true} : vector<4x1xf32> -> vector<4x1xf32>
    %70 = vector.broadcast %69 : vector<4x1xf32> to vector<4x8xf32>
    %71 = arith.mulf %66, %70 : vector<4x8xf32>
    %72 = vector.shape_cast %71 : vector<4x8xf32> to vector<4x8x1xf32>
    %73 = vector.broadcast %72 : vector<4x8x1xf32> to vector<4x8x32xf32>
    %74 = arith.mulf %73, %44 : vector<4x8x32xf32>
    %cst_85 = arith.constant dense<0.000000e+00> : vector<4x32xf32>
    %75 = vector.multi_reduction <add>, %74, %cst_85 [1] : vector<4x8x32xf32> to vector<4x32xf32>
    %cst_86 = arith.constant dense<0.000000e+00> : vector<4x8xf32>
    %76 = tpu.matmul %56, %11, %cst_86 {dimension_numbers = #tpu.dot_dimension_numbers<[1], [0], [0], [1], [0, 0, 1, 1], [], []>} : vector<4x32xf32>, vector<32x8xf32>, vector<4x8xf32> -> vector<4x8xf32>
    %cst_87 = arith.constant dense<0.000000e+00> : vector<4x8xf32>
    %77 = tpu.matmul %75, %13, %cst_87 {dimension_numbers = #tpu.dot_dimension_numbers<[1], [0], [0], [1], [0, 0, 1, 1], [], []>} : vector<4x32xf32>, vector<32x8xf32>, vector<4x8xf32> -> vector<4x8xf32>
    %78 = arith.addf %76, %77 : vector<4x8xf32>
    %79 = vector.broadcast %15 : vector<1x8xf32> to vector<4x8xf32>
    %80 = arith.addf %78, %79 : vector<4x8xf32>
    %cst_88 = arith.constant dense<0.000000e+00> : vector<4x128xf32>
    %81 = tpu.matmul %80, %17, %cst_88 {dimension_numbers = #tpu.dot_dimension_numbers<[1], [0], [0], [1], [0, 0, 1, 1], [], []>} : vector<4x8xf32>, vector<8x128xf32>, vector<4x128xf32> -> vector<4x128xf32>
    %cst_89 = arith.constant dense<0.000000e+00> : vector<4x128xf32>
    %82 = tpu.matmul %47, %19, %cst_89 {dimension_numbers = #tpu.dot_dimension_numbers<[1], [0], [0], [1], [0, 0, 1, 1], [], []>} : vector<4x32xf32>, vector<32x128xf32>, vector<4x128xf32> -> vector<4x128xf32>
    %83 = arith.addf %81, %82 : vector<4x128xf32>
    %84 = vector.broadcast %21 : vector<1x128xf32> to vector<4x128xf32>
    %85 = arith.addf %83, %84 : vector<4x128xf32>
    %86 = vector.extract_strided_slice %85 {offsets = [0, 0], sizes = [4, 32], strides = [1, 1]} : vector<4x128xf32> to vector<4x32xf32>
    %87 = arith.negf %86 : vector<4x32xf32>
    %88 = math.exp %87 : vector<4x32xf32>
    %cst_90 = arith.constant 1.000000e+00 : f32
    %89 = vector.broadcast %cst_90 : f32 to vector<4x32xf32>
    %90 = arith.addf %89, %88 : vector<4x32xf32>
    %91 = arith.divf %89, %90 : vector<4x32xf32>
    %92 = vector.extract_strided_slice %85 {offsets = [0, 32], sizes = [4, 32], strides = [1, 1]} : vector<4x128xf32> to vector<4x32xf32>
    %93 = arith.negf %92 : vector<4x32xf32>
    %94 = math.exp %93 : vector<4x32xf32>
    %cst_91 = arith.constant 1.000000e+00 : f32
    %95 = vector.broadcast %cst_91 : f32 to vector<4x32xf32>
    %96 = arith.addf %95, %94 : vector<4x32xf32>
    %97 = arith.divf %95, %96 : vector<4x32xf32>
    %98 = vector.extract_strided_slice %85 {offsets = [0, 64], sizes = [4, 32], strides = [1, 1]} : vector<4x128xf32> to vector<4x32xf32>
    %99 = math.tanh %98 : vector<4x32xf32>
    %100 = vector.extract_strided_slice %85 {offsets = [0, 96], sizes = [4, 32], strides = [1, 1]} : vector<4x128xf32> to vector<4x32xf32>
    %101 = arith.negf %100 : vector<4x32xf32>
    %102 = math.exp %101 : vector<4x32xf32>
    %cst_92 = arith.constant 1.000000e+00 : f32
    %103 = vector.broadcast %cst_92 : f32 to vector<4x32xf32>
    %104 = arith.addf %103, %102 : vector<4x32xf32>
    %105 = arith.divf %103, %104 : vector<4x32xf32>
    %106 = arith.mulf %97, %51 : vector<4x32xf32>
    %107 = arith.mulf %91, %99 : vector<4x32xf32>
    %108 = arith.addf %106, %107 : vector<4x32xf32>
    %109 = math.tanh %108 : vector<4x32xf32>
    %110 = arith.mulf %105, %109 : vector<4x32xf32>
    %cst_93 = arith.constant dense<0.000000e+00> : vector<4x128xf32>
    %111 = tpu.matmul %110, %23, %cst_93 {dimension_numbers = #tpu.dot_dimension_numbers<[1], [0], [0], [1], [0, 0, 1, 1], [], []>} : vector<4x32xf32>, vector<32x128xf32>, vector<4x128xf32> -> vector<4x128xf32>
    %cst_94 = arith.constant dense<0.000000e+00> : vector<4x128xf32>
    %112 = tpu.matmul %49, %25, %cst_94 {dimension_numbers = #tpu.dot_dimension_numbers<[1], [0], [0], [1], [0, 0, 1, 1], [], []>} : vector<4x32xf32>, vector<32x128xf32>, vector<4x128xf32> -> vector<4x128xf32>
    %113 = arith.addf %111, %112 : vector<4x128xf32>
    %114 = vector.broadcast %27 : vector<1x128xf32> to vector<4x128xf32>
    %115 = arith.addf %113, %114 : vector<4x128xf32>
    %116 = vector.extract_strided_slice %115 {offsets = [0, 0], sizes = [4, 32], strides = [1, 1]} : vector<4x128xf32> to vector<4x32xf32>
    %117 = arith.negf %116 : vector<4x32xf32>
    %118 = math.exp %117 : vector<4x32xf32>
    %cst_95 = arith.constant 1.000000e+00 : f32
    %119 = vector.broadcast %cst_95 : f32 to vector<4x32xf32>
    %120 = arith.addf %119, %118 : vector<4x32xf32>
    %121 = arith.divf %119, %120 : vector<4x32xf32>
    %122 = vector.extract_strided_slice %115 {offsets = [0, 32], sizes = [4, 32], strides = [1, 1]} : vector<4x128xf32> to vector<4x32xf32>
    %123 = arith.negf %122 : vector<4x32xf32>
    %124 = math.exp %123 : vector<4x32xf32>
    %cst_96 = arith.constant 1.000000e+00 : f32
    %125 = vector.broadcast %cst_96 : f32 to vector<4x32xf32>
    %126 = arith.addf %125, %124 : vector<4x32xf32>
    %127 = arith.divf %125, %126 : vector<4x32xf32>
    %128 = vector.extract_strided_slice %115 {offsets = [0, 64], sizes = [4, 32], strides = [1, 1]} : vector<4x128xf32> to vector<4x32xf32>
    %129 = math.tanh %128 : vector<4x32xf32>
    %130 = vector.extract_strided_slice %115 {offsets = [0, 96], sizes = [4, 32], strides = [1, 1]} : vector<4x128xf32> to vector<4x32xf32>
    %131 = arith.negf %130 : vector<4x32xf32>
    %132 = math.exp %131 : vector<4x32xf32>
    %cst_97 = arith.constant 1.000000e+00 : f32
    %133 = vector.broadcast %cst_97 : f32 to vector<4x32xf32>
    %134 = arith.addf %133, %132 : vector<4x32xf32>
    %135 = arith.divf %133, %134 : vector<4x32xf32>
    %136 = arith.mulf %127, %53 : vector<4x32xf32>
    %137 = arith.mulf %121, %129 : vector<4x32xf32>
    %138 = arith.addf %136, %137 : vector<4x32xf32>
    %139 = math.tanh %138 : vector<4x32xf32>
    %140 = arith.mulf %135, %139 : vector<4x32xf32>
    %cst_98 = arith.constant dense<0.000000e+00> : vector<4x32xf32>
    %141 = tpu.matmul %140, %29, %cst_98 {dimension_numbers = #tpu.dot_dimension_numbers<[1], [0], [0], [1], [0, 0, 1, 1], [], []>} : vector<4x32xf32>, vector<32x32xf32>, vector<4x32xf32> -> vector<4x32xf32>
    %142 = vector.broadcast %31 : vector<1x32xf32> to vector<4x32xf32>
    %143 = arith.addf %141, %142 : vector<4x32xf32>
    %cst_99 = arith.constant 0.000000e+00 : f32
    %144 = vector.broadcast %cst_99 : f32 to vector<4x32xf32>
    %145 = arith.maximumf %143, %144 : vector<4x32xf32>
    %cst_100 = arith.constant dense<0.000000e+00> : vector<4x32xf32>
    %146 = tpu.matmul %145, %33, %cst_100 {dimension_numbers = #tpu.dot_dimension_numbers<[1], [0], [0], [1], [0, 0, 1, 1], [], []>} : vector<4x32xf32>, vector<32x32xf32>, vector<4x32xf32> -> vector<4x32xf32>
    %147 = vector.broadcast %35 : vector<1x32xf32> to vector<4x32xf32>
    %148 = arith.addf %146, %147 : vector<4x32xf32>
    %cst_101 = arith.constant 0.000000e+00 : f32
    %149 = vector.broadcast %cst_101 : f32 to vector<4x32xf32>
    %150 = arith.maximumf %148, %149 : vector<4x32xf32>
    %cst_102 = arith.constant dense<0.000000e+00> : vector<4x32xf32>
    %151 = tpu.matmul %150, %37, %cst_102 {dimension_numbers = #tpu.dot_dimension_numbers<[1], [0], [0], [1], [0, 0, 1, 1], [], []>} : vector<4x32xf32>, vector<32x32xf32>, vector<4x32xf32> -> vector<4x32xf32>
    %152 = vector.broadcast %39 : vector<1x32xf32> to vector<4x32xf32>
    %153 = arith.addf %151, %152 : vector<4x32xf32>
    %cst_103 = arith.constant 0.000000e+00 : f32
    %154 = vector.broadcast %cst_103 : f32 to vector<4x32xf32>
    %155 = arith.maximumf %153, %154 : vector<4x32xf32>
    %cst_104 = arith.constant dense<0.000000e+00> : vector<4x8xf32>
    %156 = tpu.matmul %155, %41, %cst_104 {dimension_numbers = #tpu.dot_dimension_numbers<[1], [0], [0], [1], [0, 0, 1, 1], [], []>} : vector<4x32xf32>, vector<32x8xf32>, vector<4x8xf32> -> vector<4x8xf32>
    %157 = vector.broadcast %43 : vector<1x8xf32> to vector<4x8xf32>
    %158 = arith.addf %156, %157 : vector<4x8xf32>
    %c0_105 = arith.constant 0 : index
    %c0_106 = arith.constant 0 : index
    %c0_107 = arith.constant 0 : index
    %c0_108 = arith.constant 0 : index
    %159 = vector.load %arg27[%c0_105, %c0_106, %c0_107, %c0_108] : memref<1x5x4x8xf32, #tpu.memory_space<vmem>>, vector<1x1x4x8xf32>
    %160 = vector.shape_cast %159 : vector<1x1x4x8xf32> to vector<4x8xf32>
    %161 = vector.shape_cast %158 : vector<4x8xf32> to vector<1x1x4x8xf32>
    tpu.vector_store %arg27[%c0_105, %c0_106, %c0_107, %c0_108], %161 {strides = array<i32>} : memref<1x5x4x8xf32, #tpu.memory_space<vmem>>, vector<1x1x4x8xf32>,
    %cst_109 = arith.constant dense<0.000000e+00> : vector<4x32xf32>
    %162 = tpu.matmul %158, %1, %cst_109 {dimension_numbers = #tpu.dot_dimension_numbers<[1], [0], [0], [1], [0, 0, 1, 1], [], []>} : vector<4x8xf32>, vector<8x32xf32>, vector<4x32xf32> -> vector<4x32xf32>
    %163 = vector.broadcast %3 : vector<1x32xf32> to vector<4x32xf32>
    %164 = arith.addf %162, %163 : vector<4x32xf32>
    %cst_110 = arith.constant dense<0.000000e+00> : vector<4x8xf32>
    %165 = tpu.matmul %164, %5, %cst_110 {dimension_numbers = #tpu.dot_dimension_numbers<[1], [0], [0], [1], [0, 0, 1, 1], [], []>} : vector<4x32xf32>, vector<32x8xf32>, vector<4x8xf32> -> vector<4x8xf32>
    %cst_111 = arith.constant dense<0.000000e+00> : vector<4x8xf32>
    %166 = tpu.matmul %110, %7, %cst_111 {dimension_numbers = #tpu.dot_dimension_numbers<[1], [0], [0], [1], [0, 0, 1, 1], [], []>} : vector<4x32xf32>, vector<32x8xf32>, vector<4x8xf32> -> vector<4x8xf32>
    %167 = arith.addf %165, %166 : vector<4x8xf32>
    %168 = vector.broadcast %9 : vector<1x8xf32> to vector<4x8xf32>
    %169 = arith.addf %167, %168 : vector<4x8xf32>
    %cst_112 = arith.constant dense<0xFF800000> : vector<4xf32>
    %170 = vector.multi_reduction <maximumf>, %169, %cst_112 [1] : vector<4x8xf32> to vector<4xf32>
    %171 = vector.shape_cast %170 : vector<4xf32> to vector<4x1xf32>
    %172 = vector.broadcast %171 : vector<4x1xf32> to vector<4x8xf32>
    %173 = arith.subf %169, %172 : vector<4x8xf32>
    %174 = math.exp %173 : vector<4x8xf32>
    %cst_113 = arith.constant dense<0.000000e+00> : vector<4xf32>
    %175 = vector.multi_reduction <add>, %174, %cst_113 [1] : vector<4x8xf32> to vector<4xf32>
    %176 = vector.shape_cast %175 : vector<4xf32> to vector<4x1xf32>
    %177 = tpu.reciprocal %176 {approx = true} : vector<4x1xf32> -> vector<4x1xf32>
    %178 = vector.broadcast %177 : vector<4x1xf32> to vector<4x8xf32>
    %179 = arith.mulf %174, %178 : vector<4x8xf32>
    %180 = vector.shape_cast %179 : vector<4x8xf32> to vector<4x8x1xf32>
    %181 = vector.broadcast %180 : vector<4x8x1xf32> to vector<4x8x32xf32>
    %182 = arith.mulf %181, %44 : vector<4x8x32xf32>
    %cst_114 = arith.constant dense<0.000000e+00> : vector<4x32xf32>
    %183 = vector.multi_reduction <add>, %182, %cst_114 [1] : vector<4x8x32xf32> to vector<4x32xf32>
    %cst_115 = arith.constant dense<0.000000e+00> : vector<4x8xf32>
    %184 = tpu.matmul %164, %11, %cst_115 {dimension_numbers = #tpu.dot_dimension_numbers<[1], [0], [0], [1], [0, 0, 1, 1], [], []>} : vector<4x32xf32>, vector<32x8xf32>, vector<4x8xf32> -> vector<4x8xf32>
    %cst_116 = arith.constant dense<0.000000e+00> : vector<4x8xf32>
    %185 = tpu.matmul %183, %13, %cst_116 {dimension_numbers = #tpu.dot_dimension_numbers<[1], [0], [0], [1], [0, 0, 1, 1], [], []>} : vector<4x32xf32>, vector<32x8xf32>, vector<4x8xf32> -> vector<4x8xf32>
    %186 = arith.addf %184, %185 : vector<4x8xf32>
    %187 = vector.broadcast %15 : vector<1x8xf32> to vector<4x8xf32>
    %188 = arith.addf %186, %187 : vector<4x8xf32>
    %cst_117 = arith.constant dense<0.000000e+00> : vector<4x128xf32>
    %189 = tpu.matmul %188, %17, %cst_117 {dimension_numbers = #tpu.dot_dimension_numbers<[1], [0], [0], [1], [0, 0, 1, 1], [], []>} : vector<4x8xf32>, vector<8x128xf32>, vector<4x128xf32> -> vector<4x128xf32>
    %cst_118 = arith.constant dense<0.000000e+00> : vector<4x128xf32>
    %190 = tpu.matmul %110, %19, %cst_118 {dimension_numbers = #tpu.dot_dimension_numbers<[1], [0], [0], [1], [0, 0, 1, 1], [], []>} : vector<4x32xf32>, vector<32x128xf32>, vector<4x128xf32> -> vector<4x128xf32>
    %191 = arith.addf %189, %190 : vector<4x128xf32>
    %192 = vector.broadcast %21 : vector<1x128xf32> to vector<4x128xf32>
    %193 = arith.addf %191, %192 : vector<4x128xf32>
    %194 = vector.extract_strided_slice %193 {offsets = [0, 0], sizes = [4, 32], strides = [1, 1]} : vector<4x128xf32> to vector<4x32xf32>
    %195 = arith.negf %194 : vector<4x32xf32>
    %196 = math.exp %195 : vector<4x32xf32>
    %cst_119 = arith.constant 1.000000e+00 : f32
    %197 = vector.broadcast %cst_119 : f32 to vector<4x32xf32>
    %198 = arith.addf %197, %196 : vector<4x32xf32>
    %199 = arith.divf %197, %198 : vector<4x32xf32>
    %200 = vector.extract_strided_slice %193 {offsets = [0, 32], sizes = [4, 32], strides = [1, 1]} : vector<4x128xf32> to vector<4x32xf32>
    %201 = arith.negf %200 : vector<4x32xf32>
    %202 = math.exp %201 : vector<4x32xf32>
    %cst_120 = arith.constant 1.000000e+00 : f32
    %203 = vector.broadcast %cst_120 : f32 to vector<4x32xf32>
    %204 = arith.addf %203, %202 : vector<4x32xf32>
    %205 = arith.divf %203, %204 : vector<4x32xf32>
    %206 = vector.extract_strided_slice %193 {offsets = [0, 64], sizes = [4, 32], strides = [1, 1]} : vector<4x128xf32> to vector<4x32xf32>
    %207 = math.tanh %206 : vector<4x32xf32>
    %208 = vector.extract_strided_slice %193 {offsets = [0, 96], sizes = [4, 32], strides = [1, 1]} : vector<4x128xf32> to vector<4x32xf32>
    %209 = arith.negf %208 : vector<4x32xf32>
    %210 = math.exp %209 : vector<4x32xf32>
    %cst_121 = arith.constant 1.000000e+00 : f32
    %211 = vector.broadcast %cst_121 : f32 to vector<4x32xf32>
    %212 = arith.addf %211, %210 : vector<4x32xf32>
    %213 = arith.divf %211, %212 : vector<4x32xf32>
    %214 = arith.mulf %205, %108 : vector<4x32xf32>
    %215 = arith.mulf %199, %207 : vector<4x32xf32>
    %216 = arith.addf %214, %215 : vector<4x32xf32>
    %217 = math.tanh %216 : vector<4x32xf32>
    %218 = arith.mulf %213, %217 : vector<4x32xf32>
    %cst_122 = arith.constant dense<0.000000e+00> : vector<4x128xf32>
    %219 = tpu.matmul %218, %23, %cst_122 {dimension_numbers = #tpu.dot_dimension_numbers<[1], [0], [0], [1], [0, 0, 1, 1], [], []>} : vector<4x32xf32>, vector<32x128xf32>, vector<4x128xf32> -> vector<4x128xf32>
    %cst_123 = arith.constant dense<0.000000e+00> : vector<4x128xf32>
    %220 = tpu.matmul %140, %25, %cst_123 {dimension_numbers = #tpu.dot_dimension_numbers<[1], [0], [0], [1], [0, 0, 1, 1], [], []>} : vector<4x32xf32>, vector<32x128xf32>, vector<4x128xf32> -> vector<4x128xf32>
    %221 = arith.addf %219, %220 : vector<4x128xf32>
    %222 = vector.broadcast %27 : vector<1x128xf32> to vector<4x128xf32>
    %223 = arith.addf %221, %222 : vector<4x128xf32>
    %224 = vector.extract_strided_slice %223 {offsets = [0, 0], sizes = [4, 32], strides = [1, 1]} : vector<4x128xf32> to vector<4x32xf32>
    %225 = arith.negf %224 : vector<4x32xf32>
    %226 = math.exp %225 : vector<4x32xf32>
    %cst_124 = arith.constant 1.000000e+00 : f32
    %227 = vector.broadcast %cst_124 : f32 to vector<4x32xf32>
    %228 = arith.addf %227, %226 : vector<4x32xf32>
    %229 = arith.divf %227, %228 : vector<4x32xf32>
    %230 = vector.extract_strided_slice %223 {offsets = [0, 32], sizes = [4, 32], strides = [1, 1]} : vector<4x128xf32> to vector<4x32xf32>
    %231 = arith.negf %230 : vector<4x32xf32>
    %232 = math.exp %231 : vector<4x32xf32>
    %cst_125 = arith.constant 1.000000e+00 : f32
    %233 = vector.broadcast %cst_125 : f32 to vector<4x32xf32>
    %234 = arith.addf %233, %232 : vector<4x32xf32>
    %235 = arith.divf %233, %234 : vector<4x32xf32>
    %236 = vector.extract_strided_slice %223 {offsets = [0, 64], sizes = [4, 32], strides = [1, 1]} : vector<4x128xf32> to vector<4x32xf32>
    %237 = math.tanh %236 : vector<4x32xf32>
    %238 = vector.extract_strided_slice %223 {offsets = [0, 96], sizes = [4, 32], strides = [1, 1]} : vector<4x128xf32> to vector<4x32xf32>
    %239 = arith.negf %238 : vector<4x32xf32>
    %240 = math.exp %239 : vector<4x32xf32>
    %cst_126 = arith.constant 1.000000e+00 : f32
    %241 = vector.broadcast %cst_126 : f32 to vector<4x32xf32>
    %242 = arith.addf %241, %240 : vector<4x32xf32>
    %243 = arith.divf %241, %242 : vector<4x32xf32>
    %244 = arith.mulf %235, %138 : vector<4x32xf32>
    %245 = arith.mulf %229, %237 : vector<4x32xf32>
    %246 = arith.addf %244, %245 : vector<4x32xf32>
    %247 = math.tanh %246 : vector<4x32xf32>
    %248 = arith.mulf %243, %247 : vector<4x32xf32>
    %cst_127 = arith.constant dense<0.000000e+00> : vector<4x32xf32>
    %249 = tpu.matmul %248, %29, %cst_127 {dimension_numbers = #tpu.dot_dimension_numbers<[1], [0], [0], [1], [0, 0, 1, 1], [], []>} : vector<4x32xf32>, vector<32x32xf32>, vector<4x32xf32> -> vector<4x32xf32>
    %250 = vector.broadcast %31 : vector<1x32xf32> to vector<4x32xf32>
    %251 = arith.addf %249, %250 : vector<4x32xf32>
    %cst_128 = arith.constant 0.000000e+00 : f32
    %252 = vector.broadcast %cst_128 : f32 to vector<4x32xf32>
    %253 = arith.maximumf %251, %252 : vector<4x32xf32>
    %cst_129 = arith.constant dense<0.000000e+00> : vector<4x32xf32>
    %254 = tpu.matmul %253, %33, %cst_129 {dimension_numbers = #tpu.dot_dimension_numbers<[1], [0], [0], [1], [0, 0, 1, 1], [], []>} : vector<4x32xf32>, vector<32x32xf32>, vector<4x32xf32> -> vector<4x32xf32>
    %255 = vector.broadcast %35 : vector<1x32xf32> to vector<4x32xf32>
    %256 = arith.addf %254, %255 : vector<4x32xf32>
    %cst_130 = arith.constant 0.000000e+00 : f32
    %257 = vector.broadcast %cst_130 : f32 to vector<4x32xf32>
    %258 = arith.maximumf %256, %257 : vector<4x32xf32>
    %cst_131 = arith.constant dense<0.000000e+00> : vector<4x32xf32>
    %259 = tpu.matmul %258, %37, %cst_131 {dimension_numbers = #tpu.dot_dimension_numbers<[1], [0], [0], [1], [0, 0, 1, 1], [], []>} : vector<4x32xf32>, vector<32x32xf32>, vector<4x32xf32> -> vector<4x32xf32>
    %260 = vector.broadcast %39 : vector<1x32xf32> to vector<4x32xf32>
    %261 = arith.addf %259, %260 : vector<4x32xf32>
    %cst_132 = arith.constant 0.000000e+00 : f32
    %262 = vector.broadcast %cst_132 : f32 to vector<4x32xf32>
    %263 = arith.maximumf %261, %262 : vector<4x32xf32>
    %cst_133 = arith.constant dense<0.000000e+00> : vector<4x8xf32>
    %264 = tpu.matmul %263, %41, %cst_133 {dimension_numbers = #tpu.dot_dimension_numbers<[1], [0], [0], [1], [0, 0, 1, 1], [], []>} : vector<4x32xf32>, vector<32x8xf32>, vector<4x8xf32> -> vector<4x8xf32>
    %265 = vector.broadcast %43 : vector<1x8xf32> to vector<4x8xf32>
    %266 = arith.addf %264, %265 : vector<4x8xf32>
    %c0_134 = arith.constant 0 : index
    %c1_135 = arith.constant 1 : index
    %c0_136 = arith.constant 0 : index
    %c0_137 = arith.constant 0 : index
    %267 = vector.load %arg27[%c0_134, %c1_135, %c0_136, %c0_137] : memref<1x5x4x8xf32, #tpu.memory_space<vmem>>, vector<1x1x4x8xf32>
    %268 = vector.shape_cast %267 : vector<1x1x4x8xf32> to vector<4x8xf32>
    %269 = vector.shape_cast %266 : vector<4x8xf32> to vector<1x1x4x8xf32>
    tpu.vector_store %arg27[%c0_134, %c1_135, %c0_136, %c0_137], %269 {strides = array<i32>} : memref<1x5x4x8xf32, #tpu.memory_space<vmem>>, vector<1x1x4x8xf32>,
    %cst_138 = arith.constant dense<0.000000e+00> : vector<4x32xf32>
    %270 = tpu.matmul %266, %1, %cst_138 {dimension_numbers = #tpu.dot_dimension_numbers<[1], [0], [0], [1], [0, 0, 1, 1], [], []>} : vector<4x8xf32>, vector<8x32xf32>, vector<4x32xf32> -> vector<4x32xf32>
    %271 = vector.broadcast %3 : vector<1x32xf32> to vector<4x32xf32>
    %272 = arith.addf %270, %271 : vector<4x32xf32>
    %cst_139 = arith.constant dense<0.000000e+00> : vector<4x8xf32>
    %273 = tpu.matmul %272, %5, %cst_139 {dimension_numbers = #tpu.dot_dimension_numbers<[1], [0], [0], [1], [0, 0, 1, 1], [], []>} : vector<4x32xf32>, vector<32x8xf32>, vector<4x8xf32> -> vector<4x8xf32>
    %cst_140 = arith.constant dense<0.000000e+00> : vector<4x8xf32>
    %274 = tpu.matmul %218, %7, %cst_140 {dimension_numbers = #tpu.dot_dimension_numbers<[1], [0], [0], [1], [0, 0, 1, 1], [], []>} : vector<4x32xf32>, vector<32x8xf32>, vector<4x8xf32> -> vector<4x8xf32>
    %275 = arith.addf %273, %274 : vector<4x8xf32>
    %276 = vector.broadcast %9 : vector<1x8xf32> to vector<4x8xf32>
    %277 = arith.addf %275, %276 : vector<4x8xf32>
    %cst_141 = arith.constant dense<0xFF800000> : vector<4xf32>
    %278 = vector.multi_reduction <maximumf>, %277, %cst_141 [1] : vector<4x8xf32> to vector<4xf32>
    %279 = vector.shape_cast %278 : vector<4xf32> to vector<4x1xf32>
    %280 = vector.broadcast %279 : vector<4x1xf32> to vector<4x8xf32>
    %281 = arith.subf %277, %280 : vector<4x8xf32>
    %282 = math.exp %281 : vector<4x8xf32>
    %cst_142 = arith.constant dense<0.000000e+00> : vector<4xf32>
    %283 = vector.multi_reduction <add>, %282, %cst_142 [1] : vector<4x8xf32> to vector<4xf32>
    %284 = vector.shape_cast %283 : vector<4xf32> to vector<4x1xf32>
    %285 = tpu.reciprocal %284 {approx = true} : vector<4x1xf32> -> vector<4x1xf32>
    %286 = vector.broadcast %285 : vector<4x1xf32> to vector<4x8xf32>
    %287 = arith.mulf %282, %286 : vector<4x8xf32>
    %288 = vector.shape_cast %287 : vector<4x8xf32> to vector<4x8x1xf32>
    %289 = vector.broadcast %288 : vector<4x8x1xf32> to vector<4x8x32xf32>
    %290 = arith.mulf %289, %44 : vector<4x8x32xf32>
    %cst_143 = arith.constant dense<0.000000e+00> : vector<4x32xf32>
    %291 = vector.multi_reduction <add>, %290, %cst_143 [1] : vector<4x8x32xf32> to vector<4x32xf32>
    %cst_144 = arith.constant dense<0.000000e+00> : vector<4x8xf32>
    %292 = tpu.matmul %272, %11, %cst_144 {dimension_numbers = #tpu.dot_dimension_numbers<[1], [0], [0], [1], [0, 0, 1, 1], [], []>} : vector<4x32xf32>, vector<32x8xf32>, vector<4x8xf32> -> vector<4x8xf32>
    %cst_145 = arith.constant dense<0.000000e+00> : vector<4x8xf32>
    %293 = tpu.matmul %291, %13, %cst_145 {dimension_numbers = #tpu.dot_dimension_numbers<[1], [0], [0], [1], [0, 0, 1, 1], [], []>} : vector<4x32xf32>, vector<32x8xf32>, vector<4x8xf32> -> vector<4x8xf32>
    %294 = arith.addf %292, %293 : vector<4x8xf32>
    %295 = vector.broadcast %15 : vector<1x8xf32> to vector<4x8xf32>
    %296 = arith.addf %294, %295 : vector<4x8xf32>
    %cst_146 = arith.constant dense<0.000000e+00> : vector<4x128xf32>
    %297 = tpu.matmul %296, %17, %cst_146 {dimension_numbers = #tpu.dot_dimension_numbers<[1], [0], [0], [1], [0, 0, 1, 1], [], []>} : vector<4x8xf32>, vector<8x128xf32>, vector<4x128xf32> -> vector<4x128xf32>
    %cst_147 = arith.constant dense<0.000000e+00> : vector<4x128xf32>
    %298 = tpu.matmul %218, %19, %cst_147 {dimension_numbers = #tpu.dot_dimension_numbers<[1], [0], [0], [1], [0, 0, 1, 1], [], []>} : vector<4x32xf32>, vector<32x128xf32>, vector<4x128xf32> -> vector<4x128xf32>
    %299 = arith.addf %297, %298 : vector<4x128xf32>
    %300 = vector.broadcast %21 : vector<1x128xf32> to vector<4x128xf32>
    %301 = arith.addf %299, %300 : vector<4x128xf32>
    %302 = vector.extract_strided_slice %301 {offsets = [0, 0], sizes = [4, 32], strides = [1, 1]} : vector<4x128xf32> to vector<4x32xf32>
    %303 = arith.negf %302 : vector<4x32xf32>
    %304 = math.exp %303 : vector<4x32xf32>
    %cst_148 = arith.constant 1.000000e+00 : f32
    %305 = vector.broadcast %cst_148 : f32 to vector<4x32xf32>
    %306 = arith.addf %305, %304 : vector<4x32xf32>
    %307 = arith.divf %305, %306 : vector<4x32xf32>
    %308 = vector.extract_strided_slice %301 {offsets = [0, 32], sizes = [4, 32], strides = [1, 1]} : vector<4x128xf32> to vector<4x32xf32>
    %309 = arith.negf %308 : vector<4x32xf32>
    %310 = math.exp %309 : vector<4x32xf32>
    %cst_149 = arith.constant 1.000000e+00 : f32
    %311 = vector.broadcast %cst_149 : f32 to vector<4x32xf32>
    %312 = arith.addf %311, %310 : vector<4x32xf32>
    %313 = arith.divf %311, %312 : vector<4x32xf32>
    %314 = vector.extract_strided_slice %301 {offsets = [0, 64], sizes = [4, 32], strides = [1, 1]} : vector<4x128xf32> to vector<4x32xf32>
    %315 = math.tanh %314 : vector<4x32xf32>
    %316 = vector.extract_strided_slice %301 {offsets = [0, 96], sizes = [4, 32], strides = [1, 1]} : vector<4x128xf32> to vector<4x32xf32>
    %317 = arith.negf %316 : vector<4x32xf32>
    %318 = math.exp %317 : vector<4x32xf32>
    %cst_150 = arith.constant 1.000000e+00 : f32
    %319 = vector.broadcast %cst_150 : f32 to vector<4x32xf32>
    %320 = arith.addf %319, %318 : vector<4x32xf32>
    %321 = arith.divf %319, %320 : vector<4x32xf32>
    %322 = arith.mulf %313, %216 : vector<4x32xf32>
    %323 = arith.mulf %307, %315 : vector<4x32xf32>
    %324 = arith.addf %322, %323 : vector<4x32xf32>
    %325 = math.tanh %324 : vector<4x32xf32>
    %326 = arith.mulf %321, %325 : vector<4x32xf32>
    %cst_151 = arith.constant dense<0.000000e+00> : vector<4x128xf32>
    %327 = tpu.matmul %326, %23, %cst_151 {dimension_numbers = #tpu.dot_dimension_numbers<[1], [0], [0], [1], [0, 0, 1, 1], [], []>} : vector<4x32xf32>, vector<32x128xf32>, vector<4x128xf32> -> vector<4x128xf32>
    %cst_152 = arith.constant dense<0.000000e+00> : vector<4x128xf32>
    %328 = tpu.matmul %248, %25, %cst_152 {dimension_numbers = #tpu.dot_dimension_numbers<[1], [0], [0], [1], [0, 0, 1, 1], [], []>} : vector<4x32xf32>, vector<32x128xf32>, vector<4x128xf32> -> vector<4x128xf32>
    %329 = arith.addf %327, %328 : vector<4x128xf32>
    %330 = vector.broadcast %27 : vector<1x128xf32> to vector<4x128xf32>
    %331 = arith.addf %329, %330 : vector<4x128xf32>
    %332 = vector.extract_strided_slice %331 {offsets = [0, 0], sizes = [4, 32], strides = [1, 1]} : vector<4x128xf32> to vector<4x32xf32>
    %333 = arith.negf %332 : vector<4x32xf32>
    %334 = math.exp %333 : vector<4x32xf32>
    %cst_153 = arith.constant 1.000000e+00 : f32
    %335 = vector.broadcast %cst_153 : f32 to vector<4x32xf32>
    %336 = arith.addf %335, %334 : vector<4x32xf32>
    %337 = arith.divf %335, %336 : vector<4x32xf32>
    %338 = vector.extract_strided_slice %331 {offsets = [0, 32], sizes = [4, 32], strides = [1, 1]} : vector<4x128xf32> to vector<4x32xf32>
    %339 = arith.negf %338 : vector<4x32xf32>
    %340 = math.exp %339 : vector<4x32xf32>
    %cst_154 = arith.constant 1.000000e+00 : f32
    %341 = vector.broadcast %cst_154 : f32 to vector<4x32xf32>
    %342 = arith.addf %341, %340 : vector<4x32xf32>
    %343 = arith.divf %341, %342 : vector<4x32xf32>
    %344 = vector.extract_strided_slice %331 {offsets = [0, 64], sizes = [4, 32], strides = [1, 1]} : vector<4x128xf32> to vector<4x32xf32>
    %345 = math.tanh %344 : vector<4x32xf32>
    %346 = vector.extract_strided_slice %331 {offsets = [0, 96], sizes = [4, 32], strides = [1, 1]} : vector<4x128xf32> to vector<4x32xf32>
    %347 = arith.negf %346 : vector<4x32xf32>
    %348 = math.exp %347 : vector<4x32xf32>
    %cst_155 = arith.constant 1.000000e+00 : f32
    %349 = vector.broadcast %cst_155 : f32 to vector<4x32xf32>
    %350 = arith.addf %349, %348 : vector<4x32xf32>
    %351 = arith.divf %349, %350 : vector<4x32xf32>
    %352 = arith.mulf %343, %246 : vector<4x32xf32>
    %353 = arith.mulf %337, %345 : vector<4x32xf32>
    %354 = arith.addf %352, %353 : vector<4x32xf32>
    %355 = math.tanh %354 : vector<4x32xf32>
    %356 = arith.mulf %351, %355 : vector<4x32xf32>
    %cst_156 = arith.constant dense<0.000000e+00> : vector<4x32xf32>
    %357 = tpu.matmul %356, %29, %cst_156 {dimension_numbers = #tpu.dot_dimension_numbers<[1], [0], [0], [1], [0, 0, 1, 1], [], []>} : vector<4x32xf32>, vector<32x32xf32>, vector<4x32xf32> -> vector<4x32xf32>
    %358 = vector.broadcast %31 : vector<1x32xf32> to vector<4x32xf32>
    %359 = arith.addf %357, %358 : vector<4x32xf32>
    %cst_157 = arith.constant 0.000000e+00 : f32
    %360 = vector.broadcast %cst_157 : f32 to vector<4x32xf32>
    %361 = arith.maximumf %359, %360 : vector<4x32xf32>
    %cst_158 = arith.constant dense<0.000000e+00> : vector<4x32xf32>
    %362 = tpu.matmul %361, %33, %cst_158 {dimension_numbers = #tpu.dot_dimension_numbers<[1], [0], [0], [1], [0, 0, 1, 1], [], []>} : vector<4x32xf32>, vector<32x32xf32>, vector<4x32xf32> -> vector<4x32xf32>
    %363 = vector.broadcast %35 : vector<1x32xf32> to vector<4x32xf32>
    %364 = arith.addf %362, %363 : vector<4x32xf32>
    %cst_159 = arith.constant 0.000000e+00 : f32
    %365 = vector.broadcast %cst_159 : f32 to vector<4x32xf32>
    %366 = arith.maximumf %364, %365 : vector<4x32xf32>
    %cst_160 = arith.constant dense<0.000000e+00> : vector<4x32xf32>
    %367 = tpu.matmul %366, %37, %cst_160 {dimension_numbers = #tpu.dot_dimension_numbers<[1], [0], [0], [1], [0, 0, 1, 1], [], []>} : vector<4x32xf32>, vector<32x32xf32>, vector<4x32xf32> -> vector<4x32xf32>
    %368 = vector.broadcast %39 : vector<1x32xf32> to vector<4x32xf32>
    %369 = arith.addf %367, %368 : vector<4x32xf32>
    %cst_161 = arith.constant 0.000000e+00 : f32
    %370 = vector.broadcast %cst_161 : f32 to vector<4x32xf32>
    %371 = arith.maximumf %369, %370 : vector<4x32xf32>
    %cst_162 = arith.constant dense<0.000000e+00> : vector<4x8xf32>
    %372 = tpu.matmul %371, %41, %cst_162 {dimension_numbers = #tpu.dot_dimension_numbers<[1], [0], [0], [1], [0, 0, 1, 1], [], []>} : vector<4x32xf32>, vector<32x8xf32>, vector<4x8xf32> -> vector<4x8xf32>
    %373 = vector.broadcast %43 : vector<1x8xf32> to vector<4x8xf32>
    %374 = arith.addf %372, %373 : vector<4x8xf32>
    %c0_163 = arith.constant 0 : index
    %c2 = arith.constant 2 : index
    %c0_164 = arith.constant 0 : index
    %c0_165 = arith.constant 0 : index
    %375 = vector.load %arg27[%c0_163, %c2, %c0_164, %c0_165] : memref<1x5x4x8xf32, #tpu.memory_space<vmem>>, vector<1x1x4x8xf32>
    %376 = vector.shape_cast %375 : vector<1x1x4x8xf32> to vector<4x8xf32>
    %377 = vector.shape_cast %374 : vector<4x8xf32> to vector<1x1x4x8xf32>
    tpu.vector_store %arg27[%c0_163, %c2, %c0_164, %c0_165], %377 {strides = array<i32>} : memref<1x5x4x8xf32, #tpu.memory_space<vmem>>, vector<1x1x4x8xf32>,
    %cst_166 = arith.constant dense<0.000000e+00> : vector<4x32xf32>
    %378 = tpu.matmul %374, %1, %cst_166 {dimension_numbers = #tpu.dot_dimension_numbers<[1], [0], [0], [1], [0, 0, 1, 1], [], []>} : vector<4x8xf32>, vector<8x32xf32>, vector<4x32xf32> -> vector<4x32xf32>
    %379 = vector.broadcast %3 : vector<1x32xf32> to vector<4x32xf32>
    %380 = arith.addf %378, %379 : vector<4x32xf32>
    %cst_167 = arith.constant dense<0.000000e+00> : vector<4x8xf32>
    %381 = tpu.matmul %380, %5, %cst_167 {dimension_numbers = #tpu.dot_dimension_numbers<[1], [0], [0], [1], [0, 0, 1, 1], [], []>} : vector<4x32xf32>, vector<32x8xf32>, vector<4x8xf32> -> vector<4x8xf32>
    %cst_168 = arith.constant dense<0.000000e+00> : vector<4x8xf32>
    %382 = tpu.matmul %326, %7, %cst_168 {dimension_numbers = #tpu.dot_dimension_numbers<[1], [0], [0], [1], [0, 0, 1, 1], [], []>} : vector<4x32xf32>, vector<32x8xf32>, vector<4x8xf32> -> vector<4x8xf32>
    %383 = arith.addf %381, %382 : vector<4x8xf32>
    %384 = vector.broadcast %9 : vector<1x8xf32> to vector<4x8xf32>
    %385 = arith.addf %383, %384 : vector<4x8xf32>
    %cst_169 = arith.constant dense<0xFF800000> : vector<4xf32>
    %386 = vector.multi_reduction <maximumf>, %385, %cst_169 [1] : vector<4x8xf32> to vector<4xf32>
    %387 = vector.shape_cast %386 : vector<4xf32> to vector<4x1xf32>
    %388 = vector.broadcast %387 : vector<4x1xf32> to vector<4x8xf32>
    %389 = arith.subf %385, %388 : vector<4x8xf32>
    %390 = math.exp %389 : vector<4x8xf32>
    %cst_170 = arith.constant dense<0.000000e+00> : vector<4xf32>
    %391 = vector.multi_reduction <add>, %390, %cst_170 [1] : vector<4x8xf32> to vector<4xf32>
    %392 = vector.shape_cast %391 : vector<4xf32> to vector<4x1xf32>
    %393 = tpu.reciprocal %392 {approx = true} : vector<4x1xf32> -> vector<4x1xf32>
    %394 = vector.broadcast %393 : vector<4x1xf32> to vector<4x8xf32>
    %395 = arith.mulf %390, %394 : vector<4x8xf32>
    %396 = vector.shape_cast %395 : vector<4x8xf32> to vector<4x8x1xf32>
    %397 = vector.broadcast %396 : vector<4x8x1xf32> to vector<4x8x32xf32>
    %398 = arith.mulf %397, %44 : vector<4x8x32xf32>
    %cst_171 = arith.constant dense<0.000000e+00> : vector<4x32xf32>
    %399 = vector.multi_reduction <add>, %398, %cst_171 [1] : vector<4x8x32xf32> to vector<4x32xf32>
    %cst_172 = arith.constant dense<0.000000e+00> : vector<4x8xf32>
    %400 = tpu.matmul %380, %11, %cst_172 {dimension_numbers = #tpu.dot_dimension_numbers<[1], [0], [0], [1], [0, 0, 1, 1], [], []>} : vector<4x32xf32>, vector<32x8xf32>, vector<4x8xf32> -> vector<4x8xf32>
    %cst_173 = arith.constant dense<0.000000e+00> : vector<4x8xf32>
    %401 = tpu.matmul %399, %13, %cst_173 {dimension_numbers = #tpu.dot_dimension_numbers<[1], [0], [0], [1], [0, 0, 1, 1], [], []>} : vector<4x32xf32>, vector<32x8xf32>, vector<4x8xf32> -> vector<4x8xf32>
    %402 = arith.addf %400, %401 : vector<4x8xf32>
    %403 = vector.broadcast %15 : vector<1x8xf32> to vector<4x8xf32>
    %404 = arith.addf %402, %403 : vector<4x8xf32>
    %cst_174 = arith.constant dense<0.000000e+00> : vector<4x128xf32>
    %405 = tpu.matmul %404, %17, %cst_174 {dimension_numbers = #tpu.dot_dimension_numbers<[1], [0], [0], [1], [0, 0, 1, 1], [], []>} : vector<4x8xf32>, vector<8x128xf32>, vector<4x128xf32> -> vector<4x128xf32>
    %cst_175 = arith.constant dense<0.000000e+00> : vector<4x128xf32>
    %406 = tpu.matmul %326, %19, %cst_175 {dimension_numbers = #tpu.dot_dimension_numbers<[1], [0], [0], [1], [0, 0, 1, 1], [], []>} : vector<4x32xf32>, vector<32x128xf32>, vector<4x128xf32> -> vector<4x128xf32>
    %407 = arith.addf %405, %406 : vector<4x128xf32>
    %408 = vector.broadcast %21 : vector<1x128xf32> to vector<4x128xf32>
    %409 = arith.addf %407, %408 : vector<4x128xf32>
    %410 = vector.extract_strided_slice %409 {offsets = [0, 0], sizes = [4, 32], strides = [1, 1]} : vector<4x128xf32> to vector<4x32xf32>
    %411 = arith.negf %410 : vector<4x32xf32>
    %412 = math.exp %411 : vector<4x32xf32>
    %cst_176 = arith.constant 1.000000e+00 : f32
    %413 = vector.broadcast %cst_176 : f32 to vector<4x32xf32>
    %414 = arith.addf %413, %412 : vector<4x32xf32>
    %415 = arith.divf %413, %414 : vector<4x32xf32>
    %416 = vector.extract_strided_slice %409 {offsets = [0, 32], sizes = [4, 32], strides = [1, 1]} : vector<4x128xf32> to vector<4x32xf32>
    %417 = arith.negf %416 : vector<4x32xf32>
    %418 = math.exp %417 : vector<4x32xf32>
    %cst_177 = arith.constant 1.000000e+00 : f32
    %419 = vector.broadcast %cst_177 : f32 to vector<4x32xf32>
    %420 = arith.addf %419, %418 : vector<4x32xf32>
    %421 = arith.divf %419, %420 : vector<4x32xf32>
    %422 = vector.extract_strided_slice %409 {offsets = [0, 64], sizes = [4, 32], strides = [1, 1]} : vector<4x128xf32> to vector<4x32xf32>
    %423 = math.tanh %422 : vector<4x32xf32>
    %424 = vector.extract_strided_slice %409 {offsets = [0, 96], sizes = [4, 32], strides = [1, 1]} : vector<4x128xf32> to vector<4x32xf32>
    %425 = arith.negf %424 : vector<4x32xf32>
    %426 = math.exp %425 : vector<4x32xf32>
    %cst_178 = arith.constant 1.000000e+00 : f32
    %427 = vector.broadcast %cst_178 : f32 to vector<4x32xf32>
    %428 = arith.addf %427, %426 : vector<4x32xf32>
    %429 = arith.divf %427, %428 : vector<4x32xf32>
    %430 = arith.mulf %421, %324 : vector<4x32xf32>
    %431 = arith.mulf %415, %423 : vector<4x32xf32>
    %432 = arith.addf %430, %431 : vector<4x32xf32>
    %433 = math.tanh %432 : vector<4x32xf32>
    %434 = arith.mulf %429, %433 : vector<4x32xf32>
    %cst_179 = arith.constant dense<0.000000e+00> : vector<4x128xf32>
    %435 = tpu.matmul %434, %23, %cst_179 {dimension_numbers = #tpu.dot_dimension_numbers<[1], [0], [0], [1], [0, 0, 1, 1], [], []>} : vector<4x32xf32>, vector<32x128xf32>, vector<4x128xf32> -> vector<4x128xf32>
    %cst_180 = arith.constant dense<0.000000e+00> : vector<4x128xf32>
    %436 = tpu.matmul %356, %25, %cst_180 {dimension_numbers = #tpu.dot_dimension_numbers<[1], [0], [0], [1], [0, 0, 1, 1], [], []>} : vector<4x32xf32>, vector<32x128xf32>, vector<4x128xf32> -> vector<4x128xf32>
    %437 = arith.addf %435, %436 : vector<4x128xf32>
    %438 = vector.broadcast %27 : vector<1x128xf32> to vector<4x128xf32>
    %439 = arith.addf %437, %438 : vector<4x128xf32>
    %440 = vector.extract_strided_slice %439 {offsets = [0, 0], sizes = [4, 32], strides = [1, 1]} : vector<4x128xf32> to vector<4x32xf32>
    %441 = arith.negf %440 : vector<4x32xf32>
    %442 = math.exp %441 : vector<4x32xf32>
    %cst_181 = arith.constant 1.000000e+00 : f32
    %443 = vector.broadcast %cst_181 : f32 to vector<4x32xf32>
    %444 = arith.addf %443, %442 : vector<4x32xf32>
    %445 = arith.divf %443, %444 : vector<4x32xf32>
    %446 = vector.extract_strided_slice %439 {offsets = [0, 32], sizes = [4, 32], strides = [1, 1]} : vector<4x128xf32> to vector<4x32xf32>
    %447 = arith.negf %446 : vector<4x32xf32>
    %448 = math.exp %447 : vector<4x32xf32>
    %cst_182 = arith.constant 1.000000e+00 : f32
    %449 = vector.broadcast %cst_182 : f32 to vector<4x32xf32>
    %450 = arith.addf %449, %448 : vector<4x32xf32>
    %451 = arith.divf %449, %450 : vector<4x32xf32>
    %452 = vector.extract_strided_slice %439 {offsets = [0, 64], sizes = [4, 32], strides = [1, 1]} : vector<4x128xf32> to vector<4x32xf32>
    %453 = math.tanh %452 : vector<4x32xf32>
    %454 = vector.extract_strided_slice %439 {offsets = [0, 96], sizes = [4, 32], strides = [1, 1]} : vector<4x128xf32> to vector<4x32xf32>
    %455 = arith.negf %454 : vector<4x32xf32>
    %456 = math.exp %455 : vector<4x32xf32>
    %cst_183 = arith.constant 1.000000e+00 : f32
    %457 = vector.broadcast %cst_183 : f32 to vector<4x32xf32>
    %458 = arith.addf %457, %456 : vector<4x32xf32>
    %459 = arith.divf %457, %458 : vector<4x32xf32>
    %460 = arith.mulf %451, %354 : vector<4x32xf32>
    %461 = arith.mulf %445, %453 : vector<4x32xf32>
    %462 = arith.addf %460, %461 : vector<4x32xf32>
    %463 = math.tanh %462 : vector<4x32xf32>
    %464 = arith.mulf %459, %463 : vector<4x32xf32>
    %cst_184 = arith.constant dense<0.000000e+00> : vector<4x32xf32>
    %465 = tpu.matmul %464, %29, %cst_184 {dimension_numbers = #tpu.dot_dimension_numbers<[1], [0], [0], [1], [0, 0, 1, 1], [], []>} : vector<4x32xf32>, vector<32x32xf32>, vector<4x32xf32> -> vector<4x32xf32>
    %466 = vector.broadcast %31 : vector<1x32xf32> to vector<4x32xf32>
    %467 = arith.addf %465, %466 : vector<4x32xf32>
    %cst_185 = arith.constant 0.000000e+00 : f32
    %468 = vector.broadcast %cst_185 : f32 to vector<4x32xf32>
    %469 = arith.maximumf %467, %468 : vector<4x32xf32>
    %cst_186 = arith.constant dense<0.000000e+00> : vector<4x32xf32>
    %470 = tpu.matmul %469, %33, %cst_186 {dimension_numbers = #tpu.dot_dimension_numbers<[1], [0], [0], [1], [0, 0, 1, 1], [], []>} : vector<4x32xf32>, vector<32x32xf32>, vector<4x32xf32> -> vector<4x32xf32>
    %471 = vector.broadcast %35 : vector<1x32xf32> to vector<4x32xf32>
    %472 = arith.addf %470, %471 : vector<4x32xf32>
    %cst_187 = arith.constant 0.000000e+00 : f32
    %473 = vector.broadcast %cst_187 : f32 to vector<4x32xf32>
    %474 = arith.maximumf %472, %473 : vector<4x32xf32>
    %cst_188 = arith.constant dense<0.000000e+00> : vector<4x32xf32>
    %475 = tpu.matmul %474, %37, %cst_188 {dimension_numbers = #tpu.dot_dimension_numbers<[1], [0], [0], [1], [0, 0, 1, 1], [], []>} : vector<4x32xf32>, vector<32x32xf32>, vector<4x32xf32> -> vector<4x32xf32>
    %476 = vector.broadcast %39 : vector<1x32xf32> to vector<4x32xf32>
    %477 = arith.addf %475, %476 : vector<4x32xf32>
    %cst_189 = arith.constant 0.000000e+00 : f32
    %478 = vector.broadcast %cst_189 : f32 to vector<4x32xf32>
    %479 = arith.maximumf %477, %478 : vector<4x32xf32>
    %cst_190 = arith.constant dense<0.000000e+00> : vector<4x8xf32>
    %480 = tpu.matmul %479, %41, %cst_190 {dimension_numbers = #tpu.dot_dimension_numbers<[1], [0], [0], [1], [0, 0, 1, 1], [], []>} : vector<4x32xf32>, vector<32x8xf32>, vector<4x8xf32> -> vector<4x8xf32>
    %481 = vector.broadcast %43 : vector<1x8xf32> to vector<4x8xf32>
    %482 = arith.addf %480, %481 : vector<4x8xf32>
    %c0_191 = arith.constant 0 : index
    %c3 = arith.constant 3 : index
    %c0_192 = arith.constant 0 : index
    %c0_193 = arith.constant 0 : index
    %483 = vector.load %arg27[%c0_191, %c3, %c0_192, %c0_193] : memref<1x5x4x8xf32, #tpu.memory_space<vmem>>, vector<1x1x4x8xf32>
    %484 = vector.shape_cast %483 : vector<1x1x4x8xf32> to vector<4x8xf32>
    %485 = vector.shape_cast %482 : vector<4x8xf32> to vector<1x1x4x8xf32>
    tpu.vector_store %arg27[%c0_191, %c3, %c0_192, %c0_193], %485 {strides = array<i32>} : memref<1x5x4x8xf32, #tpu.memory_space<vmem>>, vector<1x1x4x8xf32>,
    %cst_194 = arith.constant dense<0.000000e+00> : vector<4x32xf32>
    %486 = tpu.matmul %482, %1, %cst_194 {dimension_numbers = #tpu.dot_dimension_numbers<[1], [0], [0], [1], [0, 0, 1, 1], [], []>} : vector<4x8xf32>, vector<8x32xf32>, vector<4x32xf32> -> vector<4x32xf32>
    %487 = vector.broadcast %3 : vector<1x32xf32> to vector<4x32xf32>
    %488 = arith.addf %486, %487 : vector<4x32xf32>
    %cst_195 = arith.constant dense<0.000000e+00> : vector<4x8xf32>
    %489 = tpu.matmul %488, %5, %cst_195 {dimension_numbers = #tpu.dot_dimension_numbers<[1], [0], [0], [1], [0, 0, 1, 1], [], []>} : vector<4x32xf32>, vector<32x8xf32>, vector<4x8xf32> -> vector<4x8xf32>
    %cst_196 = arith.constant dense<0.000000e+00> : vector<4x8xf32>
    %490 = tpu.matmul %434, %7, %cst_196 {dimension_numbers = #tpu.dot_dimension_numbers<[1], [0], [0], [1], [0, 0, 1, 1], [], []>} : vector<4x32xf32>, vector<32x8xf32>, vector<4x8xf32> -> vector<4x8xf32>
    %491 = arith.addf %489, %490 : vector<4x8xf32>
    %492 = vector.broadcast %9 : vector<1x8xf32> to vector<4x8xf32>
    %493 = arith.addf %491, %492 : vector<4x8xf32>
    %cst_197 = arith.constant dense<0xFF800000> : vector<4xf32>
    %494 = vector.multi_reduction <maximumf>, %493, %cst_197 [1] : vector<4x8xf32> to vector<4xf32>
    %495 = vector.shape_cast %494 : vector<4xf32> to vector<4x1xf32>
    %496 = vector.broadcast %495 : vector<4x1xf32> to vector<4x8xf32>
    %497 = arith.subf %493, %496 : vector<4x8xf32>
    %498 = math.exp %497 : vector<4x8xf32>
    %cst_198 = arith.constant dense<0.000000e+00> : vector<4xf32>
    %499 = vector.multi_reduction <add>, %498, %cst_198 [1] : vector<4x8xf32> to vector<4xf32>
    %500 = vector.shape_cast %499 : vector<4xf32> to vector<4x1xf32>
    %501 = tpu.reciprocal %500 {approx = true} : vector<4x1xf32> -> vector<4x1xf32>
    %502 = vector.broadcast %501 : vector<4x1xf32> to vector<4x8xf32>
    %503 = arith.mulf %498, %502 : vector<4x8xf32>
    %504 = vector.shape_cast %503 : vector<4x8xf32> to vector<4x8x1xf32>
    %505 = vector.broadcast %504 : vector<4x8x1xf32> to vector<4x8x32xf32>
    %506 = arith.mulf %505, %44 : vector<4x8x32xf32>
    %cst_199 = arith.constant dense<0.000000e+00> : vector<4x32xf32>
    %507 = vector.multi_reduction <add>, %506, %cst_199 [1] : vector<4x8x32xf32> to vector<4x32xf32>
    %cst_200 = arith.constant dense<0.000000e+00> : vector<4x8xf32>
    %508 = tpu.matmul %488, %11, %cst_200 {dimension_numbers = #tpu.dot_dimension_numbers<[1], [0], [0], [1], [0, 0, 1, 1], [], []>} : vector<4x32xf32>, vector<32x8xf32>, vector<4x8xf32> -> vector<4x8xf32>
    %cst_201 = arith.constant dense<0.000000e+00> : vector<4x8xf32>
    %509 = tpu.matmul %507, %13, %cst_201 {dimension_numbers = #tpu.dot_dimension_numbers<[1], [0], [0], [1], [0, 0, 1, 1], [], []>} : vector<4x32xf32>, vector<32x8xf32>, vector<4x8xf32> -> vector<4x8xf32>
    %510 = arith.addf %508, %509 : vector<4x8xf32>
    %511 = vector.broadcast %15 : vector<1x8xf32> to vector<4x8xf32>
    %512 = arith.addf %510, %511 : vector<4x8xf32>
    %cst_202 = arith.constant dense<0.000000e+00> : vector<4x128xf32>
    %513 = tpu.matmul %512, %17, %cst_202 {dimension_numbers = #tpu.dot_dimension_numbers<[1], [0], [0], [1], [0, 0, 1, 1], [], []>} : vector<4x8xf32>, vector<8x128xf32>, vector<4x128xf32> -> vector<4x128xf32>
    %cst_203 = arith.constant dense<0.000000e+00> : vector<4x128xf32>
    %514 = tpu.matmul %434, %19, %cst_203 {dimension_numbers = #tpu.dot_dimension_numbers<[1], [0], [0], [1], [0, 0, 1, 1], [], []>} : vector<4x32xf32>, vector<32x128xf32>, vector<4x128xf32> -> vector<4x128xf32>
    %515 = arith.addf %513, %514 : vector<4x128xf32>
    %516 = vector.broadcast %21 : vector<1x128xf32> to vector<4x128xf32>
    %517 = arith.addf %515, %516 : vector<4x128xf32>
    %518 = vector.extract_strided_slice %517 {offsets = [0, 0], sizes = [4, 32], strides = [1, 1]} : vector<4x128xf32> to vector<4x32xf32>
    %519 = arith.negf %518 : vector<4x32xf32>
    %520 = math.exp %519 : vector<4x32xf32>
    %cst_204 = arith.constant 1.000000e+00 : f32
    %521 = vector.broadcast %cst_204 : f32 to vector<4x32xf32>
    %522 = arith.addf %521, %520 : vector<4x32xf32>
    %523 = arith.divf %521, %522 : vector<4x32xf32>
    %524 = vector.extract_strided_slice %517 {offsets = [0, 32], sizes = [4, 32], strides = [1, 1]} : vector<4x128xf32> to vector<4x32xf32>
    %525 = arith.negf %524 : vector<4x32xf32>
    %526 = math.exp %525 : vector<4x32xf32>
    %cst_205 = arith.constant 1.000000e+00 : f32
    %527 = vector.broadcast %cst_205 : f32 to vector<4x32xf32>
    %528 = arith.addf %527, %526 : vector<4x32xf32>
    %529 = arith.divf %527, %528 : vector<4x32xf32>
    %530 = vector.extract_strided_slice %517 {offsets = [0, 64], sizes = [4, 32], strides = [1, 1]} : vector<4x128xf32> to vector<4x32xf32>
    %531 = math.tanh %530 : vector<4x32xf32>
    %532 = vector.extract_strided_slice %517 {offsets = [0, 96], sizes = [4, 32], strides = [1, 1]} : vector<4x128xf32> to vector<4x32xf32>
    %533 = arith.negf %532 : vector<4x32xf32>
    %534 = math.exp %533 : vector<4x32xf32>
    %cst_206 = arith.constant 1.000000e+00 : f32
    %535 = vector.broadcast %cst_206 : f32 to vector<4x32xf32>
    %536 = arith.addf %535, %534 : vector<4x32xf32>
    %537 = arith.divf %535, %536 : vector<4x32xf32>
    %538 = arith.mulf %529, %432 : vector<4x32xf32>
    %539 = arith.mulf %523, %531 : vector<4x32xf32>
    %540 = arith.addf %538, %539 : vector<4x32xf32>
    %541 = math.tanh %540 : vector<4x32xf32>
    %542 = arith.mulf %537, %541 : vector<4x32xf32>
    %cst_207 = arith.constant dense<0.000000e+00> : vector<4x128xf32>
    %543 = tpu.matmul %542, %23, %cst_207 {dimension_numbers = #tpu.dot_dimension_numbers<[1], [0], [0], [1], [0, 0, 1, 1], [], []>} : vector<4x32xf32>, vector<32x128xf32>, vector<4x128xf32> -> vector<4x128xf32>
    %cst_208 = arith.constant dense<0.000000e+00> : vector<4x128xf32>
    %544 = tpu.matmul %464, %25, %cst_208 {dimension_numbers = #tpu.dot_dimension_numbers<[1], [0], [0], [1], [0, 0, 1, 1], [], []>} : vector<4x32xf32>, vector<32x128xf32>, vector<4x128xf32> -> vector<4x128xf32>
    %545 = arith.addf %543, %544 : vector<4x128xf32>
    %546 = vector.broadcast %27 : vector<1x128xf32> to vector<4x128xf32>
    %547 = arith.addf %545, %546 : vector<4x128xf32>
    %548 = vector.extract_strided_slice %547 {offsets = [0, 0], sizes = [4, 32], strides = [1, 1]} : vector<4x128xf32> to vector<4x32xf32>
    %549 = arith.negf %548 : vector<4x32xf32>
    %550 = math.exp %549 : vector<4x32xf32>
    %cst_209 = arith.constant 1.000000e+00 : f32
    %551 = vector.broadcast %cst_209 : f32 to vector<4x32xf32>
    %552 = arith.addf %551, %550 : vector<4x32xf32>
    %553 = arith.divf %551, %552 : vector<4x32xf32>
    %554 = vector.extract_strided_slice %547 {offsets = [0, 32], sizes = [4, 32], strides = [1, 1]} : vector<4x128xf32> to vector<4x32xf32>
    %555 = arith.negf %554 : vector<4x32xf32>
    %556 = math.exp %555 : vector<4x32xf32>
    %cst_210 = arith.constant 1.000000e+00 : f32
    %557 = vector.broadcast %cst_210 : f32 to vector<4x32xf32>
    %558 = arith.addf %557, %556 : vector<4x32xf32>
    %559 = arith.divf %557, %558 : vector<4x32xf32>
    %560 = vector.extract_strided_slice %547 {offsets = [0, 64], sizes = [4, 32], strides = [1, 1]} : vector<4x128xf32> to vector<4x32xf32>
    %561 = math.tanh %560 : vector<4x32xf32>
    %562 = vector.extract_strided_slice %547 {offsets = [0, 96], sizes = [4, 32], strides = [1, 1]} : vector<4x128xf32> to vector<4x32xf32>
    %563 = arith.negf %562 : vector<4x32xf32>
    %564 = math.exp %563 : vector<4x32xf32>
    %cst_211 = arith.constant 1.000000e+00 : f32
    %565 = vector.broadcast %cst_211 : f32 to vector<4x32xf32>
    %566 = arith.addf %565, %564 : vector<4x32xf32>
    %567 = arith.divf %565, %566 : vector<4x32xf32>
    %568 = arith.mulf %559, %462 : vector<4x32xf32>
    %569 = arith.mulf %553, %561 : vector<4x32xf32>
    %570 = arith.addf %568, %569 : vector<4x32xf32>
    %571 = math.tanh %570 : vector<4x32xf32>
    %572 = arith.mulf %567, %571 : vector<4x32xf32>
    %cst_212 = arith.constant dense<0.000000e+00> : vector<4x32xf32>
    %573 = tpu.matmul %572, %29, %cst_212 {dimension_numbers = #tpu.dot_dimension_numbers<[1], [0], [0], [1], [0, 0, 1, 1], [], []>} : vector<4x32xf32>, vector<32x32xf32>, vector<4x32xf32> -> vector<4x32xf32>
    %574 = vector.broadcast %31 : vector<1x32xf32> to vector<4x32xf32>
    %575 = arith.addf %573, %574 : vector<4x32xf32>
    %cst_213 = arith.constant 0.000000e+00 : f32
    %576 = vector.broadcast %cst_213 : f32 to vector<4x32xf32>
    %577 = arith.maximumf %575, %576 : vector<4x32xf32>
    %cst_214 = arith.constant dense<0.000000e+00> : vector<4x32xf32>
    %578 = tpu.matmul %577, %33, %cst_214 {dimension_numbers = #tpu.dot_dimension_numbers<[1], [0], [0], [1], [0, 0, 1, 1], [], []>} : vector<4x32xf32>, vector<32x32xf32>, vector<4x32xf32> -> vector<4x32xf32>
    %579 = vector.broadcast %35 : vector<1x32xf32> to vector<4x32xf32>
    %580 = arith.addf %578, %579 : vector<4x32xf32>
    %cst_215 = arith.constant 0.000000e+00 : f32
    %581 = vector.broadcast %cst_215 : f32 to vector<4x32xf32>
    %582 = arith.maximumf %580, %581 : vector<4x32xf32>
    %cst_216 = arith.constant dense<0.000000e+00> : vector<4x32xf32>
    %583 = tpu.matmul %582, %37, %cst_216 {dimension_numbers = #tpu.dot_dimension_numbers<[1], [0], [0], [1], [0, 0, 1, 1], [], []>} : vector<4x32xf32>, vector<32x32xf32>, vector<4x32xf32> -> vector<4x32xf32>
    %584 = vector.broadcast %39 : vector<1x32xf32> to vector<4x32xf32>
    %585 = arith.addf %583, %584 : vector<4x32xf32>
    %cst_217 = arith.constant 0.000000e+00 : f32
    %586 = vector.broadcast %cst_217 : f32 to vector<4x32xf32>
    %587 = arith.maximumf %585, %586 : vector<4x32xf32>
    %cst_218 = arith.constant dense<0.000000e+00> : vector<4x8xf32>
    %588 = tpu.matmul %587, %41, %cst_218 {dimension_numbers = #tpu.dot_dimension_numbers<[1], [0], [0], [1], [0, 0, 1, 1], [], []>} : vector<4x32xf32>, vector<32x8xf32>, vector<4x8xf32> -> vector<4x8xf32>
    %589 = vector.broadcast %43 : vector<1x8xf32> to vector<4x8xf32>
    %590 = arith.addf %588, %589 : vector<4x8xf32>
    %c0_219 = arith.constant 0 : index
    %c4 = arith.constant 4 : index
    %c0_220 = arith.constant 0 : index
    %c0_221 = arith.constant 0 : index
    %591 = vector.load %arg27[%c0_219, %c4, %c0_220, %c0_221] : memref<1x5x4x8xf32, #tpu.memory_space<vmem>>, vector<1x1x4x8xf32>
    %592 = vector.shape_cast %591 : vector<1x1x4x8xf32> to vector<4x8xf32>
    %593 = vector.shape_cast %590 : vector<4x8xf32> to vector<1x1x4x8xf32>
    tpu.vector_store %arg27[%c0_219, %c4, %c0_220, %c0_221], %593 {strides = array<i32>} : memref<1x5x4x8xf32, #tpu.memory_space<vmem>>, vector<1x1x4x8xf32>,
    return
  }
  func.func @transform_0(%arg0: i32) -> (i32, i32, i32) {
    %c0_i32 = arith.constant 0 : i32
    %c0_i32_0 = arith.constant 0 : i32
    %c0_i32_1 = arith.constant 0 : i32
    %c0_i32_2 = arith.constant 0 : i32
    return %c0_i32, %c0_i32_0, %c0_i32_1 : i32, i32, i32
  }
  func.func @transform_1(%arg0: i32) -> (i32, i32) {
    %c0_i32 = arith.constant 0 : i32
    %c0_i32_0 = arith.constant 0 : i32
    %c0_i32_1 = arith.constant 0 : i32
    return %c0_i32, %c0_i32_0 : i32, i32
  }
  func.func @transform_2(%arg0: i32) -> (i32, i32, i32) {
    %c0_i32 = arith.constant 0 : i32
    %c0_i32_0 = arith.constant 0 : i32
    %c0_i32_1 = arith.constant 0 : i32
    %c0_i32_2 = arith.constant 0 : i32
    return %c0_i32, %c0_i32_0, %c0_i32_1 : i32, i32, i32
  }
  func.func @transform_3(%arg0: i32) -> (i32, i32, i32) {
    %c0_i32 = arith.constant 0 : i32
    %c0_i32_0 = arith.constant 0 : i32
    %c0_i32_1 = arith.constant 0 : i32
    %c0_i32_2 = arith.constant 0 : i32
    return %c0_i32, %c0_i32_0, %c0_i32_1 : i32, i32, i32
  }
  func.func @transform_4(%arg0: i32) -> (i32, i32, i32) {
    %c0_i32 = arith.constant 0 : i32
    %c0_i32_0 = arith.constant 0 : i32
    %c0_i32_1 = arith.constant 0 : i32
    return %arg0, %c0_i32, %c0_i32_0 : i32, i32, i32
  }
  func.func @transform_5(%arg0: i32) -> (i32, i32, i32) {
    %c0_i32 = arith.constant 0 : i32
    %c0_i32_0 = arith.constant 0 : i32
    %c0_i32_1 = arith.constant 0 : i32
    return %arg0, %c0_i32, %c0_i32_0 : i32, i32, i32
  }
  func.func @transform_6(%arg0: i32) -> (i32, i32, i32) {
    %c0_i32 = arith.constant 0 : i32
    %c0_i32_0 = arith.constant 0 : i32
    %c0_i32_1 = arith.constant 0 : i32
    return %arg0, %c0_i32, %c0_i32_0 : i32, i32, i32
  }
  func.func @transform_7(%arg0: i32) -> (i32, i32, i32) {
    %c0_i32 = arith.constant 0 : i32
    %c0_i32_0 = arith.constant 0 : i32
    %c0_i32_1 = arith.constant 0 : i32
    return %arg0, %c0_i32, %c0_i32_0 : i32, i32, i32
  }
  func.func @transform_8(%arg0: i32) -> (i32, i32, i32) {
    %c0_i32 = arith.constant 0 : i32
    %c0_i32_0 = arith.constant 0 : i32
    %c0_i32_1 = arith.constant 0 : i32
    return %arg0, %c0_i32, %c0_i32_0 : i32, i32, i32
  }
  func.func @transform_9(%arg0: i32) -> (i32, i32, i32) {
    %c0_i32 = arith.constant 0 : i32
    %c0_i32_0 = arith.constant 0 : i32
    %c0_i32_1 = arith.constant 0 : i32
    return %arg0, %c0_i32, %c0_i32_0 : i32, i32, i32
  }
  func.func @transform_10(%arg0: i32) -> (i32, i32, i32) {
    %c0_i32 = arith.constant 0 : i32
    %c0_i32_0 = arith.constant 0 : i32
    %c0_i32_1 = arith.constant 0 : i32
    return %arg0, %c0_i32, %c0_i32_0 : i32, i32, i32
  }
  func.func @transform_11(%arg0: i32) -> (i32, i32, i32) {
    %c0_i32 = arith.constant 0 : i32
    %c0_i32_0 = arith.constant 0 : i32
    %c0_i32_1 = arith.constant 0 : i32
    return %arg0, %c0_i32, %c0_i32_0 : i32, i32, i32
  }
  func.func @transform_12(%arg0: i32) -> (i32, i32, i32) {
    %c0_i32 = arith.constant 0 : i32
    %c0_i32_0 = arith.constant 0 : i32
    %c0_i32_1 = arith.constant 0 : i32
    return %arg0, %c0_i32, %c0_i32_0 : i32, i32, i32
  }
  func.func @transform_13(%arg0: i32) -> (i32, i32, i32) {
    %c0_i32 = arith.constant 0 : i32
    %c0_i32_0 = arith.constant 0 : i32
    %c0_i32_1 = arith.constant 0 : i32
    return %arg0, %c0_i32, %c0_i32_0 : i32, i32, i32
  }
  func.func @transform_14(%arg0: i32) -> (i32, i32, i32) {
    %c0_i32 = arith.constant 0 : i32
    %c0_i32_0 = arith.constant 0 : i32
    %c0_i32_1 = arith.constant 0 : i32
    return %arg0, %c0_i32, %c0_i32_0 : i32, i32, i32
  }
  func.func @transform_15(%arg0: i32) -> (i32, i32, i32) {
    %c0_i32 = arith.constant 0 : i32
    %c0_i32_0 = arith.constant 0 : i32
    %c0_i32_1 = arith.constant 0 : i32
    return %arg0, %c0_i32, %c0_i32_0 : i32, i32, i32
  }
  func.func @transform_16(%arg0: i32) -> (i32, i32, i32) {
    %c0_i32 = arith.constant 0 : i32
    %c0_i32_0 = arith.constant 0 : i32
    %c0_i32_1 = arith.constant 0 : i32
    return %arg0, %c0_i32, %c0_i32_0 : i32, i32, i32
  }
  func.func @transform_17(%arg0: i32) -> (i32, i32, i32) {
    %c0_i32 = arith.constant 0 : i32
    %c0_i32_0 = arith.constant 0 : i32
    %c0_i32_1 = arith.constant 0 : i32
    return %arg0, %c0_i32, %c0_i32_0 : i32, i32, i32
  }
  func.func @transform_18(%arg0: i32) -> (i32, i32, i32) {
    %c0_i32 = arith.constant 0 : i32
    %c0_i32_0 = arith.constant 0 : i32
    %c0_i32_1 = arith.constant 0 : i32
    return %arg0, %c0_i32, %c0_i32_0 : i32, i32, i32
  }
  func.func @transform_19(%arg0: i32) -> (i32, i32, i32) {
    %c0_i32 = arith.constant 0 : i32
    %c0_i32_0 = arith.constant 0 : i32
    %c0_i32_1 = arith.constant 0 : i32
    return %arg0, %c0_i32, %c0_i32_0 : i32, i32, i32
  }
  func.func @transform_20(%arg0: i32) -> (i32, i32, i32) {
    %c0_i32 = arith.constant 0 : i32
    %c0_i32_0 = arith.constant 0 : i32
    %c0_i32_1 = arith.constant 0 : i32
    return %arg0, %c0_i32, %c0_i32_0 : i32, i32, i32
  }
  func.func @transform_21(%arg0: i32) -> (i32, i32, i32) {
    %c0_i32 = arith.constant 0 : i32
    %c0_i32_0 = arith.constant 0 : i32
    %c0_i32_1 = arith.constant 0 : i32
    return %arg0, %c0_i32, %c0_i32_0 : i32, i32, i32
  }
  func.func @transform_22(%arg0: i32) -> (i32, i32, i32) {
    %c0_i32 = arith.constant 0 : i32
    %c0_i32_0 = arith.constant 0 : i32
    %c0_i32_1 = arith.constant 0 : i32
    return %arg0, %c0_i32, %c0_i32_0 : i32, i32, i32
  }
  func.func @transform_23(%arg0: i32) -> (i32, i32, i32) {
    %c0_i32 = arith.constant 0 : i32
    %c0_i32_0 = arith.constant 0 : i32
    %c0_i32_1 = arith.constant 0 : i32
    return %arg0, %c0_i32, %c0_i32_0 : i32, i32, i32
  }
  func.func @transform_24(%arg0: i32) -> (i32, i32, i32) {
    %c0_i32 = arith.constant 0 : i32
    %c0_i32_0 = arith.constant 0 : i32
    %c0_i32_1 = arith.constant 0 : i32
    return %arg0, %c0_i32, %c0_i32_0 : i32, i32, i32
  }
  func.func @transform_25(%arg0: i32) -> (i32, i32, i32) {
    %c0_i32 = arith.constant 0 : i32
    %c0_i32_0 = arith.constant 0 : i32
    %c0_i32_1 = arith.constant 0 : i32
    return %arg0, %c0_i32, %c0_i32_0 : i32, i32, i32
  }
  func.func @transform_26(%arg0: i32) -> (i32, i32, i32, i32) {
    %c0_i32 = arith.constant 0 : i32
    %c0_i32_0 = arith.constant 0 : i32
    %c0_i32_1 = arith.constant 0 : i32
    %c0_i32_2 = arith.constant 0 : i32
    return %arg0, %c0_i32, %c0_i32_0, %c0_i32_1 : i32, i32, i32, i32
  }
}

</mosaic_0001>

<llo_original>
// kernel: encoder_decoder_forward.2
$region0: #{encoder_decoder_forward.2}
  #allocation0 [shape = 'u32[]', space=smem, size = 0x4, offset = 0x4, fixed_abs, tag = 'smem constant byte address 0x4 - core index']
  #allocation1 [shape = 'u32[144,128]{1,0:T(1,128)}', space=vmem, size = 0x12000, scoped, tag = 'internal scratch']
  %s0 = inlined_call_operand.vmem [shape: f32[32,8], index: 0, kind: input, shape index: {}]
  %s1 = inlined_call_operand.hbm [shape: f32[8,32], index: 1, kind: input, shape index: {}]
  %s2 = inlined_call_operand.vmem [shape: f32[1,32], index: 2, kind: input, shape index: {}]
  %s3 = inlined_call_operand.vmem [shape: f32[32,8], index: 3, kind: input, shape index: {}]
  %s4 = inlined_call_operand.vmem [shape: f32[1,8], index: 4, kind: input, shape index: {}]
  %s5 = inlined_call_operand.hbm [shape: f32[8,128], index: 5, kind: input, shape index: {}]
  %s6 = inlined_call_operand.vmem [shape: f32[32,128], index: 6, kind: input, shape index: {}]
  %s7 = inlined_call_operand.vmem [shape: f32[1,128], index: 7, kind: input, shape index: {}]
  %s8 = inlined_call_operand.vmem [shape: f32[32,128], index: 8, kind: input, shape index: {}]
  %s9 = inlined_call_operand.hbm [shape: f32[32,128], index: 9, kind: input, shape index: {}]
  %s10 = inlined_call_operand.vmem [shape: f32[1,128], index: 10, kind: input, shape index: {}]
  %s11 = inlined_call_operand.vmem [shape: f32[8,4,32], index: 11, kind: output, shape index: {0}]
  %s12 = inlined_call_operand.vmem [shape: f32[2,4,32], index: 12, kind: output, shape index: {1}]
  %s13 = inlined_call_operand.vmem [shape: f32[2,4,32], index: 13, kind: output, shape index: {2}]
  %14 = xla_tuple %s11, %s12, %s13
  %s15 = sld [smem:[#allocation0]]
  $region82: #{encoder_decoder_forward.2} parent=0
    _
  %s17 = ssub.s32 1, %s15
  %s18 = scalar_select 0, %s17, %s15
  $region1: #{encoder_decoder_forward.2} parent=0
    #allocation2 [shape = 'u8[4096]{0}', space=vmem, size = 0x1000, scoped, tag = 'input window, operand 1, single buffered']
    #allocation3 [shape = 's32[1]{0}', space=sflag, size = 0x4, scoped, tag = 'scoped memory for encoder_decoder_forward.2']
    #allocation4 [shape = 'u8[4096]{0}', space=vmem, size = 0x1000, scoped, tag = 'input window, operand 5, single buffered']
    #allocation5 [shape = 's32[1]{0}', space=sflag, size = 0x4, scoped, tag = 'scoped memory for encoder_decoder_forward.2']
    #allocation6 [shape = 'u8[16384]{0}', space=vmem, size = 0x4000, scoped, tag = 'input window, operand 9, single buffered']
    %19 = vsyncpa [#allocation3], 0
    %20 = vsyncpa [#allocation5], 0
    // Predicated region
    $region2: #{encoder_decoder_forward.2} parent=1 // pred_check
      _
    $region3: #{encoder_decoder_forward.2} parent=1 // pred_check_branch
      %22 = sbr.rel (0) target = $region5
    $region4: #{encoder_decoder_forward.2} parent=1 // pred_region
      _
    $region5: #{encoder_decoder_forward.2} parent=1 // pred_fallthru
      _
    // Predicated region
    $region6: #{encoder_decoder_forward.2} parent=1 // pred_check
      _
    $region7: #{encoder_decoder_forward.2} parent=1 // pred_check_branch
      %24 = sbr.rel (0) target = $region9
    $region8: #{encoder_decoder_forward.2} parent=1 // pred_region
      %s26 = ssub.s32 128, 128
      %27 = vsyncadd [#allocation3], %s26
      %s29 = sshll.u32 [#allocation2], 4
      %s30 = int_to_ptr.vmem [resolvable:$true] %s29
      %32 = dma.hbm_to_vmem [thread:$0]  %s1, 128, %s30, [#allocation3]
    $region9: #{encoder_decoder_forward.2} parent=1 // pred_fallthru
      _
    // Predicated region
    $region10: #{encoder_decoder_forward.2} parent=1 // pred_check
      _
    $region11: #{encoder_decoder_forward.2} parent=1 // pred_check_branch
      %34 = sbr.rel (0) target = $region13
    $region12: #{encoder_decoder_forward.2} parent=1 // pred_region
      _
    $region13: #{encoder_decoder_forward.2} parent=1 // pred_fallthru
      _
    // Predicated region
    $region14: #{encoder_decoder_forward.2} parent=1 // pred_check
      _
    $region15: #{encoder_decoder_forward.2} parent=1 // pred_check_branch
      %36 = sbr.rel (0) target = $region17
    $region16: #{encoder_decoder_forward.2} parent=1 // pred_region
      _
    $region17: #{encoder_decoder_forward.2} parent=1 // pred_fallthru
      _
    // Predicated region
    $region18: #{encoder_decoder_forward.2} parent=1 // pred_check
      _
    $region19: #{encoder_decoder_forward.2} parent=1 // pred_check_branch
      %38 = sbr.rel (0) target = $region21
    $region20: #{encoder_decoder_forward.2} parent=1 // pred_region
      _
    $region21: #{encoder_decoder_forward.2} parent=1 // pred_fallthru
      _
    // Predicated region
    $region22: #{encoder_decoder_forward.2} parent=1 // pred_check
      _
    $region23: #{encoder_decoder_forward.2} parent=1 // pred_check_branch
      %40 = sbr.rel (0) target = $region25
    $region24: #{encoder_decoder_forward.2} parent=1 // pred_region
      %s42 = ssub.s32 128, 128
      %43 = vsyncadd [#allocation5], %s42
      %s45 = sshll.u32 [#allocation4], 4
      %s46 = int_to_ptr.vmem [resolvable:$true] %s45
      %48 = dma.hbm_to_vmem [thread:$0]  %s5, 128, %s46, [#allocation5]
    $region25: #{encoder_decoder_forward.2} parent=1 // pred_fallthru
      _
    // Predicated region
    $region26: #{encoder_decoder_forward.2} parent=1 // pred_check
      _
    $region27: #{encoder_decoder_forward.2} parent=1 // pred_check_branch
      %50 = sbr.rel (0) target = $region29
    $region28: #{encoder_decoder_forward.2} parent=1 // pred_region
      _
    $region29: #{encoder_decoder_forward.2} parent=1 // pred_fallthru
      _
    // Predicated region
    $region30: #{encoder_decoder_forward.2} parent=1 // pred_check
      _
    $region31: #{encoder_decoder_forward.2} parent=1 // pred_check_branch
      %52 = sbr.rel (0) target = $region33
    $region32: #{encoder_decoder_forward.2} parent=1 // pred_region
      _
    $region33: #{encoder_decoder_forward.2} parent=1 // pred_fallthru
      _
    // Predicated region
    $region34: #{encoder_decoder_forward.2} parent=1 // pred_check
      _
    $region35: #{encoder_decoder_forward.2} parent=1 // pred_check_branch
      %54 = sbr.rel (0) target = $region37
    $region36: #{encoder_decoder_forward.2} parent=1 // pred_region
      _
    $region37: #{encoder_decoder_forward.2} parent=1 // pred_fallthru
      _
    // Predicated region
    $region38: #{encoder_decoder_forward.2} parent=1 // pred_check
      _
    $region39: #{encoder_decoder_forward.2} parent=1 // pred_check_branch
      %56 = sbr.rel (0) target = $region41
    $region40: #{encoder_decoder_forward.2} parent=1 // pred_region
      %s58 = ssub.s32 512, 512
      %59 = vsyncadd [#allocation5], %s58
      %s60 = sshll.u32 [#allocation6], 4
      %s61 = int_to_ptr.vmem [resolvable:$true] %s60
      %66 = dma.hbm_to_vmem [thread:$0]  %s9, 512, %s61, [#allocation5], 128, 128, 8
    $region41: #{encoder_decoder_forward.2} parent=1 // pred_fallthru
      _
    // Predicated region
    $region42: #{encoder_decoder_forward.2} parent=1 // pred_check
      _
    $region43: #{encoder_decoder_forward.2} parent=1 // pred_check_branch
      %68 = sbr.rel (0) target = $region45
    $region44: #{encoder_decoder_forward.2} parent=1 // pred_region
      _
    $region45: #{encoder_decoder_forward.2} parent=1 // pred_fallthru
      _
    // Predicated region
    $region46: #{encoder_decoder_forward.2} parent=1 // pred_check
      _
    $region47: #{encoder_decoder_forward.2} parent=1 // pred_check_branch
      %70 = sbr.rel (0) target = $region49
    $region48: #{encoder_decoder_forward.2} parent=1 // pred_region
      %71 = dma.done [#allocation3], 128
    $region49: #{encoder_decoder_forward.2} parent=1 // pred_fallthru
      _
    // Predicated region
    $region50: #{encoder_decoder_forward.2} parent=1 // pred_check
      _
    $region51: #{encoder_decoder_forward.2} parent=1 // pred_check_branch
      %73 = sbr.rel (0) target = $region53
    $region52: #{encoder_decoder_forward.2} parent=1 // pred_region
      %74 = dma.done [#allocation5], 128
    $region53: #{encoder_decoder_forward.2} parent=1 // pred_fallthru
      _
    // Predicated region
    $region54: #{encoder_decoder_forward.2} parent=1 // pred_check
      _
    $region55: #{encoder_decoder_forward.2} parent=1 // pred_check_branch
      %76 = sbr.rel (0) target = $region57
    $region56: #{encoder_decoder_forward.2} parent=1 // pred_region
      %77 = dma.done [#allocation5], 512
    $region57: #{encoder_decoder_forward.2} parent=1 // pred_fallthru
      _
    %v78 = vld [vmem:[%s0] sm:$0xff]
    %v79 = vld [vmem:[%s0 + $0x8] sm:$0xff]
    %v80 = vld [vmem:[%s0 + $0x10] sm:$0xff]
    %v81 = vld [vmem:[%s0 + $0x18] sm:$0xff]
    %v82 = vld [vmem:[#allocation2] sm:$0xff]
    %v83 = vld [vmem:[%s2] sm:$0x1]
    %v85 = vlaneseq
    %v86 = vshrl.u32 %v85, 7
    %v87 = vsub.s32 0, %v86
    %v88 = vrot.slane %v83, %v87
    %vm90 = vcmask 64512
    %v92 = vsel %vm90, %v78, 0
    %v95 = vsel %vm90, %v79, 0
    %v98 = vsel %vm90, %v80, 0
    %v101 = vsel %vm90, %v81, 0
    %103 = vmatprep.subr.mxu0 0.0
    %104 = vmatpush1.msra.mxu0 0.0
    %105 = vmatprep.subr.mxu0 0.0
    %106 = vmatpush1.msra.mxu0 0.0
    %107 = vmatprep.subr.mxu0 0.0
    %108 = vmatpush1.msra.mxu0 0.0
    %109 = vmatprep.subr.mxu0 0.0
    %110 = vmatpush1.msra.mxu0 0.0
    %111 = vmatprep.subr.mxu0 0.0
    %112 = vmatpush1.msra.mxu0 0.0
    %113 = vmatprep.subr.mxu0 0.0
    %114 = vmatpush1.msra.mxu0 0.0
    %115 = vmatprep.subr.mxu0 0.0
    %116 = vmatpush1.msra.mxu0 0.0
    %117 = vmatprep.subr.mxu0 0.0
    %118 = vmatpush1.msra.mxu0 0.0
    %119 = vmatprep.subr.mxu0 0.0
    %120 = vmatpush1.msra.mxu0 0.0
    %121 = vmatprep.subr.mxu0 0.0
    %122 = vmatpush1.msra.mxu0 0.0
    %123 = vmatprep.subr.mxu0 0.0
    %124 = vmatpush1.msra.mxu0 0.0
    %125 = vmatprep.subr.mxu0 0.0
    %126 = vmatpush1.msra.mxu0 0.0
    %127 = vmatprep.subr.mxu0 0.0
    %128 = vmatpush1.msra.mxu0 0.0
    %129 = vmatprep.subr.mxu0 0.0
    %130 = vmatpush1.msra.mxu0 0.0
    %131 = vmatprep.subr.mxu0 0.0
    %132 = vmatpush1.msra.mxu0 0.0
    %133 = vmatprep.subr.mxu0 0.0
    %134 = vmatpush1.msra.mxu0 %v82
    %135 = vmatprep.subr.mxu0 0.0
    %136 = vmatpush2.msra.mxu0 0.0
    %137 = vmatprep.subr.mxu0 0.0
    %138 = vmatpush2.msra.mxu0 0.0
    %139 = vmatprep.subr.mxu0 0.0
    %140 = vmatpush2.msra.mxu0 0.0
    %141 = vmatprep.subr.mxu0 0.0
    %142 = vmatpush2.msra.mxu0 0.0
    %143 = vmatprep.subr.mxu0 0.0
    %144 = vmatpush2.msra.mxu0 0.0
    %145 = vmatprep.subr.mxu0 0.0
    %146 = vmatpush2.msra.mxu0 0.0
    %147 = vmatprep.subr.mxu0 0.0
    %148 = vmatpush2.msra.mxu0 0.0
    %149 = vmatprep.subr.mxu0 0.0
    %150 = vmatpush2.msra.mxu0 0.0
    %151 = vmatprep.subr.mxu0 0.0
    %152 = vmatpush2.msra.mxu0 0.0
    %153 = vmatprep.subr.mxu0 0.0
    %154 = vmatpush2.msra.mxu0 0.0
    %155 = vmatprep.subr.mxu0 0.0
    %156 = vmatpush2.msra.mxu0 0.0
    %157 = vmatprep.subr.mxu0 0.0
    %158 = vmatpush2.msra.mxu0 0.0
    %159 = vmatprep.subr.mxu0 0.0
    %160 = vmatpush2.msra.mxu0 0.0
    %161 = vmatprep.subr.mxu0 0.0
    %162 = vmatpush2.msra.mxu0 0.0
    %163 = vmatprep.subr.mxu0 0.0
    %164 = vmatpush2.msra.mxu0 0.0
    %165 = vmatprep.subr.mxu0 0.0
    %166 = vmatpush2.msra.mxu0 0.0
    %167 = vmatprep.mubr.f32.mxu0 0.0
    %168 = vmatmul.mubr.f32.gmra.mxu0 %v92
    %v169 = vpop.f32.mrf.mxu0
    %v170 = vadd.f32 %v88, %v169
    %v171 = vpop.f32.mrf.mxu0
    %172 = vmatprep.mubr.f32.mxu0 0.0
    %173 = vmatmul.mubr.f32.gmra.mxu0 %v95
    %v174 = vpop.f32.mrf.mxu0
    %v175 = vadd.f32 %v88, %v174
    %v176 = vpop.f32.mrf.mxu0
    %177 = vmatprep.mubr.f32.mxu0 0.0
    %178 = vmatmul.mubr.f32.gmra.mxu0 %v98
    %v179 = vpop.f32.mrf.mxu0
    %v180 = vadd.f32 %v88, %v179
    %v181 = vpop.f32.mrf.mxu0
    %182 = vmatprep.mubr.f32.mxu0 0.0
    %183 = vmatmul.mubr.f32.gmra.mxu0 %v101
    %v184 = vpop.f32.mrf.mxu0
    %v185 = vadd.f32 %v88, %v184
    %v186 = vpop.f32.mrf.mxu0
    %187 = vdwg.mxu0
    %v188 = vmax.f32 %v170, 0.0
    %v189 = vmax.f32 %v175, 0.0
    %v190 = vmax.f32 %v180, 0.0
    %v191 = vmax.f32 %v185, 0.0
    %v192 = vld [vmem:[%s3] sm:$0xff]
    %v193 = vld [vmem:[%s3 + $0x8] sm:$0xff]
    %v194 = vld [vmem:[%s3 + $0x10] sm:$0xff]
    %v195 = vld [vmem:[%s3 + $0x18] sm:$0xff]
    %v196 = vld [vmem:[%s4] sm:$0x1]
    %v198 = vlaneseq
    %v199 = vshrl.u32 %v198, 7
    %v200 = vsub.s32 0, %v199
    %v201 = vrot.slane %v196, %v200
    %vm203 = vcmask 261120
    %v205 = vsel %vm203, %v188, 0
    %v208 = vsel %vm203, %v189, 0
    %v211 = vsel %vm203, %v190, 0
    %v214 = vsel %vm203, %v191, 0
    %216 = vmatprep.subr.mxu0 0.0
    %217 = vmatpush1.msra.mxu0 0.0
    %218 = vmatprep.subr.mxu0 0.0
    %219 = vmatpush1.msra.mxu0 0.0
    %220 = vmatprep.subr.mxu0 0.0
    %221 = vmatpush1.msra.mxu0 0.0
    %222 = vmatprep.subr.mxu0 0.0
    %223 = vmatpush1.msra.mxu0 0.0
    %224 = vmatprep.subr.mxu0 0.0
    %225 = vmatpush1.msra.mxu0 0.0
    %226 = vmatprep.subr.mxu0 0.0
    %227 = vmatpush1.msra.mxu0 0.0
    %228 = vmatprep.subr.mxu0 0.0
    %229 = vmatpush1.msra.mxu0 0.0
    %230 = vmatprep.subr.mxu0 0.0
    %231 = vmatpush1.msra.mxu0 0.0
    %232 = vmatprep.subr.mxu0 0.0
    %233 = vmatpush1.msra.mxu0 0.0
    %234 = vmatprep.subr.mxu0 0.0
    %235 = vmatpush1.msra.mxu0 0.0
    %236 = vmatprep.subr.mxu0 0.0
    %237 = vmatpush1.msra.mxu0 0.0
    %238 = vmatprep.subr.mxu0 0.0
    %239 = vmatpush1.msra.mxu0 0.0
    %240 = vmatprep.subr.mxu0 0.0
    %241 = vmatpush1.msra.mxu0 %v195
    %242 = vmatprep.subr.mxu0 0.0
    %243 = vmatpush1.msra.mxu0 %v194
    %244 = vmatprep.subr.mxu0 0.0
    %245 = vmatpush1.msra.mxu0 %v193
    %246 = vmatprep.subr.mxu0 0.0
    %247 = vmatpush1.msra.mxu0 %v192
    %248 = vmatprep.subr.mxu0 0.0
    %249 = vmatpush2.msra.mxu0 0.0
    %250 = vmatprep.subr.mxu0 0.0
    %251 = vmatpush2.msra.mxu0 0.0
    %252 = vmatprep.subr.mxu0 0.0
    %253 = vmatpush2.msra.mxu0 0.0
    %254 = vmatprep.subr.mxu0 0.0
    %255 = vmatpush2.msra.mxu0 0.0
    %256 = vmatprep.subr.mxu0 0.0
    %257 = vmatpush2.msra.mxu0 0.0
    %258 = vmatprep.subr.mxu0 0.0
    %259 = vmatpush2.msra.mxu0 0.0
    %260 = vmatprep.subr.mxu0 0.0
    %261 = vmatpush2.msra.mxu0 0.0
    %262 = vmatprep.subr.mxu0 0.0
    %263 = vmatpush2.msra.mxu0 0.0
    %264 = vmatprep.subr.mxu0 0.0
    %265 = vmatpush2.msra.mxu0 0.0
    %266 = vmatprep.subr.mxu0 0.0
    %267 = vmatpush2.msra.mxu0 0.0
    %268 = vmatprep.subr.mxu0 0.0
    %269 = vmatpush2.msra.mxu0 0.0
    %270 = vmatprep.subr.mxu0 0.0
    %271 = vmatpush2.msra.mxu0 0.0
    %272 = vmatprep.subr.mxu0 0.0
    %273 = vmatpush2.msra.mxu0 0.0
    %274 = vmatprep.subr.mxu0 0.0
    %275 = vmatpush2.msra.mxu0 0.0
    %276 = vmatprep.subr.mxu0 0.0
    %277 = vmatpush2.msra.mxu0 0.0
    %278 = vmatprep.subr.mxu0 0.0
    %279 = vmatpush2.msra.mxu0 0.0
    %280 = vmatprep.mubr.f32.mxu0 0.0
    %281 = vmatmul.mubr.f32.gmra.mxu0 %v205
    %v282 = vpop.f32.mrf.mxu0
    %v283 = vadd.f32 %v201, %v282
    %v284 = vpop.f32.mrf.mxu0
    %285 = vmatprep.mubr.f32.mxu0 0.0
    %286 = vmatmul.mubr.f32.gmra.mxu0 %v208
    %v287 = vpop.f32.mrf.mxu0
    %v288 = vadd.f32 %v201, %v287
    %v289 = vpop.f32.mrf.mxu0
    %290 = vmatprep.mubr.f32.mxu0 0.0
    %291 = vmatmul.mubr.f32.gmra.mxu0 %v211
    %v292 = vpop.f32.mrf.mxu0
    %v293 = vadd.f32 %v201, %v292
    %v294 = vpop.f32.mrf.mxu0
    %295 = vmatprep.mubr.f32.mxu0 0.0
    %296 = vmatmul.mubr.f32.gmra.mxu0 %v214
    %v297 = vpop.f32.mrf.mxu0
    %v298 = vadd.f32 %v201, %v297
    %v299 = vpop.f32.mrf.mxu0
    %300 = vdwg.mxu0
    %v301 = vmax.f32 %v283, 0.0
    %v302 = vmax.f32 %v288, 0.0
    %v303 = vmax.f32 %v293, 0.0
    %v304 = vmax.f32 %v298, 0.0
    %v305 = vld [vmem:[#allocation4] sm:$0xff]
    %v306 = vld [vmem:[%s6] sm:$0xff]
    %v307 = vld [vmem:[%s6 + $0x8] sm:$0xff]
    %v308 = vld [vmem:[%s6 + $0x10] sm:$0xff]
    %v309 = vld [vmem:[%s6 + $0x18] sm:$0xff]
    %v310 = vld [vmem:[%s7] sm:$0x1]
    %v311 = vld [vmem:[%s8] sm:$0xff]
    %v312 = vld [vmem:[%s8 + $0x8] sm:$0xff]
    %v313 = vld [vmem:[%s8 + $0x10] sm:$0xff]
    %v314 = vld [vmem:[%s8 + $0x18] sm:$0xff]
    %v315 = vld [vmem:[#allocation6] sm:$0xff]
    %v316 = vld [vmem:[#allocation6 + $0x8] sm:$0xff]
    %v317 = vld [vmem:[#allocation6 + $0x10] sm:$0xff]
    %v318 = vld [vmem:[#allocation6 + $0x18] sm:$0xff]
    %v319 = vld [vmem:[%s10] sm:$0x1]
    %v321 = vlaneseq
    %v322 = vshrl.u32 %v321, 7
    %v323 = vsub.s32 0, %v322
    %v324 = vrot.slane %v310, %v323
    %v327 = vsel %vm90, %v301, 0
    %v330 = vsel %vm90, %v302, 0
    %v333 = vsel %vm90, %v303, 0
    %v336 = vsel %vm90, %v304, 0
    %338 = vmatprep.subr.mxu0 0.0
    %339 = vmatpush1.msra.mxu0 0.0
    %340 = vmatprep.subr.mxu0 0.0
    %341 = vmatpush1.msra.mxu0 0.0
    %342 = vmatprep.subr.mxu0 0.0
    %343 = vmatpush1.msra.mxu0 0.0
    %344 = vmatprep.subr.mxu0 0.0
    %345 = vmatpush1.msra.mxu0 0.0
    %346 = vmatprep.subr.mxu0 0.0
    %347 = vmatpush1.msra.mxu0 0.0
    %348 = vmatprep.subr.mxu0 0.0
    %349 = vmatpush1.msra.mxu0 0.0
    %350 = vmatprep.subr.mxu0 0.0
    %351 = vmatpush1.msra.mxu0 0.0
    %352 = vmatprep.subr.mxu0 0.0
    %353 = vmatpush1.msra.mxu0 0.0
    %354 = vmatprep.subr.mxu0 0.0
    %355 = vmatpush1.msra.mxu0 0.0
    %356 = vmatprep.subr.mxu0 0.0
    %357 = vmatpush1.msra.mxu0 0.0
    %358 = vmatprep.subr.mxu0 0.0
    %359 = vmatpush1.msra.mxu0 0.0
    %360 = vmatprep.subr.mxu0 0.0
    %361 = vmatpush1.msra.mxu0 0.0
    %362 = vmatprep.subr.mxu0 0.0
    %363 = vmatpush1.msra.mxu0 0.0
    %364 = vmatprep.subr.mxu0 0.0
    %365 = vmatpush1.msra.mxu0 0.0
    %366 = vmatprep.subr.mxu0 0.0
    %367 = vmatpush1.msra.mxu0 0.0
    %368 = vmatprep.subr.mxu0 0.0
    %369 = vmatpush1.msra.mxu0 %v305
    %370 = vmatprep.subr.mxu0 0.0
    %371 = vmatpush2.msra.mxu0 0.0
    %372 = vmatprep.subr.mxu0 0.0
    %373 = vmatpush2.msra.mxu0 0.0
    %374 = vmatprep.subr.mxu0 0.0
    %375 = vmatpush2.msra.mxu0 0.0
    %376 = vmatprep.subr.mxu0 0.0
    %377 = vmatpush2.msra.mxu0 0.0
    %378 = vmatprep.subr.mxu0 0.0
    %379 = vmatpush2.msra.mxu0 0.0
    %380 = vmatprep.subr.mxu0 0.0
    %381 = vmatpush2.msra.mxu0 0.0
    %382 = vmatprep.subr.mxu0 0.0
    %383 = vmatpush2.msra.mxu0 0.0
    %384 = vmatprep.subr.mxu0 0.0
    %385 = vmatpush2.msra.mxu0 0.0
    %386 = vmatprep.subr.mxu0 0.0
    %387 = vmatpush2.msra.mxu0 0.0
    %388 = vmatprep.subr.mxu0 0.0
    %389 = vmatpush2.msra.mxu0 0.0
    %390 = vmatprep.subr.mxu0 0.0
    %391 = vmatpush2.msra.mxu0 0.0
    %392 = vmatprep.subr.mxu0 0.0
    %393 = vmatpush2.msra.mxu0 0.0
    %394 = vmatprep.subr.mxu0 0.0
    %395 = vmatpush2.msra.mxu0 0.0
    %396 = vmatprep.subr.mxu0 0.0
    %397 = vmatpush2.msra.mxu0 0.0
    %398 = vmatprep.subr.mxu0 0.0
    %399 = vmatpush2.msra.mxu0 0.0
    %400 = vmatprep.subr.mxu0 0.0
    %401 = vmatpush2.msra.mxu0 0.0
    %402 = vmatprep.mubr.f32.mxu0 0.0
    %403 = vmatmul.mubr.f32.gmra.mxu0 %v327
    %v404 = vpop.f32.mrf.mxu0
    %v405 = vadd.f32 %v324, %v404
    %v406 = vpop.f32.mrf.mxu0
    %407 = vmatprep.mubr.f32.mxu0 0.0
    %408 = vmatmul.mubr.f32.gmra.mxu0 %v330
    %v409 = vpop.f32.mrf.mxu0
    %v410 = vadd.f32 %v324, %v409
    %v411 = vpop.f32.mrf.mxu0
    %412 = vmatprep.mubr.f32.mxu0 0.0
    %413 = vmatmul.mubr.f32.gmra.mxu0 %v333
    %v414 = vpop.f32.mrf.mxu0
    %v415 = vadd.f32 %v324, %v414
    %v416 = vpop.f32.mrf.mxu0
    %417 = vmatprep.mubr.f32.mxu0 0.0
    %418 = vmatmul.mubr.f32.gmra.mxu0 %v336
    %v419 = vpop.f32.mrf.mxu0
    %v420 = vadd.f32 %v324, %v419
    %v421 = vpop.f32.mrf.mxu0
    %422 = vdwg.mxu0
    %v424 = vsel %vm203, 0.0, 0
    %426 = vmatprep.subr.mxu0 0.0
    %427 = vmatpush1.msra.mxu0 0.0
    %428 = vmatprep.subr.mxu0 0.0
    %429 = vmatpush1.msra.mxu0 0.0
    %430 = vmatprep.subr.mxu0 0.0
    %431 = vmatpush1.msra.mxu0 0.0
    %432 = vmatprep.subr.mxu0 0.0
    %433 = vmatpush1.msra.mxu0 0.0
    %434 = vmatprep.subr.mxu0 0.0
    %435 = vmatpush1.msra.mxu0 0.0
    %436 = vmatprep.subr.mxu0 0.0
    %437 = vmatpush1.msra.mxu0 0.0
    %438 = vmatprep.subr.mxu0 0.0
    %439 = vmatpush1.msra.mxu0 0.0
    %440 = vmatprep.subr.mxu0 0.0
    %441 = vmatpush1.msra.mxu0 0.0
    %442 = vmatprep.subr.mxu0 0.0
    %443 = vmatpush1.msra.mxu0 0.0
    %444 = vmatprep.subr.mxu0 0.0
    %445 = vmatpush1.msra.mxu0 0.0
    %446 = vmatprep.subr.mxu0 0.0
    %447 = vmatpush1.msra.mxu0 0.0
    %448 = vmatprep.subr.mxu0 0.0
    %449 = vmatpush1.msra.mxu0 0.0
    %450 = vmatprep.subr.mxu0 0.0
    %451 = vmatpush1.msra.mxu0 %v309
    %452 = vmatprep.subr.mxu0 0.0
    %453 = vmatpush1.msra.mxu0 %v308
    %454 = vmatprep.subr.mxu0 0.0
    %455 = vmatpush1.msra.mxu0 %v307
    %456 = vmatprep.subr.mxu0 0.0
    %457 = vmatpush1.msra.mxu0 %v306
    %458 = vmatprep.subr.mxu0 0.0
    %459 = vmatpush2.msra.mxu0 0.0
    %460 = vmatprep.subr.mxu0 0.0
    %461 = vmatpush2.msra.mxu0 0.0
    %462 = vmatprep.subr.mxu0 0.0
    %463 = vmatpush2.msra.mxu0 0.0
    %464 = vmatprep.subr.mxu0 0.0
    %465 = vmatpush2.msra.mxu0 0.0
    %466 = vmatprep.subr.mxu0 0.0
    %467 = vmatpush2.msra.mxu0 0.0
    %468 = vmatprep.subr.mxu0 0.0
    %469 = vmatpush2.msra.mxu0 0.0
    %470 = vmatprep.subr.mxu0 0.0
    %471 = vmatpush2.msra.mxu0 0.0
    %472 = vmatprep.subr.mxu0 0.0
    %473 = vmatpush2.msra.mxu0 0.0
    %474 = vmatprep.subr.mxu0 0.0
    %475 = vmatpush2.msra.mxu0 0.0
    %476 = vmatprep.subr.mxu0 0.0
    %477 = vmatpush2.msra.mxu0 0.0
    %478 = vmatprep.subr.mxu0 0.0
    %479 = vmatpush2.msra.mxu0 0.0
    %480 = vmatprep.subr.mxu0 0.0
    %481 = vmatpush2.msra.mxu0 0.0
    %482 = vmatprep.subr.mxu0 0.0
    %483 = vmatpush2.msra.mxu0 0.0
    %484 = vmatprep.subr.mxu0 0.0
    %485 = vmatpush2.msra.mxu0 0.0
    %486 = vmatprep.subr.mxu0 0.0
    %487 = vmatpush2.msra.mxu0 0.0
    %488 = vmatprep.subr.mxu0 0.0
    %489 = vmatpush2.msra.mxu0 0.0
    %490 = vmatprep.mubr.f32.mxu0 0.0
    %491 = vmatmul.mubr.f32.gmra.mxu0 %v424
    %v492 = vpop.f32.mrf.mxu0
    %v493 = vadd.f32 0.0, %v492
    %v494 = vpop.f32.mrf.mxu0
    %495 = vdwg.mxu0
    %v496 = vadd.f32 %v405, %v493
    %v497 = vxor.u32 %v496, 2147483648
    %v498 = vmul.f32 %v497, 1.442695
    %v499 = vpow.pop %v498
    %v500 = vadd.f32 %v499, 1.0
    %v501 = vrcp.pop %v500
    %v502 = vmul.f32 1.0, %v501
    %v503 = vtanh.pop %v496
    %v504 = vmul.f32 %v502, 0.0
    %506 = vrot.lane.b32.xlu0 %v503, 64
    %v507 = vpop.permute.xlu0 %506
    %v509 = vmul.f32 %v502, %v507
    %511 = vrot.lane.b32.xlu0 %v509, 32
    %v512 = vpop.permute.xlu0 %511
    %v514 = vadd.f32 %v504, %v512
    %v515 = vtanh.pop %v514
    %517 = vrot.lane.b32.xlu0 %v515, 64
    %v518 = vpop.permute.xlu0 %517
    %v520 = vmul.f32 %v502, %v518
    %521 = vmatprep.subr.mxu0 0.0
    %522 = vmatpush1.msra.mxu0 0.0
    %523 = vmatprep.subr.mxu0 0.0
    %524 = vmatpush1.msra.mxu0 0.0
    %525 = vmatprep.subr.mxu0 0.0
    %526 = vmatpush1.msra.mxu0 0.0
    %527 = vmatprep.subr.mxu0 0.0
    %528 = vmatpush1.msra.mxu0 0.0
    %529 = vmatprep.subr.mxu0 0.0
    %530 = vmatpush1.msra.mxu0 0.0
    %531 = vmatprep.subr.mxu0 0.0
    %532 = vmatpush1.msra.mxu0 0.0
    %533 = vmatprep.subr.mxu0 0.0
    %534 = vmatpush1.msra.mxu0 0.0
    %535 = vmatprep.subr.mxu0 0.0
    %536 = vmatpush1.msra.mxu0 0.0
    %537 = vmatprep.subr.mxu0 0.0
    %538 = vmatpush1.msra.mxu0 0.0
    %539 = vmatprep.subr.mxu0 0.0
    %540 = vmatpush1.msra.mxu0 0.0
    %541 = vmatprep.subr.mxu0 0.0
    %542 = vmatpush1.msra.mxu0 0.0
    %543 = vmatprep.subr.mxu0 0.0
    %544 = vmatpush1.msra.mxu0 0.0
    %545 = vmatprep.subr.mxu0 0.0
    %546 = vmatpush1.msra.mxu0 %v318
    %547 = vmatprep.subr.mxu0 0.0
    %548 = vmatpush1.msra.mxu0 %v317
    %549 = vmatprep.subr.mxu0 0.0
    %550 = vmatpush1.msra.mxu0 %v316
    %551 = vmatprep.subr.mxu0 0.0
    %552 = vmatpush1.msra.mxu0 %v315
    %553 = vmatprep.subr.mxu0 0.0
    %554 = vmatpush2.msra.mxu0 0.0
    %555 = vmatprep.subr.mxu0 0.0
    %556 = vmatpush2.msra.mxu0 0.0
    %557 = vmatprep.subr.mxu0 0.0
    %558 = vmatpush2.msra.mxu0 0.0
    %559 = vmatprep.subr.mxu0 0.0
    %560 = vmatpush2.msra.mxu0 0.0
    %561 = vmatprep.subr.mxu0 0.0
    %562 = vmatpush2.msra.mxu0 0.0
    %563 = vmatprep.subr.mxu0 0.0
    %564 = vmatpush2.msra.mxu0 0.0
    %565 = vmatprep.subr.mxu0 0.0
    %566 = vmatpush2.msra.mxu0 0.0
    %567 = vmatprep.subr.mxu0 0.0
    %568 = vmatpush2.msra.mxu0 0.0
    %569 = vmatprep.subr.mxu0 0.0
    %570 = vmatpush2.msra.mxu0 0.0
    %571 = vmatprep.subr.mxu0 0.0
    %572 = vmatpush2.msra.mxu0 0.0
    %573 = vmatprep.subr.mxu0 0.0
    %574 = vmatpush2.msra.mxu0 0.0
    %575 = vmatprep.subr.mxu0 0.0
    %576 = vmatpush2.msra.mxu0 0.0
    %577 = vmatprep.subr.mxu0 0.0
    %578 = vmatpush2.msra.mxu0 0.0
    %579 = vmatprep.subr.mxu0 0.0
    %580 = vmatpush2.msra.mxu0 0.0
    %581 = vmatprep.subr.mxu0 0.0
    %582 = vmatpush2.msra.mxu0 0.0
    %583 = vmatprep.subr.mxu0 0.0
    %584 = vmatpush2.msra.mxu0 0.0
    %585 = vmatprep.mubr.f32.mxu0 0.0
    %586 = vmatmul.mubr.f32.gmra.mxu0 %v424
    %v587 = vpop.f32.mrf.mxu0
    %v588 = vadd.f32 0.0, %v587
    %v589 = vpop.f32.mrf.mxu0
    %590 = vdwg.mxu0
    %592 = vrot.lane.b32.xlu0 %v520, 32
    %v593 = vpop.permute.xlu0 %592
    %v594 = vsel %vm203, %v593, 0
    %596 = vmatprep.subr.mxu0 0.0
    %597 = vmatpush1.msra.mxu0 0.0
    %598 = vmatprep.subr.mxu0 0.0
    %599 = vmatpush1.msra.mxu0 0.0
    %600 = vmatprep.subr.mxu0 0.0
    %601 = vmatpush1.msra.mxu0 0.0
    %602 = vmatprep.subr.mxu0 0.0
    %603 = vmatpush1.msra.mxu0 0.0
    %604 = vmatprep.subr.mxu0 0.0
    %605 = vmatpush1.msra.mxu0 0.0
    %606 = vmatprep.subr.mxu0 0.0
    %607 = vmatpush1.msra.mxu0 0.0
    %608 = vmatprep.subr.mxu0 0.0
    %609 = vmatpush1.msra.mxu0 0.0
    %610 = vmatprep.subr.mxu0 0.0
    %611 = vmatpush1.msra.mxu0 0.0
    %612 = vmatprep.subr.mxu0 0.0
    %613 = vmatpush1.msra.mxu0 0.0
    %614 = vmatprep.subr.mxu0 0.0
    %615 = vmatpush1.msra.mxu0 0.0
    %616 = vmatprep.subr.mxu0 0.0
    %617 = vmatpush1.msra.mxu0 0.0
    %618 = vmatprep.subr.mxu0 0.0
    %619 = vmatpush1.msra.mxu0 0.0
    %620 = vmatprep.subr.mxu0 0.0
    %621 = vmatpush1.msra.mxu0 %v314
    %622 = vmatprep.subr.mxu0 0.0
    %623 = vmatpush1.msra.mxu0 %v313
    %624 = vmatprep.subr.mxu0 0.0
    %625 = vmatpush1.msra.mxu0 %v312
    %626 = vmatprep.subr.mxu0 0.0
    %627 = vmatpush1.msra.mxu0 %v311
    %628 = vmatprep.subr.mxu0 0.0
    %629 = vmatpush2.msra.mxu0 0.0
    %630 = vmatprep.subr.mxu0 0.0
    %631 = vmatpush2.msra.mxu0 0.0
    %632 = vmatprep.subr.mxu0 0.0
    %633 = vmatpush2.msra.mxu0 0.0
    %634 = vmatprep.subr.mxu0 0.0
    %635 = vmatpush2.msra.mxu0 0.0
    %636 = vmatprep.subr.mxu0 0.0
    %637 = vmatpush2.msra.mxu0 0.0
    %638 = vmatprep.subr.mxu0 0.0
    %639 = vmatpush2.msra.mxu0 0.0
    %640 = vmatprep.subr.mxu0 0.0
    %641 = vmatpush2.msra.mxu0 0.0
    %642 = vmatprep.subr.mxu0 0.0
    %643 = vmatpush2.msra.mxu0 0.0
    %644 = vmatprep.subr.mxu0 0.0
    %645 = vmatpush2.msra.mxu0 0.0
    %646 = vmatprep.subr.mxu0 0.0
    %647 = vmatpush2.msra.mxu0 0.0
    %648 = vmatprep.subr.mxu0 0.0
    %649 = vmatpush2.msra.mxu0 0.0
    %650 = vmatprep.subr.mxu0 0.0
    %651 = vmatpush2.msra.mxu0 0.0
    %652 = vmatprep.subr.mxu0 0.0
    %653 = vmatpush2.msra.mxu0 0.0
    %654 = vmatprep.subr.mxu0 0.0
    %655 = vmatpush2.msra.mxu0 0.0
    %656 = vmatprep.subr.mxu0 0.0
    %657 = vmatpush2.msra.mxu0 0.0
    %658 = vmatprep.subr.mxu0 0.0
    %659 = vmatpush2.msra.mxu0 0.0
    %660 = vmatprep.mubr.f32.mxu0 0.0
    %661 = vmatmul.mubr.f32.gmra.mxu0 %v594
    %v662 = vpop.f32.mrf.mxu0
    %v663 = vadd.f32 %v588, %v662
    %v664 = vpop.f32.mrf.mxu0
    %665 = vdwg.mxu0
    %v667 = vlaneseq
    %v668 = vshrl.u32 %v667, 7
    %v669 = vsub.s32 0, %v668
    %v670 = vrot.slane %v319, %v669
    %v672 = vadd.f32 %v663, %v670
    %v673 = vxor.u32 %v672, 2147483648
    %v674 = vmul.f32 %v673, 1.442695
    %v675 = vpow.pop %v674
    %v676 = vadd.f32 %v675, 1.0
    %v677 = vrcp.pop %v676
    %v678 = vmul.f32 1.0, %v677
    %v679 = vtanh.pop %v672
    %v680 = vmul.f32 %v678, 0.0
    %682 = vrot.lane.b32.xlu0 %v679, 64
    %v683 = vpop.permute.xlu0 %682
    %v685 = vmul.f32 %v678, %v683
    %687 = vrot.lane.b32.xlu0 %v685, 32
    %v688 = vpop.permute.xlu0 %687
    %v690 = vadd.f32 %v680, %v688
    %v691 = vtanh.pop %v690
    %693 = vrot.lane.b32.xlu0 %v691, 64
    %v694 = vpop.permute.xlu0 %693
    %v696 = vmul.f32 %v678, %v694
    %698 = vrot.lane.b32.xlu0 %v696, 32
    %v699 = vpop.permute.xlu0 %698
    %vm701 = vcmask 257024
    %702 = vst.msk [vmem:[%s11] sm:$0xf] %vm701, %v699
    %703 = vmatprep.subr.mxu0 0.0
    %704 = vmatpush1.msra.mxu0 0.0
    %705 = vmatprep.subr.mxu0 0.0
    %706 = vmatpush1.msra.mxu0 0.0
    %707 = vmatprep.subr.mxu0 0.0
    %708 = vmatpush1.msra.mxu0 0.0
    %709 = vmatprep.subr.mxu0 0.0
    %710 = vmatpush1.msra.mxu0 0.0
    %711 = vmatprep.subr.mxu0 0.0
    %712 = vmatpush1.msra.mxu0 0.0
    %713 = vmatprep.subr.mxu0 0.0
    %714 = vmatpush1.msra.mxu0 0.0
    %715 = vmatprep.subr.mxu0 0.0
    %716 = vmatpush1.msra.mxu0 0.0
    %717 = vmatprep.subr.mxu0 0.0
    %718 = vmatpush1.msra.mxu0 0.0
    %719 = vmatprep.subr.mxu0 0.0
    %720 = vmatpush1.msra.mxu0 0.0
    %721 = vmatprep.subr.mxu0 0.0
    %722 = vmatpush1.msra.mxu0 0.0
    %723 = vmatprep.subr.mxu0 0.0
    %724 = vmatpush1.msra.mxu0 0.0
    %725 = vmatprep.subr.mxu0 0.0
    %726 = vmatpush1.msra.mxu0 0.0
    %727 = vmatprep.subr.mxu0 0.0
    %728 = vmatpush1.msra.mxu0 %v309
    %729 = vmatprep.subr.mxu0 0.0
    %730 = vmatpush1.msra.mxu0 %v308
    %731 = vmatprep.subr.mxu0 0.0
    %732 = vmatpush1.msra.mxu0 %v307
    %733 = vmatprep.subr.mxu0 0.0
    %734 = vmatpush1.msra.mxu0 %v306
    %735 = vmatprep.subr.mxu0 0.0
    %736 = vmatpush2.msra.mxu0 0.0
    %737 = vmatprep.subr.mxu0 0.0
    %738 = vmatpush2.msra.mxu0 0.0
    %739 = vmatprep.subr.mxu0 0.0
    %740 = vmatpush2.msra.mxu0 0.0
    %741 = vmatprep.subr.mxu0 0.0
    %742 = vmatpush2.msra.mxu0 0.0
    %743 = vmatprep.subr.mxu0 0.0
    %744 = vmatpush2.msra.mxu0 0.0
    %745 = vmatprep.subr.mxu0 0.0
    %746 = vmatpush2.msra.mxu0 0.0
    %747 = vmatprep.subr.mxu0 0.0
    %748 = vmatpush2.msra.mxu0 0.0
    %749 = vmatprep.subr.mxu0 0.0
    %750 = vmatpush2.msra.mxu0 0.0
    %751 = vmatprep.subr.mxu0 0.0
    %752 = vmatpush2.msra.mxu0 0.0
    %753 = vmatprep.subr.mxu0 0.0
    %754 = vmatpush2.msra.mxu0 0.0
    %755 = vmatprep.subr.mxu0 0.0
    %756 = vmatpush2.msra.mxu0 0.0
    %757 = vmatprep.subr.mxu0 0.0
    %758 = vmatpush2.msra.mxu0 0.0
    %759 = vmatprep.subr.mxu0 0.0
    %760 = vmatpush2.msra.mxu0 0.0
    %761 = vmatprep.subr.mxu0 0.0
    %762 = vmatpush2.msra.mxu0 0.0
    %763 = vmatprep.subr.mxu0 0.0
    %764 = vmatpush2.msra.mxu0 0.0
    %765 = vmatprep.subr.mxu0 0.0
    %766 = vmatpush2.msra.mxu0 0.0
    %767 = vmatprep.mubr.f32.mxu0 0.0
    %768 = vmatmul.mubr.f32.gmra.mxu0 %v594
    %v769 = vpop.f32.mrf.mxu0
    %v770 = vadd.f32 0.0, %v769
    %v771 = vpop.f32.mrf.mxu0
    %772 = vdwg.mxu0
    %v774 = vrot.slane %v770, 4
    %v776 = vadd.f32 %v405, %v774
    %v777 = vxor.u32 %v776, 2147483648
    %v778 = vmul.f32 %v777, 1.442695
    %v779 = vpow.pop %v778
    %v780 = vadd.f32 %v779, 1.0
    %v781 = vrcp.pop %v780
    %v782 = vmul.f32 1.0, %v781
    %v783 = vtanh.pop %v776
    %v785 = vrot.slane %v514, 4
    %v787 = vmul.f32 %v782, %v785
    %789 = vrot.lane.b32.xlu0 %v783, 64
    %v790 = vpop.permute.xlu0 %789
    %v792 = vmul.f32 %v782, %v790
    %794 = vrot.lane.b32.xlu0 %v792, 32
    %v795 = vpop.permute.xlu0 %794
    %v797 = vadd.f32 %v787, %v795
    %v798 = vtanh.pop %v797
    %800 = vrot.lane.b32.xlu0 %v798, 64
    %v801 = vpop.permute.xlu0 %800
    %v803 = vmul.f32 %v782, %v801
    %v804 = vsel %vm203, %v699, 0
    %806 = vmatprep.subr.mxu0 0.0
    %807 = vmatpush1.msra.mxu0 0.0
    %808 = vmatprep.subr.mxu0 0.0
    %809 = vmatpush1.msra.mxu0 0.0
    %810 = vmatprep.subr.mxu0 0.0
    %811 = vmatpush1.msra.mxu0 0.0
    %812 = vmatprep.subr.mxu0 0.0
    %813 = vmatpush1.msra.mxu0 0.0
    %814 = vmatprep.subr.mxu0 0.0
    %815 = vmatpush1.msra.mxu0 0.0
    %816 = vmatprep.subr.mxu0 0.0
    %817 = vmatpush1.msra.mxu0 0.0
    %818 = vmatprep.subr.mxu0 0.0
    %819 = vmatpush1.msra.mxu0 0.0
    %820 = vmatprep.subr.mxu0 0.0
    %821 = vmatpush1.msra.mxu0 0.0
    %822 = vmatprep.subr.mxu0 0.0
    %823 = vmatpush1.msra.mxu0 0.0
    %824 = vmatprep.subr.mxu0 0.0
    %825 = vmatpush1.msra.mxu0 0.0
    %826 = vmatprep.subr.mxu0 0.0
    %827 = vmatpush1.msra.mxu0 0.0
    %828 = vmatprep.subr.mxu0 0.0
    %829 = vmatpush1.msra.mxu0 0.0
    %830 = vmatprep.subr.mxu0 0.0
    %831 = vmatpush1.msra.mxu0 %v318
    %832 = vmatprep.subr.mxu0 0.0
    %833 = vmatpush1.msra.mxu0 %v317
    %834 = vmatprep.subr.mxu0 0.0
    %835 = vmatpush1.msra.mxu0 %v316
    %836 = vmatprep.subr.mxu0 0.0
    %837 = vmatpush1.msra.mxu0 %v315
    %838 = vmatprep.subr.mxu0 0.0
    %839 = vmatpush2.msra.mxu0 0.0
    %840 = vmatprep.subr.mxu0 0.0
    %841 = vmatpush2.msra.mxu0 0.0
    %842 = vmatprep.subr.mxu0 0.0
    %843 = vmatpush2.msra.mxu0 0.0
    %844 = vmatprep.subr.mxu0 0.0
    %845 = vmatpush2.msra.mxu0 0.0
    %846 = vmatprep.subr.mxu0 0.0
    %847 = vmatpush2.msra.mxu0 0.0
    %848 = vmatprep.subr.mxu0 0.0
    %849 = vmatpush2.msra.mxu0 0.0
    %850 = vmatprep.subr.mxu0 0.0
    %851 = vmatpush2.msra.mxu0 0.0
    %852 = vmatprep.subr.mxu0 0.0
    %853 = vmatpush2.msra.mxu0 0.0
    %854 = vmatprep.subr.mxu0 0.0
    %855 = vmatpush2.msra.mxu0 0.0
    %856 = vmatprep.subr.mxu0 0.0
    %857 = vmatpush2.msra.mxu0 0.0
    %858 = vmatprep.subr.mxu0 0.0
    %859 = vmatpush2.msra.mxu0 0.0
    %860 = vmatprep.subr.mxu0 0.0
    %861 = vmatpush2.msra.mxu0 0.0
    %862 = vmatprep.subr.mxu0 0.0
    %863 = vmatpush2.msra.mxu0 0.0
    %864 = vmatprep.subr.mxu0 0.0
    %865 = vmatpush2.msra.mxu0 0.0
    %866 = vmatprep.subr.mxu0 0.0
    %867 = vmatpush2.msra.mxu0 0.0
    %868 = vmatprep.subr.mxu0 0.0
    %869 = vmatpush2.msra.mxu0 0.0
    %870 = vmatprep.mubr.f32.mxu0 0.0
    %871 = vmatmul.mubr.f32.gmra.mxu0 %v804
    %v872 = vpop.f32.mrf.mxu0
    %v873 = vadd.f32 0.0, %v872
    %v874 = vpop.f32.mrf.mxu0
    %875 = vdwg.mxu0
    %v877 = vrot.slane %v803, 4
    %878 = vrot.lane.b32.xlu0 %v877, 32
    %v879 = vpop.permute.xlu0 %878
    %v880 = vsel %vm203, %v879, 0
    %882 = vmatprep.subr.mxu0 0.0
    %883 = vmatpush1.msra.mxu0 0.0
    %884 = vmatprep.subr.mxu0 0.0
    %885 = vmatpush1.msra.mxu0 0.0
    %886 = vmatprep.subr.mxu0 0.0
    %887 = vmatpush1.msra.mxu0 0.0
    %888 = vmatprep.subr.mxu0 0.0
    %889 = vmatpush1.msra.mxu0 0.0
    %890 = vmatprep.subr.mxu0 0.0
    %891 = vmatpush1.msra.mxu0 0.0
    %892 = vmatprep.subr.mxu0 0.0
    %893 = vmatpush1.msra.mxu0 0.0
    %894 = vmatprep.subr.mxu0 0.0
    %895 = vmatpush1.msra.mxu0 0.0
    %896 = vmatprep.subr.mxu0 0.0
    %897 = vmatpush1.msra.mxu0 0.0
    %898 = vmatprep.subr.mxu0 0.0
    %899 = vmatpush1.msra.mxu0 0.0
    %900 = vmatprep.subr.mxu0 0.0
    %901 = vmatpush1.msra.mxu0 0.0
    %902 = vmatprep.subr.mxu0 0.0
    %903 = vmatpush1.msra.mxu0 0.0
    %904 = vmatprep.subr.mxu0 0.0
    %905 = vmatpush1.msra.mxu0 0.0
    %906 = vmatprep.subr.mxu0 0.0
    %907 = vmatpush1.msra.mxu0 %v314
    %908 = vmatprep.subr.mxu0 0.0
    %909 = vmatpush1.msra.mxu0 %v313
    %910 = vmatprep.subr.mxu0 0.0
    %911 = vmatpush1.msra.mxu0 %v312
    %912 = vmatprep.subr.mxu0 0.0
    %913 = vmatpush1.msra.mxu0 %v311
    %914 = vmatprep.subr.mxu0 0.0
    %915 = vmatpush2.msra.mxu0 0.0
    %916 = vmatprep.subr.mxu0 0.0
    %917 = vmatpush2.msra.mxu0 0.0
    %918 = vmatprep.subr.mxu0 0.0
    %919 = vmatpush2.msra.mxu0 0.0
    %920 = vmatprep.subr.mxu0 0.0
    %921 = vmatpush2.msra.mxu0 0.0
    %922 = vmatprep.subr.mxu0 0.0
    %923 = vmatpush2.msra.mxu0 0.0
    %924 = vmatprep.subr.mxu0 0.0
    %925 = vmatpush2.msra.mxu0 0.0
    %926 = vmatprep.subr.mxu0 0.0
    %927 = vmatpush2.msra.mxu0 0.0
    %928 = vmatprep.subr.mxu0 0.0
    %929 = vmatpush2.msra.mxu0 0.0
    %930 = vmatprep.subr.mxu0 0.0
    %931 = vmatpush2.msra.mxu0 0.0
    %932 = vmatprep.subr.mxu0 0.0
    %933 = vmatpush2.msra.mxu0 0.0
    %934 = vmatprep.subr.mxu0 0.0
    %935 = vmatpush2.msra.mxu0 0.0
    %936 = vmatprep.subr.mxu0 0.0
    %937 = vmatpush2.msra.mxu0 0.0
    %938 = vmatprep.subr.mxu0 0.0
    %939 = vmatpush2.msra.mxu0 0.0
    %940 = vmatprep.subr.mxu0 0.0
    %941 = vmatpush2.msra.mxu0 0.0
    %942 = vmatprep.subr.mxu0 0.0
    %943 = vmatpush2.msra.mxu0 0.0
    %944 = vmatprep.subr.mxu0 0.0
    %945 = vmatpush2.msra.mxu0 0.0
    %946 = vmatprep.mubr.f32.mxu0 0.0
    %947 = vmatmul.mubr.f32.gmra.mxu0 %v880
    %v948 = vpop.f32.mrf.mxu0
    %v949 = vadd.f32 %v873, %v948
    %v950 = vpop.f32.mrf.mxu0
    %951 = vdwg.mxu0
    %v952 = vadd.f32 %v949, %v670
    %v953 = vxor.u32 %v952, 2147483648
    %v954 = vmul.f32 %v953, 1.442695
    %v955 = vpow.pop %v954
    %v956 = vadd.f32 %v955, 1.0
    %v957 = vrcp.pop %v956
    %v958 = vmul.f32 1.0, %v957
    %v959 = vtanh.pop %v952
    %v960 = vmul.f32 %v958, %v690
    %962 = vrot.lane.b32.xlu0 %v959, 64
    %v963 = vpop.permute.xlu0 %962
    %v965 = vmul.f32 %v958, %v963
    %967 = vrot.lane.b32.xlu0 %v965, 32
    %v968 = vpop.permute.xlu0 %967
    %v970 = vadd.f32 %v960, %v968
    %v971 = vtanh.pop %v970
    %973 = vrot.lane.b32.xlu0 %v971, 64
    %v974 = vpop.permute.xlu0 %973
    %v976 = vmul.f32 %v958, %v974
    %978 = vrot.lane.b32.xlu0 %v976, 32
    %v979 = vpop.permute.xlu0 %978
    %s981 = scalar_lea.vmem %s11, 4
    %982 = vst.msk [vmem:[%s981] sm:$0xf] %vm701, %v979
    %983 = vmatprep.subr.mxu0 0.0
    %984 = vmatpush1.msra.mxu0 0.0
    %985 = vmatprep.subr.mxu0 0.0
    %986 = vmatpush1.msra.mxu0 0.0
    %987 = vmatprep.subr.mxu0 0.0
    %988 = vmatpush1.msra.mxu0 0.0
    %989 = vmatprep.subr.mxu0 0.0
    %990 = vmatpush1.msra.mxu0 0.0
    %991 = vmatprep.subr.mxu0 0.0
    %992 = vmatpush1.msra.mxu0 0.0
    %993 = vmatprep.subr.mxu0 0.0
    %994 = vmatpush1.msra.mxu0 0.0
    %995 = vmatprep.subr.mxu0 0.0
    %996 = vmatpush1.msra.mxu0 0.0
    %997 = vmatprep.subr.mxu0 0.0
    %998 = vmatpush1.msra.mxu0 0.0
    %999 = vmatprep.subr.mxu0 0.0
    %1000 = vmatpush1.msra.mxu0 0.0
    %1001 = vmatprep.subr.mxu0 0.0
    %1002 = vmatpush1.msra.mxu0 0.0
    %1003 = vmatprep.subr.mxu0 0.0
    %1004 = vmatpush1.msra.mxu0 0.0
    %1005 = vmatprep.subr.mxu0 0.0
    %1006 = vmatpush1.msra.mxu0 0.0
    %1007 = vmatprep.subr.mxu0 0.0
    %1008 = vmatpush1.msra.mxu0 %v309
    %1009 = vmatprep.subr.mxu0 0.0
    %1010 = vmatpush1.msra.mxu0 %v308
    %1011 = vmatprep.subr.mxu0 0.0
    %1012 = vmatpush1.msra.mxu0 %v307
    %1013 = vmatprep.subr.mxu0 0.0
    %1014 = vmatpush1.msra.mxu0 %v306
    %1015 = vmatprep.subr.mxu0 0.0
    %1016 = vmatpush2.msra.mxu0 0.0
    %1017 = vmatprep.subr.mxu0 0.0
    %1018 = vmatpush2.msra.mxu0 0.0
    %1019 = vmatprep.subr.mxu0 0.0
    %1020 = vmatpush2.msra.mxu0 0.0
    %1021 = vmatprep.subr.mxu0 0.0
    %1022 = vmatpush2.msra.mxu0 0.0
    %1023 = vmatprep.subr.mxu0 0.0
    %1024 = vmatpush2.msra.mxu0 0.0
    %1025 = vmatprep.subr.mxu0 0.0
    %1026 = vmatpush2.msra.mxu0 0.0
    %1027 = vmatprep.subr.mxu0 0.0
    %1028 = vmatpush2.msra.mxu0 0.0
    %1029 = vmatprep.subr.mxu0 0.0
    %1030 = vmatpush2.msra.mxu0 0.0
    %1031 = vmatprep.subr.mxu0 0.0
    %1032 = vmatpush2.msra.mxu0 0.0
    %1033 = vmatprep.subr.mxu0 0.0
    %1034 = vmatpush2.msra.mxu0 0.0
    %1035 = vmatprep.subr.mxu0 0.0
    %1036 = vmatpush2.msra.mxu0 0.0
    %1037 = vmatprep.subr.mxu0 0.0
    %1038 = vmatpush2.msra.mxu0 0.0
    %1039 = vmatprep.subr.mxu0 0.0
    %1040 = vmatpush2.msra.mxu0 0.0
    %1041 = vmatprep.subr.mxu0 0.0
    %1042 = vmatpush2.msra.mxu0 0.0
    %1043 = vmatprep.subr.mxu0 0.0
    %1044 = vmatpush2.msra.mxu0 0.0
    %1045 = vmatprep.subr.mxu0 0.0
    %1046 = vmatpush2.msra.mxu0 0.0
    %1047 = vmatprep.mubr.f32.mxu0 0.0
    %1048 = vmatmul.mubr.f32.gmra.mxu0 %v880
    %v1049 = vpop.f32.mrf.mxu0
    %v1050 = vadd.f32 0.0, %v1049
    %v1051 = vpop.f32.mrf.mxu0
    %1052 = vdwg.mxu0
    %v1053 = vadd.f32 %v410, %v1050
    %v1054 = vxor.u32 %v1053, 2147483648
    %v1055 = vmul.f32 %v1054, 1.442695
    %v1056 = vpow.pop %v1055
    %v1057 = vadd.f32 %v1056, 1.0
    %v1058 = vrcp.pop %v1057
    %v1059 = vmul.f32 1.0, %v1058
    %v1060 = vtanh.pop %v1053
    %v1062 = vrot.slane %v797, 4
    %v1064 = vmul.f32 %v1059, %v1062
    %1066 = vrot.lane.b32.xlu0 %v1060, 64
    %v1067 = vpop.permute.xlu0 %1066
    %v1069 = vmul.f32 %v1059, %v1067
    %1071 = vrot.lane.b32.xlu0 %v1069, 32
    %v1072 = vpop.permute.xlu0 %1071
    %v1074 = vadd.f32 %v1064, %v1072
    %v1075 = vtanh.pop %v1074
    %1077 = vrot.lane.b32.xlu0 %v1075, 64
    %v1078 = vpop.permute.xlu0 %1077
    %v1080 = vmul.f32 %v1059, %v1078
    %v1081 = vsel %vm203, %v979, 0
    %1083 = vmatprep.subr.mxu0 0.0
    %1084 = vmatpush1.msra.mxu0 0.0
    %1085 = vmatprep.subr.mxu0 0.0
    %1086 = vmatpush1.msra.mxu0 0.0
    %1087 = vmatprep.subr.mxu0 0.0
    %1088 = vmatpush1.msra.mxu0 0.0
    %1089 = vmatprep.subr.mxu0 0.0
    %1090 = vmatpush1.msra.mxu0 0.0
    %1091 = vmatprep.subr.mxu0 0.0
    %1092 = vmatpush1.msra.mxu0 0.0
    %1093 = vmatprep.subr.mxu0 0.0
    %1094 = vmatpush1.msra.mxu0 0.0
    %1095 = vmatprep.subr.mxu0 0.0
    %1096 = vmatpush1.msra.mxu0 0.0
    %1097 = vmatprep.subr.mxu0 0.0
    %1098 = vmatpush1.msra.mxu0 0.0
    %1099 = vmatprep.subr.mxu0 0.0
    %1100 = vmatpush1.msra.mxu0 0.0
    %1101 = vmatprep.subr.mxu0 0.0
    %1102 = vmatpush1.msra.mxu0 0.0
    %1103 = vmatprep.subr.mxu0 0.0
    %1104 = vmatpush1.msra.mxu0 0.0
    %1105 = vmatprep.subr.mxu0 0.0
    %1106 = vmatpush1.msra.mxu0 0.0
    %1107 = vmatprep.subr.mxu0 0.0
    %1108 = vmatpush1.msra.mxu0 %v318
    %1109 = vmatprep.subr.mxu0 0.0
    %1110 = vmatpush1.msra.mxu0 %v317
    %1111 = vmatprep.subr.mxu0 0.0
    %1112 = vmatpush1.msra.mxu0 %v316
    %1113 = vmatprep.subr.mxu0 0.0
    %1114 = vmatpush1.msra.mxu0 %v315
    %1115 = vmatprep.subr.mxu0 0.0
    %1116 = vmatpush2.msra.mxu0 0.0
    %1117 = vmatprep.subr.mxu0 0.0
    %1118 = vmatpush2.msra.mxu0 0.0
    %1119 = vmatprep.subr.mxu0 0.0
    %1120 = vmatpush2.msra.mxu0 0.0
    %1121 = vmatprep.subr.mxu0 0.0
    %1122 = vmatpush2.msra.mxu0 0.0
    %1123 = vmatprep.subr.mxu0 0.0
    %1124 = vmatpush2.msra.mxu0 0.0
    %1125 = vmatprep.subr.mxu0 0.0
    %1126 = vmatpush2.msra.mxu0 0.0
    %1127 = vmatprep.subr.mxu0 0.0
    %1128 = vmatpush2.msra.mxu0 0.0
    %1129 = vmatprep.subr.mxu0 0.0
    %1130 = vmatpush2.msra.mxu0 0.0
    %1131 = vmatprep.subr.mxu0 0.0
    %1132 = vmatpush2.msra.mxu0 0.0
    %1133 = vmatprep.subr.mxu0 0.0
    %1134 = vmatpush2.msra.mxu0 0.0
    %1135 = vmatprep.subr.mxu0 0.0
    %1136 = vmatpush2.msra.mxu0 0.0
    %1137 = vmatprep.subr.mxu0 0.0
    %1138 = vmatpush2.msra.mxu0 0.0
    %1139 = vmatprep.subr.mxu0 0.0
    %1140 = vmatpush2.msra.mxu0 0.0
    %1141 = vmatprep.subr.mxu0 0.0
    %1142 = vmatpush2.msra.mxu0 0.0
    %1143 = vmatprep.subr.mxu0 0.0
    %1144 = vmatpush2.msra.mxu0 0.0
    %1145 = vmatprep.subr.mxu0 0.0
    %1146 = vmatpush2.msra.mxu0 0.0
    %1147 = vmatprep.mubr.f32.mxu0 0.0
    %1148 = vmatmul.mubr.f32.gmra.mxu0 %v1081
    %v1149 = vpop.f32.mrf.mxu0
    %v1150 = vadd.f32 0.0, %v1149
    %v1151 = vpop.f32.mrf.mxu0
    %1152 = vdwg.mxu0
    %1154 = vrot.lane.b32.xlu0 %v1080, 32
    %v1155 = vpop.permute.xlu0 %1154
    %v1156 = vsel %vm203, %v1155, 0
    %1158 = vmatprep.subr.mxu0 0.0
    %1159 = vmatpush1.msra.mxu0 0.0
    %1160 = vmatprep.subr.mxu0 0.0
    %1161 = vmatpush1.msra.mxu0 0.0
    %1162 = vmatprep.subr.mxu0 0.0
    %1163 = vmatpush1.msra.mxu0 0.0
    %1164 = vmatprep.subr.mxu0 0.0
    %1165 = vmatpush1.msra.mxu0 0.0
    %1166 = vmatprep.subr.mxu0 0.0
    %1167 = vmatpush1.msra.mxu0 0.0
    %1168 = vmatprep.subr.mxu0 0.0
    %1169 = vmatpush1.msra.mxu0 0.0
    %1170 = vmatprep.subr.mxu0 0.0
    %1171 = vmatpush1.msra.mxu0 0.0
    %1172 = vmatprep.subr.mxu0 0.0
    %1173 = vmatpush1.msra.mxu0 0.0
    %1174 = vmatprep.subr.mxu0 0.0
    %1175 = vmatpush1.msra.mxu0 0.0
    %1176 = vmatprep.subr.mxu0 0.0
    %1177 = vmatpush1.msra.mxu0 0.0
    %1178 = vmatprep.subr.mxu0 0.0
    %1179 = vmatpush1.msra.mxu0 0.0
    %1180 = vmatprep.subr.mxu0 0.0
    %1181 = vmatpush1.msra.mxu0 0.0
    %1182 = vmatprep.subr.mxu0 0.0
    %1183 = vmatpush1.msra.mxu0 %v314
    %1184 = vmatprep.subr.mxu0 0.0
    %1185 = vmatpush1.msra.mxu0 %v313
    %1186 = vmatprep.subr.mxu0 0.0
    %1187 = vmatpush1.msra.mxu0 %v312
    %1188 = vmatprep.subr.mxu0 0.0
    %1189 = vmatpush1.msra.mxu0 %v311
    %1190 = vmatprep.subr.mxu0 0.0
    %1191 = vmatpush2.msra.mxu0 0.0
    %1192 = vmatprep.subr.mxu0 0.0
    %1193 = vmatpush2.msra.mxu0 0.0
    %1194 = vmatprep.subr.mxu0 0.0
    %1195 = vmatpush2.msra.mxu0 0.0
    %1196 = vmatprep.subr.mxu0 0.0
    %1197 = vmatpush2.msra.mxu0 0.0
    %1198 = vmatprep.subr.mxu0 0.0
    %1199 = vmatpush2.msra.mxu0 0.0
    %1200 = vmatprep.subr.mxu0 0.0
    %1201 = vmatpush2.msra.mxu0 0.0
    %1202 = vmatprep.subr.mxu0 0.0
    %1203 = vmatpush2.msra.mxu0 0.0
    %1204 = vmatprep.subr.mxu0 0.0
    %1205 = vmatpush2.msra.mxu0 0.0
    %1206 = vmatprep.subr.mxu0 0.0
    %1207 = vmatpush2.msra.mxu0 0.0
    %1208 = vmatprep.subr.mxu0 0.0
    %1209 = vmatpush2.msra.mxu0 0.0
    %1210 = vmatprep.subr.mxu0 0.0
    %1211 = vmatpush2.msra.mxu0 0.0
    %1212 = vmatprep.subr.mxu0 0.0
    %1213 = vmatpush2.msra.mxu0 0.0
    %1214 = vmatprep.subr.mxu0 0.0
    %1215 = vmatpush2.msra.mxu0 0.0
    %1216 = vmatprep.subr.mxu0 0.0
    %1217 = vmatpush2.msra.mxu0 0.0
    %1218 = vmatprep.subr.mxu0 0.0
    %1219 = vmatpush2.msra.mxu0 0.0
    %1220 = vmatprep.subr.mxu0 0.0
    %1221 = vmatpush2.msra.mxu0 0.0
    %1222 = vmatprep.mubr.f32.mxu0 0.0
    %1223 = vmatmul.mubr.f32.gmra.mxu0 %v1156
    %v1224 = vpop.f32.mrf.mxu0
    %v1225 = vadd.f32 %v1150, %v1224
    %v1226 = vpop.f32.mrf.mxu0
    %1227 = vdwg.mxu0
    %v1228 = vadd.f32 %v1225, %v670
    %v1229 = vxor.u32 %v1228, 2147483648
    %v1230 = vmul.f32 %v1229, 1.442695
    %v1231 = vpow.pop %v1230
    %v1232 = vadd.f32 %v1231, 1.0
    %v1233 = vrcp.pop %v1232
    %v1234 = vmul.f32 1.0, %v1233
    %v1235 = vtanh.pop %v1228
    %v1236 = vmul.f32 %v1234, %v970
    %1238 = vrot.lane.b32.xlu0 %v1235, 64
    %v1239 = vpop.permute.xlu0 %1238
    %v1241 = vmul.f32 %v1234, %v1239
    %1243 = vrot.lane.b32.xlu0 %v1241, 32
    %v1244 = vpop.permute.xlu0 %1243
    %v1246 = vadd.f32 %v1236, %v1244
    %v1247 = vtanh.pop %v1246
    %1249 = vrot.lane.b32.xlu0 %v1247, 64
    %v1250 = vpop.permute.xlu0 %1249
    %v1252 = vmul.f32 %v1234, %v1250
    %1254 = vrot.lane.b32.xlu0 %v1252, 32
    %v1255 = vpop.permute.xlu0 %1254
    %s1257 = scalar_lea.vmem %s11, 8
    %1258 = vst.msk [vmem:[%s1257] sm:$0xf] %vm701, %v1255
    %1259 = vmatprep.subr.mxu0 0.0
    %1260 = vmatpush1.msra.mxu0 0.0
    %1261 = vmatprep.subr.mxu0 0.0
    %1262 = vmatpush1.msra.mxu0 0.0
    %1263 = vmatprep.subr.mxu0 0.0
    %1264 = vmatpush1.msra.mxu0 0.0
    %1265 = vmatprep.subr.mxu0 0.0
    %1266 = vmatpush1.msra.mxu0 0.0
    %1267 = vmatprep.subr.mxu0 0.0
    %1268 = vmatpush1.msra.mxu0 0.0
    %1269 = vmatprep.subr.mxu0 0.0
    %1270 = vmatpush1.msra.mxu0 0.0
    %1271 = vmatprep.subr.mxu0 0.0
    %1272 = vmatpush1.msra.mxu0 0.0
    %1273 = vmatprep.subr.mxu0 0.0
    %1274 = vmatpush1.msra.mxu0 0.0
    %1275 = vmatprep.subr.mxu0 0.0
    %1276 = vmatpush1.msra.mxu0 0.0
    %1277 = vmatprep.subr.mxu0 0.0
    %1278 = vmatpush1.msra.mxu0 0.0
    %1279 = vmatprep.subr.mxu0 0.0
    %1280 = vmatpush1.msra.mxu0 0.0
    %1281 = vmatprep.subr.mxu0 0.0
    %1282 = vmatpush1.msra.mxu0 0.0
    %1283 = vmatprep.subr.mxu0 0.0
    %1284 = vmatpush1.msra.mxu0 %v309
    %1285 = vmatprep.subr.mxu0 0.0
    %1286 = vmatpush1.msra.mxu0 %v308
    %1287 = vmatprep.subr.mxu0 0.0
    %1288 = vmatpush1.msra.mxu0 %v307
    %1289 = vmatprep.subr.mxu0 0.0
    %1290 = vmatpush1.msra.mxu0 %v306
    %1291 = vmatprep.subr.mxu0 0.0
    %1292 = vmatpush2.msra.mxu0 0.0
    %1293 = vmatprep.subr.mxu0 0.0
    %1294 = vmatpush2.msra.mxu0 0.0
    %1295 = vmatprep.subr.mxu0 0.0
    %1296 = vmatpush2.msra.mxu0 0.0
    %1297 = vmatprep.subr.mxu0 0.0
    %1298 = vmatpush2.msra.mxu0 0.0
    %1299 = vmatprep.subr.mxu0 0.0
    %1300 = vmatpush2.msra.mxu0 0.0
    %1301 = vmatprep.subr.mxu0 0.0
    %1302 = vmatpush2.msra.mxu0 0.0
    %1303 = vmatprep.subr.mxu0 0.0
    %1304 = vmatpush2.msra.mxu0 0.0
    %1305 = vmatprep.subr.mxu0 0.0
    %1306 = vmatpush2.msra.mxu0 0.0
    %1307 = vmatprep.subr.mxu0 0.0
    %1308 = vmatpush2.msra.mxu0 0.0
    %1309 = vmatprep.subr.mxu0 0.0
    %1310 = vmatpush2.msra.mxu0 0.0
    %1311 = vmatprep.subr.mxu0 0.0
    %1312 = vmatpush2.msra.mxu0 0.0
    %1313 = vmatprep.subr.mxu0 0.0
    %1314 = vmatpush2.msra.mxu0 0.0
    %1315 = vmatprep.subr.mxu0 0.0
    %1316 = vmatpush2.msra.mxu0 0.0
    %1317 = vmatprep.subr.mxu0 0.0
    %1318 = vmatpush2.msra.mxu0 0.0
    %1319 = vmatprep.subr.mxu0 0.0
    %1320 = vmatpush2.msra.mxu0 0.0
    %1321 = vmatprep.subr.mxu0 0.0
    %1322 = vmatpush2.msra.mxu0 0.0
    %1323 = vmatprep.mubr.f32.mxu0 0.0
    %1324 = vmatmul.mubr.f32.gmra.mxu0 %v1156
    %v1325 = vpop.f32.mrf.mxu0
    %v1326 = vadd.f32 0.0, %v1325
    %v1327 = vpop.f32.mrf.mxu0
    %1328 = vdwg.mxu0
    %v1330 = vrot.slane %v1326, 4
    %v1332 = vadd.f32 %v410, %v1330
    %v1333 = vxor.u32 %v1332, 2147483648
    %v1334 = vmul.f32 %v1333, 1.442695
    %v1335 = vpow.pop %v1334
    %v1336 = vadd.f32 %v1335, 1.0
    %v1337 = vrcp.pop %v1336
    %v1338 = vmul.f32 1.0, %v1337
    %v1339 = vtanh.pop %v1332
    %v1341 = vrot.slane %v1074, 4
    %v1343 = vmul.f32 %v1338, %v1341
    %1345 = vrot.lane.b32.xlu0 %v1339, 64
    %v1346 = vpop.permute.xlu0 %1345
    %v1348 = vmul.f32 %v1338, %v1346
    %1350 = vrot.lane.b32.xlu0 %v1348, 32
    %v1351 = vpop.permute.xlu0 %1350
    %v1353 = vadd.f32 %v1343, %v1351
    %v1354 = vtanh.pop %v1353
    %1356 = vrot.lane.b32.xlu0 %v1354, 64
    %v1357 = vpop.permute.xlu0 %1356
    %v1359 = vmul.f32 %v1338, %v1357
    %v1360 = vsel %vm203, %v1255, 0
    %1362 = vmatprep.subr.mxu0 0.0
    %1363 = vmatpush1.msra.mxu0 0.0
    %1364 = vmatprep.subr.mxu0 0.0
    %1365 = vmatpush1.msra.mxu0 0.0
    %1366 = vmatprep.subr.mxu0 0.0
    %1367 = vmatpush1.msra.mxu0 0.0
    %1368 = vmatprep.subr.mxu0 0.0
    %1369 = vmatpush1.msra.mxu0 0.0
    %1370 = vmatprep.subr.mxu0 0.0
    %1371 = vmatpush1.msra.mxu0 0.0
    %1372 = vmatprep.subr.mxu0 0.0
    %1373 = vmatpush1.msra.mxu0 0.0
    %1374 = vmatprep.subr.mxu0 0.0
    %1375 = vmatpush1.msra.mxu0 0.0
    %1376 = vmatprep.subr.mxu0 0.0
    %1377 = vmatpush1.msra.mxu0 0.0
    %1378 = vmatprep.subr.mxu0 0.0
    %1379 = vmatpush1.msra.mxu0 0.0
    %1380 = vmatprep.subr.mxu0 0.0
    %1381 = vmatpush1.msra.mxu0 0.0
    %1382 = vmatprep.subr.mxu0 0.0
    %1383 = vmatpush1.msra.mxu0 0.0
    %1384 = vmatprep.subr.mxu0 0.0
    %1385 = vmatpush1.msra.mxu0 0.0
    %1386 = vmatprep.subr.mxu0 0.0
    %1387 = vmatpush1.msra.mxu0 %v318
    %1388 = vmatprep.subr.mxu0 0.0
    %1389 = vmatpush1.msra.mxu0 %v317
    %1390 = vmatprep.subr.mxu0 0.0
    %1391 = vmatpush1.msra.mxu0 %v316
    %1392 = vmatprep.subr.mxu0 0.0
    %1393 = vmatpush1.msra.mxu0 %v315
    %1394 = vmatprep.subr.mxu0 0.0
    %1395 = vmatpush2.msra.mxu0 0.0
    %1396 = vmatprep.subr.mxu0 0.0
    %1397 = vmatpush2.msra.mxu0 0.0
    %1398 = vmatprep.subr.mxu0 0.0
    %1399 = vmatpush2.msra.mxu0 0.0
    %1400 = vmatprep.subr.mxu0 0.0
    %1401 = vmatpush2.msra.mxu0 0.0
    %1402 = vmatprep.subr.mxu0 0.0
    %1403 = vmatpush2.msra.mxu0 0.0
    %1404 = vmatprep.subr.mxu0 0.0
    %1405 = vmatpush2.msra.mxu0 0.0
    %1406 = vmatprep.subr.mxu0 0.0
    %1407 = vmatpush2.msra.mxu0 0.0
    %1408 = vmatprep.subr.mxu0 0.0
    %1409 = vmatpush2.msra.mxu0 0.0
    %1410 = vmatprep.subr.mxu0 0.0
    %1411 = vmatpush2.msra.mxu0 0.0
    %1412 = vmatprep.subr.mxu0 0.0
    %1413 = vmatpush2.msra.mxu0 0.0
    %1414 = vmatprep.subr.mxu0 0.0
    %1415 = vmatpush2.msra.mxu0 0.0
    %1416 = vmatprep.subr.mxu0 0.0
    %1417 = vmatpush2.msra.mxu0 0.0
    %1418 = vmatprep.subr.mxu0 0.0
    %1419 = vmatpush2.msra.mxu0 0.0
    %1420 = vmatprep.subr.mxu0 0.0
    %1421 = vmatpush2.msra.mxu0 0.0
    %1422 = vmatprep.subr.mxu0 0.0
    %1423 = vmatpush2.msra.mxu0 0.0
    %1424 = vmatprep.subr.mxu0 0.0
    %1425 = vmatpush2.msra.mxu0 0.0
    %1426 = vmatprep.mubr.f32.mxu0 0.0
    %1427 = vmatmul.mubr.f32.gmra.mxu0 %v1360
    %v1428 = vpop.f32.mrf.mxu0
    %v1429 = vadd.f32 0.0, %v1428
    %v1430 = vpop.f32.mrf.mxu0
    %1431 = vdwg.mxu0
    %v1433 = vrot.slane %v1359, 4
    %1434 = vrot.lane.b32.xlu0 %v1433, 32
    %v1435 = vpop.permute.xlu0 %1434
    %v1436 = vsel %vm203, %v1435, 0
    %1438 = vmatprep.subr.mxu0 0.0
    %1439 = vmatpush1.msra.mxu0 0.0
    %1440 = vmatprep.subr.mxu0 0.0
    %1441 = vmatpush1.msra.mxu0 0.0
    %1442 = vmatprep.subr.mxu0 0.0
    %1443 = vmatpush1.msra.mxu0 0.0
    %1444 = vmatprep.subr.mxu0 0.0
    %1445 = vmatpush1.msra.mxu0 0.0
    %1446 = vmatprep.subr.mxu0 0.0
    %1447 = vmatpush1.msra.mxu0 0.0
    %1448 = vmatprep.subr.mxu0 0.0
    %1449 = vmatpush1.msra.mxu0 0.0
    %1450 = vmatprep.subr.mxu0 0.0
    %1451 = vmatpush1.msra.mxu0 0.0
    %1452 = vmatprep.subr.mxu0 0.0
    %1453 = vmatpush1.msra.mxu0 0.0
    %1454 = vmatprep.subr.mxu0 0.0
    %1455 = vmatpush1.msra.mxu0 0.0
    %1456 = vmatprep.subr.mxu0 0.0
    %1457 = vmatpush1.msra.mxu0 0.0
    %1458 = vmatprep.subr.mxu0 0.0
    %1459 = vmatpush1.msra.mxu0 0.0
    %1460 = vmatprep.subr.mxu0 0.0
    %1461 = vmatpush1.msra.mxu0 0.0
    %1462 = vmatprep.subr.mxu0 0.0
    %1463 = vmatpush1.msra.mxu0 %v314
    %1464 = vmatprep.subr.mxu0 0.0
    %1465 = vmatpush1.msra.mxu0 %v313
    %1466 = vmatprep.subr.mxu0 0.0
    %1467 = vmatpush1.msra.mxu0 %v312
    %1468 = vmatprep.subr.mxu0 0.0
    %1469 = vmatpush1.msra.mxu0 %v311
    %1470 = vmatprep.subr.mxu0 0.0
    %1471 = vmatpush2.msra.mxu0 0.0
    %1472 = vmatprep.subr.mxu0 0.0
    %1473 = vmatpush2.msra.mxu0 0.0
    %1474 = vmatprep.subr.mxu0 0.0
    %1475 = vmatpush2.msra.mxu0 0.0
    %1476 = vmatprep.subr.mxu0 0.0
    %1477 = vmatpush2.msra.mxu0 0.0
    %1478 = vmatprep.subr.mxu0 0.0
    %1479 = vmatpush2.msra.mxu0 0.0
    %1480 = vmatprep.subr.mxu0 0.0
    %1481 = vmatpush2.msra.mxu0 0.0
    %1482 = vmatprep.subr.mxu0 0.0
    %1483 = vmatpush2.msra.mxu0 0.0
    %1484 = vmatprep.subr.mxu0 0.0
    %1485 = vmatpush2.msra.mxu0 0.0
    %1486 = vmatprep.subr.mxu0 0.0
    %1487 = vmatpush2.msra.mxu0 0.0
    %1488 = vmatprep.subr.mxu0 0.0
    %1489 = vmatpush2.msra.mxu0 0.0
    %1490 = vmatprep.subr.mxu0 0.0
    %1491 = vmatpush2.msra.mxu0 0.0
    %1492 = vmatprep.subr.mxu0 0.0
    %1493 = vmatpush2.msra.mxu0 0.0
    %1494 = vmatprep.subr.mxu0 0.0
    %1495 = vmatpush2.msra.mxu0 0.0
    %1496 = vmatprep.subr.mxu0 0.0
    %1497 = vmatpush2.msra.mxu0 0.0
    %1498 = vmatprep.subr.mxu0 0.0
    %1499 = vmatpush2.msra.mxu0 0.0
    %1500 = vmatprep.subr.mxu0 0.0
    %1501 = vmatpush2.msra.mxu0 0.0
    %1502 = vmatprep.mubr.f32.mxu0 0.0
    %1503 = vmatmul.mubr.f32.gmra.mxu0 %v1436
    %v1504 = vpop.f32.mrf.mxu0
    %v1505 = vadd.f32 %v1429, %v1504
    %v1506 = vpop.f32.mrf.mxu0
    %1507 = vdwg.mxu0
    %v1508 = vadd.f32 %v1505, %v670
    %v1509 = vxor.u32 %v1508, 2147483648
    %v1510 = vmul.f32 %v1509, 1.442695
    %v1511 = vpow.pop %v1510
    %v1512 = vadd.f32 %v1511, 1.0
    %v1513 = vrcp.pop %v1512
    %v1514 = vmul.f32 1.0, %v1513
    %v1515 = vtanh.pop %v1508
    %v1516 = vmul.f32 %v1514, %v1246
    %1518 = vrot.lane.b32.xlu0 %v1515, 64
    %v1519 = vpop.permute.xlu0 %1518
    %v1521 = vmul.f32 %v1514, %v1519
    %1523 = vrot.lane.b32.xlu0 %v1521, 32
    %v1524 = vpop.permute.xlu0 %1523
    %v1526 = vadd.f32 %v1516, %v1524
    %v1527 = vtanh.pop %v1526
    %1529 = vrot.lane.b32.xlu0 %v1527, 64
    %v1530 = vpop.permute.xlu0 %1529
    %v1532 = vmul.f32 %v1514, %v1530
    %1534 = vrot.lane.b32.xlu0 %v1532, 32
    %v1535 = vpop.permute.xlu0 %1534
    %s1537 = scalar_lea.vmem %s11, 12
    %1538 = vst.msk [vmem:[%s1537] sm:$0xf] %vm701, %v1535
    %1539 = vmatprep.subr.mxu0 0.0
    %1540 = vmatpush1.msra.mxu0 0.0
    %1541 = vmatprep.subr.mxu0 0.0
    %1542 = vmatpush1.msra.mxu0 0.0
    %1543 = vmatprep.subr.mxu0 0.0
    %1544 = vmatpush1.msra.mxu0 0.0
    %1545 = vmatprep.subr.mxu0 0.0
    %1546 = vmatpush1.msra.mxu0 0.0
    %1547 = vmatprep.subr.mxu0 0.0
    %1548 = vmatpush1.msra.mxu0 0.0
    %1549 = vmatprep.subr.mxu0 0.0
    %1550 = vmatpush1.msra.mxu0 0.0
    %1551 = vmatprep.subr.mxu0 0.0
    %1552 = vmatpush1.msra.mxu0 0.0
    %1553 = vmatprep.subr.mxu0 0.0
    %1554 = vmatpush1.msra.mxu0 0.0
    %1555 = vmatprep.subr.mxu0 0.0
    %1556 = vmatpush1.msra.mxu0 0.0
    %1557 = vmatprep.subr.mxu0 0.0
    %1558 = vmatpush1.msra.mxu0 0.0
    %1559 = vmatprep.subr.mxu0 0.0
    %1560 = vmatpush1.msra.mxu0 0.0
    %1561 = vmatprep.subr.mxu0 0.0
    %1562 = vmatpush1.msra.mxu0 0.0
    %1563 = vmatprep.subr.mxu0 0.0
    %1564 = vmatpush1.msra.mxu0 %v309
    %1565 = vmatprep.subr.mxu0 0.0
    %1566 = vmatpush1.msra.mxu0 %v308
    %1567 = vmatprep.subr.mxu0 0.0
    %1568 = vmatpush1.msra.mxu0 %v307
    %1569 = vmatprep.subr.mxu0 0.0
    %1570 = vmatpush1.msra.mxu0 %v306
    %1571 = vmatprep.subr.mxu0 0.0
    %1572 = vmatpush2.msra.mxu0 0.0
    %1573 = vmatprep.subr.mxu0 0.0
    %1574 = vmatpush2.msra.mxu0 0.0
    %1575 = vmatprep.subr.mxu0 0.0
    %1576 = vmatpush2.msra.mxu0 0.0
    %1577 = vmatprep.subr.mxu0 0.0
    %1578 = vmatpush2.msra.mxu0 0.0
    %1579 = vmatprep.subr.mxu0 0.0
    %1580 = vmatpush2.msra.mxu0 0.0
    %1581 = vmatprep.subr.mxu0 0.0
    %1582 = vmatpush2.msra.mxu0 0.0
    %1583 = vmatprep.subr.mxu0 0.0
    %1584 = vmatpush2.msra.mxu0 0.0
    %1585 = vmatprep.subr.mxu0 0.0
    %1586 = vmatpush2.msra.mxu0 0.0
    %1587 = vmatprep.subr.mxu0 0.0
    %1588 = vmatpush2.msra.mxu0 0.0
    %1589 = vmatprep.subr.mxu0 0.0
    %1590 = vmatpush2.msra.mxu0 0.0
    %1591 = vmatprep.subr.mxu0 0.0
    %1592 = vmatpush2.msra.mxu0 0.0
    %1593 = vmatprep.subr.mxu0 0.0
    %1594 = vmatpush2.msra.mxu0 0.0
    %1595 = vmatprep.subr.mxu0 0.0
    %1596 = vmatpush2.msra.mxu0 0.0
    %1597 = vmatprep.subr.mxu0 0.0
    %1598 = vmatpush2.msra.mxu0 0.0
    %1599 = vmatprep.subr.mxu0 0.0
    %1600 = vmatpush2.msra.mxu0 0.0
    %1601 = vmatprep.subr.mxu0 0.0
    %1602 = vmatpush2.msra.mxu0 0.0
    %1603 = vmatprep.mubr.f32.mxu0 0.0
    %1604 = vmatmul.mubr.f32.gmra.mxu0 %v1436
    %v1605 = vpop.f32.mrf.mxu0
    %v1606 = vadd.f32 0.0, %v1605
    %v1607 = vpop.f32.mrf.mxu0
    %1608 = vdwg.mxu0
    %v1609 = vadd.f32 %v415, %v1606
    %v1610 = vxor.u32 %v1609, 2147483648
    %v1611 = vmul.f32 %v1610, 1.442695
    %v1612 = vpow.pop %v1611
    %v1613 = vadd.f32 %v1612, 1.0
    %v1614 = vrcp.pop %v1613
    %v1615 = vmul.f32 1.0, %v1614
    %v1616 = vtanh.pop %v1609
    %v1618 = vrot.slane %v1353, 4
    %v1620 = vmul.f32 %v1615, %v1618
    %1622 = vrot.lane.b32.xlu0 %v1616, 64
    %v1623 = vpop.permute.xlu0 %1622
    %v1625 = vmul.f32 %v1615, %v1623
    %1627 = vrot.lane.b32.xlu0 %v1625, 32
    %v1628 = vpop.permute.xlu0 %1627
    %v1630 = vadd.f32 %v1620, %v1628
    %v1631 = vtanh.pop %v1630
    %1633 = vrot.lane.b32.xlu0 %v1631, 64
    %v1634 = vpop.permute.xlu0 %1633
    %v1636 = vmul.f32 %v1615, %v1634
    %v1637 = vsel %vm203, %v1535, 0
    %1639 = vmatprep.subr.mxu0 0.0
    %1640 = vmatpush1.msra.mxu0 0.0
    %1641 = vmatprep.subr.mxu0 0.0
    %1642 = vmatpush1.msra.mxu0 0.0
    %1643 = vmatprep.subr.mxu0 0.0
    %1644 = vmatpush1.msra.mxu0 0.0
    %1645 = vmatprep.subr.mxu0 0.0
    %1646 = vmatpush1.msra.mxu0 0.0
    %1647 = vmatprep.subr.mxu0 0.0
    %1648 = vmatpush1.msra.mxu0 0.0
    %1649 = vmatprep.subr.mxu0 0.0
    %1650 = vmatpush1.msra.mxu0 0.0
    %1651 = vmatprep.subr.mxu0 0.0
    %1652 = vmatpush1.msra.mxu0 0.0
    %1653 = vmatprep.subr.mxu0 0.0
    %1654 = vmatpush1.msra.mxu0 0.0
    %1655 = vmatprep.subr.mxu0 0.0
    %1656 = vmatpush1.msra.mxu0 0.0
    %1657 = vmatprep.subr.mxu0 0.0
    %1658 = vmatpush1.msra.mxu0 0.0
    %1659 = vmatprep.subr.mxu0 0.0
    %1660 = vmatpush1.msra.mxu0 0.0
    %1661 = vmatprep.subr.mxu0 0.0
    %1662 = vmatpush1.msra.mxu0 0.0
    %1663 = vmatprep.subr.mxu0 0.0
    %1664 = vmatpush1.msra.mxu0 %v318
    %1665 = vmatprep.subr.mxu0 0.0
    %1666 = vmatpush1.msra.mxu0 %v317
    %1667 = vmatprep.subr.mxu0 0.0
    %1668 = vmatpush1.msra.mxu0 %v316
    %1669 = vmatprep.subr.mxu0 0.0
    %1670 = vmatpush1.msra.mxu0 %v315
    %1671 = vmatprep.subr.mxu0 0.0
    %1672 = vmatpush2.msra.mxu0 0.0
    %1673 = vmatprep.subr.mxu0 0.0
    %1674 = vmatpush2.msra.mxu0 0.0
    %1675 = vmatprep.subr.mxu0 0.0
    %1676 = vmatpush2.msra.mxu0 0.0
    %1677 = vmatprep.subr.mxu0 0.0
    %1678 = vmatpush2.msra.mxu0 0.0
    %1679 = vmatprep.subr.mxu0 0.0
    %1680 = vmatpush2.msra.mxu0 0.0
    %1681 = vmatprep.subr.mxu0 0.0
    %1682 = vmatpush2.msra.mxu0 0.0
    %1683 = vmatprep.subr.mxu0 0.0
    %1684 = vmatpush2.msra.mxu0 0.0
    %1685 = vmatprep.subr.mxu0 0.0
    %1686 = vmatpush2.msra.mxu0 0.0
    %1687 = vmatprep.subr.mxu0 0.0
    %1688 = vmatpush2.msra.mxu0 0.0
    %1689 = vmatprep.subr.mxu0 0.0
    %1690 = vmatpush2.msra.mxu0 0.0
    %1691 = vmatprep.subr.mxu0 0.0
    %1692 = vmatpush2.msra.mxu0 0.0
    %1693 = vmatprep.subr.mxu0 0.0
    %1694 = vmatpush2.msra.mxu0 0.0
    %1695 = vmatprep.subr.mxu0 0.0
    %1696 = vmatpush2.msra.mxu0 0.0
    %1697 = vmatprep.subr.mxu0 0.0
    %1698 = vmatpush2.msra.mxu0 0.0
    %1699 = vmatprep.subr.mxu0 0.0
    %1700 = vmatpush2.msra.mxu0 0.0
    %1701 = vmatprep.subr.mxu0 0.0
    %1702 = vmatpush2.msra.mxu0 0.0
    %1703 = vmatprep.mubr.f32.mxu0 0.0
    %1704 = vmatmul.mubr.f32.gmra.mxu0 %v1637
    %v1705 = vpop.f32.mrf.mxu0
    %v1706 = vadd.f32 0.0, %v1705
    %v1707 = vpop.f32.mrf.mxu0
    %1708 = vdwg.mxu0
    %1710 = vrot.lane.b32.xlu0 %v1636, 32
    %v1711 = vpop.permute.xlu0 %1710
    %v1712 = vsel %vm203, %v1711, 0
    %1714 = vmatprep.subr.mxu0 0.0
    %1715 = vmatpush1.msra.mxu0 0.0
    %1716 = vmatprep.subr.mxu0 0.0
    %1717 = vmatpush1.msra.mxu0 0.0
    %1718 = vmatprep.subr.mxu0 0.0
    %1719 = vmatpush1.msra.mxu0 0.0
    %1720 = vmatprep.subr.mxu0 0.0
    %1721 = vmatpush1.msra.mxu0 0.0
    %1722 = vmatprep.subr.mxu0 0.0
    %1723 = vmatpush1.msra.mxu0 0.0
    %1724 = vmatprep.subr.mxu0 0.0
    %1725 = vmatpush1.msra.mxu0 0.0
    %1726 = vmatprep.subr.mxu0 0.0
    %1727 = vmatpush1.msra.mxu0 0.0
    %1728 = vmatprep.subr.mxu0 0.0
    %1729 = vmatpush1.msra.mxu0 0.0
    %1730 = vmatprep.subr.mxu0 0.0
    %1731 = vmatpush1.msra.mxu0 0.0
    %1732 = vmatprep.subr.mxu0 0.0
    %1733 = vmatpush1.msra.mxu0 0.0
    %1734 = vmatprep.subr.mxu0 0.0
    %1735 = vmatpush1.msra.mxu0 0.0
    %1736 = vmatprep.subr.mxu0 0.0
    %1737 = vmatpush1.msra.mxu0 0.0
    %1738 = vmatprep.subr.mxu0 0.0
    %1739 = vmatpush1.msra.mxu0 %v314
    %1740 = vmatprep.subr.mxu0 0.0
    %1741 = vmatpush1.msra.mxu0 %v313
    %1742 = vmatprep.subr.mxu0 0.0
    %1743 = vmatpush1.msra.mxu0 %v312
    %1744 = vmatprep.subr.mxu0 0.0
    %1745 = vmatpush1.msra.mxu0 %v311
    %1746 = vmatprep.subr.mxu0 0.0
    %1747 = vmatpush2.msra.mxu0 0.0
    %1748 = vmatprep.subr.mxu0 0.0
    %1749 = vmatpush2.msra.mxu0 0.0
    %1750 = vmatprep.subr.mxu0 0.0
    %1751 = vmatpush2.msra.mxu0 0.0
    %1752 = vmatprep.subr.mxu0 0.0
    %1753 = vmatpush2.msra.mxu0 0.0
    %1754 = vmatprep.subr.mxu0 0.0
    %1755 = vmatpush2.msra.mxu0 0.0
    %1756 = vmatprep.subr.mxu0 0.0
    %1757 = vmatpush2.msra.mxu0 0.0
    %1758 = vmatprep.subr.mxu0 0.0
    %1759 = vmatpush2.msra.mxu0 0.0
    %1760 = vmatprep.subr.mxu0 0.0
    %1761 = vmatpush2.msra.mxu0 0.0
    %1762 = vmatprep.subr.mxu0 0.0
    %1763 = vmatpush2.msra.mxu0 0.0
    %1764 = vmatprep.subr.mxu0 0.0
    %1765 = vmatpush2.msra.mxu0 0.0
    %1766 = vmatprep.subr.mxu0 0.0
    %1767 = vmatpush2.msra.mxu0 0.0
    %1768 = vmatprep.subr.mxu0 0.0
    %1769 = vmatpush2.msra.mxu0 0.0
    %1770 = vmatprep.subr.mxu0 0.0
    %1771 = vmatpush2.msra.mxu0 0.0
    %1772 = vmatprep.subr.mxu0 0.0
    %1773 = vmatpush2.msra.mxu0 0.0
    %1774 = vmatprep.subr.mxu0 0.0
    %1775 = vmatpush2.msra.mxu0 0.0
    %1776 = vmatprep.subr.mxu0 0.0
    %1777 = vmatpush2.msra.mxu0 0.0
    %1778 = vmatprep.mubr.f32.mxu0 0.0
    %1779 = vmatmul.mubr.f32.gmra.mxu0 %v1712
    %v1780 = vpop.f32.mrf.mxu0
    %v1781 = vadd.f32 %v1706, %v1780
    %v1782 = vpop.f32.mrf.mxu0
    %1783 = vdwg.mxu0
    %v1784 = vadd.f32 %v1781, %v670
    %v1785 = vxor.u32 %v1784, 2147483648
    %v1786 = vmul.f32 %v1785, 1.442695
    %v1787 = vpow.pop %v1786
    %v1788 = vadd.f32 %v1787, 1.0
    %v1789 = vrcp.pop %v1788
    %v1790 = vmul.f32 1.0, %v1789
    %v1791 = vtanh.pop %v1784
    %v1792 = vmul.f32 %v1790, %v1526
    %1794 = vrot.lane.b32.xlu0 %v1791, 64
    %v1795 = vpop.permute.xlu0 %1794
    %v1797 = vmul.f32 %v1790, %v1795
    %1799 = vrot.lane.b32.xlu0 %v1797, 32
    %v1800 = vpop.permute.xlu0 %1799
    %v1802 = vadd.f32 %v1792, %v1800
    %v1803 = vtanh.pop %v1802
    %1805 = vrot.lane.b32.xlu0 %v1803, 64
    %v1806 = vpop.permute.xlu0 %1805
    %v1808 = vmul.f32 %v1790, %v1806
    %1810 = vrot.lane.b32.xlu0 %v1808, 32
    %v1811 = vpop.permute.xlu0 %1810
    %s1813 = scalar_lea.vmem %s11, 16
    %1814 = vst.msk [vmem:[%s1813] sm:$0xf] %vm701, %v1811
    %1815 = vmatprep.subr.mxu0 0.0
    %1816 = vmatpush1.msra.mxu0 0.0
    %1817 = vmatprep.subr.mxu0 0.0
    %1818 = vmatpush1.msra.mxu0 0.0
    %1819 = vmatprep.subr.mxu0 0.0
    %1820 = vmatpush1.msra.mxu0 0.0
    %1821 = vmatprep.subr.mxu0 0.0
    %1822 = vmatpush1.msra.mxu0 0.0
    %1823 = vmatprep.subr.mxu0 0.0
    %1824 = vmatpush1.msra.mxu0 0.0
    %1825 = vmatprep.subr.mxu0 0.0
    %1826 = vmatpush1.msra.mxu0 0.0
    %1827 = vmatprep.subr.mxu0 0.0
    %1828 = vmatpush1.msra.mxu0 0.0
    %1829 = vmatprep.subr.mxu0 0.0
    %1830 = vmatpush1.msra.mxu0 0.0
    %1831 = vmatprep.subr.mxu0 0.0
    %1832 = vmatpush1.msra.mxu0 0.0
    %1833 = vmatprep.subr.mxu0 0.0
    %1834 = vmatpush1.msra.mxu0 0.0
    %1835 = vmatprep.subr.mxu0 0.0
    %1836 = vmatpush1.msra.mxu0 0.0
    %1837 = vmatprep.subr.mxu0 0.0
    %1838 = vmatpush1.msra.mxu0 0.0
    %1839 = vmatprep.subr.mxu0 0.0
    %1840 = vmatpush1.msra.mxu0 %v309
    %1841 = vmatprep.subr.mxu0 0.0
    %1842 = vmatpush1.msra.mxu0 %v308
    %1843 = vmatprep.subr.mxu0 0.0
    %1844 = vmatpush1.msra.mxu0 %v307
    %1845 = vmatprep.subr.mxu0 0.0
    %1846 = vmatpush1.msra.mxu0 %v306
    %1847 = vmatprep.subr.mxu0 0.0
    %1848 = vmatpush2.msra.mxu0 0.0
    %1849 = vmatprep.subr.mxu0 0.0
    %1850 = vmatpush2.msra.mxu0 0.0
    %1851 = vmatprep.subr.mxu0 0.0
    %1852 = vmatpush2.msra.mxu0 0.0
    %1853 = vmatprep.subr.mxu0 0.0
    %1854 = vmatpush2.msra.mxu0 0.0
    %1855 = vmatprep.subr.mxu0 0.0
    %1856 = vmatpush2.msra.mxu0 0.0
    %1857 = vmatprep.subr.mxu0 0.0
    %1858 = vmatpush2.msra.mxu0 0.0
    %1859 = vmatprep.subr.mxu0 0.0
    %1860 = vmatpush2.msra.mxu0 0.0
    %1861 = vmatprep.subr.mxu0 0.0
    %1862 = vmatpush2.msra.mxu0 0.0
    %1863 = vmatprep.subr.mxu0 0.0
    %1864 = vmatpush2.msra.mxu0 0.0
    %1865 = vmatprep.subr.mxu0 0.0
    %1866 = vmatpush2.msra.mxu0 0.0
    %1867 = vmatprep.subr.mxu0 0.0
    %1868 = vmatpush2.msra.mxu0 0.0
    %1869 = vmatprep.subr.mxu0 0.0
    %1870 = vmatpush2.msra.mxu0 0.0
    %1871 = vmatprep.subr.mxu0 0.0
    %1872 = vmatpush2.msra.mxu0 0.0
    %1873 = vmatprep.subr.mxu0 0.0
    %1874 = vmatpush2.msra.mxu0 0.0
    %1875 = vmatprep.subr.mxu0 0.0
    %1876 = vmatpush2.msra.mxu0 0.0
    %1877 = vmatprep.subr.mxu0 0.0
    %1878 = vmatpush2.msra.mxu0 0.0
    %1879 = vmatprep.mubr.f32.mxu0 0.0
    %1880 = vmatmul.mubr.f32.gmra.mxu0 %v1712
    %v1881 = vpop.f32.mrf.mxu0
    %v1882 = vadd.f32 0.0, %v1881
    %v1883 = vpop.f32.mrf.mxu0
    %1884 = vdwg.mxu0
    %v1886 = vrot.slane %v1882, 4
    %v1888 = vadd.f32 %v415, %v1886
    %v1889 = vxor.u32 %v1888, 2147483648
    %v1890 = vmul.f32 %v1889, 1.442695
    %v1891 = vpow.pop %v1890
    %v1892 = vadd.f32 %v1891, 1.0
    %v1893 = vrcp.pop %v1892
    %v1894 = vmul.f32 1.0, %v1893
    %v1895 = vtanh.pop %v1888
    %v1897 = vrot.slane %v1630, 4
    %v1899 = vmul.f32 %v1894, %v1897
    %1901 = vrot.lane.b32.xlu0 %v1895, 64
    %v1902 = vpop.permute.xlu0 %1901
    %v1904 = vmul.f32 %v1894, %v1902
    %1906 = vrot.lane.b32.xlu0 %v1904, 32
    %v1907 = vpop.permute.xlu0 %1906
    %v1909 = vadd.f32 %v1899, %v1907
    %v1910 = vtanh.pop %v1909
    %1912 = vrot.lane.b32.xlu0 %v1910, 64
    %v1913 = vpop.permute.xlu0 %1912
    %v1915 = vmul.f32 %v1894, %v1913
    %v1916 = vsel %vm203, %v1811, 0
    %1918 = vmatprep.subr.mxu0 0.0
    %1919 = vmatpush1.msra.mxu0 0.0
    %1920 = vmatprep.subr.mxu0 0.0
    %1921 = vmatpush1.msra.mxu0 0.0
    %1922 = vmatprep.subr.mxu0 0.0
    %1923 = vmatpush1.msra.mxu0 0.0
    %1924 = vmatprep.subr.mxu0 0.0
    %1925 = vmatpush1.msra.mxu0 0.0
    %1926 = vmatprep.subr.mxu0 0.0
    %1927 = vmatpush1.msra.mxu0 0.0
    %1928 = vmatprep.subr.mxu0 0.0
    %1929 = vmatpush1.msra.mxu0 0.0
    %1930 = vmatprep.subr.mxu0 0.0
    %1931 = vmatpush1.msra.mxu0 0.0
    %1932 = vmatprep.subr.mxu0 0.0
    %1933 = vmatpush1.msra.mxu0 0.0
    %1934 = vmatprep.subr.mxu0 0.0
    %1935 = vmatpush1.msra.mxu0 0.0
    %1936 = vmatprep.subr.mxu0 0.0
    %1937 = vmatpush1.msra.mxu0 0.0
    %1938 = vmatprep.subr.mxu0 0.0
    %1939 = vmatpush1.msra.mxu0 0.0
    %1940 = vmatprep.subr.mxu0 0.0
    %1941 = vmatpush1.msra.mxu0 0.0
    %1942 = vmatprep.subr.mxu0 0.0
    %1943 = vmatpush1.msra.mxu0 %v318
    %1944 = vmatprep.subr.mxu0 0.0
    %1945 = vmatpush1.msra.mxu0 %v317
    %1946 = vmatprep.subr.mxu0 0.0
    %1947 = vmatpush1.msra.mxu0 %v316
    %1948 = vmatprep.subr.mxu0 0.0
    %1949 = vmatpush1.msra.mxu0 %v315
    %1950 = vmatprep.subr.mxu0 0.0
    %1951 = vmatpush2.msra.mxu0 0.0
    %1952 = vmatprep.subr.mxu0 0.0
    %1953 = vmatpush2.msra.mxu0 0.0
    %1954 = vmatprep.subr.mxu0 0.0
    %1955 = vmatpush2.msra.mxu0 0.0
    %1956 = vmatprep.subr.mxu0 0.0
    %1957 = vmatpush2.msra.mxu0 0.0
    %1958 = vmatprep.subr.mxu0 0.0
    %1959 = vmatpush2.msra.mxu0 0.0
    %1960 = vmatprep.subr.mxu0 0.0
    %1961 = vmatpush2.msra.mxu0 0.0
    %1962 = vmatprep.subr.mxu0 0.0
    %1963 = vmatpush2.msra.mxu0 0.0
    %1964 = vmatprep.subr.mxu0 0.0
    %1965 = vmatpush2.msra.mxu0 0.0
    %1966 = vmatprep.subr.mxu0 0.0
    %1967 = vmatpush2.msra.mxu0 0.0
    %1968 = vmatprep.subr.mxu0 0.0
    %1969 = vmatpush2.msra.mxu0 0.0
    %1970 = vmatprep.subr.mxu0 0.0
    %1971 = vmatpush2.msra.mxu0 0.0
    %1972 = vmatprep.subr.mxu0 0.0
    %1973 = vmatpush2.msra.mxu0 0.0
    %1974 = vmatprep.subr.mxu0 0.0
    %1975 = vmatpush2.msra.mxu0 0.0
    %1976 = vmatprep.subr.mxu0 0.0
    %1977 = vmatpush2.msra.mxu0 0.0
    %1978 = vmatprep.subr.mxu0 0.0
    %1979 = vmatpush2.msra.mxu0 0.0
    %1980 = vmatprep.subr.mxu0 0.0
    %1981 = vmatpush2.msra.mxu0 0.0
    %1982 = vmatprep.mubr.f32.mxu0 0.0
    %1983 = vmatmul.mubr.f32.gmra.mxu0 %v1916
    %v1984 = vpop.f32.mrf.mxu0
    %v1985 = vadd.f32 0.0, %v1984
    %v1986 = vpop.f32.mrf.mxu0
    %1987 = vdwg.mxu0
    %v1989 = vrot.slane %v1915, 4
    %1990 = vrot.lane.b32.xlu0 %v1989, 32
    %v1991 = vpop.permute.xlu0 %1990
    %v1992 = vsel %vm203, %v1991, 0
    %1994 = vmatprep.subr.mxu0 0.0
    %1995 = vmatpush1.msra.mxu0 0.0
    %1996 = vmatprep.subr.mxu0 0.0
    %1997 = vmatpush1.msra.mxu0 0.0
    %1998 = vmatprep.subr.mxu0 0.0
    %1999 = vmatpush1.msra.mxu0 0.0
    %2000 = vmatprep.subr.mxu0 0.0
    %2001 = vmatpush1.msra.mxu0 0.0
    %2002 = vmatprep.subr.mxu0 0.0
    %2003 = vmatpush1.msra.mxu0 0.0
    %2004 = vmatprep.subr.mxu0 0.0
    %2005 = vmatpush1.msra.mxu0 0.0
    %2006 = vmatprep.subr.mxu0 0.0
    %2007 = vmatpush1.msra.mxu0 0.0
    %2008 = vmatprep.subr.mxu0 0.0
    %2009 = vmatpush1.msra.mxu0 0.0
    %2010 = vmatprep.subr.mxu0 0.0
    %2011 = vmatpush1.msra.mxu0 0.0
    %2012 = vmatprep.subr.mxu0 0.0
    %2013 = vmatpush1.msra.mxu0 0.0
    %2014 = vmatprep.subr.mxu0 0.0
    %2015 = vmatpush1.msra.mxu0 0.0
    %2016 = vmatprep.subr.mxu0 0.0
    %2017 = vmatpush1.msra.mxu0 0.0
    %2018 = vmatprep.subr.mxu0 0.0
    %2019 = vmatpush1.msra.mxu0 %v314
    %2020 = vmatprep.subr.mxu0 0.0
    %2021 = vmatpush1.msra.mxu0 %v313
    %2022 = vmatprep.subr.mxu0 0.0
    %2023 = vmatpush1.msra.mxu0 %v312
    %2024 = vmatprep.subr.mxu0 0.0
    %2025 = vmatpush1.msra.mxu0 %v311
    %2026 = vmatprep.subr.mxu0 0.0
    %2027 = vmatpush2.msra.mxu0 0.0
    %2028 = vmatprep.subr.mxu0 0.0
    %2029 = vmatpush2.msra.mxu0 0.0
    %2030 = vmatprep.subr.mxu0 0.0
    %2031 = vmatpush2.msra.mxu0 0.0
    %2032 = vmatprep.subr.mxu0 0.0
    %2033 = vmatpush2.msra.mxu0 0.0
    %2034 = vmatprep.subr.mxu0 0.0
    %2035 = vmatpush2.msra.mxu0 0.0
    %2036 = vmatprep.subr.mxu0 0.0
    %2037 = vmatpush2.msra.mxu0 0.0
    %2038 = vmatprep.subr.mxu0 0.0
    %2039 = vmatpush2.msra.mxu0 0.0
    %2040 = vmatprep.subr.mxu0 0.0
    %2041 = vmatpush2.msra.mxu0 0.0
    %2042 = vmatprep.subr.mxu0 0.0
    %2043 = vmatpush2.msra.mxu0 0.0
    %2044 = vmatprep.subr.mxu0 0.0
    %2045 = vmatpush2.msra.mxu0 0.0
    %2046 = vmatprep.subr.mxu0 0.0
    %2047 = vmatpush2.msra.mxu0 0.0
    %2048 = vmatprep.subr.mxu0 0.0
    %2049 = vmatpush2.msra.mxu0 0.0
    %2050 = vmatprep.subr.mxu0 0.0
    %2051 = vmatpush2.msra.mxu0 0.0
    %2052 = vmatprep.subr.mxu0 0.0
    %2053 = vmatpush2.msra.mxu0 0.0
    %2054 = vmatprep.subr.mxu0 0.0
    %2055 = vmatpush2.msra.mxu0 0.0
    %2056 = vmatprep.subr.mxu0 0.0
    %2057 = vmatpush2.msra.mxu0 0.0
    %2058 = vmatprep.mubr.f32.mxu0 0.0
    %2059 = vmatmul.mubr.f32.gmra.mxu0 %v1992
    %v2060 = vpop.f32.mrf.mxu0
    %v2061 = vadd.f32 %v1985, %v2060
    %v2062 = vpop.f32.mrf.mxu0
    %2063 = vdwg.mxu0
    %v2064 = vadd.f32 %v2061, %v670
    %v2065 = vxor.u32 %v2064, 2147483648
    %v2066 = vmul.f32 %v2065, 1.442695
    %v2067 = vpow.pop %v2066
    %v2068 = vadd.f32 %v2067, 1.0
    %v2069 = vrcp.pop %v2068
    %v2070 = vmul.f32 1.0, %v2069
    %v2071 = vtanh.pop %v2064
    %v2072 = vmul.f32 %v2070, %v1802
    %2074 = vrot.lane.b32.xlu0 %v2071, 64
    %v2075 = vpop.permute.xlu0 %2074
    %v2077 = vmul.f32 %v2070, %v2075
    %2079 = vrot.lane.b32.xlu0 %v2077, 32
    %v2080 = vpop.permute.xlu0 %2079
    %v2082 = vadd.f32 %v2072, %v2080
    %v2083 = vtanh.pop %v2082
    %2085 = vrot.lane.b32.xlu0 %v2083, 64
    %v2086 = vpop.permute.xlu0 %2085
    %v2088 = vmul.f32 %v2070, %v2086
    %2090 = vrot.lane.b32.xlu0 %v2088, 32
    %v2091 = vpop.permute.xlu0 %2090
    %s2093 = scalar_lea.vmem %s11, 20
    %2094 = vst.msk [vmem:[%s2093] sm:$0xf] %vm701, %v2091
    %2095 = vmatprep.subr.mxu0 0.0
    %2096 = vmatpush1.msra.mxu0 0.0
    %2097 = vmatprep.subr.mxu0 0.0
    %2098 = vmatpush1.msra.mxu0 0.0
    %2099 = vmatprep.subr.mxu0 0.0
    %2100 = vmatpush1.msra.mxu0 0.0
    %2101 = vmatprep.subr.mxu0 0.0
    %2102 = vmatpush1.msra.mxu0 0.0
    %2103 = vmatprep.subr.mxu0 0.0
    %2104 = vmatpush1.msra.mxu0 0.0
    %2105 = vmatprep.subr.mxu0 0.0
    %2106 = vmatpush1.msra.mxu0 0.0
    %2107 = vmatprep.subr.mxu0 0.0
    %2108 = vmatpush1.msra.mxu0 0.0
    %2109 = vmatprep.subr.mxu0 0.0
    %2110 = vmatpush1.msra.mxu0 0.0
    %2111 = vmatprep.subr.mxu0 0.0
    %2112 = vmatpush1.msra.mxu0 0.0
    %2113 = vmatprep.subr.mxu0 0.0
    %2114 = vmatpush1.msra.mxu0 0.0
    %2115 = vmatprep.subr.mxu0 0.0
    %2116 = vmatpush1.msra.mxu0 0.0
    %2117 = vmatprep.subr.mxu0 0.0
    %2118 = vmatpush1.msra.mxu0 0.0
    %2119 = vmatprep.subr.mxu0 0.0
    %2120 = vmatpush1.msra.mxu0 %v309
    %2121 = vmatprep.subr.mxu0 0.0
    %2122 = vmatpush1.msra.mxu0 %v308
    %2123 = vmatprep.subr.mxu0 0.0
    %2124 = vmatpush1.msra.mxu0 %v307
    %2125 = vmatprep.subr.mxu0 0.0
    %2126 = vmatpush1.msra.mxu0 %v306
    %2127 = vmatprep.subr.mxu0 0.0
    %2128 = vmatpush2.msra.mxu0 0.0
    %2129 = vmatprep.subr.mxu0 0.0
    %2130 = vmatpush2.msra.mxu0 0.0
    %2131 = vmatprep.subr.mxu0 0.0
    %2132 = vmatpush2.msra.mxu0 0.0
    %2133 = vmatprep.subr.mxu0 0.0
    %2134 = vmatpush2.msra.mxu0 0.0
    %2135 = vmatprep.subr.mxu0 0.0
    %2136 = vmatpush2.msra.mxu0 0.0
    %2137 = vmatprep.subr.mxu0 0.0
    %2138 = vmatpush2.msra.mxu0 0.0
    %2139 = vmatprep.subr.mxu0 0.0
    %2140 = vmatpush2.msra.mxu0 0.0
    %2141 = vmatprep.subr.mxu0 0.0
    %2142 = vmatpush2.msra.mxu0 0.0
    %2143 = vmatprep.subr.mxu0 0.0
    %2144 = vmatpush2.msra.mxu0 0.0
    %2145 = vmatprep.subr.mxu0 0.0
    %2146 = vmatpush2.msra.mxu0 0.0
    %2147 = vmatprep.subr.mxu0 0.0
    %2148 = vmatpush2.msra.mxu0 0.0
    %2149 = vmatprep.subr.mxu0 0.0
    %2150 = vmatpush2.msra.mxu0 0.0
    %2151 = vmatprep.subr.mxu0 0.0
    %2152 = vmatpush2.msra.mxu0 0.0
    %2153 = vmatprep.subr.mxu0 0.0
    %2154 = vmatpush2.msra.mxu0 0.0
    %2155 = vmatprep.subr.mxu0 0.0
    %2156 = vmatpush2.msra.mxu0 0.0
    %2157 = vmatprep.subr.mxu0 0.0
    %2158 = vmatpush2.msra.mxu0 0.0
    %2159 = vmatprep.mubr.f32.mxu0 0.0
    %2160 = vmatmul.mubr.f32.gmra.mxu0 %v1992
    %v2161 = vpop.f32.mrf.mxu0
    %v2162 = vadd.f32 0.0, %v2161
    %v2163 = vpop.f32.mrf.mxu0
    %2164 = vdwg.mxu0
    %v2165 = vadd.f32 %v420, %v2162
    %v2166 = vxor.u32 %v2165, 2147483648
    %v2167 = vmul.f32 %v2166, 1.442695
    %v2168 = vpow.pop %v2167
    %v2169 = vadd.f32 %v2168, 1.0
    %v2170 = vrcp.pop %v2169
    %v2171 = vmul.f32 1.0, %v2170
    %v2172 = vtanh.pop %v2165
    %v2174 = vrot.slane %v1909, 4
    %v2176 = vmul.f32 %v2171, %v2174
    %2178 = vrot.lane.b32.xlu0 %v2172, 64
    %v2179 = vpop.permute.xlu0 %2178
    %v2181 = vmul.f32 %v2171, %v2179
    %2183 = vrot.lane.b32.xlu0 %v2181, 32
    %v2184 = vpop.permute.xlu0 %2183
    %v2186 = vadd.f32 %v2176, %v2184
    %v2187 = vtanh.pop %v2186
    %2189 = vrot.lane.b32.xlu0 %v2187, 64
    %v2190 = vpop.permute.xlu0 %2189
    %v2192 = vmul.f32 %v2171, %v2190
    %v2193 = vsel %vm203, %v2091, 0
    %2195 = vmatprep.subr.mxu0 0.0
    %2196 = vmatpush1.msra.mxu0 0.0
    %2197 = vmatprep.subr.mxu0 0.0
    %2198 = vmatpush1.msra.mxu0 0.0
    %2199 = vmatprep.subr.mxu0 0.0
    %2200 = vmatpush1.msra.mxu0 0.0
    %2201 = vmatprep.subr.mxu0 0.0
    %2202 = vmatpush1.msra.mxu0 0.0
    %2203 = vmatprep.subr.mxu0 0.0
    %2204 = vmatpush1.msra.mxu0 0.0
    %2205 = vmatprep.subr.mxu0 0.0
    %2206 = vmatpush1.msra.mxu0 0.0
    %2207 = vmatprep.subr.mxu0 0.0
    %2208 = vmatpush1.msra.mxu0 0.0
    %2209 = vmatprep.subr.mxu0 0.0
    %2210 = vmatpush1.msra.mxu0 0.0
    %2211 = vmatprep.subr.mxu0 0.0
    %2212 = vmatpush1.msra.mxu0 0.0
    %2213 = vmatprep.subr.mxu0 0.0
    %2214 = vmatpush1.msra.mxu0 0.0
    %2215 = vmatprep.subr.mxu0 0.0
    %2216 = vmatpush1.msra.mxu0 0.0
    %2217 = vmatprep.subr.mxu0 0.0
    %2218 = vmatpush1.msra.mxu0 0.0
    %2219 = vmatprep.subr.mxu0 0.0
    %2220 = vmatpush1.msra.mxu0 %v318
    %2221 = vmatprep.subr.mxu0 0.0
    %2222 = vmatpush1.msra.mxu0 %v317
    %2223 = vmatprep.subr.mxu0 0.0
    %2224 = vmatpush1.msra.mxu0 %v316
    %2225 = vmatprep.subr.mxu0 0.0
    %2226 = vmatpush1.msra.mxu0 %v315
    %2227 = vmatprep.subr.mxu0 0.0
    %2228 = vmatpush2.msra.mxu0 0.0
    %2229 = vmatprep.subr.mxu0 0.0
    %2230 = vmatpush2.msra.mxu0 0.0
    %2231 = vmatprep.subr.mxu0 0.0
    %2232 = vmatpush2.msra.mxu0 0.0
    %2233 = vmatprep.subr.mxu0 0.0
    %2234 = vmatpush2.msra.mxu0 0.0
    %2235 = vmatprep.subr.mxu0 0.0
    %2236 = vmatpush2.msra.mxu0 0.0
    %2237 = vmatprep.subr.mxu0 0.0
    %2238 = vmatpush2.msra.mxu0 0.0
    %2239 = vmatprep.subr.mxu0 0.0
    %2240 = vmatpush2.msra.mxu0 0.0
    %2241 = vmatprep.subr.mxu0 0.0
    %2242 = vmatpush2.msra.mxu0 0.0
    %2243 = vmatprep.subr.mxu0 0.0
    %2244 = vmatpush2.msra.mxu0 0.0
    %2245 = vmatprep.subr.mxu0 0.0
    %2246 = vmatpush2.msra.mxu0 0.0
    %2247 = vmatprep.subr.mxu0 0.0
    %2248 = vmatpush2.msra.mxu0 0.0
    %2249 = vmatprep.subr.mxu0 0.0
    %2250 = vmatpush2.msra.mxu0 0.0
    %2251 = vmatprep.subr.mxu0 0.0
    %2252 = vmatpush2.msra.mxu0 0.0
    %2253 = vmatprep.subr.mxu0 0.0
    %2254 = vmatpush2.msra.mxu0 0.0
    %2255 = vmatprep.subr.mxu0 0.0
    %2256 = vmatpush2.msra.mxu0 0.0
    %2257 = vmatprep.subr.mxu0 0.0
    %2258 = vmatpush2.msra.mxu0 0.0
    %2259 = vmatprep.mubr.f32.mxu0 0.0
    %2260 = vmatmul.mubr.f32.gmra.mxu0 %v2193
    %v2261 = vpop.f32.mrf.mxu0
    %v2262 = vadd.f32 0.0, %v2261
    %v2263 = vpop.f32.mrf.mxu0
    %2264 = vdwg.mxu0
    %2266 = vrot.lane.b32.xlu0 %v2192, 32
    %v2267 = vpop.permute.xlu0 %2266
    %v2268 = vsel %vm203, %v2267, 0
    %2270 = vmatprep.subr.mxu0 0.0
    %2271 = vmatpush1.msra.mxu0 0.0
    %2272 = vmatprep.subr.mxu0 0.0
    %2273 = vmatpush1.msra.mxu0 0.0
    %2274 = vmatprep.subr.mxu0 0.0
    %2275 = vmatpush1.msra.mxu0 0.0
    %2276 = vmatprep.subr.mxu0 0.0
    %2277 = vmatpush1.msra.mxu0 0.0
    %2278 = vmatprep.subr.mxu0 0.0
    %2279 = vmatpush1.msra.mxu0 0.0
    %2280 = vmatprep.subr.mxu0 0.0
    %2281 = vmatpush1.msra.mxu0 0.0
    %2282 = vmatprep.subr.mxu0 0.0
    %2283 = vmatpush1.msra.mxu0 0.0
    %2284 = vmatprep.subr.mxu0 0.0
    %2285 = vmatpush1.msra.mxu0 0.0
    %2286 = vmatprep.subr.mxu0 0.0
    %2287 = vmatpush1.msra.mxu0 0.0
    %2288 = vmatprep.subr.mxu0 0.0
    %2289 = vmatpush1.msra.mxu0 0.0
    %2290 = vmatprep.subr.mxu0 0.0
    %2291 = vmatpush1.msra.mxu0 0.0
    %2292 = vmatprep.subr.mxu0 0.0
    %2293 = vmatpush1.msra.mxu0 0.0
    %2294 = vmatprep.subr.mxu0 0.0
    %2295 = vmatpush1.msra.mxu0 %v314
    %2296 = vmatprep.subr.mxu0 0.0
    %2297 = vmatpush1.msra.mxu0 %v313
    %2298 = vmatprep.subr.mxu0 0.0
    %2299 = vmatpush1.msra.mxu0 %v312
    %2300 = vmatprep.subr.mxu0 0.0
    %2301 = vmatpush1.msra.mxu0 %v311
    %2302 = vmatprep.subr.mxu0 0.0
    %2303 = vmatpush2.msra.mxu0 0.0
    %2304 = vmatprep.subr.mxu0 0.0
    %2305 = vmatpush2.msra.mxu0 0.0
    %2306 = vmatprep.subr.mxu0 0.0
    %2307 = vmatpush2.msra.mxu0 0.0
    %2308 = vmatprep.subr.mxu0 0.0
    %2309 = vmatpush2.msra.mxu0 0.0
    %2310 = vmatprep.subr.mxu0 0.0
    %2311 = vmatpush2.msra.mxu0 0.0
    %2312 = vmatprep.subr.mxu0 0.0
    %2313 = vmatpush2.msra.mxu0 0.0
    %2314 = vmatprep.subr.mxu0 0.0
    %2315 = vmatpush2.msra.mxu0 0.0
    %2316 = vmatprep.subr.mxu0 0.0
    %2317 = vmatpush2.msra.mxu0 0.0
    %2318 = vmatprep.subr.mxu0 0.0
    %2319 = vmatpush2.msra.mxu0 0.0
    %2320 = vmatprep.subr.mxu0 0.0
    %2321 = vmatpush2.msra.mxu0 0.0
    %2322 = vmatprep.subr.mxu0 0.0
    %2323 = vmatpush2.msra.mxu0 0.0
    %2324 = vmatprep.subr.mxu0 0.0
    %2325 = vmatpush2.msra.mxu0 0.0
    %2326 = vmatprep.subr.mxu0 0.0
    %2327 = vmatpush2.msra.mxu0 0.0
    %2328 = vmatprep.subr.mxu0 0.0
    %2329 = vmatpush2.msra.mxu0 0.0
    %2330 = vmatprep.subr.mxu0 0.0
    %2331 = vmatpush2.msra.mxu0 0.0
    %2332 = vmatprep.subr.mxu0 0.0
    %2333 = vmatpush2.msra.mxu0 0.0
    %2334 = vmatprep.mubr.f32.mxu0 0.0
    %2335 = vmatmul.mubr.f32.gmra.mxu0 %v2268
    %v2336 = vpop.f32.mrf.mxu0
    %v2337 = vadd.f32 %v2262, %v2336
    %v2338 = vpop.f32.mrf.mxu0
    %2339 = vdwg.mxu0
    %v2340 = vadd.f32 %v2337, %v670
    %v2341 = vxor.u32 %v2340, 2147483648
    %v2342 = vmul.f32 %v2341, 1.442695
    %v2343 = vpow.pop %v2342
    %v2344 = vadd.f32 %v2343, 1.0
    %v2345 = vrcp.pop %v2344
    %v2346 = vmul.f32 1.0, %v2345
    %v2347 = vtanh.pop %v2340
    %v2348 = vmul.f32 %v2346, %v2082
    %2350 = vrot.lane.b32.xlu0 %v2347, 64
    %v2351 = vpop.permute.xlu0 %2350
    %v2353 = vmul.f32 %v2346, %v2351
    %2355 = vrot.lane.b32.xlu0 %v2353, 32
    %v2356 = vpop.permute.xlu0 %2355
    %v2358 = vadd.f32 %v2348, %v2356
    %v2359 = vtanh.pop %v2358
    %2361 = vrot.lane.b32.xlu0 %v2359, 64
    %v2362 = vpop.permute.xlu0 %2361
    %v2364 = vmul.f32 %v2346, %v2362
    %2366 = vrot.lane.b32.xlu0 %v2364, 32
    %v2367 = vpop.permute.xlu0 %2366
    %s2369 = scalar_lea.vmem %s11, 24
    %2370 = vst.msk [vmem:[%s2369] sm:$0xf] %vm701, %v2367
    %2371 = vmatprep.subr.mxu0 0.0
    %2372 = vmatpush1.msra.mxu0 0.0
    %2373 = vmatprep.subr.mxu0 0.0
    %2374 = vmatpush1.msra.mxu0 0.0
    %2375 = vmatprep.subr.mxu0 0.0
    %2376 = vmatpush1.msra.mxu0 0.0
    %2377 = vmatprep.subr.mxu0 0.0
    %2378 = vmatpush1.msra.mxu0 0.0
    %2379 = vmatprep.subr.mxu0 0.0
    %2380 = vmatpush1.msra.mxu0 0.0
    %2381 = vmatprep.subr.mxu0 0.0
    %2382 = vmatpush1.msra.mxu0 0.0
    %2383 = vmatprep.subr.mxu0 0.0
    %2384 = vmatpush1.msra.mxu0 0.0
    %2385 = vmatprep.subr.mxu0 0.0
    %2386 = vmatpush1.msra.mxu0 0.0
    %2387 = vmatprep.subr.mxu0 0.0
    %2388 = vmatpush1.msra.mxu0 0.0
    %2389 = vmatprep.subr.mxu0 0.0
    %2390 = vmatpush1.msra.mxu0 0.0
    %2391 = vmatprep.subr.mxu0 0.0
    %2392 = vmatpush1.msra.mxu0 0.0
    %2393 = vmatprep.subr.mxu0 0.0
    %2394 = vmatpush1.msra.mxu0 0.0
    %2395 = vmatprep.subr.mxu0 0.0
    %2396 = vmatpush1.msra.mxu0 %v309
    %2397 = vmatprep.subr.mxu0 0.0
    %2398 = vmatpush1.msra.mxu0 %v308
    %2399 = vmatprep.subr.mxu0 0.0
    %2400 = vmatpush1.msra.mxu0 %v307
    %2401 = vmatprep.subr.mxu0 0.0
    %2402 = vmatpush1.msra.mxu0 %v306
    %2403 = vmatprep.subr.mxu0 0.0
    %2404 = vmatpush2.msra.mxu0 0.0
    %2405 = vmatprep.subr.mxu0 0.0
    %2406 = vmatpush2.msra.mxu0 0.0
    %2407 = vmatprep.subr.mxu0 0.0
    %2408 = vmatpush2.msra.mxu0 0.0
    %2409 = vmatprep.subr.mxu0 0.0
    %2410 = vmatpush2.msra.mxu0 0.0
    %2411 = vmatprep.subr.mxu0 0.0
    %2412 = vmatpush2.msra.mxu0 0.0
    %2413 = vmatprep.subr.mxu0 0.0
    %2414 = vmatpush2.msra.mxu0 0.0
    %2415 = vmatprep.subr.mxu0 0.0
    %2416 = vmatpush2.msra.mxu0 0.0
    %2417 = vmatprep.subr.mxu0 0.0
    %2418 = vmatpush2.msra.mxu0 0.0
    %2419 = vmatprep.subr.mxu0 0.0
    %2420 = vmatpush2.msra.mxu0 0.0
    %2421 = vmatprep.subr.mxu0 0.0
    %2422 = vmatpush2.msra.mxu0 0.0
    %2423 = vmatprep.subr.mxu0 0.0
    %2424 = vmatpush2.msra.mxu0 0.0
    %2425 = vmatprep.subr.mxu0 0.0
    %2426 = vmatpush2.msra.mxu0 0.0
    %2427 = vmatprep.subr.mxu0 0.0
    %2428 = vmatpush2.msra.mxu0 0.0
    %2429 = vmatprep.subr.mxu0 0.0
    %2430 = vmatpush2.msra.mxu0 0.0
    %2431 = vmatprep.subr.mxu0 0.0
    %2432 = vmatpush2.msra.mxu0 0.0
    %2433 = vmatprep.subr.mxu0 0.0
    %2434 = vmatpush2.msra.mxu0 0.0
    %2435 = vmatprep.mubr.f32.mxu0 0.0
    %2436 = vmatmul.mubr.f32.gmra.mxu0 %v2268
    %v2437 = vpop.f32.mrf.mxu0
    %v2438 = vadd.f32 0.0, %v2437
    %v2439 = vpop.f32.mrf.mxu0
    %2440 = vdwg.mxu0
    %v2442 = vrot.slane %v2438, 4
    %v2444 = vadd.f32 %v420, %v2442
    %v2445 = vxor.u32 %v2444, 2147483648
    %v2446 = vmul.f32 %v2445, 1.442695
    %v2447 = vpow.pop %v2446
    %v2448 = vadd.f32 %v2447, 1.0
    %v2449 = vrcp.pop %v2448
    %v2450 = vmul.f32 1.0, %v2449
    %v2451 = vtanh.pop %v2444
    %v2453 = vrot.slane %v2186, 4
    %v2455 = vmul.f32 %v2450, %v2453
    %2457 = vrot.lane.b32.xlu0 %v2451, 64
    %v2458 = vpop.permute.xlu0 %2457
    %v2460 = vmul.f32 %v2450, %v2458
    %2462 = vrot.lane.b32.xlu0 %v2460, 32
    %v2463 = vpop.permute.xlu0 %2462
    %v2465 = vadd.f32 %v2455, %v2463
    %v2466 = vtanh.pop %v2465
    %2468 = vrot.lane.b32.xlu0 %v2466, 64
    %v2469 = vpop.permute.xlu0 %2468
    %v2471 = vmul.f32 %v2450, %v2469
    %v2472 = vsel %vm203, %v2367, 0
    %2474 = vmatprep.subr.mxu0 0.0
    %2475 = vmatpush1.msra.mxu0 0.0
    %2476 = vmatprep.subr.mxu0 0.0
    %2477 = vmatpush1.msra.mxu0 0.0
    %2478 = vmatprep.subr.mxu0 0.0
    %2479 = vmatpush1.msra.mxu0 0.0
    %2480 = vmatprep.subr.mxu0 0.0
    %2481 = vmatpush1.msra.mxu0 0.0
    %2482 = vmatprep.subr.mxu0 0.0
    %2483 = vmatpush1.msra.mxu0 0.0
    %2484 = vmatprep.subr.mxu0 0.0
    %2485 = vmatpush1.msra.mxu0 0.0
    %2486 = vmatprep.subr.mxu0 0.0
    %2487 = vmatpush1.msra.mxu0 0.0
    %2488 = vmatprep.subr.mxu0 0.0
    %2489 = vmatpush1.msra.mxu0 0.0
    %2490 = vmatprep.subr.mxu0 0.0
    %2491 = vmatpush1.msra.mxu0 0.0
    %2492 = vmatprep.subr.mxu0 0.0
    %2493 = vmatpush1.msra.mxu0 0.0
    %2494 = vmatprep.subr.mxu0 0.0
    %2495 = vmatpush1.msra.mxu0 0.0
    %2496 = vmatprep.subr.mxu0 0.0
    %2497 = vmatpush1.msra.mxu0 0.0
    %2498 = vmatprep.subr.mxu0 0.0
    %2499 = vmatpush1.msra.mxu0 %v318
    %2500 = vmatprep.subr.mxu0 0.0
    %2501 = vmatpush1.msra.mxu0 %v317
    %2502 = vmatprep.subr.mxu0 0.0
    %2503 = vmatpush1.msra.mxu0 %v316
    %2504 = vmatprep.subr.mxu0 0.0
    %2505 = vmatpush1.msra.mxu0 %v315
    %2506 = vmatprep.subr.mxu0 0.0
    %2507 = vmatpush2.msra.mxu0 0.0
    %2508 = vmatprep.subr.mxu0 0.0
    %2509 = vmatpush2.msra.mxu0 0.0
    %2510 = vmatprep.subr.mxu0 0.0
    %2511 = vmatpush2.msra.mxu0 0.0
    %2512 = vmatprep.subr.mxu0 0.0
    %2513 = vmatpush2.msra.mxu0 0.0
    %2514 = vmatprep.subr.mxu0 0.0
    %2515 = vmatpush2.msra.mxu0 0.0
    %2516 = vmatprep.subr.mxu0 0.0
    %2517 = vmatpush2.msra.mxu0 0.0
    %2518 = vmatprep.subr.mxu0 0.0
    %2519 = vmatpush2.msra.mxu0 0.0
    %2520 = vmatprep.subr.mxu0 0.0
    %2521 = vmatpush2.msra.mxu0 0.0
    %2522 = vmatprep.subr.mxu0 0.0
    %2523 = vmatpush2.msra.mxu0 0.0
    %2524 = vmatprep.subr.mxu0 0.0
    %2525 = vmatpush2.msra.mxu0 0.0
    %2526 = vmatprep.subr.mxu0 0.0
    %2527 = vmatpush2.msra.mxu0 0.0
    %2528 = vmatprep.subr.mxu0 0.0
    %2529 = vmatpush2.msra.mxu0 0.0
    %2530 = vmatprep.subr.mxu0 0.0
    %2531 = vmatpush2.msra.mxu0 0.0
    %2532 = vmatprep.subr.mxu0 0.0
    %2533 = vmatpush2.msra.mxu0 0.0
    %2534 = vmatprep.subr.mxu0 0.0
    %2535 = vmatpush2.msra.mxu0 0.0
    %2536 = vmatprep.subr.mxu0 0.0
    %2537 = vmatpush2.msra.mxu0 0.0
    %2538 = vmatprep.mubr.f32.mxu0 0.0
    %2539 = vmatmul.mubr.f32.gmra.mxu0 %v2472
    %v2540 = vpop.f32.mrf.mxu0
    %v2541 = vadd.f32 0.0, %v2540
    %v2542 = vpop.f32.mrf.mxu0
    %2543 = vdwg.mxu0
    %v2545 = vrot.slane %v2471, 4
    %2546 = vrot.lane.b32.xlu0 %v2545, 32
    %v2547 = vpop.permute.xlu0 %2546
    %v2548 = vsel %vm203, %v2547, 0
    %2550 = vmatprep.subr.mxu0 0.0
    %2551 = vmatpush1.msra.mxu0 0.0
    %2552 = vmatprep.subr.mxu0 0.0
    %2553 = vmatpush1.msra.mxu0 0.0
    %2554 = vmatprep.subr.mxu0 0.0
    %2555 = vmatpush1.msra.mxu0 0.0
    %2556 = vmatprep.subr.mxu0 0.0
    %2557 = vmatpush1.msra.mxu0 0.0
    %2558 = vmatprep.subr.mxu0 0.0
    %2559 = vmatpush1.msra.mxu0 0.0
    %2560 = vmatprep.subr.mxu0 0.0
    %2561 = vmatpush1.msra.mxu0 0.0
    %2562 = vmatprep.subr.mxu0 0.0
    %2563 = vmatpush1.msra.mxu0 0.0
    %2564 = vmatprep.subr.mxu0 0.0
    %2565 = vmatpush1.msra.mxu0 0.0
    %2566 = vmatprep.subr.mxu0 0.0
    %2567 = vmatpush1.msra.mxu0 0.0
    %2568 = vmatprep.subr.mxu0 0.0
    %2569 = vmatpush1.msra.mxu0 0.0
    %2570 = vmatprep.subr.mxu0 0.0
    %2571 = vmatpush1.msra.mxu0 0.0
    %2572 = vmatprep.subr.mxu0 0.0
    %2573 = vmatpush1.msra.mxu0 0.0
    %2574 = vmatprep.subr.mxu0 0.0
    %2575 = vmatpush1.msra.mxu0 %v314
    %2576 = vmatprep.subr.mxu0 0.0
    %2577 = vmatpush1.msra.mxu0 %v313
    %2578 = vmatprep.subr.mxu0 0.0
    %2579 = vmatpush1.msra.mxu0 %v312
    %2580 = vmatprep.subr.mxu0 0.0
    %2581 = vmatpush1.msra.mxu0 %v311
    %2582 = vmatprep.subr.mxu0 0.0
    %2583 = vmatpush2.msra.mxu0 0.0
    %2584 = vmatprep.subr.mxu0 0.0
    %2585 = vmatpush2.msra.mxu0 0.0
    %2586 = vmatprep.subr.mxu0 0.0
    %2587 = vmatpush2.msra.mxu0 0.0
    %2588 = vmatprep.subr.mxu0 0.0
    %2589 = vmatpush2.msra.mxu0 0.0
    %2590 = vmatprep.subr.mxu0 0.0
    %2591 = vmatpush2.msra.mxu0 0.0
    %2592 = vmatprep.subr.mxu0 0.0
    %2593 = vmatpush2.msra.mxu0 0.0
    %2594 = vmatprep.subr.mxu0 0.0
    %2595 = vmatpush2.msra.mxu0 0.0
    %2596 = vmatprep.subr.mxu0 0.0
    %2597 = vmatpush2.msra.mxu0 0.0
    %2598 = vmatprep.subr.mxu0 0.0
    %2599 = vmatpush2.msra.mxu0 0.0
    %2600 = vmatprep.subr.mxu0 0.0
    %2601 = vmatpush2.msra.mxu0 0.0
    %2602 = vmatprep.subr.mxu0 0.0
    %2603 = vmatpush2.msra.mxu0 0.0
    %2604 = vmatprep.subr.mxu0 0.0
    %2605 = vmatpush2.msra.mxu0 0.0
    %2606 = vmatprep.subr.mxu0 0.0
    %2607 = vmatpush2.msra.mxu0 0.0
    %2608 = vmatprep.subr.mxu0 0.0
    %2609 = vmatpush2.msra.mxu0 0.0
    %2610 = vmatprep.subr.mxu0 0.0
    %2611 = vmatpush2.msra.mxu0 0.0
    %2612 = vmatprep.subr.mxu0 0.0
    %2613 = vmatpush2.msra.mxu0 0.0
    %2614 = vmatprep.mubr.f32.mxu0 0.0
    %2615 = vmatmul.mubr.f32.gmra.mxu0 %v2548
    %v2616 = vpop.f32.mrf.mxu0
    %v2617 = vadd.f32 %v2541, %v2616
    %v2618 = vpop.f32.mrf.mxu0
    %2619 = vdwg.mxu0
    %v2620 = vadd.f32 %v2617, %v670
    %v2621 = vxor.u32 %v2620, 2147483648
    %v2622 = vmul.f32 %v2621, 1.442695
    %v2623 = vpow.pop %v2622
    %v2624 = vadd.f32 %v2623, 1.0
    %v2625 = vrcp.pop %v2624
    %v2626 = vmul.f32 1.0, %v2625
    %v2627 = vtanh.pop %v2620
    %v2628 = vmul.f32 %v2626, %v2358
    %2630 = vrot.lane.b32.xlu0 %v2627, 64
    %v2631 = vpop.permute.xlu0 %2630
    %v2633 = vmul.f32 %v2626, %v2631
    %2635 = vrot.lane.b32.xlu0 %v2633, 32
    %v2636 = vpop.permute.xlu0 %2635
    %v2638 = vadd.f32 %v2628, %v2636
    %v2639 = vtanh.pop %v2638
    %2641 = vrot.lane.b32.xlu0 %v2639, 64
    %v2642 = vpop.permute.xlu0 %2641
    %v2644 = vmul.f32 %v2626, %v2642
    %2646 = vrot.lane.b32.xlu0 %v2644, 32
    %v2647 = vpop.permute.xlu0 %2646
    %s2649 = scalar_lea.vmem %s11, 28
    %2650 = vst.msk [vmem:[%s2649] sm:$0xf] %vm701, %v2647
    %2651 = vrot.lane.b32.xlu0 %v2471, 32
    %v2652 = vpop.permute.xlu0 %2651
    %vm2654 = vcmask 261124
    %2655 = vst.msk [vmem:[%s12 - $0x4] sm:$0xf0] %vm2654, %v2652
    %2657 = vrot.lane.b32.xlu0 %v2465, 96
    %v2658 = vpop.permute.xlu0 %2657
    %2660 = vst.msk [vmem:[%s13 - $0x4] sm:$0xf0] %vm2654, %v2658
    %s2661 = scalar_lea.vmem %s12, 4
    %2662 = vst.msk [vmem:[%s2661] sm:$0xf] %vm701, %v2647
    %2664 = vrot.lane.b32.xlu0 %v2638, 96
    %v2665 = vpop.permute.xlu0 %2664
    %s2667 = scalar_lea.vmem %s13, 4
    %2668 = vst.msk [vmem:[%s2667] sm:$0xf] %vm701, %v2665
    // Predicated region
    $region58: #{encoder_decoder_forward.2} parent=1 // pred_check
      _
    $region59: #{encoder_decoder_forward.2} parent=1 // pred_check_branch
      %2670 = sbr.rel (0) target = $region61
    $region60: #{encoder_decoder_forward.2} parent=1 // pred_region
      _
    $region61: #{encoder_decoder_forward.2} parent=1 // pred_fallthru
      _
    // Predicated region
    $region62: #{encoder_decoder_forward.2} parent=1 // pred_check
      _
    $region63: #{encoder_decoder_forward.2} parent=1 // pred_check_branch
      %2672 = sbr.rel (0) target = $region65
    $region64: #{encoder_decoder_forward.2} parent=1 // pred_region
      _
    $region65: #{encoder_decoder_forward.2} parent=1 // pred_fallthru
      _
    // Predicated region
    $region66: #{encoder_decoder_forward.2} parent=1 // pred_check
      _
    $region67: #{encoder_decoder_forward.2} parent=1 // pred_check_branch
      %2674 = sbr.rel (0) target = $region69
    $region68: #{encoder_decoder_forward.2} parent=1 // pred_region
      _
    $region69: #{encoder_decoder_forward.2} parent=1 // pred_fallthru
      _
    // Predicated region
    $region70: #{encoder_decoder_forward.2} parent=1 // pred_check
      _
    $region71: #{encoder_decoder_forward.2} parent=1 // pred_check_branch
      %2676 = sbr.rel (0) target = $region73
    $region72: #{encoder_decoder_forward.2} parent=1 // pred_region
      _
    $region73: #{encoder_decoder_forward.2} parent=1 // pred_fallthru
      _
    // Predicated region
    $region74: #{encoder_decoder_forward.2} parent=1 // pred_check
      _
    $region75: #{encoder_decoder_forward.2} parent=1 // pred_check_branch
      %2678 = sbr.rel (0) target = $region77
    $region76: #{encoder_decoder_forward.2} parent=1 // pred_region
      _
    $region77: #{encoder_decoder_forward.2} parent=1 // pred_fallthru
      _
    // Predicated region
    $region78: #{encoder_decoder_forward.2} parent=1 // pred_check
      _
    $region79: #{encoder_decoder_forward.2} parent=1 // pred_check_branch
      %2680 = sbr.rel (0) target = $region81
    $region80: #{encoder_decoder_forward.2} parent=1 // pred_region
      _
    $region81: #{encoder_decoder_forward.2} parent=1 // pred_fallthru
      _
    %2681 = vsyncpa [#allocation3], 1
    %2682 = vsyncpa [#allocation5], 1

// kernel: encoder_decoder_forward.3
$region0: #{encoder_decoder_forward.3}
  #allocation0 [shape = 'u32[]', space=smem, size = 0x4, offset = 0x4, fixed_abs, tag = 'smem constant byte address 0x4 - core index']
  #allocation1 [shape = 'u32[144,128]{1,0:T(1,128)}', space=vmem, size = 0x12000, scoped, tag = 'internal scratch']
  %s0 = inlined_call_operand.vmem [shape: f32[4,8,32], index: 0, kind: input, shape index: {}]
  %s1 = inlined_call_operand.vmem [shape: f32[4,8], index: 1, kind: input, shape index: {}]
  %s2 = inlined_call_operand.vmem [shape: f32[2,4,32], index: 2, kind: input, shape index: {}]
  %s3 = inlined_call_operand.vmem [shape: f32[2,4,32], index: 3, kind: input, shape index: {}]
  %s4 = inlined_call_operand.vmem [shape: f32[2,8,32], index: 4, kind: input, shape index: {}]
  %s5 = inlined_call_operand.vmem [shape: f32[2,1,32], index: 5, kind: input, shape index: {}]
  %s6 = inlined_call_operand.vmem [shape: f32[2,32,8], index: 6, kind: input, shape index: {}]
  %s7 = inlined_call_operand.vmem [shape: f32[2,32,8], index: 7, kind: input, shape index: {}]
  %s8 = inlined_call_operand.vmem [shape: f32[2,1,8], index: 8, kind: input, shape index: {}]
  %s9 = inlined_call_operand.vmem [shape: f32[2,32,8], index: 9, kind: input, shape index: {}]
  %s10 = inlined_call_operand.vmem [shape: f32[2,32,8], index: 10, kind: input, shape index: {}]
  %s11 = inlined_call_operand.vmem [shape: f32[2,1,8], index: 11, kind: input, shape index: {}]
  %s12 = inlined_call_operand.vmem [shape: f32[2,8,128], index: 12, kind: input, shape index: {}]
  %s13 = inlined_call_operand.vmem [shape: f32[2,32,128], index: 13, kind: input, shape index: {}]
  %s14 = inlined_call_operand.vmem [shape: f32[2,1,128], index: 14, kind: input, shape index: {}]
  %s15 = inlined_call_operand.vmem [shape: f32[2,32,128], index: 15, kind: input, shape index: {}]
  %s16 = inlined_call_operand.vmem [shape: f32[2,32,128], index: 16, kind: input, shape index: {}]
  %s17 = inlined_call_operand.vmem [shape: f32[2,1,128], index: 17, kind: input, shape index: {}]
  %s18 = inlined_call_operand.vmem [shape: f32[2,32,32], index: 18, kind: input, shape index: {}]
  %s19 = inlined_call_operand.vmem [shape: f32[2,1,32], index: 19, kind: input, shape index: {}]
  %s20 = inlined_call_operand.vmem [shape: f32[2,32,32], index: 20, kind: input, shape index: {}]
  %s21 = inlined_call_operand.vmem [shape: f32[2,1,32], index: 21, kind: input, shape index: {}]
  %s22 = inlined_call_operand.vmem [shape: f32[2,32,32], index: 22, kind: input, shape index: {}]
  %s23 = inlined_call_operand.vmem [shape: f32[2,1,32], index: 23, kind: input, shape index: {}]
  %s24 = inlined_call_operand.vmem [shape: f32[2,32,8], index: 24, kind: input, shape index: {}]
  %s25 = inlined_call_operand.vmem [shape: f32[2,1,8], index: 25, kind: input, shape index: {}]
  %s26 = inlined_call_operand.vmem [shape: f32[2,5,4,8], index: 26, kind: output, shape index: {}]
  %s27 = sld [smem:[#allocation0]]
  $region137: #{encoder_decoder_forward.3} parent=0
    _
  %s29 = ssub.s32 1, %s27
  %s30 = scalar_select 0, %s29, %s27
  loop: start=0, step=1, limit=4
  $region2: #{encoder_decoder_forward.3} parent=0 // loop_pre_header
    _
  $region3: #{encoder_decoder_forward.3} parent=0 // loop_header
    %s32 = sphi 0, %s36
    %p33 = scmp.ge.s32.totalorder %s32, 4
    %s40 = sphi 0, %s40
    %s42 = sphi 0, %s40
    %s43 = sphi 0, %s42
    %s57 = sphi 0, %s43
    %s61 = sphi 0, %s61
    %s63 = sphi 0, %s61
    %s64 = sphi 0, %s63
    %s78 = sphi 0, %s64
    %s82 = sphi 0, %s82
    %s84 = sphi 0, %s82
    %s85 = sphi 0, %s84
    %s99 = sphi 0, %s85
    %s103 = sphi 0, %s103
    %s105 = sphi 0, %s103
    %s106 = sphi 0, %s105
    %s120 = sphi 0, %s106
    %s126 = sphi 0, %s128
    %s129 = sphi 0, %s126
    %s130 = sphi 0, %s129
    %s146 = sphi 0, %s130
    %s152 = sphi 0, %s154
    %s155 = sphi 0, %s152
    %s156 = sphi 0, %s155
    %s172 = sphi 0, %s156
    %s178 = sphi 0, %s180
    %s181 = sphi 0, %s178
    %s182 = sphi 0, %s181
    %s198 = sphi 0, %s182
    %s204 = sphi 0, %s206
    %s207 = sphi 0, %s204
    %s208 = sphi 0, %s207
    %s224 = sphi 0, %s208
    %s230 = sphi 0, %s232
    %s233 = sphi 0, %s230
    %s234 = sphi 0, %s233
    %s250 = sphi 0, %s234
    %s256 = sphi 0, %s258
    %s259 = sphi 0, %s256
    %s260 = sphi 0, %s259
    %s276 = sphi 0, %s260
    %s282 = sphi 0, %s284
    %s285 = sphi 0, %s282
    %s286 = sphi 0, %s285
    %s302 = sphi 0, %s286
    %s308 = sphi 0, %s310
    %s311 = sphi 0, %s308
    %s312 = sphi 0, %s311
    %s328 = sphi 0, %s312
    %s334 = sphi 0, %s336
    %s337 = sphi 0, %s334
    %s338 = sphi 0, %s337
    %s354 = sphi 0, %s338
    %s360 = sphi 0, %s362
    %s363 = sphi 0, %s360
    %s364 = sphi 0, %s363
    %s380 = sphi 0, %s364
    %s386 = sphi 0, %s388
    %s389 = sphi 0, %s386
    %s390 = sphi 0, %s389
    %s406 = sphi 0, %s390
    %s412 = sphi 0, %s414
    %s415 = sphi 0, %s412
    %s416 = sphi 0, %s415
    %s432 = sphi 0, %s416
    %s438 = sphi 0, %s440
    %s441 = sphi 0, %s438
    %s442 = sphi 0, %s441
    %s458 = sphi 0, %s442
    %s464 = sphi 0, %s466
    %s467 = sphi 0, %s464
    %s468 = sphi 0, %s467
    %s484 = sphi 0, %s468
    %s490 = sphi 0, %s492
    %s493 = sphi 0, %s490
    %s494 = sphi 0, %s493
    %s510 = sphi 0, %s494
    %s516 = sphi 0, %s518
    %s519 = sphi 0, %s516
    %s520 = sphi 0, %s519
    %s536 = sphi 0, %s520
    %s542 = sphi 0, %s544
    %s545 = sphi 0, %s542
    %s546 = sphi 0, %s545
    %s562 = sphi 0, %s546
    %s568 = sphi 0, %s570
    %s571 = sphi 0, %s568
    %s572 = sphi 0, %s571
    %s588 = sphi 0, %s572
    %s594 = sphi 0, %s596
    %s597 = sphi 0, %s594
    %s598 = sphi 0, %s597
    %s614 = sphi 0, %s598
    %s620 = sphi 0, %s622
    %s623 = sphi 0, %s620
    %s624 = sphi 0, %s623
    %s640 = sphi 0, %s624
    %s646 = sphi 0, %s648
    %s649 = sphi 0, %s646
    %s650 = sphi 0, %s649
    %s666 = sphi 0, %s650
    %s672 = sphi 0, %s674
    %s675 = sphi 0, %s672
    %s676 = sphi 0, %s675
    %s692 = sphi 0, %s676
    %s698 = sphi 0, %s700
    %s701 = sphi 0, %s698
    %s702 = sphi 0, %s701
    %s718 = sphi 0, %s702
  $region4: #{encoder_decoder_forward.3} parent=0 // loop_header_branch
    %35 = sbr.rel (%p33) target = $region8
  $region5: #{encoder_decoder_forward.3} parent=0 // loop_body
    %s37 = ssub.s32 %s32, 1
    %s38 = ssub.s32 %s32, 2
    %s39 = sadd.s32 %s32, 1
    %s41 = sadd.s32 %s40, 1
    %p44 = scmp.eq.s32.totalorder %s32, 1
    %p45 = scmp.ne.s32.totalorder %s40, %s42
    %p46 = scmp.eq.s32.totalorder %s32, 0
    %p47 = por %p45, %p46
    %p48 = scmp.ne.s32.totalorder %s40, %s42
    %p49 = scmp.eq.s32.totalorder %s37, 1
    %p50 = por %p48, %p49
    %p51 = scmp.ne.s32.totalorder %s42, %s43
    %p52 = scmp.eq.s32.totalorder %s37, 0
    %p53 = por %p51, %p52
    %p54 = scmp.ne.s32.totalorder %s42, %s43
    %p55 = scmp.eq.s32.totalorder %s38, 1
    %p56 = por %p54, %p55
    %p58 = scmp.ne.s32.totalorder %s43, %s57
    %p59 = scmp.eq.s32.totalorder %s38, 0
    %p60 = por %p58, %p59
    %s62 = sadd.s32 %s61, 1
    %p65 = scmp.eq.s32.totalorder %s32, 1
    %p66 = scmp.ne.s32.totalorder %s61, %s63
    %p67 = scmp.eq.s32.totalorder %s32, 0
    %p68 = por %p66, %p67
    %p69 = scmp.ne.s32.totalorder %s61, %s63
    %p70 = scmp.eq.s32.totalorder %s37, 1
    %p71 = por %p69, %p70
    %p72 = scmp.ne.s32.totalorder %s63, %s64
    %p73 = scmp.eq.s32.totalorder %s37, 0
    %p74 = por %p72, %p73
    %p75 = scmp.ne.s32.totalorder %s63, %s64
    %p76 = scmp.eq.s32.totalorder %s38, 1
    %p77 = por %p75, %p76
    %p79 = scmp.ne.s32.totalorder %s64, %s78
    %p80 = scmp.eq.s32.totalorder %s38, 0
    %p81 = por %p79, %p80
    %s83 = sadd.s32 %s82, 1
    %p86 = scmp.eq.s32.totalorder %s32, 1
    %p87 = scmp.ne.s32.totalorder %s82, %s84
    %p88 = scmp.eq.s32.totalorder %s32, 0
    %p89 = por %p87, %p88
    %p90 = scmp.ne.s32.totalorder %s82, %s84
    %p91 = scmp.eq.s32.totalorder %s37, 1
    %p92 = por %p90, %p91
    %p93 = scmp.ne.s32.totalorder %s84, %s85
    %p94 = scmp.eq.s32.totalorder %s37, 0
    %p95 = por %p93, %p94
    %p96 = scmp.ne.s32.totalorder %s84, %s85
    %p97 = scmp.eq.s32.totalorder %s38, 1
    %p98 = por %p96, %p97
    %p100 = scmp.ne.s32.totalorder %s85, %s99
    %p101 = scmp.eq.s32.totalorder %s38, 0
    %p102 = por %p100, %p101
    %s104 = sadd.s32 %s103, 1
    %p107 = scmp.eq.s32.totalorder %s32, 1
    %p108 = scmp.ne.s32.totalorder %s103, %s105
    %p109 = scmp.eq.s32.totalorder %s32, 0
    %p110 = por %p108, %p109
    %p111 = scmp.ne.s32.totalorder %s103, %s105
    %p112 = scmp.eq.s32.totalorder %s37, 1
    %p113 = por %p111, %p112
    %p114 = scmp.ne.s32.totalorder %s105, %s106
    %p115 = scmp.eq.s32.totalorder %s37, 0
    %p116 = por %p114, %p115
    %p117 = scmp.ne.s32.totalorder %s105, %s106
    %p118 = scmp.eq.s32.totalorder %s38, 1
    %p119 = por %p117, %p118
    %p121 = scmp.ne.s32.totalorder %s106, %s120
    %p122 = scmp.eq.s32.totalorder %s38, 0
    %p123 = por %p121, %p122
    %s124 = ssub.s32 %s32, %s39
    %p125 = scmp.eq.s32.totalorder %s124, 0
    %s127 = sadd.s32 %s126, 1
    %s128 = scalar_select %p125, %s126, %s127
    %p131 = pneg %p125
    %p132 = scmp.eq.s32.totalorder %s32, 1
    %p133 = por %p131, %p132
    %p134 = scmp.ne.s32.totalorder %s126, %s129
    %p135 = scmp.eq.s32.totalorder %s32, 0
    %p136 = por %p134, %p135
    %p137 = scmp.ne.s32.totalorder %s126, %s129
    %p138 = scmp.eq.s32.totalorder %s37, 1
    %p139 = por %p137, %p138
    %p140 = scmp.ne.s32.totalorder %s129, %s130
    %p141 = scmp.eq.s32.totalorder %s37, 0
    %p142 = por %p140, %p141
    %p143 = scmp.ne.s32.totalorder %s129, %s130
    %p144 = scmp.eq.s32.totalorder %s38, 1
    %p145 = por %p143, %p144
    %p147 = scmp.ne.s32.totalorder %s130, %s146
    %p148 = scmp.eq.s32.totalorder %s38, 0
    %p149 = por %p147, %p148
    %s150 = ssub.s32 %s32, %s39
    %p151 = scmp.eq.s32.totalorder %s150, 0
    %s153 = sadd.s32 %s152, 1
    %s154 = scalar_select %p151, %s152, %s153
    %p157 = pneg %p151
    %p158 = scmp.eq.s32.totalorder %s32, 1
    %p159 = por %p157, %p158
    %p160 = scmp.ne.s32.totalorder %s152, %s155
    %p161 = scmp.eq.s32.totalorder %s32, 0
    %p162 = por %p160, %p161
    %p163 = scmp.ne.s32.totalorder %s152, %s155
    %p164 = scmp.eq.s32.totalorder %s37, 1
    %p165 = por %p163, %p164
    %p166 = scmp.ne.s32.totalorder %s155, %s156
    %p167 = scmp.eq.s32.totalorder %s37, 0
    %p168 = por %p166, %p167
    %p169 = scmp.ne.s32.totalorder %s155, %s156
    %p170 = scmp.eq.s32.totalorder %s38, 1
    %p171 = por %p169, %p170
    %p173 = scmp.ne.s32.totalorder %s156, %s172
    %p174 = scmp.eq.s32.totalorder %s38, 0
    %p175 = por %p173, %p174
    %s176 = ssub.s32 %s32, %s39
    %p177 = scmp.eq.s32.totalorder %s176, 0
    %s179 = sadd.s32 %s178, 1
    %s180 = scalar_select %p177, %s178, %s179
    %p183 = pneg %p177
    %p184 = scmp.eq.s32.totalorder %s32, 1
    %p185 = por %p183, %p184
    %p186 = scmp.ne.s32.totalorder %s178, %s181
    %p187 = scmp.eq.s32.totalorder %s32, 0
    %p188 = por %p186, %p187
    %p189 = scmp.ne.s32.totalorder %s178, %s181
    %p190 = scmp.eq.s32.totalorder %s37, 1
    %p191 = por %p189, %p190
    %p192 = scmp.ne.s32.totalorder %s181, %s182
    %p193 = scmp.eq.s32.totalorder %s37, 0
    %p194 = por %p192, %p193
    %p195 = scmp.ne.s32.totalorder %s181, %s182
    %p196 = scmp.eq.s32.totalorder %s38, 1
    %p197 = por %p195, %p196
    %p199 = scmp.ne.s32.totalorder %s182, %s198
    %p200 = scmp.eq.s32.totalorder %s38, 0
    %p201 = por %p199, %p200
    %s202 = ssub.s32 %s32, %s39
    %p203 = scmp.eq.s32.totalorder %s202, 0
    %s205 = sadd.s32 %s204, 1
    %s206 = scalar_select %p203, %s204, %s205
    %p209 = pneg %p203
    %p210 = scmp.eq.s32.totalorder %s32, 1
    %p211 = por %p209, %p210
    %p212 = scmp.ne.s32.totalorder %s204, %s207
    %p213 = scmp.eq.s32.totalorder %s32, 0
    %p214 = por %p212, %p213
    %p215 = scmp.ne.s32.totalorder %s204, %s207
    %p216 = scmp.eq.s32.totalorder %s37, 1
    %p217 = por %p215, %p216
    %p218 = scmp.ne.s32.totalorder %s207, %s208
    %p219 = scmp.eq.s32.totalorder %s37, 0
    %p220 = por %p218, %p219
    %p221 = scmp.ne.s32.totalorder %s207, %s208
    %p222 = scmp.eq.s32.totalorder %s38, 1
    %p223 = por %p221, %p222
    %p225 = scmp.ne.s32.totalorder %s208, %s224
    %p226 = scmp.eq.s32.totalorder %s38, 0
    %p227 = por %p225, %p226
    %s228 = ssub.s32 %s32, %s39
    %p229 = scmp.eq.s32.totalorder %s228, 0
    %s231 = sadd.s32 %s230, 1
    %s232 = scalar_select %p229, %s230, %s231
    %p235 = pneg %p229
    %p236 = scmp.eq.s32.totalorder %s32, 1
    %p237 = por %p235, %p236
    %p238 = scmp.ne.s32.totalorder %s230, %s233
    %p239 = scmp.eq.s32.totalorder %s32, 0
    %p240 = por %p238, %p239
    %p241 = scmp.ne.s32.totalorder %s230, %s233
    %p242 = scmp.eq.s32.totalorder %s37, 1
    %p243 = por %p241, %p242
    %p244 = scmp.ne.s32.totalorder %s233, %s234
    %p245 = scmp.eq.s32.totalorder %s37, 0
    %p246 = por %p244, %p245
    %p247 = scmp.ne.s32.totalorder %s233, %s234
    %p248 = scmp.eq.s32.totalorder %s38, 1
    %p249 = por %p247, %p248
    %p251 = scmp.ne.s32.totalorder %s234, %s250
    %p252 = scmp.eq.s32.totalorder %s38, 0
    %p253 = por %p251, %p252
    %s254 = ssub.s32 %s32, %s39
    %p255 = scmp.eq.s32.totalorder %s254, 0
    %s257 = sadd.s32 %s256, 1
    %s258 = scalar_select %p255, %s256, %s257
    %p261 = pneg %p255
    %p262 = scmp.eq.s32.totalorder %s32, 1
    %p263 = por %p261, %p262
    %p264 = scmp.ne.s32.totalorder %s256, %s259
    %p265 = scmp.eq.s32.totalorder %s32, 0
    %p266 = por %p264, %p265
    %p267 = scmp.ne.s32.totalorder %s256, %s259
    %p268 = scmp.eq.s32.totalorder %s37, 1
    %p269 = por %p267, %p268
    %p270 = scmp.ne.s32.totalorder %s259, %s260
    %p271 = scmp.eq.s32.totalorder %s37, 0
    %p272 = por %p270, %p271
    %p273 = scmp.ne.s32.totalorder %s259, %s260
    %p274 = scmp.eq.s32.totalorder %s38, 1
    %p275 = por %p273, %p274
    %p277 = scmp.ne.s32.totalorder %s260, %s276
    %p278 = scmp.eq.s32.totalorder %s38, 0
    %p279 = por %p277, %p278
    %s280 = ssub.s32 %s32, %s39
    %p281 = scmp.eq.s32.totalorder %s280, 0
    %s283 = sadd.s32 %s282, 1
    %s284 = scalar_select %p281, %s282, %s283
    %p287 = pneg %p281
    %p288 = scmp.eq.s32.totalorder %s32, 1
    %p289 = por %p287, %p288
    %p290 = scmp.ne.s32.totalorder %s282, %s285
    %p291 = scmp.eq.s32.totalorder %s32, 0
    %p292 = por %p290, %p291
    %p293 = scmp.ne.s32.totalorder %s282, %s285
    %p294 = scmp.eq.s32.totalorder %s37, 1
    %p295 = por %p293, %p294
    %p296 = scmp.ne.s32.totalorder %s285, %s286
    %p297 = scmp.eq.s32.totalorder %s37, 0
    %p298 = por %p296, %p297
    %p299 = scmp.ne.s32.totalorder %s285, %s286
    %p300 = scmp.eq.s32.totalorder %s38, 1
    %p301 = por %p299, %p300
    %p303 = scmp.ne.s32.totalorder %s286, %s302
    %p304 = scmp.eq.s32.totalorder %s38, 0
    %p305 = por %p303, %p304
    %s306 = ssub.s32 %s32, %s39
    %p307 = scmp.eq.s32.totalorder %s306, 0
    %s309 = sadd.s32 %s308, 1
    %s310 = scalar_select %p307, %s308, %s309
    %p313 = pneg %p307
    %p314 = scmp.eq.s32.totalorder %s32, 1
    %p315 = por %p313, %p314
    %p316 = scmp.ne.s32.totalorder %s308, %s311
    %p317 = scmp.eq.s32.totalorder %s32, 0
    %p318 = por %p316, %p317
    %p319 = scmp.ne.s32.totalorder %s308, %s311
    %p320 = scmp.eq.s32.totalorder %s37, 1
    %p321 = por %p319, %p320
    %p322 = scmp.ne.s32.totalorder %s311, %s312
    %p323 = scmp.eq.s32.totalorder %s37, 0
    %p324 = por %p322, %p323
    %p325 = scmp.ne.s32.totalorder %s311, %s312
    %p326 = scmp.eq.s32.totalorder %s38, 1
    %p327 = por %p325, %p326
    %p329 = scmp.ne.s32.totalorder %s312, %s328
    %p330 = scmp.eq.s32.totalorder %s38, 0
    %p331 = por %p329, %p330
    %s332 = ssub.s32 %s32, %s39
    %p333 = scmp.eq.s32.totalorder %s332, 0
    %s335 = sadd.s32 %s334, 1
    %s336 = scalar_select %p333, %s334, %s335
    %p339 = pneg %p333
    %p340 = scmp.eq.s32.totalorder %s32, 1
    %p341 = por %p339, %p340
    %p342 = scmp.ne.s32.totalorder %s334, %s337
    %p343 = scmp.eq.s32.totalorder %s32, 0
    %p344 = por %p342, %p343
    %p345 = scmp.ne.s32.totalorder %s334, %s337
    %p346 = scmp.eq.s32.totalorder %s37, 1
    %p347 = por %p345, %p346
    %p348 = scmp.ne.s32.totalorder %s337, %s338
    %p349 = scmp.eq.s32.totalorder %s37, 0
    %p350 = por %p348, %p349
    %p351 = scmp.ne.s32.totalorder %s337, %s338
    %p352 = scmp.eq.s32.totalorder %s38, 1
    %p353 = por %p351, %p352
    %p355 = scmp.ne.s32.totalorder %s338, %s354
    %p356 = scmp.eq.s32.totalorder %s38, 0
    %p357 = por %p355, %p356
    %s358 = ssub.s32 %s32, %s39
    %p359 = scmp.eq.s32.totalorder %s358, 0
    %s361 = sadd.s32 %s360, 1
    %s362 = scalar_select %p359, %s360, %s361
    %p365 = pneg %p359
    %p366 = scmp.eq.s32.totalorder %s32, 1
    %p367 = por %p365, %p366
    %p368 = scmp.ne.s32.totalorder %s360, %s363
    %p369 = scmp.eq.s32.totalorder %s32, 0
    %p370 = por %p368, %p369
    %p371 = scmp.ne.s32.totalorder %s360, %s363
    %p372 = scmp.eq.s32.totalorder %s37, 1
    %p373 = por %p371, %p372
    %p374 = scmp.ne.s32.totalorder %s363, %s364
    %p375 = scmp.eq.s32.totalorder %s37, 0
    %p376 = por %p374, %p375
    %p377 = scmp.ne.s32.totalorder %s363, %s364
    %p378 = scmp.eq.s32.totalorder %s38, 1
    %p379 = por %p377, %p378
    %p381 = scmp.ne.s32.totalorder %s364, %s380
    %p382 = scmp.eq.s32.totalorder %s38, 0
    %p383 = por %p381, %p382
    %s384 = ssub.s32 %s32, %s39
    %p385 = scmp.eq.s32.totalorder %s384, 0
    %s387 = sadd.s32 %s386, 1
    %s388 = scalar_select %p385, %s386, %s387
    %p391 = pneg %p385
    %p392 = scmp.eq.s32.totalorder %s32, 1
    %p393 = por %p391, %p392
    %p394 = scmp.ne.s32.totalorder %s386, %s389
    %p395 = scmp.eq.s32.totalorder %s32, 0
    %p396 = por %p394, %p395
    %p397 = scmp.ne.s32.totalorder %s386, %s389
    %p398 = scmp.eq.s32.totalorder %s37, 1
    %p399 = por %p397, %p398
    %p400 = scmp.ne.s32.totalorder %s389, %s390
    %p401 = scmp.eq.s32.totalorder %s37, 0
    %p402 = por %p400, %p401
    %p403 = scmp.ne.s32.totalorder %s389, %s390
    %p404 = scmp.eq.s32.totalorder %s38, 1
    %p405 = por %p403, %p404
    %p407 = scmp.ne.s32.totalorder %s390, %s406
    %p408 = scmp.eq.s32.totalorder %s38, 0
    %p409 = por %p407, %p408
    %s410 = ssub.s32 %s32, %s39
    %p411 = scmp.eq.s32.totalorder %s410, 0
    %s413 = sadd.s32 %s412, 1
    %s414 = scalar_select %p411, %s412, %s413
    %p417 = pneg %p411
    %p418 = scmp.eq.s32.totalorder %s32, 1
    %p419 = por %p417, %p418
    %p420 = scmp.ne.s32.totalorder %s412, %s415
    %p421 = scmp.eq.s32.totalorder %s32, 0
    %p422 = por %p420, %p421
    %p423 = scmp.ne.s32.totalorder %s412, %s415
    %p424 = scmp.eq.s32.totalorder %s37, 1
    %p425 = por %p423, %p424
    %p426 = scmp.ne.s32.totalorder %s415, %s416
    %p427 = scmp.eq.s32.totalorder %s37, 0
    %p428 = por %p426, %p427
    %p429 = scmp.ne.s32.totalorder %s415, %s416
    %p430 = scmp.eq.s32.totalorder %s38, 1
    %p431 = por %p429, %p430
    %p433 = scmp.ne.s32.totalorder %s416, %s432
    %p434 = scmp.eq.s32.totalorder %s38, 0
    %p435 = por %p433, %p434
    %s436 = ssub.s32 %s32, %s39
    %p437 = scmp.eq.s32.totalorder %s436, 0
    %s439 = sadd.s32 %s438, 1
    %s440 = scalar_select %p437, %s438, %s439
    %p443 = pneg %p437
    %p444 = scmp.eq.s32.totalorder %s32, 1
    %p445 = por %p443, %p444
    %p446 = scmp.ne.s32.totalorder %s438, %s441
    %p447 = scmp.eq.s32.totalorder %s32, 0
    %p448 = por %p446, %p447
    %p449 = scmp.ne.s32.totalorder %s438, %s441
    %p450 = scmp.eq.s32.totalorder %s37, 1
    %p451 = por %p449, %p450
    %p452 = scmp.ne.s32.totalorder %s441, %s442
    %p453 = scmp.eq.s32.totalorder %s37, 0
    %p454 = por %p452, %p453
    %p455 = scmp.ne.s32.totalorder %s441, %s442
    %p456 = scmp.eq.s32.totalorder %s38, 1
    %p457 = por %p455, %p456
    %p459 = scmp.ne.s32.totalorder %s442, %s458
    %p460 = scmp.eq.s32.totalorder %s38, 0
    %p461 = por %p459, %p460
    %s462 = ssub.s32 %s32, %s39
    %p463 = scmp.eq.s32.totalorder %s462, 0
    %s465 = sadd.s32 %s464, 1
    %s466 = scalar_select %p463, %s464, %s465
    %p469 = pneg %p463
    %p470 = scmp.eq.s32.totalorder %s32, 1
    %p471 = por %p469, %p470
    %p472 = scmp.ne.s32.totalorder %s464, %s467
    %p473 = scmp.eq.s32.totalorder %s32, 0
    %p474 = por %p472, %p473
    %p475 = scmp.ne.s32.totalorder %s464, %s467
    %p476 = scmp.eq.s32.totalorder %s37, 1
    %p477 = por %p475, %p476
    %p478 = scmp.ne.s32.totalorder %s467, %s468
    %p479 = scmp.eq.s32.totalorder %s37, 0
    %p480 = por %p478, %p479
    %p481 = scmp.ne.s32.totalorder %s467, %s468
    %p482 = scmp.eq.s32.totalorder %s38, 1
    %p483 = por %p481, %p482
    %p485 = scmp.ne.s32.totalorder %s468, %s484
    %p486 = scmp.eq.s32.totalorder %s38, 0
    %p487 = por %p485, %p486
    %s488 = ssub.s32 %s32, %s39
    %p489 = scmp.eq.s32.totalorder %s488, 0
    %s491 = sadd.s32 %s490, 1
    %s492 = scalar_select %p489, %s490, %s491
    %p495 = pneg %p489
    %p496 = scmp.eq.s32.totalorder %s32, 1
    %p497 = por %p495, %p496
    %p498 = scmp.ne.s32.totalorder %s490, %s493
    %p499 = scmp.eq.s32.totalorder %s32, 0
    %p500 = por %p498, %p499
    %p501 = scmp.ne.s32.totalorder %s490, %s493
    %p502 = scmp.eq.s32.totalorder %s37, 1
    %p503 = por %p501, %p502
    %p504 = scmp.ne.s32.totalorder %s493, %s494
    %p505 = scmp.eq.s32.totalorder %s37, 0
    %p506 = por %p504, %p505
    %p507 = scmp.ne.s32.totalorder %s493, %s494
    %p508 = scmp.eq.s32.totalorder %s38, 1
    %p509 = por %p507, %p508
    %p511 = scmp.ne.s32.totalorder %s494, %s510
    %p512 = scmp.eq.s32.totalorder %s38, 0
    %p513 = por %p511, %p512
    %s514 = ssub.s32 %s32, %s39
    %p515 = scmp.eq.s32.totalorder %s514, 0
    %s517 = sadd.s32 %s516, 1
    %s518 = scalar_select %p515, %s516, %s517
    %p521 = pneg %p515
    %p522 = scmp.eq.s32.totalorder %s32, 1
    %p523 = por %p521, %p522
    %p524 = scmp.ne.s32.totalorder %s516, %s519
    %p525 = scmp.eq.s32.totalorder %s32, 0
    %p526 = por %p524, %p525
    %p527 = scmp.ne.s32.totalorder %s516, %s519
    %p528 = scmp.eq.s32.totalorder %s37, 1
    %p529 = por %p527, %p528
    %p530 = scmp.ne.s32.totalorder %s519, %s520
    %p531 = scmp.eq.s32.totalorder %s37, 0
    %p532 = por %p530, %p531
    %p533 = scmp.ne.s32.totalorder %s519, %s520
    %p534 = scmp.eq.s32.totalorder %s38, 1
    %p535 = por %p533, %p534
    %p537 = scmp.ne.s32.totalorder %s520, %s536
    %p538 = scmp.eq.s32.totalorder %s38, 0
    %p539 = por %p537, %p538
    %s540 = ssub.s32 %s32, %s39
    %p541 = scmp.eq.s32.totalorder %s540, 0
    %s543 = sadd.s32 %s542, 1
    %s544 = scalar_select %p541, %s542, %s543
    %p547 = pneg %p541
    %p548 = scmp.eq.s32.totalorder %s32, 1
    %p549 = por %p547, %p548
    %p550 = scmp.ne.s32.totalorder %s542, %s545
    %p551 = scmp.eq.s32.totalorder %s32, 0
    %p552 = por %p550, %p551
    %p553 = scmp.ne.s32.totalorder %s542, %s545
    %p554 = scmp.eq.s32.totalorder %s37, 1
    %p555 = por %p553, %p554
    %p556 = scmp.ne.s32.totalorder %s545, %s546
    %p557 = scmp.eq.s32.totalorder %s37, 0
    %p558 = por %p556, %p557
    %p559 = scmp.ne.s32.totalorder %s545, %s546
    %p560 = scmp.eq.s32.totalorder %s38, 1
    %p561 = por %p559, %p560
    %p563 = scmp.ne.s32.totalorder %s546, %s562
    %p564 = scmp.eq.s32.totalorder %s38, 0
    %p565 = por %p563, %p564
    %s566 = ssub.s32 %s32, %s39
    %p567 = scmp.eq.s32.totalorder %s566, 0
    %s569 = sadd.s32 %s568, 1
    %s570 = scalar_select %p567, %s568, %s569
    %p573 = pneg %p567
    %p574 = scmp.eq.s32.totalorder %s32, 1
    %p575 = por %p573, %p574
    %p576 = scmp.ne.s32.totalorder %s568, %s571
    %p577 = scmp.eq.s32.totalorder %s32, 0
    %p578 = por %p576, %p577
    %p579 = scmp.ne.s32.totalorder %s568, %s571
    %p580 = scmp.eq.s32.totalorder %s37, 1
    %p581 = por %p579, %p580
    %p582 = scmp.ne.s32.totalorder %s571, %s572
    %p583 = scmp.eq.s32.totalorder %s37, 0
    %p584 = por %p582, %p583
    %p585 = scmp.ne.s32.totalorder %s571, %s572
    %p586 = scmp.eq.s32.totalorder %s38, 1
    %p587 = por %p585, %p586
    %p589 = scmp.ne.s32.totalorder %s572, %s588
    %p590 = scmp.eq.s32.totalorder %s38, 0
    %p591 = por %p589, %p590
    %s592 = ssub.s32 %s32, %s39
    %p593 = scmp.eq.s32.totalorder %s592, 0
    %s595 = sadd.s32 %s594, 1
    %s596 = scalar_select %p593, %s594, %s595
    %p599 = pneg %p593
    %p600 = scmp.eq.s32.totalorder %s32, 1
    %p601 = por %p599, %p600
    %p602 = scmp.ne.s32.totalorder %s594, %s597
    %p603 = scmp.eq.s32.totalorder %s32, 0
    %p604 = por %p602, %p603
    %p605 = scmp.ne.s32.totalorder %s594, %s597
    %p606 = scmp.eq.s32.totalorder %s37, 1
    %p607 = por %p605, %p606
    %p608 = scmp.ne.s32.totalorder %s597, %s598
    %p609 = scmp.eq.s32.totalorder %s37, 0
    %p610 = por %p608, %p609
    %p611 = scmp.ne.s32.totalorder %s597, %s598
    %p612 = scmp.eq.s32.totalorder %s38, 1
    %p613 = por %p611, %p612
    %p615 = scmp.ne.s32.totalorder %s598, %s614
    %p616 = scmp.eq.s32.totalorder %s38, 0
    %p617 = por %p615, %p616
    %s618 = ssub.s32 %s32, %s39
    %p619 = scmp.eq.s32.totalorder %s618, 0
    %s621 = sadd.s32 %s620, 1
    %s622 = scalar_select %p619, %s620, %s621
    %p625 = pneg %p619
    %p626 = scmp.eq.s32.totalorder %s32, 1
    %p627 = por %p625, %p626
    %p628 = scmp.ne.s32.totalorder %s620, %s623
    %p629 = scmp.eq.s32.totalorder %s32, 0
    %p630 = por %p628, %p629
    %p631 = scmp.ne.s32.totalorder %s620, %s623
    %p632 = scmp.eq.s32.totalorder %s37, 1
    %p633 = por %p631, %p632
    %p634 = scmp.ne.s32.totalorder %s623, %s624
    %p635 = scmp.eq.s32.totalorder %s37, 0
    %p636 = por %p634, %p635
    %p637 = scmp.ne.s32.totalorder %s623, %s624
    %p638 = scmp.eq.s32.totalorder %s38, 1
    %p639 = por %p637, %p638
    %p641 = scmp.ne.s32.totalorder %s624, %s640
    %p642 = scmp.eq.s32.totalorder %s38, 0
    %p643 = por %p641, %p642
    %s644 = ssub.s32 %s32, %s39
    %p645 = scmp.eq.s32.totalorder %s644, 0
    %s647 = sadd.s32 %s646, 1
    %s648 = scalar_select %p645, %s646, %s647
    %p651 = pneg %p645
    %p652 = scmp.eq.s32.totalorder %s32, 1
    %p653 = por %p651, %p652
    %p654 = scmp.ne.s32.totalorder %s646, %s649
    %p655 = scmp.eq.s32.totalorder %s32, 0
    %p656 = por %p654, %p655
    %p657 = scmp.ne.s32.totalorder %s646, %s649
    %p658 = scmp.eq.s32.totalorder %s37, 1
    %p659 = por %p657, %p658
    %p660 = scmp.ne.s32.totalorder %s649, %s650
    %p661 = scmp.eq.s32.totalorder %s37, 0
    %p662 = por %p660, %p661
    %p663 = scmp.ne.s32.totalorder %s649, %s650
    %p664 = scmp.eq.s32.totalorder %s38, 1
    %p665 = por %p663, %p664
    %p667 = scmp.ne.s32.totalorder %s650, %s666
    %p668 = scmp.eq.s32.totalorder %s38, 0
    %p669 = por %p667, %p668
    %s670 = ssub.s32 %s32, %s39
    %p671 = scmp.eq.s32.totalorder %s670, 0
    %s673 = sadd.s32 %s672, 1
    %s674 = scalar_select %p671, %s672, %s673
    %p677 = pneg %p671
    %p678 = scmp.eq.s32.totalorder %s32, 1
    %p679 = por %p677, %p678
    %p680 = scmp.ne.s32.totalorder %s672, %s675
    %p681 = scmp.eq.s32.totalorder %s32, 0
    %p682 = por %p680, %p681
    %p683 = scmp.ne.s32.totalorder %s672, %s675
    %p684 = scmp.eq.s32.totalorder %s37, 1
    %p685 = por %p683, %p684
    %p686 = scmp.ne.s32.totalorder %s675, %s676
    %p687 = scmp.eq.s32.totalorder %s37, 0
    %p688 = por %p686, %p687
    %p689 = scmp.ne.s32.totalorder %s675, %s676
    %p690 = scmp.eq.s32.totalorder %s38, 1
    %p691 = por %p689, %p690
    %p693 = scmp.ne.s32.totalorder %s676, %s692
    %p694 = scmp.eq.s32.totalorder %s38, 0
    %p695 = por %p693, %p694
    %s696 = ssub.s32 %s32, %s39
    %p697 = scmp.eq.s32.totalorder %s696, 0
    %s699 = sadd.s32 %s698, 1
    %s700 = scalar_select %p697, %s698, %s699
    %p703 = pneg %p697
    %p704 = scmp.eq.s32.totalorder %s32, 1
    %p705 = por %p703, %p704
    %p706 = scmp.ne.s32.totalorder %s698, %s701
    %p707 = scmp.eq.s32.totalorder %s32, 0
    %p708 = por %p706, %p707
    %p709 = scmp.ne.s32.totalorder %s698, %s701
    %p710 = scmp.eq.s32.totalorder %s37, 1
    %p711 = por %p709, %p710
    %p712 = scmp.ne.s32.totalorder %s701, %s702
    %p713 = scmp.eq.s32.totalorder %s37, 0
    %p714 = por %p712, %p713
    %p715 = scmp.ne.s32.totalorder %s701, %s702
    %p716 = scmp.eq.s32.totalorder %s38, 1
    %p717 = por %p715, %p716
    %p719 = scmp.ne.s32.totalorder %s702, %s718
    %p720 = scmp.eq.s32.totalorder %s38, 0
    %p721 = por %p719, %p720
    %p722 = scmp.le.s32.totalorder 1, %s32
    %p723 = scmp.lt.s32.totalorder %s32, 3
    %p724 = pnand %p722, %p723
    %p725 = pneg %p724
    // Predicated region
    $region9: #{encoder_decoder_forward.3} parent=5 // pred_check
      _
    $region10: #{encoder_decoder_forward.3} parent=5 // pred_check_branch
      %727 = sbr.rel (%p724) target = $region12
    $region11: #{encoder_decoder_forward.3} parent=5 // pred_region
      %s728 = ssub.s32 %s32, 1
      // Predicated region
      $region13: #{encoder_decoder_forward.3} parent=11 // pred_check
        %p729 = pneg %p53
      $region14: #{encoder_decoder_forward.3} parent=11 // pred_check_branch
        %731 = sbr.rel (%p729) target = $region16
      $region15: #{encoder_decoder_forward.3} parent=11 // pred_region
        _
      $region16: #{encoder_decoder_forward.3} parent=11 // pred_fallthru
        _
      // Predicated region
      $region17: #{encoder_decoder_forward.3} parent=11 // pred_check
        %p732 = pneg %p74
      $region18: #{encoder_decoder_forward.3} parent=11 // pred_check_branch
        %734 = sbr.rel (%p732) target = $region20
      $region19: #{encoder_decoder_forward.3} parent=11 // pred_region
        _
      $region20: #{encoder_decoder_forward.3} parent=11 // pred_fallthru
        _
      // Predicated region
      $region21: #{encoder_decoder_forward.3} parent=11 // pred_check
        %p735 = pneg %p95
      $region22: #{encoder_decoder_forward.3} parent=11 // pred_check_branch
        %737 = sbr.rel (%p735) target = $region24
      $region23: #{encoder_decoder_forward.3} parent=11 // pred_region
        _
      $region24: #{encoder_decoder_forward.3} parent=11 // pred_fallthru
        _
      // Predicated region
      $region25: #{encoder_decoder_forward.3} parent=11 // pred_check
        %p738 = pneg %p116
      $region26: #{encoder_decoder_forward.3} parent=11 // pred_check_branch
        %740 = sbr.rel (%p738) target = $region28
      $region27: #{encoder_decoder_forward.3} parent=11 // pred_region
        _
      $region28: #{encoder_decoder_forward.3} parent=11 // pred_fallthru
        _
    $region12: #{encoder_decoder_forward.3} parent=5 // pred_fallthru
      _
    %p741 = scmp.lt.s32.totalorder %s32, 2
    // Predicated region
    $region29: #{encoder_decoder_forward.3} parent=5 // pred_check
      %p742 = pneg %p741
    $region30: #{encoder_decoder_forward.3} parent=5 // pred_check_branch
      %744 = sbr.rel (%p742) target = $region32
    $region31: #{encoder_decoder_forward.3} parent=5 // pred_region
      // Predicated region
      $region33: #{encoder_decoder_forward.3} parent=31 // pred_check
        %p745 = pneg %p136
      $region34: #{encoder_decoder_forward.3} parent=31 // pred_check_branch
        %747 = sbr.rel (%p745) target = $region36
      $region35: #{encoder_decoder_forward.3} parent=31 // pred_region
        %p748 = scmp.lt.s32.totalorder %s32, 1
        %s749 = scalar_select %p748, %s32, 1
        %s750 = smul.addr %s749, 8
        %s751 = scalar_lea.vmem %s4, %s750
      $region36: #{encoder_decoder_forward.3} parent=31 // pred_fallthru
        _
      // Predicated region
      $region37: #{encoder_decoder_forward.3} parent=31 // pred_check
        %p752 = pneg %p162
      $region38: #{encoder_decoder_forward.3} parent=31 // pred_check_branch
        %754 = sbr.rel (%p752) target = $region40
      $region39: #{encoder_decoder_forward.3} parent=31 // pred_region
        %p755 = scmp.lt.s32.totalorder %s32, 1
        %s756 = scalar_select %p755, %s32, 1
        %s757 = scalar_lea.vmem %s5, %s756
      $region40: #{encoder_decoder_forward.3} parent=31 // pred_fallthru
        _
      // Predicated region
      $region41: #{encoder_decoder_forward.3} parent=31 // pred_check
        %p758 = pneg %p188
      $region42: #{encoder_decoder_forward.3} parent=31 // pred_check_branch
        %760 = sbr.rel (%p758) target = $region44
      $region43: #{encoder_decoder_forward.3} parent=31 // pred_region
        %p761 = scmp.lt.s32.totalorder %s32, 1
        %s762 = scalar_select %p761, %s32, 1
        %s763 = smul.addr %s762, 4
        %s764 = smul.addr %s763, 8
        %s765 = scalar_lea.vmem %s6, %s764
      $region44: #{encoder_decoder_forward.3} parent=31 // pred_fallthru
        _
      // Predicated region
      $region45: #{encoder_decoder_forward.3} parent=31 // pred_check
        %p766 = pneg %p214
      $region46: #{encoder_decoder_forward.3} parent=31 // pred_check_branch
        %768 = sbr.rel (%p766) target = $region48
      $region47: #{encoder_decoder_forward.3} parent=31 // pred_region
        %p769 = scmp.lt.s32.totalorder %s32, 1
        %s770 = scalar_select %p769, %s32, 1
        %s771 = smul.addr %s770, 4
        %s772 = smul.addr %s771, 8
        %s773 = scalar_lea.vmem %s7, %s772
      $region48: #{encoder_decoder_forward.3} parent=31 // pred_fallthru
        _
      // Predicated region
      $region49: #{encoder_decoder_forward.3} parent=31 // pred_check
        %p774 = pneg %p240
      $region50: #{encoder_decoder_forward.3} parent=31 // pred_check_branch
        %776 = sbr.rel (%p774) target = $region52
      $region51: #{encoder_decoder_forward.3} parent=31 // pred_region
        %p777 = scmp.lt.s32.totalorder %s32, 1
        %s778 = scalar_select %p777, %s32, 1
        %s779 = scalar_lea.vmem %s8, %s778
      $region52: #{encoder_decoder_forward.3} parent=31 // pred_fallthru
        _
      // Predicated region
      $region53: #{encoder_decoder_forward.3} parent=31 // pred_check
        %p780 = pneg %p266
      $region54: #{encoder_decoder_forward.3} parent=31 // pred_check_branch
        %782 = sbr.rel (%p780) target = $region56
      $region55: #{encoder_decoder_forward.3} parent=31 // pred_region
        %p783 = scmp.lt.s32.totalorder %s32, 1
        %s784 = scalar_select %p783, %s32, 1
        %s785 = smul.addr %s784, 4
        %s786 = smul.addr %s785, 8
        %s787 = scalar_lea.vmem %s9, %s786
      $region56: #{encoder_decoder_forward.3} parent=31 // pred_fallthru
        _
      // Predicated region
      $region57: #{encoder_decoder_forward.3} parent=31 // pred_check
        %p788 = pneg %p292
      $region58: #{encoder_decoder_forward.3} parent=31 // pred_check_branch
        %790 = sbr.rel (%p788) target = $region60
      $region59: #{encoder_decoder_forward.3} parent=31 // pred_region
        %p791 = scmp.lt.s32.totalorder %s32, 1
        %s792 = scalar_select %p791, %s32, 1
        %s793 = smul.addr %s792, 4
        %s794 = smul.addr %s793, 8
        %s795 = scalar_lea.vmem %s10, %s794
      $region60: #{encoder_decoder_forward.3} parent=31 // pred_fallthru
        _
      // Predicated region
      $region61: #{encoder_decoder_forward.3} parent=31 // pred_check
        %p796 = pneg %p318
      $region62: #{encoder_decoder_forward.3} parent=31 // pred_check_branch
        %798 = sbr.rel (%p796) target = $region64
      $region63: #{encoder_decoder_forward.3} parent=31 // pred_region
        %p799 = scmp.lt.s32.totalorder %s32, 1
        %s800 = scalar_select %p799, %s32, 1
        %s801 = scalar_lea.vmem %s11, %s800
      $region64: #{encoder_decoder_forward.3} parent=31 // pred_fallthru
        _
      // Predicated region
      $region65: #{encoder_decoder_forward.3} parent=31 // pred_check
        %p802 = pneg %p344
      $region66: #{encoder_decoder_forward.3} parent=31 // pred_check_branch
        %804 = sbr.rel (%p802) target = $region68
      $region67: #{encoder_decoder_forward.3} parent=31 // pred_region
        %p805 = scmp.lt.s32.totalorder %s32, 1
        %s806 = scalar_select %p805, %s32, 1
        %s807 = smul.addr %s806, 8
        %s808 = scalar_lea.vmem %s12, %s807
      $region68: #{encoder_decoder_forward.3} parent=31 // pred_fallthru
        _
      // Predicated region
      $region69: #{encoder_decoder_forward.3} parent=31 // pred_check
        %p809 = pneg %p370
      $region70: #{encoder_decoder_forward.3} parent=31 // pred_check_branch
        %811 = sbr.rel (%p809) target = $region72
      $region71: #{encoder_decoder_forward.3} parent=31 // pred_region
        %p812 = scmp.lt.s32.totalorder %s32, 1
        %s813 = scalar_select %p812, %s32, 1
        %s814 = smul.addr %s813, 4
        %s815 = smul.addr %s814, 8
        %s816 = scalar_lea.vmem %s13, %s815
      $region72: #{encoder_decoder_forward.3} parent=31 // pred_fallthru
        _
      // Predicated region
      $region73: #{encoder_decoder_forward.3} parent=31 // pred_check
        %p817 = pneg %p396
      $region74: #{encoder_decoder_forward.3} parent=31 // pred_check_branch
        %819 = sbr.rel (%p817) target = $region76
      $region75: #{encoder_decoder_forward.3} parent=31 // pred_region
        %p820 = scmp.lt.s32.totalorder %s32, 1
        %s821 = scalar_select %p820, %s32, 1
        %s822 = scalar_lea.vmem %s14, %s821
      $region76: #{encoder_decoder_forward.3} parent=31 // pred_fallthru
        _
      // Predicated region
      $region77: #{encoder_decoder_forward.3} parent=31 // pred_check
        %p823 = pneg %p422
      $region78: #{encoder_decoder_forward.3} parent=31 // pred_check_branch
        %825 = sbr.rel (%p823) target = $region80
      $region79: #{encoder_decoder_forward.3} parent=31 // pred_region
        %p826 = scmp.lt.s32.totalorder %s32, 1
        %s827 = scalar_select %p826, %s32, 1
        %s828 = smul.addr %s827, 4
        %s829 = smul.addr %s828, 8
        %s830 = scalar_lea.vmem %s15, %s829
      $region80: #{encoder_decoder_forward.3} parent=31 // pred_fallthru
        _
      // Predicated region
      $region81: #{encoder_decoder_forward.3} parent=31 // pred_check
        %p831 = pneg %p448
      $region82: #{encoder_decoder_forward.3} parent=31 // pred_check_branch
        %833 = sbr.rel (%p831) target = $region84
      $region83: #{encoder_decoder_forward.3} parent=31 // pred_region
        %p834 = scmp.lt.s32.totalorder %s32, 1
        %s835 = scalar_select %p834, %s32, 1
        %s836 = smul.addr %s835, 4
        %s837 = smul.addr %s836, 8
        %s838 = scalar_lea.vmem %s16, %s837
      $region84: #{encoder_decoder_forward.3} parent=31 // pred_fallthru
        _
      // Predicated region
      $region85: #{encoder_decoder_forward.3} parent=31 // pred_check
        %p839 = pneg %p474
      $region86: #{encoder_decoder_forward.3} parent=31 // pred_check_branch
        %841 = sbr.rel (%p839) target = $region88
      $region87: #{encoder_decoder_forward.3} parent=31 // pred_region
        %p842 = scmp.lt.s32.totalorder %s32, 1
        %s843 = scalar_select %p842, %s32, 1
        %s844 = scalar_lea.vmem %s17, %s843
      $region88: #{encoder_decoder_forward.3} parent=31 // pred_fallthru
        _
      // Predicated region
      $region89: #{encoder_decoder_forward.3} parent=31 // pred_check
        %p845 = pneg %p500
      $region90: #{encoder_decoder_forward.3} parent=31 // pred_check_branch
        %847 = sbr.rel (%p845) target = $region92
      $region91: #{encoder_decoder_forward.3} parent=31 // pred_region
        %p848 = scmp.lt.s32.totalorder %s32, 1
        %s849 = scalar_select %p848, %s32, 1
        %s850 = smul.addr %s849, 4
        %s851 = smul.addr %s850, 8
        %s852 = scalar_lea.vmem %s18, %s851
      $region92: #{encoder_decoder_forward.3} parent=31 // pred_fallthru
        _
      // Predicated region
      $region93: #{encoder_decoder_forward.3} parent=31 // pred_check
        %p853 = pneg %p526
      $region94: #{encoder_decoder_forward.3} parent=31 // pred_check_branch
        %855 = sbr.rel (%p853) target = $region96
      $region95: #{encoder_decoder_forward.3} parent=31 // pred_region
        %p856 = scmp.lt.s32.totalorder %s32, 1
        %s857 = scalar_select %p856, %s32, 1
        %s858 = scalar_lea.vmem %s19, %s857
      $region96: #{encoder_decoder_forward.3} parent=31 // pred_fallthru
        _
      // Predicated region
      $region97: #{encoder_decoder_forward.3} parent=31 // pred_check
        %p859 = pneg %p552
      $region98: #{encoder_decoder_forward.3} parent=31 // pred_check_branch
        %861 = sbr.rel (%p859) target = $region100
      $region99: #{encoder_decoder_forward.3} parent=31 // pred_region
        %p862 = scmp.lt.s32.totalorder %s32, 1
        %s863 = scalar_select %p862, %s32, 1
        %s864 = smul.addr %s863, 4
        %s865 = smul.addr %s864, 8
        %s866 = scalar_lea.vmem %s20, %s865
      $region100: #{encoder_decoder_forward.3} parent=31 // pred_fallthru
        _
      // Predicated region
      $region101: #{encoder_decoder_forward.3} parent=31 // pred_check
        %p867 = pneg %p578
      $region102: #{encoder_decoder_forward.3} parent=31 // pred_check_branch
        %869 = sbr.rel (%p867) target = $region104
      $region103: #{encoder_decoder_forward.3} parent=31 // pred_region
        %p870 = scmp.lt.s32.totalorder %s32, 1
        %s871 = scalar_select %p870, %s32, 1
        %s872 = scalar_lea.vmem %s21, %s871
      $region104: #{encoder_decoder_forward.3} parent=31 // pred_fallthru
        _
      // Predicated region
      $region105: #{encoder_decoder_forward.3} parent=31 // pred_check
        %p873 = pneg %p604
      $region106: #{encoder_decoder_forward.3} parent=31 // pred_check_branch
        %875 = sbr.rel (%p873) target = $region108
      $region107: #{encoder_decoder_forward.3} parent=31 // pred_region
        %p876 = scmp.lt.s32.totalorder %s32, 1
        %s877 = scalar_select %p876, %s32, 1
        %s878 = smul.addr %s877, 4
        %s879 = smul.addr %s878, 8
        %s880 = scalar_lea.vmem %s22, %s879
      $region108: #{encoder_decoder_forward.3} parent=31 // pred_fallthru
        _
      // Predicated region
      $region109: #{encoder_decoder_forward.3} parent=31 // pred_check
        %p881 = pneg %p630
      $region110: #{encoder_decoder_forward.3} parent=31 // pred_check_branch
        %883 = sbr.rel (%p881) target = $region112
      $region111: #{encoder_decoder_forward.3} parent=31 // pred_region
        %p884 = scmp.lt.s32.totalorder %s32, 1
        %s885 = scalar_select %p884, %s32, 1
        %s886 = scalar_lea.vmem %s23, %s885
      $region112: #{encoder_decoder_forward.3} parent=31 // pred_fallthru
        _
      // Predicated region
      $region113: #{encoder_decoder_forward.3} parent=31 // pred_check
        %p887 = pneg %p656
      $region114: #{encoder_decoder_forward.3} parent=31 // pred_check_branch
        %889 = sbr.rel (%p887) target = $region116
      $region115: #{encoder_decoder_forward.3} parent=31 // pred_region
        %p890 = scmp.lt.s32.totalorder %s32, 1
        %s891 = scalar_select %p890, %s32, 1
        %s892 = smul.addr %s891, 4
        %s893 = smul.addr %s892, 8
        %s894 = scalar_lea.vmem %s24, %s893
      $region116: #{encoder_decoder_forward.3} parent=31 // pred_fallthru
        _
      // Predicated region
      $region117: #{encoder_decoder_forward.3} parent=31 // pred_check
        %p895 = pneg %p682
      $region118: #{encoder_decoder_forward.3} parent=31 // pred_check_branch
        %897 = sbr.rel (%p895) target = $region120
      $region119: #{encoder_decoder_forward.3} parent=31 // pred_region
        %p898 = scmp.lt.s32.totalorder %s32, 1
        %s899 = scalar_select %p898, %s32, 1
        %s900 = scalar_lea.vmem %s25, %s899
      $region120: #{encoder_decoder_forward.3} parent=31 // pred_fallthru
        _
    $region32: #{encoder_decoder_forward.3} parent=5 // pred_fallthru
      _
    %p901 = scmp.le.s32.totalorder 1, %s32
    %p902 = scmp.lt.s32.totalorder %s32, 3
    %p903 = pnand %p901, %p902
    %p904 = pneg %p903
    // Predicated region
    $region121: #{encoder_decoder_forward.3} parent=5 // pred_check
      _
    $region122: #{encoder_decoder_forward.3} parent=5 // pred_check_branch
      %906 = sbr.rel (%p903) target = $region124
    $region123: #{encoder_decoder_forward.3} parent=5 // pred_region
      %s907 = ssub.s32 %s32, 1
      %p908 = pneg %p53
      %p909 = pneg %p50
      %p910 = pneg %p74
      %p911 = pneg %p71
      %p912 = pneg %p95
      %p913 = pneg %p92
      %p914 = pneg %p116
      %p915 = pneg %p113
      %p916 = scmp.lt.s32.totalorder %s37, 1
      %s917 = scalar_select %p916, %s37, 1
      %s918 = smul.addr %s917, 8
      %s919 = scalar_lea.vmem %s4, %s918
      %p920 = pneg %p142
      %p921 = pneg %p139
      %p922 = scmp.lt.s32.totalorder %s37, 1
      %s923 = scalar_select %p922, %s37, 1
      %s924 = scalar_lea.vmem %s5, %s923
      %p925 = pneg %p168
      %p926 = pneg %p165
      %p927 = scmp.lt.s32.totalorder %s37, 1
      %s928 = scalar_select %p927, %s37, 1
      %s929 = smul.addr %s928, 4
      %s930 = smul.addr %s929, 8
      %s931 = scalar_lea.vmem %s6, %s930
      %p932 = pneg %p194
      %p933 = pneg %p191
      %p934 = scmp.lt.s32.totalorder %s37, 1
      %s935 = scalar_select %p934, %s37, 1
      %s936 = smul.addr %s935, 4
      %s937 = smul.addr %s936, 8
      %s938 = scalar_lea.vmem %s7, %s937
      %p939 = pneg %p220
      %p940 = pneg %p217
      %p941 = scmp.lt.s32.totalorder %s37, 1
      %s942 = scalar_select %p941, %s37, 1
      %s943 = scalar_lea.vmem %s8, %s942
      %p944 = pneg %p246
      %p945 = pneg %p243
      %p946 = scmp.lt.s32.totalorder %s37, 1
      %s947 = scalar_select %p946, %s37, 1
      %s948 = smul.addr %s947, 4
      %s949 = smul.addr %s948, 8
      %s950 = scalar_lea.vmem %s9, %s949
      %p951 = pneg %p272
      %p952 = pneg %p269
      %p953 = scmp.lt.s32.totalorder %s37, 1
      %s954 = scalar_select %p953, %s37, 1
      %s955 = smul.addr %s954, 4
      %s956 = smul.addr %s955, 8
      %s957 = scalar_lea.vmem %s10, %s956
      %p958 = pneg %p298
      %p959 = pneg %p295
      %p960 = scmp.lt.s32.totalorder %s37, 1
      %s961 = scalar_select %p960, %s37, 1
      %s962 = scalar_lea.vmem %s11, %s961
      %p963 = pneg %p324
      %p964 = pneg %p321
      %p965 = scmp.lt.s32.totalorder %s37, 1
      %s966 = scalar_select %p965, %s37, 1
      %s967 = smul.addr %s966, 8
      %s968 = scalar_lea.vmem %s12, %s967
      %p969 = pneg %p350
      %p970 = pneg %p347
      %p971 = scmp.lt.s32.totalorder %s37, 1
      %s972 = scalar_select %p971, %s37, 1
      %s973 = smul.addr %s972, 4
      %s974 = smul.addr %s973, 8
      %s975 = scalar_lea.vmem %s13, %s974
      %p976 = pneg %p376
      %p977 = pneg %p373
      %p978 = scmp.lt.s32.totalorder %s37, 1
      %s979 = scalar_select %p978, %s37, 1
      %s980 = scalar_lea.vmem %s14, %s979
      %p981 = pneg %p402
      %p982 = pneg %p399
      %p983 = scmp.lt.s32.totalorder %s37, 1
      %s984 = scalar_select %p983, %s37, 1
      %s985 = smul.addr %s984, 4
      %s986 = smul.addr %s985, 8
      %s987 = scalar_lea.vmem %s15, %s986
      %p988 = pneg %p428
      %p989 = pneg %p425
      %p990 = scmp.lt.s32.totalorder %s37, 1
      %s991 = scalar_select %p990, %s37, 1
      %s992 = smul.addr %s991, 4
      %s993 = smul.addr %s992, 8
      %s994 = scalar_lea.vmem %s16, %s993
      %p995 = pneg %p454
      %p996 = pneg %p451
      %p997 = scmp.lt.s32.totalorder %s37, 1
      %s998 = scalar_select %p997, %s37, 1
      %s999 = scalar_lea.vmem %s17, %s998
      %p1000 = pneg %p480
      %p1001 = pneg %p477
      %p1002 = scmp.lt.s32.totalorder %s37, 1
      %s1003 = scalar_select %p1002, %s37, 1
      %s1004 = smul.addr %s1003, 4
      %s1005 = smul.addr %s1004, 8
      %s1006 = scalar_lea.vmem %s18, %s1005
      %p1007 = pneg %p506
      %p1008 = pneg %p503
      %p1009 = scmp.lt.s32.totalorder %s37, 1
      %s1010 = scalar_select %p1009, %s37, 1
      %s1011 = scalar_lea.vmem %s19, %s1010
      %p1012 = pneg %p532
      %p1013 = pneg %p529
      %p1014 = scmp.lt.s32.totalorder %s37, 1
      %s1015 = scalar_select %p1014, %s37, 1
      %s1016 = smul.addr %s1015, 4
      %s1017 = smul.addr %s1016, 8
      %s1018 = scalar_lea.vmem %s20, %s1017
      %p1019 = pneg %p558
      %p1020 = pneg %p555
      %p1021 = scmp.lt.s32.totalorder %s37, 1
      %s1022 = scalar_select %p1021, %s37, 1
      %s1023 = scalar_lea.vmem %s21, %s1022
      %p1024 = pneg %p584
      %p1025 = pneg %p581
      %p1026 = scmp.lt.s32.totalorder %s37, 1
      %s1027 = scalar_select %p1026, %s37, 1
      %s1028 = smul.addr %s1027, 4
      %s1029 = smul.addr %s1028, 8
      %s1030 = scalar_lea.vmem %s22, %s1029
      %p1031 = pneg %p610
      %p1032 = pneg %p607
      %p1033 = scmp.lt.s32.totalorder %s37, 1
      %s1034 = scalar_select %p1033, %s37, 1
      %s1035 = scalar_lea.vmem %s23, %s1034
      %p1036 = pneg %p636
      %p1037 = pneg %p633
      %p1038 = scmp.lt.s32.totalorder %s37, 1
      %s1039 = scalar_select %p1038, %s37, 1
      %s1040 = smul.addr %s1039, 4
      %s1041 = smul.addr %s1040, 8
      %s1042 = scalar_lea.vmem %s24, %s1041
      %p1043 = pneg %p662
      %p1044 = pneg %p659
      %p1045 = scmp.lt.s32.totalorder %s37, 1
      %s1046 = scalar_select %p1045, %s37, 1
      %s1047 = scalar_lea.vmem %s25, %s1046
      %p1048 = pneg %p688
      %p1049 = pneg %p685
      %p1050 = pneg %p714
      %p1051 = pneg %p711
      %p1052 = scmp.lt.s32.totalorder %s37, 1
      %s1053 = scalar_select %p1052, %s37, 1
      %s1054 = smul.addr %s1053, 5
      %s1055 = smul.addr %s1054, 4
      %s1056 = scalar_lea.vmem %s26, %s1055
      %p1057 = scmp.lt.s32.totalorder %s37, 1
      %s1058 = scalar_select %p1057, %s37, 1
      %s1059 = smul.addr %s1058, 8
      %s1060 = scalar_lea.vmem %s4, %s1059
      %p1061 = scmp.lt.s32.totalorder %s37, 1
      %s1062 = scalar_select %p1061, %s37, 1
      %s1063 = scalar_lea.vmem %s5, %s1062
      %p1064 = scmp.lt.s32.totalorder %s37, 1
      %s1065 = scalar_select %p1064, %s37, 1
      %s1066 = smul.addr %s1065, 4
      %s1067 = smul.addr %s1066, 8
      %s1068 = scalar_lea.vmem %s6, %s1067
      %p1069 = scmp.lt.s32.totalorder %s37, 1
      %s1070 = scalar_select %p1069, %s37, 1
      %s1071 = smul.addr %s1070, 4
      %s1072 = smul.addr %s1071, 8
      %s1073 = scalar_lea.vmem %s7, %s1072
      %p1074 = scmp.lt.s32.totalorder %s37, 1
      %s1075 = scalar_select %p1074, %s37, 1
      %s1076 = scalar_lea.vmem %s8, %s1075
      %p1077 = scmp.lt.s32.totalorder %s37, 1
      %s1078 = scalar_select %p1077, %s37, 1
      %s1079 = smul.addr %s1078, 4
      %s1080 = smul.addr %s1079, 8
      %s1081 = scalar_lea.vmem %s9, %s1080
      %p1082 = scmp.lt.s32.totalorder %s37, 1
      %s1083 = scalar_select %p1082, %s37, 1
      %s1084 = smul.addr %s1083, 4
      %s1085 = smul.addr %s1084, 8
      %s1086 = scalar_lea.vmem %s10, %s1085
      %p1087 = scmp.lt.s32.totalorder %s37, 1
      %s1088 = scalar_select %p1087, %s37, 1
      %s1089 = scalar_lea.vmem %s11, %s1088
      %p1090 = scmp.lt.s32.totalorder %s37, 1
      %s1091 = scalar_select %p1090, %s37, 1
      %s1092 = smul.addr %s1091, 8
      %s1093 = scalar_lea.vmem %s12, %s1092
      %p1094 = scmp.lt.s32.totalorder %s37, 1
      %s1095 = scalar_select %p1094, %s37, 1
      %s1096 = smul.addr %s1095, 4
      %s1097 = smul.addr %s1096, 8
      %s1098 = scalar_lea.vmem %s13, %s1097
      %p1099 = scmp.lt.s32.totalorder %s37, 1
      %s1100 = scalar_select %p1099, %s37, 1
      %s1101 = scalar_lea.vmem %s14, %s1100
      %p1102 = scmp.lt.s32.totalorder %s37, 1
      %s1103 = scalar_select %p1102, %s37, 1
      %s1104 = smul.addr %s1103, 4
      %s1105 = smul.addr %s1104, 8
      %s1106 = scalar_lea.vmem %s15, %s1105
      %p1107 = scmp.lt.s32.totalorder %s37, 1
      %s1108 = scalar_select %p1107, %s37, 1
      %s1109 = smul.addr %s1108, 4
      %s1110 = smul.addr %s1109, 8
      %s1111 = scalar_lea.vmem %s16, %s1110
      %p1112 = scmp.lt.s32.totalorder %s37, 1
      %s1113 = scalar_select %p1112, %s37, 1
      %s1114 = scalar_lea.vmem %s17, %s1113
      %p1115 = scmp.lt.s32.totalorder %s37, 1
      %s1116 = scalar_select %p1115, %s37, 1
      %s1117 = smul.addr %s1116, 4
      %s1118 = smul.addr %s1117, 8
      %s1119 = scalar_lea.vmem %s18, %s1118
      %p1120 = scmp.lt.s32.totalorder %s37, 1
      %s1121 = scalar_select %p1120, %s37, 1
      %s1122 = scalar_lea.vmem %s19, %s1121
      %p1123 = scmp.lt.s32.totalorder %s37, 1
      %s1124 = scalar_select %p1123, %s37, 1
      %s1125 = smul.addr %s1124, 4
      %s1126 = smul.addr %s1125, 8
      %s1127 = scalar_lea.vmem %s20, %s1126
      %p1128 = scmp.lt.s32.totalorder %s37, 1
      %s1129 = scalar_select %p1128, %s37, 1
      %s1130 = scalar_lea.vmem %s21, %s1129
      %p1131 = scmp.lt.s32.totalorder %s37, 1
      %s1132 = scalar_select %p1131, %s37, 1
      %s1133 = smul.addr %s1132, 4
      %s1134 = smul.addr %s1133, 8
      %s1135 = scalar_lea.vmem %s22, %s1134
      %p1136 = scmp.lt.s32.totalorder %s37, 1
      %s1137 = scalar_select %p1136, %s37, 1
      %s1138 = scalar_lea.vmem %s23, %s1137
      %p1139 = scmp.lt.s32.totalorder %s37, 1
      %s1140 = scalar_select %p1139, %s37, 1
      %s1141 = smul.addr %s1140, 4
      %s1142 = smul.addr %s1141, 8
      %s1143 = scalar_lea.vmem %s24, %s1142
      %p1144 = scmp.lt.s32.totalorder %s37, 1
      %s1145 = scalar_select %p1144, %s37, 1
      %s1146 = scalar_lea.vmem %s25, %s1145
      %p1147 = scmp.lt.s32.totalorder %s37, 1
      %s1148 = scalar_select %p1147, %s37, 1
      %s1149 = smul.addr %s1148, 5
      %s1150 = smul.addr %s1149, 4
      %s1151 = scalar_lea.vmem %s26, %s1150
      %v1152 = vld [vmem:[%s1060] sm:$0xff]
      %v1153 = vld [vmem:[%s1063] sm:$0x1]
      %v1154 = vld [vmem:[%s1068] sm:$0xff]
      %v1155 = vld [vmem:[%s1068 + $0x8] sm:$0xff]
      %v1156 = vld [vmem:[%s1068 + $0x10] sm:$0xff]
      %v1157 = vld [vmem:[%s1068 + $0x18] sm:$0xff]
      %v1158 = vld [vmem:[%s1073] sm:$0xff]
      %v1159 = vld [vmem:[%s1073 + $0x8] sm:$0xff]
      %v1160 = vld [vmem:[%s1073 + $0x10] sm:$0xff]
      %v1161 = vld [vmem:[%s1073 + $0x18] sm:$0xff]
      %v1162 = vld [vmem:[%s1076] sm:$0x1]
      %v1163 = vld [vmem:[%s1081] sm:$0xff]
      %v1164 = vld [vmem:[%s1081 + $0x8] sm:$0xff]
      %v1165 = vld [vmem:[%s1081 + $0x10] sm:$0xff]
      %v1166 = vld [vmem:[%s1081 + $0x18] sm:$0xff]
      %v1167 = vld [vmem:[%s1086] sm:$0xff]
      %v1168 = vld [vmem:[%s1086 + $0x8] sm:$0xff]
      %v1169 = vld [vmem:[%s1086 + $0x10] sm:$0xff]
      %v1170 = vld [vmem:[%s1086 + $0x18] sm:$0xff]
      %v1171 = vld [vmem:[%s1089] sm:$0x1]
      %v1172 = vld [vmem:[%s1093] sm:$0xff]
      %v1173 = vld [vmem:[%s1098] sm:$0xff]
      %v1174 = vld [vmem:[%s1098 + $0x8] sm:$0xff]
      %v1175 = vld [vmem:[%s1098 + $0x10] sm:$0xff]
      %v1176 = vld [vmem:[%s1098 + $0x18] sm:$0xff]
      %v1177 = vld [vmem:[%s1101] sm:$0x1]
      %v1178 = vld [vmem:[%s1106] sm:$0xff]
      %v1179 = vld [vmem:[%s1106 + $0x8] sm:$0xff]
      %v1180 = vld [vmem:[%s1106 + $0x10] sm:$0xff]
      %v1181 = vld [vmem:[%s1106 + $0x18] sm:$0xff]
      %v1182 = vld [vmem:[%s1111] sm:$0xff]
      %v1183 = vld [vmem:[%s1111 + $0x8] sm:$0xff]
      %v1184 = vld [vmem:[%s1111 + $0x10] sm:$0xff]
      %v1185 = vld [vmem:[%s1111 + $0x18] sm:$0xff]
      %v1186 = vld [vmem:[%s1114] sm:$0x1]
      %v1187 = vld [vmem:[%s1119] sm:$0xff]
      %v1188 = vld [vmem:[%s1119 + $0x8] sm:$0xff]
      %v1189 = vld [vmem:[%s1119 + $0x10] sm:$0xff]
      %v1190 = vld [vmem:[%s1119 + $0x18] sm:$0xff]
      %v1191 = vld [vmem:[%s1122] sm:$0x1]
      %v1192 = vld [vmem:[%s1127] sm:$0xff]
      %v1193 = vld [vmem:[%s1127 + $0x8] sm:$0xff]
      %v1194 = vld [vmem:[%s1127 + $0x10] sm:$0xff]
      %v1195 = vld [vmem:[%s1127 + $0x18] sm:$0xff]
      %v1196 = vld [vmem:[%s1130] sm:$0x1]
      %v1197 = vld [vmem:[%s1135] sm:$0xff]
      %v1198 = vld [vmem:[%s1135 + $0x8] sm:$0xff]
      %v1199 = vld [vmem:[%s1135 + $0x10] sm:$0xff]
      %v1200 = vld [vmem:[%s1135 + $0x18] sm:$0xff]
      %v1201 = vld [vmem:[%s1138] sm:$0x1]
      %v1202 = vld [vmem:[%s1143] sm:$0xff]
      %v1203 = vld [vmem:[%s1143 + $0x8] sm:$0xff]
      %v1204 = vld [vmem:[%s1143 + $0x10] sm:$0xff]
      %v1205 = vld [vmem:[%s1143 + $0x18] sm:$0xff]
      %v1206 = vld [vmem:[%s1146] sm:$0x1]
      %v1207 = vld [vmem:[%s0] sm:$0xff]
      %v1208 = vld [vmem:[%s0 + $0x8] sm:$0xff]
      %v1209 = vld [vmem:[%s0 + $0x10] sm:$0xff]
      %v1210 = vld [vmem:[%s0 + $0x18] sm:$0xff]
      %v1211 = vld [vmem:[%s1] sm:$0xf]
      %v1212 = vld [vmem:[%s2] sm:$0xf]
      %s1213 = scalar_lea.vmem %s2, 4
      %v1214 = vld [vmem:[%s1213] sm:$0xf]
      %v1215 = vld [vmem:[%s3] sm:$0xf]
      %s1216 = scalar_lea.vmem %s3, 4
      %v1217 = vld [vmem:[%s1216] sm:$0xf]
      %v1219 = vlaneseq
      %v1220 = vshrl.u32 %v1219, 7
      %v1221 = vsub.s32 0, %v1220
      %v1222 = vrot.slane %v1153, %v1221
      %vm1224 = vcmask 64512
      %v1226 = vsel %vm1224, %v1211, 0
      %1228 = vmatprep.subr.mxu0 0.0
      %1229 = vmatpush1.msra.mxu0 0.0
      %1230 = vmatprep.subr.mxu0 0.0
      %1231 = vmatpush1.msra.mxu0 0.0
      %1232 = vmatprep.subr.mxu0 0.0
      %1233 = vmatpush1.msra.mxu0 0.0
      %1234 = vmatprep.subr.mxu0 0.0
      %1235 = vmatpush1.msra.mxu0 0.0
      %1236 = vmatprep.subr.mxu0 0.0
      %1237 = vmatpush1.msra.mxu0 0.0
      %1238 = vmatprep.subr.mxu0 0.0
      %1239 = vmatpush1.msra.mxu0 0.0
      %1240 = vmatprep.subr.mxu0 0.0
      %1241 = vmatpush1.msra.mxu0 0.0
      %1242 = vmatprep.subr.mxu0 0.0
      %1243 = vmatpush1.msra.mxu0 0.0
      %1244 = vmatprep.subr.mxu0 0.0
      %1245 = vmatpush1.msra.mxu0 0.0
      %1246 = vmatprep.subr.mxu0 0.0
      %1247 = vmatpush1.msra.mxu0 0.0
      %1248 = vmatprep.subr.mxu0 0.0
      %1249 = vmatpush1.msra.mxu0 0.0
      %1250 = vmatprep.subr.mxu0 0.0
      %1251 = vmatpush1.msra.mxu0 0.0
      %1252 = vmatprep.subr.mxu0 0.0
      %1253 = vmatpush1.msra.mxu0 0.0
      %1254 = vmatprep.subr.mxu0 0.0
      %1255 = vmatpush1.msra.mxu0 0.0
      %1256 = vmatprep.subr.mxu0 0.0
      %1257 = vmatpush1.msra.mxu0 0.0
      %1258 = vmatprep.subr.mxu0 0.0
      %1259 = vmatpush1.msra.mxu0 %v1152
      %1260 = vmatprep.subr.mxu0 0.0
      %1261 = vmatpush2.msra.mxu0 0.0
      %1262 = vmatprep.subr.mxu0 0.0
      %1263 = vmatpush2.msra.mxu0 0.0
      %1264 = vmatprep.subr.mxu0 0.0
      %1265 = vmatpush2.msra.mxu0 0.0
      %1266 = vmatprep.subr.mxu0 0.0
      %1267 = vmatpush2.msra.mxu0 0.0
      %1268 = vmatprep.subr.mxu0 0.0
      %1269 = vmatpush2.msra.mxu0 0.0
      %1270 = vmatprep.subr.mxu0 0.0
      %1271 = vmatpush2.msra.mxu0 0.0
      %1272 = vmatprep.subr.mxu0 0.0
      %1273 = vmatpush2.msra.mxu0 0.0
      %1274 = vmatprep.subr.mxu0 0.0
      %1275 = vmatpush2.msra.mxu0 0.0
      %1276 = vmatprep.subr.mxu0 0.0
      %1277 = vmatpush2.msra.mxu0 0.0
      %1278 = vmatprep.subr.mxu0 0.0
      %1279 = vmatpush2.msra.mxu0 0.0
      %1280 = vmatprep.subr.mxu0 0.0
      %1281 = vmatpush2.msra.mxu0 0.0
      %1282 = vmatprep.subr.mxu0 0.0
      %1283 = vmatpush2.msra.mxu0 0.0
      %1284 = vmatprep.subr.mxu0 0.0
      %1285 = vmatpush2.msra.mxu0 0.0
      %1286 = vmatprep.subr.mxu0 0.0
      %1287 = vmatpush2.msra.mxu0 0.0
      %1288 = vmatprep.subr.mxu0 0.0
      %1289 = vmatpush2.msra.mxu0 0.0
      %1290 = vmatprep.subr.mxu0 0.0
      %1291 = vmatpush2.msra.mxu0 0.0
      %1292 = vmatprep.mubr.f32.mxu0 0.0
      %1293 = vmatmul.mubr.f32.gmra.mxu0 %v1226
      %v1294 = vpop.f32.mrf.mxu0
      %v1295 = vadd.f32 %v1222, %v1294
      %v1296 = vpop.f32.mrf.mxu0
      %1297 = vdwg.mxu0
      %vm1298 = vcmask 261120
      %v1300 = vsel %vm1298, %v1212, 0
      %1302 = vmatprep.subr.mxu0 0.0
      %1303 = vmatpush1.msra.mxu0 0.0
      %1304 = vmatprep.subr.mxu0 0.0
      %1305 = vmatpush1.msra.mxu0 0.0
      %1306 = vmatprep.subr.mxu0 0.0
      %1307 = vmatpush1.msra.mxu0 0.0
      %1308 = vmatprep.subr.mxu0 0.0
      %1309 = vmatpush1.msra.mxu0 0.0
      %1310 = vmatprep.subr.mxu0 0.0
      %1311 = vmatpush1.msra.mxu0 0.0
      %1312 = vmatprep.subr.mxu0 0.0
      %1313 = vmatpush1.msra.mxu0 0.0
      %1314 = vmatprep.subr.mxu0 0.0
      %1315 = vmatpush1.msra.mxu0 0.0
      %1316 = vmatprep.subr.mxu0 0.0
      %1317 = vmatpush1.msra.mxu0 0.0
      %1318 = vmatprep.subr.mxu0 0.0
      %1319 = vmatpush1.msra.mxu0 0.0
      %1320 = vmatprep.subr.mxu0 0.0
      %1321 = vmatpush1.msra.mxu0 0.0
      %1322 = vmatprep.subr.mxu0 0.0
      %1323 = vmatpush1.msra.mxu0 0.0
      %1324 = vmatprep.subr.mxu0 0.0
      %1325 = vmatpush1.msra.mxu0 0.0
      %1326 = vmatprep.subr.mxu0 0.0
      %1327 = vmatpush1.msra.mxu0 %v1161
      %1328 = vmatprep.subr.mxu0 0.0
      %1329 = vmatpush1.msra.mxu0 %v1160
      %1330 = vmatprep.subr.mxu0 0.0
      %1331 = vmatpush1.msra.mxu0 %v1159
      %1332 = vmatprep.subr.mxu0 0.0
      %1333 = vmatpush1.msra.mxu0 %v1158
      %1334 = vmatprep.subr.mxu0 0.0
      %1335 = vmatpush2.msra.mxu0 0.0
      %1336 = vmatprep.subr.mxu0 0.0
      %1337 = vmatpush2.msra.mxu0 0.0
      %1338 = vmatprep.subr.mxu0 0.0
      %1339 = vmatpush2.msra.mxu0 0.0
      %1340 = vmatprep.subr.mxu0 0.0
      %1341 = vmatpush2.msra.mxu0 0.0
      %1342 = vmatprep.subr.mxu0 0.0
      %1343 = vmatpush2.msra.mxu0 0.0
      %1344 = vmatprep.subr.mxu0 0.0
      %1345 = vmatpush2.msra.mxu0 0.0
      %1346 = vmatprep.subr.mxu0 0.0
      %1347 = vmatpush2.msra.mxu0 0.0
      %1348 = vmatprep.subr.mxu0 0.0
      %1349 = vmatpush2.msra.mxu0 0.0
      %1350 = vmatprep.subr.mxu0 0.0
      %1351 = vmatpush2.msra.mxu0 0.0
      %1352 = vmatprep.subr.mxu0 0.0
      %1353 = vmatpush2.msra.mxu0 0.0
      %1354 = vmatprep.subr.mxu0 0.0
      %1355 = vmatpush2.msra.mxu0 0.0
      %1356 = vmatprep.subr.mxu0 0.0
      %1357 = vmatpush2.msra.mxu0 0.0
      %1358 = vmatprep.subr.mxu0 0.0
      %1359 = vmatpush2.msra.mxu0 0.0
      %1360 = vmatprep.subr.mxu0 0.0
      %1361 = vmatpush2.msra.mxu0 0.0
      %1362 = vmatprep.subr.mxu0 0.0
      %1363 = vmatpush2.msra.mxu0 0.0
      %1364 = vmatprep.subr.mxu0 0.0
      %1365 = vmatpush2.msra.mxu0 0.0
      %1366 = vmatprep.mubr.f32.mxu0 0.0
      %1367 = vmatmul.mubr.f32.gmra.mxu0 %v1300
      %v1368 = vpop.f32.mrf.mxu0
      %v1369 = vadd.f32 0.0, %v1368
      %v1370 = vpop.f32.mrf.mxu0
      %1371 = vdwg.mxu0
      %v1373 = vsel %vm1298, %v1295, 0
      %1375 = vmatprep.subr.mxu0 0.0
      %1376 = vmatpush1.msra.mxu0 0.0
      %1377 = vmatprep.subr.mxu0 0.0
      %1378 = vmatpush1.msra.mxu0 0.0
      %1379 = vmatprep.subr.mxu0 0.0
      %1380 = vmatpush1.msra.mxu0 0.0
      %1381 = vmatprep.subr.mxu0 0.0
      %1382 = vmatpush1.msra.mxu0 0.0
      %1383 = vmatprep.subr.mxu0 0.0
      %1384 = vmatpush1.msra.mxu0 0.0
      %1385 = vmatprep.subr.mxu0 0.0
      %1386 = vmatpush1.msra.mxu0 0.0
      %1387 = vmatprep.subr.mxu0 0.0
      %1388 = vmatpush1.msra.mxu0 0.0
      %1389 = vmatprep.subr.mxu0 0.0
      %1390 = vmatpush1.msra.mxu0 0.0
      %1391 = vmatprep.subr.mxu0 0.0
      %1392 = vmatpush1.msra.mxu0 0.0
      %1393 = vmatprep.subr.mxu0 0.0
      %1394 = vmatpush1.msra.mxu0 0.0
      %1395 = vmatprep.subr.mxu0 0.0
      %1396 = vmatpush1.msra.mxu0 0.0
      %1397 = vmatprep.subr.mxu0 0.0
      %1398 = vmatpush1.msra.mxu0 0.0
      %1399 = vmatprep.subr.mxu0 0.0
      %1400 = vmatpush1.msra.mxu0 %v1157
      %1401 = vmatprep.subr.mxu0 0.0
      %1402 = vmatpush1.msra.mxu0 %v1156
      %1403 = vmatprep.subr.mxu0 0.0
      %1404 = vmatpush1.msra.mxu0 %v1155
      %1405 = vmatprep.subr.mxu0 0.0
      %1406 = vmatpush1.msra.mxu0 %v1154
      %1407 = vmatprep.subr.mxu0 0.0
      %1408 = vmatpush2.msra.mxu0 0.0
      %1409 = vmatprep.subr.mxu0 0.0
      %1410 = vmatpush2.msra.mxu0 0.0
      %1411 = vmatprep.subr.mxu0 0.0
      %1412 = vmatpush2.msra.mxu0 0.0
      %1413 = vmatprep.subr.mxu0 0.0
      %1414 = vmatpush2.msra.mxu0 0.0
      %1415 = vmatprep.subr.mxu0 0.0
      %1416 = vmatpush2.msra.mxu0 0.0
      %1417 = vmatprep.subr.mxu0 0.0
      %1418 = vmatpush2.msra.mxu0 0.0
      %1419 = vmatprep.subr.mxu0 0.0
      %1420 = vmatpush2.msra.mxu0 0.0
      %1421 = vmatprep.subr.mxu0 0.0
      %1422 = vmatpush2.msra.mxu0 0.0
      %1423 = vmatprep.subr.mxu0 0.0
      %1424 = vmatpush2.msra.mxu0 0.0
      %1425 = vmatprep.subr.mxu0 0.0
      %1426 = vmatpush2.msra.mxu0 0.0
      %1427 = vmatprep.subr.mxu0 0.0
      %1428 = vmatpush2.msra.mxu0 0.0
      %1429 = vmatprep.subr.mxu0 0.0
      %1430 = vmatpush2.msra.mxu0 0.0
      %1431 = vmatprep.subr.mxu0 0.0
      %1432 = vmatpush2.msra.mxu0 0.0
      %1433 = vmatprep.subr.mxu0 0.0
      %1434 = vmatpush2.msra.mxu0 0.0
      %1435 = vmatprep.subr.mxu0 0.0
      %1436 = vmatpush2.msra.mxu0 0.0
      %1437 = vmatprep.subr.mxu0 0.0
      %1438 = vmatpush2.msra.mxu0 0.0
      %1439 = vmatprep.mubr.f32.mxu0 0.0
      %1440 = vmatmul.mubr.f32.gmra.mxu0 %v1373
      %v1441 = vpop.f32.mrf.mxu0
      %v1442 = vadd.f32 %v1369, %v1441
      %v1443 = vpop.f32.mrf.mxu0
      %1444 = vdwg.mxu0
      %v1446 = vlaneseq
      %v1447 = vshrl.u32 %v1446, 7
      %v1448 = vsub.s32 0, %v1447
      %v1449 = vrot.slane %v1162, %v1448
      %v1451 = vadd.f32 %v1442, %v1449
      %vm1452 = vcmask 60416
      %v1453 = vsel %vm1452, %v1451, -inf
      %1454 = vmax.xlane.f32.xlu0 %v1453
      %v1455 = vpop.xlane.xlu0 %1454
      %v1456 = vsub.f32 %v1451, %v1455
      %v1457 = vmul.f32 %v1456, 1.442695
      %v1458 = vpow.pop %v1457
      %v1459 = vsel %vm1452, %v1458, 0.0
      %1460 = vadd.xlane.f32.xlu0 %v1459
      %v1461 = vpop.xlane.xlu0 %1460
      %v1462 = vrcp.pop %v1461
      %v1463 = vmul.f32 %v1458, %v1462
      %v1464 = vlaneseq
      %v1465 = vshrl.u32 %v1464, 7
      %v1466 = vsub.s32 0, %v1465
      %v1467 = vrot.slane %v1463, %v1466
      %1469 = vbcast.lane.b32.xlu0 %v1467, 256
      %v1470 = vpop.permute.xlu0 %1469
      %v1471 = vlaneseq
      %v1472 = vshrl.u32 %v1471, 7
      %v1473 = vsub.s32 1, %v1472
      %v1474 = vrot.slane %v1463, %v1473
      %1476 = vbcast.lane.b32.xlu0 %v1474, 256
      %v1477 = vpop.permute.xlu0 %1476
      %v1478 = vlaneseq
      %v1479 = vshrl.u32 %v1478, 7
      %v1480 = vsub.s32 2, %v1479
      %v1481 = vrot.slane %v1463, %v1480
      %1483 = vbcast.lane.b32.xlu0 %v1481, 256
      %v1484 = vpop.permute.xlu0 %1483
      %v1485 = vlaneseq
      %v1486 = vshrl.u32 %v1485, 7
      %v1487 = vsub.s32 3, %v1486
      %v1488 = vrot.slane %v1463, %v1487
      %1490 = vbcast.lane.b32.xlu0 %v1488, 256
      %v1491 = vpop.permute.xlu0 %1490
      %v1492 = vmul.f32 %v1470, %v1207
      %v1493 = vmul.f32 %v1477, %v1208
      %v1494 = vmul.f32 %v1484, %v1209
      %v1495 = vmul.f32 %v1491, %v1210
      %v1496 = vsel %vm1298, %v1492, 0.0
      %v1497 = vrot.slane %v1496, 4
      %v1498 = vadd.f32 %v1496, %v1497
      %v1499 = vrot.slane %v1498, 2
      %v1500 = vadd.f32 %v1498, %v1499
      %v1501 = vrot.slane %v1500, 1
      %v1502 = vadd.f32 %v1500, %v1501
      %v1503 = vsel %vm1298, %v1493, 0.0
      %v1504 = vrot.slane %v1503, 4
      %v1505 = vadd.f32 %v1503, %v1504
      %v1506 = vrot.slane %v1505, 2
      %v1507 = vadd.f32 %v1505, %v1506
      %v1508 = vrot.slane %v1507, 1
      %v1509 = vadd.f32 %v1507, %v1508
      %v1510 = vsel %vm1298, %v1494, 0.0
      %v1511 = vrot.slane %v1510, 4
      %v1512 = vadd.f32 %v1510, %v1511
      %v1513 = vrot.slane %v1512, 2
      %v1514 = vadd.f32 %v1512, %v1513
      %v1515 = vrot.slane %v1514, 1
      %v1516 = vadd.f32 %v1514, %v1515
      %v1517 = vsel %vm1298, %v1495, 0.0
      %v1518 = vrot.slane %v1517, 4
      %v1519 = vadd.f32 %v1517, %v1518
      %v1520 = vrot.slane %v1519, 2
      %v1521 = vadd.f32 %v1519, %v1520
      %v1522 = vrot.slane %v1521, 1
      %v1523 = vadd.f32 %v1521, %v1522
      %vm1528 = vcmask 1041409
      %v1529 = vsel %vm1528, %v1509, %v1502
      %vm1530 = vcmask 1042434
      %v1531 = vsel %vm1530, %v1516, %v1529
      %vm1532 = vcmask 1043459
      %v1533 = vsel %vm1532, %v1523, %v1531
      %v1534 = vsel %vm1298, %v1533, 0
      %1536 = vmatprep.subr.mxu0 0.0
      %1537 = vmatpush1.msra.mxu0 0.0
      %1538 = vmatprep.subr.mxu0 0.0
      %1539 = vmatpush1.msra.mxu0 0.0
      %1540 = vmatprep.subr.mxu0 0.0
      %1541 = vmatpush1.msra.mxu0 0.0
      %1542 = vmatprep.subr.mxu0 0.0
      %1543 = vmatpush1.msra.mxu0 0.0
      %1544 = vmatprep.subr.mxu0 0.0
      %1545 = vmatpush1.msra.mxu0 0.0
      %1546 = vmatprep.subr.mxu0 0.0
      %1547 = vmatpush1.msra.mxu0 0.0
      %1548 = vmatprep.subr.mxu0 0.0
      %1549 = vmatpush1.msra.mxu0 0.0
      %1550 = vmatprep.subr.mxu0 0.0
      %1551 = vmatpush1.msra.mxu0 0.0
      %1552 = vmatprep.subr.mxu0 0.0
      %1553 = vmatpush1.msra.mxu0 0.0
      %1554 = vmatprep.subr.mxu0 0.0
      %1555 = vmatpush1.msra.mxu0 0.0
      %1556 = vmatprep.subr.mxu0 0.0
      %1557 = vmatpush1.msra.mxu0 0.0
      %1558 = vmatprep.subr.mxu0 0.0
      %1559 = vmatpush1.msra.mxu0 0.0
      %1560 = vmatprep.subr.mxu0 0.0
      %1561 = vmatpush1.msra.mxu0 %v1170
      %1562 = vmatprep.subr.mxu0 0.0
      %1563 = vmatpush1.msra.mxu0 %v1169
      %1564 = vmatprep.subr.mxu0 0.0
      %1565 = vmatpush1.msra.mxu0 %v1168
      %1566 = vmatprep.subr.mxu0 0.0
      %1567 = vmatpush1.msra.mxu0 %v1167
      %1568 = vmatprep.subr.mxu0 0.0
      %1569 = vmatpush2.msra.mxu0 0.0
      %1570 = vmatprep.subr.mxu0 0.0
      %1571 = vmatpush2.msra.mxu0 0.0
      %1572 = vmatprep.subr.mxu0 0.0
      %1573 = vmatpush2.msra.mxu0 0.0
      %1574 = vmatprep.subr.mxu0 0.0
      %1575 = vmatpush2.msra.mxu0 0.0
      %1576 = vmatprep.subr.mxu0 0.0
      %1577 = vmatpush2.msra.mxu0 0.0
      %1578 = vmatprep.subr.mxu0 0.0
      %1579 = vmatpush2.msra.mxu0 0.0
      %1580 = vmatprep.subr.mxu0 0.0
      %1581 = vmatpush2.msra.mxu0 0.0
      %1582 = vmatprep.subr.mxu0 0.0
      %1583 = vmatpush2.msra.mxu0 0.0
      %1584 = vmatprep.subr.mxu0 0.0
      %1585 = vmatpush2.msra.mxu0 0.0
      %1586 = vmatprep.subr.mxu0 0.0
      %1587 = vmatpush2.msra.mxu0 0.0
      %1588 = vmatprep.subr.mxu0 0.0
      %1589 = vmatpush2.msra.mxu0 0.0
      %1590 = vmatprep.subr.mxu0 0.0
      %1591 = vmatpush2.msra.mxu0 0.0
      %1592 = vmatprep.subr.mxu0 0.0
      %1593 = vmatpush2.msra.mxu0 0.0
      %1594 = vmatprep.subr.mxu0 0.0
      %1595 = vmatpush2.msra.mxu0 0.0
      %1596 = vmatprep.subr.mxu0 0.0
      %1597 = vmatpush2.msra.mxu0 0.0
      %1598 = vmatprep.subr.mxu0 0.0
      %1599 = vmatpush2.msra.mxu0 0.0
      %1600 = vmatprep.mubr.f32.mxu0 0.0
      %1601 = vmatmul.mubr.f32.gmra.mxu0 %v1534
      %v1602 = vpop.f32.mrf.mxu0
      %v1603 = vadd.f32 0.0, %v1602
      %v1604 = vpop.f32.mrf.mxu0
      %1605 = vdwg.mxu0
      %1606 = vmatprep.subr.mxu0 0.0
      %1607 = vmatpush1.msra.mxu0 0.0
      %1608 = vmatprep.subr.mxu0 0.0
      %1609 = vmatpush1.msra.mxu0 0.0
      %1610 = vmatprep.subr.mxu0 0.0
      %1611 = vmatpush1.msra.mxu0 0.0
      %1612 = vmatprep.subr.mxu0 0.0
      %1613 = vmatpush1.msra.mxu0 0.0
      %1614 = vmatprep.subr.mxu0 0.0
      %1615 = vmatpush1.msra.mxu0 0.0
      %1616 = vmatprep.subr.mxu0 0.0
      %1617 = vmatpush1.msra.mxu0 0.0
      %1618 = vmatprep.subr.mxu0 0.0
      %1619 = vmatpush1.msra.mxu0 0.0
      %1620 = vmatprep.subr.mxu0 0.0
      %1621 = vmatpush1.msra.mxu0 0.0
      %1622 = vmatprep.subr.mxu0 0.0
      %1623 = vmatpush1.msra.mxu0 0.0
      %1624 = vmatprep.subr.mxu0 0.0
      %1625 = vmatpush1.msra.mxu0 0.0
      %1626 = vmatprep.subr.mxu0 0.0
      %1627 = vmatpush1.msra.mxu0 0.0
      %1628 = vmatprep.subr.mxu0 0.0
      %1629 = vmatpush1.msra.mxu0 0.0
      %1630 = vmatprep.subr.mxu0 0.0
      %1631 = vmatpush1.msra.mxu0 %v1166
      %1632 = vmatprep.subr.mxu0 0.0
      %1633 = vmatpush1.msra.mxu0 %v1165
      %1634 = vmatprep.subr.mxu0 0.0
      %1635 = vmatpush1.msra.mxu0 %v1164
      %1636 = vmatprep.subr.mxu0 0.0
      %1637 = vmatpush1.msra.mxu0 %v1163
      %1638 = vmatprep.subr.mxu0 0.0
      %1639 = vmatpush2.msra.mxu0 0.0
      %1640 = vmatprep.subr.mxu0 0.0
      %1641 = vmatpush2.msra.mxu0 0.0
      %1642 = vmatprep.subr.mxu0 0.0
      %1643 = vmatpush2.msra.mxu0 0.0
      %1644 = vmatprep.subr.mxu0 0.0
      %1645 = vmatpush2.msra.mxu0 0.0
      %1646 = vmatprep.subr.mxu0 0.0
      %1647 = vmatpush2.msra.mxu0 0.0
      %1648 = vmatprep.subr.mxu0 0.0
      %1649 = vmatpush2.msra.mxu0 0.0
      %1650 = vmatprep.subr.mxu0 0.0
      %1651 = vmatpush2.msra.mxu0 0.0
      %1652 = vmatprep.subr.mxu0 0.0
      %1653 = vmatpush2.msra.mxu0 0.0
      %1654 = vmatprep.subr.mxu0 0.0
      %1655 = vmatpush2.msra.mxu0 0.0
      %1656 = vmatprep.subr.mxu0 0.0
      %1657 = vmatpush2.msra.mxu0 0.0
      %1658 = vmatprep.subr.mxu0 0.0
      %1659 = vmatpush2.msra.mxu0 0.0
      %1660 = vmatprep.subr.mxu0 0.0
      %1661 = vmatpush2.msra.mxu0 0.0
      %1662 = vmatprep.subr.mxu0 0.0
      %1663 = vmatpush2.msra.mxu0 0.0
      %1664 = vmatprep.subr.mxu0 0.0
      %1665 = vmatpush2.msra.mxu0 0.0
      %1666 = vmatprep.subr.mxu0 0.0
      %1667 = vmatpush2.msra.mxu0 0.0
      %1668 = vmatprep.subr.mxu0 0.0
      %1669 = vmatpush2.msra.mxu0 0.0
      %1670 = vmatprep.mubr.f32.mxu0 0.0
      %1671 = vmatmul.mubr.f32.gmra.mxu0 %v1373
      %v1672 = vpop.f32.mrf.mxu0
      %v1673 = vadd.f32 %v1603, %v1672
      %v1674 = vpop.f32.mrf.mxu0
      %1675 = vdwg.mxu0
      %v1677 = vlaneseq
      %v1678 = vshrl.u32 %v1677, 7
      %v1679 = vsub.s32 0, %v1678
      %v1680 = vrot.slane %v1171, %v1679
      %v1682 = vadd.f32 %v1673, %v1680
      %1683 = vmatprep.subr.mxu0 0.0
      %1684 = vmatpush1.msra.mxu0 0.0
      %1685 = vmatprep.subr.mxu0 0.0
      %1686 = vmatpush1.msra.mxu0 0.0
      %1687 = vmatprep.subr.mxu0 0.0
      %1688 = vmatpush1.msra.mxu0 0.0
      %1689 = vmatprep.subr.mxu0 0.0
      %1690 = vmatpush1.msra.mxu0 0.0
      %1691 = vmatprep.subr.mxu0 0.0
      %1692 = vmatpush1.msra.mxu0 0.0
      %1693 = vmatprep.subr.mxu0 0.0
      %1694 = vmatpush1.msra.mxu0 0.0
      %1695 = vmatprep.subr.mxu0 0.0
      %1696 = vmatpush1.msra.mxu0 0.0
      %1697 = vmatprep.subr.mxu0 0.0
      %1698 = vmatpush1.msra.mxu0 0.0
      %1699 = vmatprep.subr.mxu0 0.0
      %1700 = vmatpush1.msra.mxu0 0.0
      %1701 = vmatprep.subr.mxu0 0.0
      %1702 = vmatpush1.msra.mxu0 0.0
      %1703 = vmatprep.subr.mxu0 0.0
      %1704 = vmatpush1.msra.mxu0 0.0
      %1705 = vmatprep.subr.mxu0 0.0
      %1706 = vmatpush1.msra.mxu0 0.0
      %1707 = vmatprep.subr.mxu0 0.0
      %1708 = vmatpush1.msra.mxu0 %v1176
      %1709 = vmatprep.subr.mxu0 0.0
      %1710 = vmatpush1.msra.mxu0 %v1175
      %1711 = vmatprep.subr.mxu0 0.0
      %1712 = vmatpush1.msra.mxu0 %v1174
      %1713 = vmatprep.subr.mxu0 0.0
      %1714 = vmatpush1.msra.mxu0 %v1173
      %1715 = vmatprep.subr.mxu0 0.0
      %1716 = vmatpush2.msra.mxu0 0.0
      %1717 = vmatprep.subr.mxu0 0.0
      %1718 = vmatpush2.msra.mxu0 0.0
      %1719 = vmatprep.subr.mxu0 0.0
      %1720 = vmatpush2.msra.mxu0 0.0
      %1721 = vmatprep.subr.mxu0 0.0
      %1722 = vmatpush2.msra.mxu0 0.0
      %1723 = vmatprep.subr.mxu0 0.0
      %1724 = vmatpush2.msra.mxu0 0.0
      %1725 = vmatprep.subr.mxu0 0.0
      %1726 = vmatpush2.msra.mxu0 0.0
      %1727 = vmatprep.subr.mxu0 0.0
      %1728 = vmatpush2.msra.mxu0 0.0
      %1729 = vmatprep.subr.mxu0 0.0
      %1730 = vmatpush2.msra.mxu0 0.0
      %1731 = vmatprep.subr.mxu0 0.0
      %1732 = vmatpush2.msra.mxu0 0.0
      %1733 = vmatprep.subr.mxu0 0.0
      %1734 = vmatpush2.msra.mxu0 0.0
      %1735 = vmatprep.subr.mxu0 0.0
      %1736 = vmatpush2.msra.mxu0 0.0
      %1737 = vmatprep.subr.mxu0 0.0
      %1738 = vmatpush2.msra.mxu0 0.0
      %1739 = vmatprep.subr.mxu0 0.0
      %1740 = vmatpush2.msra.mxu0 0.0
      %1741 = vmatprep.subr.mxu0 0.0
      %1742 = vmatpush2.msra.mxu0 0.0
      %1743 = vmatprep.subr.mxu0 0.0
      %1744 = vmatpush2.msra.mxu0 0.0
      %1745 = vmatprep.subr.mxu0 0.0
      %1746 = vmatpush2.msra.mxu0 0.0
      %1747 = vmatprep.mubr.f32.mxu0 0.0
      %1748 = vmatmul.mubr.f32.gmra.mxu0 %v1300
      %v1749 = vpop.f32.mrf.mxu0
      %v1750 = vadd.f32 0.0, %v1749
      %v1751 = vpop.f32.mrf.mxu0
      %1752 = vdwg.mxu0
      %v1754 = vsel %vm1224, %v1682, 0
      %1756 = vmatprep.subr.mxu0 0.0
      %1757 = vmatpush1.msra.mxu0 0.0
      %1758 = vmatprep.subr.mxu0 0.0
      %1759 = vmatpush1.msra.mxu0 0.0
      %1760 = vmatprep.subr.mxu0 0.0
      %1761 = vmatpush1.msra.mxu0 0.0
      %1762 = vmatprep.subr.mxu0 0.0
      %1763 = vmatpush1.msra.mxu0 0.0
      %1764 = vmatprep.subr.mxu0 0.0
      %1765 = vmatpush1.msra.mxu0 0.0
      %1766 = vmatprep.subr.mxu0 0.0
      %1767 = vmatpush1.msra.mxu0 0.0
      %1768 = vmatprep.subr.mxu0 0.0
      %1769 = vmatpush1.msra.mxu0 0.0
      %1770 = vmatprep.subr.mxu0 0.0
      %1771 = vmatpush1.msra.mxu0 0.0
      %1772 = vmatprep.subr.mxu0 0.0
      %1773 = vmatpush1.msra.mxu0 0.0
      %1774 = vmatprep.subr.mxu0 0.0
      %1775 = vmatpush1.msra.mxu0 0.0
      %1776 = vmatprep.subr.mxu0 0.0
      %1777 = vmatpush1.msra.mxu0 0.0
      %1778 = vmatprep.subr.mxu0 0.0
      %1779 = vmatpush1.msra.mxu0 0.0
      %1780 = vmatprep.subr.mxu0 0.0
      %1781 = vmatpush1.msra.mxu0 0.0
      %1782 = vmatprep.subr.mxu0 0.0
      %1783 = vmatpush1.msra.mxu0 0.0
      %1784 = vmatprep.subr.mxu0 0.0
      %1785 = vmatpush1.msra.mxu0 0.0
      %1786 = vmatprep.subr.mxu0 0.0
      %1787 = vmatpush1.msra.mxu0 %v1172
      %1788 = vmatprep.subr.mxu0 0.0
      %1789 = vmatpush2.msra.mxu0 0.0
      %1790 = vmatprep.subr.mxu0 0.0
      %1791 = vmatpush2.msra.mxu0 0.0
      %1792 = vmatprep.subr.mxu0 0.0
      %1793 = vmatpush2.msra.mxu0 0.0
      %1794 = vmatprep.subr.mxu0 0.0
      %1795 = vmatpush2.msra.mxu0 0.0
      %1796 = vmatprep.subr.mxu0 0.0
      %1797 = vmatpush2.msra.mxu0 0.0
      %1798 = vmatprep.subr.mxu0 0.0
      %1799 = vmatpush2.msra.mxu0 0.0
      %1800 = vmatprep.subr.mxu0 0.0
      %1801 = vmatpush2.msra.mxu0 0.0
      %1802 = vmatprep.subr.mxu0 0.0
      %1803 = vmatpush2.msra.mxu0 0.0
      %1804 = vmatprep.subr.mxu0 0.0
      %1805 = vmatpush2.msra.mxu0 0.0
      %1806 = vmatprep.subr.mxu0 0.0
      %1807 = vmatpush2.msra.mxu0 0.0
      %1808 = vmatprep.subr.mxu0 0.0
      %1809 = vmatpush2.msra.mxu0 0.0
      %1810 = vmatprep.subr.mxu0 0.0
      %1811 = vmatpush2.msra.mxu0 0.0
      %1812 = vmatprep.subr.mxu0 0.0
      %1813 = vmatpush2.msra.mxu0 0.0
      %1814 = vmatprep.subr.mxu0 0.0
      %1815 = vmatpush2.msra.mxu0 0.0
      %1816 = vmatprep.subr.mxu0 0.0
      %1817 = vmatpush2.msra.mxu0 0.0
      %1818 = vmatprep.subr.mxu0 0.0
      %1819 = vmatpush2.msra.mxu0 0.0
      %1820 = vmatprep.mubr.f32.mxu0 0.0
      %1821 = vmatmul.mubr.f32.gmra.mxu0 %v1754
      %v1822 = vpop.f32.mrf.mxu0
      %v1823 = vadd.f32 %v1750, %v1822
      %v1824 = vpop.f32.mrf.mxu0
      %1825 = vdwg.mxu0
      %v1827 = vlaneseq
      %v1828 = vshrl.u32 %v1827, 7
      %v1829 = vsub.s32 0, %v1828
      %v1830 = vrot.slane %v1177, %v1829
      %v1832 = vadd.f32 %v1823, %v1830
      %v1833 = vxor.u32 %v1832, 2147483648
      %v1834 = vmul.f32 %v1833, 1.442695
      %v1835 = vpow.pop %v1834
      %v1836 = vadd.f32 %v1835, 1.0
      %v1837 = vrcp.pop %v1836
      %v1838 = vmul.f32 1.0, %v1837
      %v1839 = vtanh.pop %v1832
      %1841 = vrot.lane.b32.xlu0 %v1215, 32
      %v1842 = vpop.permute.xlu0 %1841
      %v1844 = vmul.f32 %v1838, %v1842
      %1846 = vrot.lane.b32.xlu0 %v1839, 64
      %v1847 = vpop.permute.xlu0 %1846
      %v1849 = vmul.f32 %v1838, %v1847
      %1851 = vrot.lane.b32.xlu0 %v1849, 32
      %v1852 = vpop.permute.xlu0 %1851
      %v1854 = vadd.f32 %v1844, %v1852
      %v1855 = vtanh.pop %v1854
      %1857 = vrot.lane.b32.xlu0 %v1855, 64
      %v1858 = vpop.permute.xlu0 %1857
      %v1860 = vmul.f32 %v1838, %v1858
      %v1862 = vsel %vm1298, %v1214, 0
      %1864 = vmatprep.subr.mxu0 0.0
      %1865 = vmatpush1.msra.mxu0 0.0
      %1866 = vmatprep.subr.mxu0 0.0
      %1867 = vmatpush1.msra.mxu0 0.0
      %1868 = vmatprep.subr.mxu0 0.0
      %1869 = vmatpush1.msra.mxu0 0.0
      %1870 = vmatprep.subr.mxu0 0.0
      %1871 = vmatpush1.msra.mxu0 0.0
      %1872 = vmatprep.subr.mxu0 0.0
      %1873 = vmatpush1.msra.mxu0 0.0
      %1874 = vmatprep.subr.mxu0 0.0
      %1875 = vmatpush1.msra.mxu0 0.0
      %1876 = vmatprep.subr.mxu0 0.0
      %1877 = vmatpush1.msra.mxu0 0.0
      %1878 = vmatprep.subr.mxu0 0.0
      %1879 = vmatpush1.msra.mxu0 0.0
      %1880 = vmatprep.subr.mxu0 0.0
      %1881 = vmatpush1.msra.mxu0 0.0
      %1882 = vmatprep.subr.mxu0 0.0
      %1883 = vmatpush1.msra.mxu0 0.0
      %1884 = vmatprep.subr.mxu0 0.0
      %1885 = vmatpush1.msra.mxu0 0.0
      %1886 = vmatprep.subr.mxu0 0.0
      %1887 = vmatpush1.msra.mxu0 0.0
      %1888 = vmatprep.subr.mxu0 0.0
      %1889 = vmatpush1.msra.mxu0 %v1185
      %1890 = vmatprep.subr.mxu0 0.0
      %1891 = vmatpush1.msra.mxu0 %v1184
      %1892 = vmatprep.subr.mxu0 0.0
      %1893 = vmatpush1.msra.mxu0 %v1183
      %1894 = vmatprep.subr.mxu0 0.0
      %1895 = vmatpush1.msra.mxu0 %v1182
      %1896 = vmatprep.subr.mxu0 0.0
      %1897 = vmatpush2.msra.mxu0 0.0
      %1898 = vmatprep.subr.mxu0 0.0
      %1899 = vmatpush2.msra.mxu0 0.0
      %1900 = vmatprep.subr.mxu0 0.0
      %1901 = vmatpush2.msra.mxu0 0.0
      %1902 = vmatprep.subr.mxu0 0.0
      %1903 = vmatpush2.msra.mxu0 0.0
      %1904 = vmatprep.subr.mxu0 0.0
      %1905 = vmatpush2.msra.mxu0 0.0
      %1906 = vmatprep.subr.mxu0 0.0
      %1907 = vmatpush2.msra.mxu0 0.0
      %1908 = vmatprep.subr.mxu0 0.0
      %1909 = vmatpush2.msra.mxu0 0.0
      %1910 = vmatprep.subr.mxu0 0.0
      %1911 = vmatpush2.msra.mxu0 0.0
      %1912 = vmatprep.subr.mxu0 0.0
      %1913 = vmatpush2.msra.mxu0 0.0
      %1914 = vmatprep.subr.mxu0 0.0
      %1915 = vmatpush2.msra.mxu0 0.0
      %1916 = vmatprep.subr.mxu0 0.0
      %1917 = vmatpush2.msra.mxu0 0.0
      %1918 = vmatprep.subr.mxu0 0.0
      %1919 = vmatpush2.msra.mxu0 0.0
      %1920 = vmatprep.subr.mxu0 0.0
      %1921 = vmatpush2.msra.mxu0 0.0
      %1922 = vmatprep.subr.mxu0 0.0
      %1923 = vmatpush2.msra.mxu0 0.0
      %1924 = vmatprep.subr.mxu0 0.0
      %1925 = vmatpush2.msra.mxu0 0.0
      %1926 = vmatprep.subr.mxu0 0.0
      %1927 = vmatpush2.msra.mxu0 0.0
      %1928 = vmatprep.mubr.f32.mxu0 0.0
      %1929 = vmatmul.mubr.f32.gmra.mxu0 %v1862
      %v1930 = vpop.f32.mrf.mxu0
      %v1931 = vadd.f32 0.0, %v1930
      %v1932 = vpop.f32.mrf.mxu0
      %1933 = vdwg.mxu0
      %1935 = vrot.lane.b32.xlu0 %v1860, 32
      %v1936 = vpop.permute.xlu0 %1935
      %v1937 = vsel %vm1298, %v1936, 0
      %1939 = vmatprep.subr.mxu0 0.0
      %1940 = vmatpush1.msra.mxu0 0.0
      %1941 = vmatprep.subr.mxu0 0.0
      %1942 = vmatpush1.msra.mxu0 0.0
      %1943 = vmatprep.subr.mxu0 0.0
      %1944 = vmatpush1.msra.mxu0 0.0
      %1945 = vmatprep.subr.mxu0 0.0
      %1946 = vmatpush1.msra.mxu0 0.0
      %1947 = vmatprep.subr.mxu0 0.0
      %1948 = vmatpush1.msra.mxu0 0.0
      %1949 = vmatprep.subr.mxu0 0.0
      %1950 = vmatpush1.msra.mxu0 0.0
      %1951 = vmatprep.subr.mxu0 0.0
      %1952 = vmatpush1.msra.mxu0 0.0
      %1953 = vmatprep.subr.mxu0 0.0
      %1954 = vmatpush1.msra.mxu0 0.0
      %1955 = vmatprep.subr.mxu0 0.0
      %1956 = vmatpush1.msra.mxu0 0.0
      %1957 = vmatprep.subr.mxu0 0.0
      %1958 = vmatpush1.msra.mxu0 0.0
      %1959 = vmatprep.subr.mxu0 0.0
      %1960 = vmatpush1.msra.mxu0 0.0
      %1961 = vmatprep.subr.mxu0 0.0
      %1962 = vmatpush1.msra.mxu0 0.0
      %1963 = vmatprep.subr.mxu0 0.0
      %1964 = vmatpush1.msra.mxu0 %v1181
      %1965 = vmatprep.subr.mxu0 0.0
      %1966 = vmatpush1.msra.mxu0 %v1180
      %1967 = vmatprep.subr.mxu0 0.0
      %1968 = vmatpush1.msra.mxu0 %v1179
      %1969 = vmatprep.subr.mxu0 0.0
      %1970 = vmatpush1.msra.mxu0 %v1178
      %1971 = vmatprep.subr.mxu0 0.0
      %1972 = vmatpush2.msra.mxu0 0.0
      %1973 = vmatprep.subr.mxu0 0.0
      %1974 = vmatpush2.msra.mxu0 0.0
      %1975 = vmatprep.subr.mxu0 0.0
      %1976 = vmatpush2.msra.mxu0 0.0
      %1977 = vmatprep.subr.mxu0 0.0
      %1978 = vmatpush2.msra.mxu0 0.0
      %1979 = vmatprep.subr.mxu0 0.0
      %1980 = vmatpush2.msra.mxu0 0.0
      %1981 = vmatprep.subr.mxu0 0.0
      %1982 = vmatpush2.msra.mxu0 0.0
      %1983 = vmatprep.subr.mxu0 0.0
      %1984 = vmatpush2.msra.mxu0 0.0
      %1985 = vmatprep.subr.mxu0 0.0
      %1986 = vmatpush2.msra.mxu0 0.0
      %1987 = vmatprep.subr.mxu0 0.0
      %1988 = vmatpush2.msra.mxu0 0.0
      %1989 = vmatprep.subr.mxu0 0.0
      %1990 = vmatpush2.msra.mxu0 0.0
      %1991 = vmatprep.subr.mxu0 0.0
      %1992 = vmatpush2.msra.mxu0 0.0
      %1993 = vmatprep.subr.mxu0 0.0
      %1994 = vmatpush2.msra.mxu0 0.0
      %1995 = vmatprep.subr.mxu0 0.0
      %1996 = vmatpush2.msra.mxu0 0.0
      %1997 = vmatprep.subr.mxu0 0.0
      %1998 = vmatpush2.msra.mxu0 0.0
      %1999 = vmatprep.subr.mxu0 0.0
      %2000 = vmatpush2.msra.mxu0 0.0
      %2001 = vmatprep.subr.mxu0 0.0
      %2002 = vmatpush2.msra.mxu0 0.0
      %2003 = vmatprep.mubr.f32.mxu0 0.0
      %2004 = vmatmul.mubr.f32.gmra.mxu0 %v1937
      %v2005 = vpop.f32.mrf.mxu0
      %v2006 = vadd.f32 %v1931, %v2005
      %v2007 = vpop.f32.mrf.mxu0
      %2008 = vdwg.mxu0
      %v2010 = vlaneseq
      %v2011 = vshrl.u32 %v2010, 7
      %v2012 = vsub.s32 0, %v2011
      %v2013 = vrot.slane %v1186, %v2012
      %v2015 = vadd.f32 %v2006, %v2013
      %v2016 = vxor.u32 %v2015, 2147483648
      %v2017 = vmul.f32 %v2016, 1.442695
      %v2018 = vpow.pop %v2017
      %v2019 = vadd.f32 %v2018, 1.0
      %v2020 = vrcp.pop %v2019
      %v2021 = vmul.f32 1.0, %v2020
      %v2022 = vtanh.pop %v2015
      %2024 = vrot.lane.b32.xlu0 %v1217, 32
      %v2025 = vpop.permute.xlu0 %2024
      %v2027 = vmul.f32 %v2021, %v2025
      %2029 = vrot.lane.b32.xlu0 %v2022, 64
      %v2030 = vpop.permute.xlu0 %2029
      %v2032 = vmul.f32 %v2021, %v2030
      %2034 = vrot.lane.b32.xlu0 %v2032, 32
      %v2035 = vpop.permute.xlu0 %2034
      %v2037 = vadd.f32 %v2027, %v2035
      %v2038 = vtanh.pop %v2037
      %2040 = vrot.lane.b32.xlu0 %v2038, 64
      %v2041 = vpop.permute.xlu0 %2040
      %v2043 = vmul.f32 %v2021, %v2041
      %v2045 = vlaneseq
      %v2046 = vshrl.u32 %v2045, 7
      %v2047 = vsub.s32 0, %v2046
      %v2048 = vrot.slane %v1191, %v2047
      %2051 = vrot.lane.b32.xlu0 %v2043, 32
      %v2052 = vpop.permute.xlu0 %2051
      %v2053 = vsel %vm1298, %v2052, 0
      %2055 = vmatprep.subr.mxu0 0.0
      %2056 = vmatpush1.msra.mxu0 0.0
      %2057 = vmatprep.subr.mxu0 0.0
      %2058 = vmatpush1.msra.mxu0 0.0
      %2059 = vmatprep.subr.mxu0 0.0
      %2060 = vmatpush1.msra.mxu0 0.0
      %2061 = vmatprep.subr.mxu0 0.0
      %2062 = vmatpush1.msra.mxu0 0.0
      %2063 = vmatprep.subr.mxu0 0.0
      %2064 = vmatpush1.msra.mxu0 0.0
      %2065 = vmatprep.subr.mxu0 0.0
      %2066 = vmatpush1.msra.mxu0 0.0
      %2067 = vmatprep.subr.mxu0 0.0
      %2068 = vmatpush1.msra.mxu0 0.0
      %2069 = vmatprep.subr.mxu0 0.0
      %2070 = vmatpush1.msra.mxu0 0.0
      %2071 = vmatprep.subr.mxu0 0.0
      %2072 = vmatpush1.msra.mxu0 0.0
      %2073 = vmatprep.subr.mxu0 0.0
      %2074 = vmatpush1.msra.mxu0 0.0
      %2075 = vmatprep.subr.mxu0 0.0
      %2076 = vmatpush1.msra.mxu0 0.0
      %2077 = vmatprep.subr.mxu0 0.0
      %2078 = vmatpush1.msra.mxu0 0.0
      %2079 = vmatprep.subr.mxu0 0.0
      %2080 = vmatpush1.msra.mxu0 %v1190
      %2081 = vmatprep.subr.mxu0 0.0
      %2082 = vmatpush1.msra.mxu0 %v1189
      %2083 = vmatprep.subr.mxu0 0.0
      %2084 = vmatpush1.msra.mxu0 %v1188
      %2085 = vmatprep.subr.mxu0 0.0
      %2086 = vmatpush1.msra.mxu0 %v1187
      %2087 = vmatprep.subr.mxu0 0.0
      %2088 = vmatpush2.msra.mxu0 0.0
      %2089 = vmatprep.subr.mxu0 0.0
      %2090 = vmatpush2.msra.mxu0 0.0
      %2091 = vmatprep.subr.mxu0 0.0
      %2092 = vmatpush2.msra.mxu0 0.0
      %2093 = vmatprep.subr.mxu0 0.0
      %2094 = vmatpush2.msra.mxu0 0.0
      %2095 = vmatprep.subr.mxu0 0.0
      %2096 = vmatpush2.msra.mxu0 0.0
      %2097 = vmatprep.subr.mxu0 0.0
      %2098 = vmatpush2.msra.mxu0 0.0
      %2099 = vmatprep.subr.mxu0 0.0
      %2100 = vmatpush2.msra.mxu0 0.0
      %2101 = vmatprep.subr.mxu0 0.0
      %2102 = vmatpush2.msra.mxu0 0.0
      %2103 = vmatprep.subr.mxu0 0.0
      %2104 = vmatpush2.msra.mxu0 0.0
      %2105 = vmatprep.subr.mxu0 0.0
      %2106 = vmatpush2.msra.mxu0 0.0
      %2107 = vmatprep.subr.mxu0 0.0
      %2108 = vmatpush2.msra.mxu0 0.0
      %2109 = vmatprep.subr.mxu0 0.0
      %2110 = vmatpush2.msra.mxu0 0.0
      %2111 = vmatprep.subr.mxu0 0.0
      %2112 = vmatpush2.msra.mxu0 0.0
      %2113 = vmatprep.subr.mxu0 0.0
      %2114 = vmatpush2.msra.mxu0 0.0
      %2115 = vmatprep.subr.mxu0 0.0
      %2116 = vmatpush2.msra.mxu0 0.0
      %2117 = vmatprep.subr.mxu0 0.0
      %2118 = vmatpush2.msra.mxu0 0.0
      %2119 = vmatprep.mubr.f32.mxu0 0.0
      %2120 = vmatmul.mubr.f32.gmra.mxu0 %v2053
      %v2121 = vpop.f32.mrf.mxu0
      %v2122 = vadd.f32 %v2048, %v2121
      %v2123 = vpop.f32.mrf.mxu0
      %2124 = vdwg.mxu0
      %v2125 = vmax.f32 %v2122, 0.0
      %v2127 = vlaneseq
      %v2128 = vshrl.u32 %v2127, 7
      %v2129 = vsub.s32 0, %v2128
      %v2130 = vrot.slane %v1196, %v2129
      %v2133 = vsel %vm1298, %v2125, 0
      %2135 = vmatprep.subr.mxu0 0.0
      %2136 = vmatpush1.msra.mxu0 0.0
      %2137 = vmatprep.subr.mxu0 0.0
      %2138 = vmatpush1.msra.mxu0 0.0
      %2139 = vmatprep.subr.mxu0 0.0
      %2140 = vmatpush1.msra.mxu0 0.0
      %2141 = vmatprep.subr.mxu0 0.0
      %2142 = vmatpush1.msra.mxu0 0.0
      %2143 = vmatprep.subr.mxu0 0.0
      %2144 = vmatpush1.msra.mxu0 0.0
      %2145 = vmatprep.subr.mxu0 0.0
      %2146 = vmatpush1.msra.mxu0 0.0
      %2147 = vmatprep.subr.mxu0 0.0
      %2148 = vmatpush1.msra.mxu0 0.0
      %2149 = vmatprep.subr.mxu0 0.0
      %2150 = vmatpush1.msra.mxu0 0.0
      %2151 = vmatprep.subr.mxu0 0.0
      %2152 = vmatpush1.msra.mxu0 0.0
      %2153 = vmatprep.subr.mxu0 0.0
      %2154 = vmatpush1.msra.mxu0 0.0
      %2155 = vmatprep.subr.mxu0 0.0
      %2156 = vmatpush1.msra.mxu0 0.0
      %2157 = vmatprep.subr.mxu0 0.0
      %2158 = vmatpush1.msra.mxu0 0.0
      %2159 = vmatprep.subr.mxu0 0.0
      %2160 = vmatpush1.msra.mxu0 %v1195
      %2161 = vmatprep.subr.mxu0 0.0
      %2162 = vmatpush1.msra.mxu0 %v1194
      %2163 = vmatprep.subr.mxu0 0.0
      %2164 = vmatpush1.msra.mxu0 %v1193
      %2165 = vmatprep.subr.mxu0 0.0
      %2166 = vmatpush1.msra.mxu0 %v1192
      %2167 = vmatprep.subr.mxu0 0.0
      %2168 = vmatpush2.msra.mxu0 0.0
      %2169 = vmatprep.subr.mxu0 0.0
      %2170 = vmatpush2.msra.mxu0 0.0
      %2171 = vmatprep.subr.mxu0 0.0
      %2172 = vmatpush2.msra.mxu0 0.0
      %2173 = vmatprep.subr.mxu0 0.0
      %2174 = vmatpush2.msra.mxu0 0.0
      %2175 = vmatprep.subr.mxu0 0.0
      %2176 = vmatpush2.msra.mxu0 0.0
      %2177 = vmatprep.subr.mxu0 0.0
      %2178 = vmatpush2.msra.mxu0 0.0
      %2179 = vmatprep.subr.mxu0 0.0
      %2180 = vmatpush2.msra.mxu0 0.0
      %2181 = vmatprep.subr.mxu0 0.0
      %2182 = vmatpush2.msra.mxu0 0.0
      %2183 = vmatprep.subr.mxu0 0.0
      %2184 = vmatpush2.msra.mxu0 0.0
      %2185 = vmatprep.subr.mxu0 0.0
      %2186 = vmatpush2.msra.mxu0 0.0
      %2187 = vmatprep.subr.mxu0 0.0
      %2188 = vmatpush2.msra.mxu0 0.0
      %2189 = vmatprep.subr.mxu0 0.0
      %2190 = vmatpush2.msra.mxu0 0.0
      %2191 = vmatprep.subr.mxu0 0.0
      %2192 = vmatpush2.msra.mxu0 0.0
      %2193 = vmatprep.subr.mxu0 0.0
      %2194 = vmatpush2.msra.mxu0 0.0
      %2195 = vmatprep.subr.mxu0 0.0
      %2196 = vmatpush2.msra.mxu0 0.0
      %2197 = vmatprep.subr.mxu0 0.0
      %2198 = vmatpush2.msra.mxu0 0.0
      %2199 = vmatprep.mubr.f32.mxu0 0.0
      %2200 = vmatmul.mubr.f32.gmra.mxu0 %v2133
      %v2201 = vpop.f32.mrf.mxu0
      %v2202 = vadd.f32 %v2130, %v2201
      %v2203 = vpop.f32.mrf.mxu0
      %2204 = vdwg.mxu0
      %v2205 = vmax.f32 %v2202, 0.0
      %v2207 = vlaneseq
      %v2208 = vshrl.u32 %v2207, 7
      %v2209 = vsub.s32 0, %v2208
      %v2210 = vrot.slane %v1201, %v2209
      %v2213 = vsel %vm1298, %v2205, 0
      %2215 = vmatprep.subr.mxu0 0.0
      %2216 = vmatpush1.msra.mxu0 0.0
      %2217 = vmatprep.subr.mxu0 0.0
      %2218 = vmatpush1.msra.mxu0 0.0
      %2219 = vmatprep.subr.mxu0 0.0
      %2220 = vmatpush1.msra.mxu0 0.0
      %2221 = vmatprep.subr.mxu0 0.0
      %2222 = vmatpush1.msra.mxu0 0.0
      %2223 = vmatprep.subr.mxu0 0.0
      %2224 = vmatpush1.msra.mxu0 0.0
      %2225 = vmatprep.subr.mxu0 0.0
      %2226 = vmatpush1.msra.mxu0 0.0
      %2227 = vmatprep.subr.mxu0 0.0
      %2228 = vmatpush1.msra.mxu0 0.0
      %2229 = vmatprep.subr.mxu0 0.0
      %2230 = vmatpush1.msra.mxu0 0.0
      %2231 = vmatprep.subr.mxu0 0.0
      %2232 = vmatpush1.msra.mxu0 0.0
      %2233 = vmatprep.subr.mxu0 0.0
      %2234 = vmatpush1.msra.mxu0 0.0
      %2235 = vmatprep.subr.mxu0 0.0
      %2236 = vmatpush1.msra.mxu0 0.0
      %2237 = vmatprep.subr.mxu0 0.0
      %2238 = vmatpush1.msra.mxu0 0.0
      %2239 = vmatprep.subr.mxu0 0.0
      %2240 = vmatpush1.msra.mxu0 %v1200
      %2241 = vmatprep.subr.mxu0 0.0
      %2242 = vmatpush1.msra.mxu0 %v1199
      %2243 = vmatprep.subr.mxu0 0.0
      %2244 = vmatpush1.msra.mxu0 %v1198
      %2245 = vmatprep.subr.mxu0 0.0
      %2246 = vmatpush1.msra.mxu0 %v1197
      %2247 = vmatprep.subr.mxu0 0.0
      %2248 = vmatpush2.msra.mxu0 0.0
      %2249 = vmatprep.subr.mxu0 0.0
      %2250 = vmatpush2.msra.mxu0 0.0
      %2251 = vmatprep.subr.mxu0 0.0
      %2252 = vmatpush2.msra.mxu0 0.0
      %2253 = vmatprep.subr.mxu0 0.0
      %2254 = vmatpush2.msra.mxu0 0.0
      %2255 = vmatprep.subr.mxu0 0.0
      %2256 = vmatpush2.msra.mxu0 0.0
      %2257 = vmatprep.subr.mxu0 0.0
      %2258 = vmatpush2.msra.mxu0 0.0
      %2259 = vmatprep.subr.mxu0 0.0
      %2260 = vmatpush2.msra.mxu0 0.0
      %2261 = vmatprep.subr.mxu0 0.0
      %2262 = vmatpush2.msra.mxu0 0.0
      %2263 = vmatprep.subr.mxu0 0.0
      %2264 = vmatpush2.msra.mxu0 0.0
      %2265 = vmatprep.subr.mxu0 0.0
      %2266 = vmatpush2.msra.mxu0 0.0
      %2267 = vmatprep.subr.mxu0 0.0
      %2268 = vmatpush2.msra.mxu0 0.0
      %2269 = vmatprep.subr.mxu0 0.0
      %2270 = vmatpush2.msra.mxu0 0.0
      %2271 = vmatprep.subr.mxu0 0.0
      %2272 = vmatpush2.msra.mxu0 0.0
      %2273 = vmatprep.subr.mxu0 0.0
      %2274 = vmatpush2.msra.mxu0 0.0
      %2275 = vmatprep.subr.mxu0 0.0
      %2276 = vmatpush2.msra.mxu0 0.0
      %2277 = vmatprep.subr.mxu0 0.0
      %2278 = vmatpush2.msra.mxu0 0.0
      %2279 = vmatprep.mubr.f32.mxu0 0.0
      %2280 = vmatmul.mubr.f32.gmra.mxu0 %v2213
      %v2281 = vpop.f32.mrf.mxu0
      %v2282 = vadd.f32 %v2210, %v2281
      %v2283 = vpop.f32.mrf.mxu0
      %2284 = vdwg.mxu0
      %v2285 = vmax.f32 %v2282, 0.0
      %v2287 = vlaneseq
      %v2288 = vshrl.u32 %v2287, 7
      %v2289 = vsub.s32 0, %v2288
      %v2290 = vrot.slane %v1206, %v2289
      %v2293 = vsel %vm1298, %v2285, 0
      %2295 = vmatprep.subr.mxu0 0.0
      %2296 = vmatpush1.msra.mxu0 0.0
      %2297 = vmatprep.subr.mxu0 0.0
      %2298 = vmatpush1.msra.mxu0 0.0
      %2299 = vmatprep.subr.mxu0 0.0
      %2300 = vmatpush1.msra.mxu0 0.0
      %2301 = vmatprep.subr.mxu0 0.0
      %2302 = vmatpush1.msra.mxu0 0.0
      %2303 = vmatprep.subr.mxu0 0.0
      %2304 = vmatpush1.msra.mxu0 0.0
      %2305 = vmatprep.subr.mxu0 0.0
      %2306 = vmatpush1.msra.mxu0 0.0
      %2307 = vmatprep.subr.mxu0 0.0
      %2308 = vmatpush1.msra.mxu0 0.0
      %2309 = vmatprep.subr.mxu0 0.0
      %2310 = vmatpush1.msra.mxu0 0.0
      %2311 = vmatprep.subr.mxu0 0.0
      %2312 = vmatpush1.msra.mxu0 0.0
      %2313 = vmatprep.subr.mxu0 0.0
      %2314 = vmatpush1.msra.mxu0 0.0
      %2315 = vmatprep.subr.mxu0 0.0
      %2316 = vmatpush1.msra.mxu0 0.0
      %2317 = vmatprep.subr.mxu0 0.0
      %2318 = vmatpush1.msra.mxu0 0.0
      %2319 = vmatprep.subr.mxu0 0.0
      %2320 = vmatpush1.msra.mxu0 %v1205
      %2321 = vmatprep.subr.mxu0 0.0
      %2322 = vmatpush1.msra.mxu0 %v1204
      %2323 = vmatprep.subr.mxu0 0.0
      %2324 = vmatpush1.msra.mxu0 %v1203
      %2325 = vmatprep.subr.mxu0 0.0
      %2326 = vmatpush1.msra.mxu0 %v1202
      %2327 = vmatprep.subr.mxu0 0.0
      %2328 = vmatpush2.msra.mxu0 0.0
      %2329 = vmatprep.subr.mxu0 0.0
      %2330 = vmatpush2.msra.mxu0 0.0
      %2331 = vmatprep.subr.mxu0 0.0
      %2332 = vmatpush2.msra.mxu0 0.0
      %2333 = vmatprep.subr.mxu0 0.0
      %2334 = vmatpush2.msra.mxu0 0.0
      %2335 = vmatprep.subr.mxu0 0.0
      %2336 = vmatpush2.msra.mxu0 0.0
      %2337 = vmatprep.subr.mxu0 0.0
      %2338 = vmatpush2.msra.mxu0 0.0
      %2339 = vmatprep.subr.mxu0 0.0
      %2340 = vmatpush2.msra.mxu0 0.0
      %2341 = vmatprep.subr.mxu0 0.0
      %2342 = vmatpush2.msra.mxu0 0.0
      %2343 = vmatprep.subr.mxu0 0.0
      %2344 = vmatpush2.msra.mxu0 0.0
      %2345 = vmatprep.subr.mxu0 0.0
      %2346 = vmatpush2.msra.mxu0 0.0
      %2347 = vmatprep.subr.mxu0 0.0
      %2348 = vmatpush2.msra.mxu0 0.0
      %2349 = vmatprep.subr.mxu0 0.0
      %2350 = vmatpush2.msra.mxu0 0.0
      %2351 = vmatprep.subr.mxu0 0.0
      %2352 = vmatpush2.msra.mxu0 0.0
      %2353 = vmatprep.subr.mxu0 0.0
      %2354 = vmatpush2.msra.mxu0 0.0
      %2355 = vmatprep.subr.mxu0 0.0
      %2356 = vmatpush2.msra.mxu0 0.0
      %2357 = vmatprep.subr.mxu0 0.0
      %2358 = vmatpush2.msra.mxu0 0.0
      %2359 = vmatprep.mubr.f32.mxu0 0.0
      %2360 = vmatmul.mubr.f32.gmra.mxu0 %v2293
      %v2361 = vpop.f32.mrf.mxu0
      %v2362 = vadd.f32 %v2290, %v2361
      %v2363 = vpop.f32.mrf.mxu0
      %2364 = vdwg.mxu0
      %2365 = vst.msk [vmem:[%s1151] sm:$0xf] %vm1452, %v2362
      %v2367 = vsel %vm1224, %v2362, 0
      %2369 = vmatprep.subr.mxu0 0.0
      %2370 = vmatpush1.msra.mxu0 0.0
      %2371 = vmatprep.subr.mxu0 0.0
      %2372 = vmatpush1.msra.mxu0 0.0
      %2373 = vmatprep.subr.mxu0 0.0
      %2374 = vmatpush1.msra.mxu0 0.0
      %2375 = vmatprep.subr.mxu0 0.0
      %2376 = vmatpush1.msra.mxu0 0.0
      %2377 = vmatprep.subr.mxu0 0.0
      %2378 = vmatpush1.msra.mxu0 0.0
      %2379 = vmatprep.subr.mxu0 0.0
      %2380 = vmatpush1.msra.mxu0 0.0
      %2381 = vmatprep.subr.mxu0 0.0
      %2382 = vmatpush1.msra.mxu0 0.0
      %2383 = vmatprep.subr.mxu0 0.0
      %2384 = vmatpush1.msra.mxu0 0.0
      %2385 = vmatprep.subr.mxu0 0.0
      %2386 = vmatpush1.msra.mxu0 0.0
      %2387 = vmatprep.subr.mxu0 0.0
      %2388 = vmatpush1.msra.mxu0 0.0
      %2389 = vmatprep.subr.mxu0 0.0
      %2390 = vmatpush1.msra.mxu0 0.0
      %2391 = vmatprep.subr.mxu0 0.0
      %2392 = vmatpush1.msra.mxu0 0.0
      %2393 = vmatprep.subr.mxu0 0.0
      %2394 = vmatpush1.msra.mxu0 0.0
      %2395 = vmatprep.subr.mxu0 0.0
      %2396 = vmatpush1.msra.mxu0 0.0
      %2397 = vmatprep.subr.mxu0 0.0
      %2398 = vmatpush1.msra.mxu0 0.0
      %2399 = vmatprep.subr.mxu0 0.0
      %2400 = vmatpush1.msra.mxu0 %v1152
      %2401 = vmatprep.subr.mxu0 0.0
      %2402 = vmatpush2.msra.mxu0 0.0
      %2403 = vmatprep.subr.mxu0 0.0
      %2404 = vmatpush2.msra.mxu0 0.0
      %2405 = vmatprep.subr.mxu0 0.0
      %2406 = vmatpush2.msra.mxu0 0.0
      %2407 = vmatprep.subr.mxu0 0.0
      %2408 = vmatpush2.msra.mxu0 0.0
      %2409 = vmatprep.subr.mxu0 0.0
      %2410 = vmatpush2.msra.mxu0 0.0
      %2411 = vmatprep.subr.mxu0 0.0
      %2412 = vmatpush2.msra.mxu0 0.0
      %2413 = vmatprep.subr.mxu0 0.0
      %2414 = vmatpush2.msra.mxu0 0.0
      %2415 = vmatprep.subr.mxu0 0.0
      %2416 = vmatpush2.msra.mxu0 0.0
      %2417 = vmatprep.subr.mxu0 0.0
      %2418 = vmatpush2.msra.mxu0 0.0
      %2419 = vmatprep.subr.mxu0 0.0
      %2420 = vmatpush2.msra.mxu0 0.0
      %2421 = vmatprep.subr.mxu0 0.0
      %2422 = vmatpush2.msra.mxu0 0.0
      %2423 = vmatprep.subr.mxu0 0.0
      %2424 = vmatpush2.msra.mxu0 0.0
      %2425 = vmatprep.subr.mxu0 0.0
      %2426 = vmatpush2.msra.mxu0 0.0
      %2427 = vmatprep.subr.mxu0 0.0
      %2428 = vmatpush2.msra.mxu0 0.0
      %2429 = vmatprep.subr.mxu0 0.0
      %2430 = vmatpush2.msra.mxu0 0.0
      %2431 = vmatprep.subr.mxu0 0.0
      %2432 = vmatpush2.msra.mxu0 0.0
      %2433 = vmatprep.mubr.f32.mxu0 0.0
      %2434 = vmatmul.mubr.f32.gmra.mxu0 %v2367
      %v2435 = vpop.f32.mrf.mxu0
      %v2436 = vadd.f32 %v1222, %v2435
      %v2437 = vpop.f32.mrf.mxu0
      %2438 = vdwg.mxu0
      %2439 = vmatprep.subr.mxu0 0.0
      %2440 = vmatpush1.msra.mxu0 0.0
      %2441 = vmatprep.subr.mxu0 0.0
      %2442 = vmatpush1.msra.mxu0 0.0
      %2443 = vmatprep.subr.mxu0 0.0
      %2444 = vmatpush1.msra.mxu0 0.0
      %2445 = vmatprep.subr.mxu0 0.0
      %2446 = vmatpush1.msra.mxu0 0.0
      %2447 = vmatprep.subr.mxu0 0.0
      %2448 = vmatpush1.msra.mxu0 0.0
      %2449 = vmatprep.subr.mxu0 0.0
      %2450 = vmatpush1.msra.mxu0 0.0
      %2451 = vmatprep.subr.mxu0 0.0
      %2452 = vmatpush1.msra.mxu0 0.0
      %2453 = vmatprep.subr.mxu0 0.0
      %2454 = vmatpush1.msra.mxu0 0.0
      %2455 = vmatprep.subr.mxu0 0.0
      %2456 = vmatpush1.msra.mxu0 0.0
      %2457 = vmatprep.subr.mxu0 0.0
      %2458 = vmatpush1.msra.mxu0 0.0
      %2459 = vmatprep.subr.mxu0 0.0
      %2460 = vmatpush1.msra.mxu0 0.0
      %2461 = vmatprep.subr.mxu0 0.0
      %2462 = vmatpush1.msra.mxu0 0.0
      %2463 = vmatprep.subr.mxu0 0.0
      %2464 = vmatpush1.msra.mxu0 %v1161
      %2465 = vmatprep.subr.mxu0 0.0
      %2466 = vmatpush1.msra.mxu0 %v1160
      %2467 = vmatprep.subr.mxu0 0.0
      %2468 = vmatpush1.msra.mxu0 %v1159
      %2469 = vmatprep.subr.mxu0 0.0
      %2470 = vmatpush1.msra.mxu0 %v1158
      %2471 = vmatprep.subr.mxu0 0.0
      %2472 = vmatpush2.msra.mxu0 0.0
      %2473 = vmatprep.subr.mxu0 0.0
      %2474 = vmatpush2.msra.mxu0 0.0
      %2475 = vmatprep.subr.mxu0 0.0
      %2476 = vmatpush2.msra.mxu0 0.0
      %2477 = vmatprep.subr.mxu0 0.0
      %2478 = vmatpush2.msra.mxu0 0.0
      %2479 = vmatprep.subr.mxu0 0.0
      %2480 = vmatpush2.msra.mxu0 0.0
      %2481 = vmatprep.subr.mxu0 0.0
      %2482 = vmatpush2.msra.mxu0 0.0
      %2483 = vmatprep.subr.mxu0 0.0
      %2484 = vmatpush2.msra.mxu0 0.0
      %2485 = vmatprep.subr.mxu0 0.0
      %2486 = vmatpush2.msra.mxu0 0.0
      %2487 = vmatprep.subr.mxu0 0.0
      %2488 = vmatpush2.msra.mxu0 0.0
      %2489 = vmatprep.subr.mxu0 0.0
      %2490 = vmatpush2.msra.mxu0 0.0
      %2491 = vmatprep.subr.mxu0 0.0
      %2492 = vmatpush2.msra.mxu0 0.0
      %2493 = vmatprep.subr.mxu0 0.0
      %2494 = vmatpush2.msra.mxu0 0.0
      %2495 = vmatprep.subr.mxu0 0.0
      %2496 = vmatpush2.msra.mxu0 0.0
      %2497 = vmatprep.subr.mxu0 0.0
      %2498 = vmatpush2.msra.mxu0 0.0
      %2499 = vmatprep.subr.mxu0 0.0
      %2500 = vmatpush2.msra.mxu0 0.0
      %2501 = vmatprep.subr.mxu0 0.0
      %2502 = vmatpush2.msra.mxu0 0.0
      %2503 = vmatprep.mubr.f32.mxu0 0.0
      %2504 = vmatmul.mubr.f32.gmra.mxu0 %v1937
      %v2505 = vpop.f32.mrf.mxu0
      %v2506 = vadd.f32 0.0, %v2505
      %v2507 = vpop.f32.mrf.mxu0
      %2508 = vdwg.mxu0
      %v2510 = vsel %vm1298, %v2436, 0
      %2512 = vmatprep.subr.mxu0 0.0
      %2513 = vmatpush1.msra.mxu0 0.0
      %2514 = vmatprep.subr.mxu0 0.0
      %2515 = vmatpush1.msra.mxu0 0.0
      %2516 = vmatprep.subr.mxu0 0.0
      %2517 = vmatpush1.msra.mxu0 0.0
      %2518 = vmatprep.subr.mxu0 0.0
      %2519 = vmatpush1.msra.mxu0 0.0
      %2520 = vmatprep.subr.mxu0 0.0
      %2521 = vmatpush1.msra.mxu0 0.0
      %2522 = vmatprep.subr.mxu0 0.0
      %2523 = vmatpush1.msra.mxu0 0.0
      %2524 = vmatprep.subr.mxu0 0.0
      %2525 = vmatpush1.msra.mxu0 0.0
      %2526 = vmatprep.subr.mxu0 0.0
      %2527 = vmatpush1.msra.mxu0 0.0
      %2528 = vmatprep.subr.mxu0 0.0
      %2529 = vmatpush1.msra.mxu0 0.0
      %2530 = vmatprep.subr.mxu0 0.0
      %2531 = vmatpush1.msra.mxu0 0.0
      %2532 = vmatprep.subr.mxu0 0.0
      %2533 = vmatpush1.msra.mxu0 0.0
      %2534 = vmatprep.subr.mxu0 0.0
      %2535 = vmatpush1.msra.mxu0 0.0
      %2536 = vmatprep.subr.mxu0 0.0
      %2537 = vmatpush1.msra.mxu0 %v1157
      %2538 = vmatprep.subr.mxu0 0.0
      %2539 = vmatpush1.msra.mxu0 %v1156
      %2540 = vmatprep.subr.mxu0 0.0
      %2541 = vmatpush1.msra.mxu0 %v1155
      %2542 = vmatprep.subr.mxu0 0.0
      %2543 = vmatpush1.msra.mxu0 %v1154
      %2544 = vmatprep.subr.mxu0 0.0
      %2545 = vmatpush2.msra.mxu0 0.0
      %2546 = vmatprep.subr.mxu0 0.0
      %2547 = vmatpush2.msra.mxu0 0.0
      %2548 = vmatprep.subr.mxu0 0.0
      %2549 = vmatpush2.msra.mxu0 0.0
      %2550 = vmatprep.subr.mxu0 0.0
      %2551 = vmatpush2.msra.mxu0 0.0
      %2552 = vmatprep.subr.mxu0 0.0
      %2553 = vmatpush2.msra.mxu0 0.0
      %2554 = vmatprep.subr.mxu0 0.0
      %2555 = vmatpush2.msra.mxu0 0.0
      %2556 = vmatprep.subr.mxu0 0.0
      %2557 = vmatpush2.msra.mxu0 0.0
      %2558 = vmatprep.subr.mxu0 0.0
      %2559 = vmatpush2.msra.mxu0 0.0
      %2560 = vmatprep.subr.mxu0 0.0
      %2561 = vmatpush2.msra.mxu0 0.0
      %2562 = vmatprep.subr.mxu0 0.0
      %2563 = vmatpush2.msra.mxu0 0.0
      %2564 = vmatprep.subr.mxu0 0.0
      %2565 = vmatpush2.msra.mxu0 0.0
      %2566 = vmatprep.subr.mxu0 0.0
      %2567 = vmatpush2.msra.mxu0 0.0
      %2568 = vmatprep.subr.mxu0 0.0
      %2569 = vmatpush2.msra.mxu0 0.0
      %2570 = vmatprep.subr.mxu0 0.0
      %2571 = vmatpush2.msra.mxu0 0.0
      %2572 = vmatprep.subr.mxu0 0.0
      %2573 = vmatpush2.msra.mxu0 0.0
      %2574 = vmatprep.subr.mxu0 0.0
      %2575 = vmatpush2.msra.mxu0 0.0
      %2576 = vmatprep.mubr.f32.mxu0 0.0
      %2577 = vmatmul.mubr.f32.gmra.mxu0 %v2510
      %v2578 = vpop.f32.mrf.mxu0
      %v2579 = vadd.f32 %v2506, %v2578
      %v2580 = vpop.f32.mrf.mxu0
      %2581 = vdwg.mxu0
      %v2582 = vadd.f32 %v2579, %v1449
      %v2583 = vsel %vm1452, %v2582, -inf
      %2584 = vmax.xlane.f32.xlu0 %v2583
      %v2585 = vpop.xlane.xlu0 %2584
      %v2586 = vsub.f32 %v2582, %v2585
      %v2587 = vmul.f32 %v2586, 1.442695
      %v2588 = vpow.pop %v2587
      %v2589 = vsel %vm1452, %v2588, 0.0
      %2590 = vadd.xlane.f32.xlu0 %v2589
      %v2591 = vpop.xlane.xlu0 %2590
      %v2592 = vrcp.pop %v2591
      %v2593 = vmul.f32 %v2588, %v2592
      %v2594 = vlaneseq
      %v2595 = vshrl.u32 %v2594, 7
      %v2596 = vsub.s32 0, %v2595
      %v2597 = vrot.slane %v2593, %v2596
      %2599 = vbcast.lane.b32.xlu0 %v2597, 256
      %v2600 = vpop.permute.xlu0 %2599
      %v2601 = vlaneseq
      %v2602 = vshrl.u32 %v2601, 7
      %v2603 = vsub.s32 1, %v2602
      %v2604 = vrot.slane %v2593, %v2603
      %2606 = vbcast.lane.b32.xlu0 %v2604, 256
      %v2607 = vpop.permute.xlu0 %2606
      %v2608 = vlaneseq
      %v2609 = vshrl.u32 %v2608, 7
      %v2610 = vsub.s32 2, %v2609
      %v2611 = vrot.slane %v2593, %v2610
      %2613 = vbcast.lane.b32.xlu0 %v2611, 256
      %v2614 = vpop.permute.xlu0 %2613
      %v2615 = vlaneseq
      %v2616 = vshrl.u32 %v2615, 7
      %v2617 = vsub.s32 3, %v2616
      %v2618 = vrot.slane %v2593, %v2617
      %2620 = vbcast.lane.b32.xlu0 %v2618, 256
      %v2621 = vpop.permute.xlu0 %2620
      %v2622 = vmul.f32 %v2600, %v1207
      %v2623 = vmul.f32 %v2607, %v1208
      %v2624 = vmul.f32 %v2614, %v1209
      %v2625 = vmul.f32 %v2621, %v1210
      %v2626 = vsel %vm1298, %v2622, 0.0
      %v2627 = vrot.slane %v2626, 4
      %v2628 = vadd.f32 %v2626, %v2627
      %v2629 = vrot.slane %v2628, 2
      %v2630 = vadd.f32 %v2628, %v2629
      %v2631 = vrot.slane %v2630, 1
      %v2632 = vadd.f32 %v2630, %v2631
      %v2633 = vsel %vm1298, %v2623, 0.0
      %v2634 = vrot.slane %v2633, 4
      %v2635 = vadd.f32 %v2633, %v2634
      %v2636 = vrot.slane %v2635, 2
      %v2637 = vadd.f32 %v2635, %v2636
      %v2638 = vrot.slane %v2637, 1
      %v2639 = vadd.f32 %v2637, %v2638
      %v2640 = vsel %vm1298, %v2624, 0.0
      %v2641 = vrot.slane %v2640, 4
      %v2642 = vadd.f32 %v2640, %v2641
      %v2643 = vrot.slane %v2642, 2
      %v2644 = vadd.f32 %v2642, %v2643
      %v2645 = vrot.slane %v2644, 1
      %v2646 = vadd.f32 %v2644, %v2645
      %v2647 = vsel %vm1298, %v2625, 0.0
      %v2648 = vrot.slane %v2647, 4
      %v2649 = vadd.f32 %v2647, %v2648
      %v2650 = vrot.slane %v2649, 2
      %v2651 = vadd.f32 %v2649, %v2650
      %v2652 = vrot.slane %v2651, 1
      %v2653 = vadd.f32 %v2651, %v2652
      %v2658 = vsel %vm1528, %v2639, %v2632
      %v2659 = vsel %vm1530, %v2646, %v2658
      %v2660 = vsel %vm1532, %v2653, %v2659
      %v2661 = vsel %vm1298, %v2660, 0
      %2663 = vmatprep.subr.mxu0 0.0
      %2664 = vmatpush1.msra.mxu0 0.0
      %2665 = vmatprep.subr.mxu0 0.0
      %2666 = vmatpush1.msra.mxu0 0.0
      %2667 = vmatprep.subr.mxu0 0.0
      %2668 = vmatpush1.msra.mxu0 0.0
      %2669 = vmatprep.subr.mxu0 0.0
      %2670 = vmatpush1.msra.mxu0 0.0
      %2671 = vmatprep.subr.mxu0 0.0
      %2672 = vmatpush1.msra.mxu0 0.0
      %2673 = vmatprep.subr.mxu0 0.0
      %2674 = vmatpush1.msra.mxu0 0.0
      %2675 = vmatprep.subr.mxu0 0.0
      %2676 = vmatpush1.msra.mxu0 0.0
      %2677 = vmatprep.subr.mxu0 0.0
      %2678 = vmatpush1.msra.mxu0 0.0
      %2679 = vmatprep.subr.mxu0 0.0
      %2680 = vmatpush1.msra.mxu0 0.0
      %2681 = vmatprep.subr.mxu0 0.0
      %2682 = vmatpush1.msra.mxu0 0.0
      %2683 = vmatprep.subr.mxu0 0.0
      %2684 = vmatpush1.msra.mxu0 0.0
      %2685 = vmatprep.subr.mxu0 0.0
      %2686 = vmatpush1.msra.mxu0 0.0
      %2687 = vmatprep.subr.mxu0 0.0
      %2688 = vmatpush1.msra.mxu0 %v1170
      %2689 = vmatprep.subr.mxu0 0.0
      %2690 = vmatpush1.msra.mxu0 %v1169
      %2691 = vmatprep.subr.mxu0 0.0
      %2692 = vmatpush1.msra.mxu0 %v1168
      %2693 = vmatprep.subr.mxu0 0.0
      %2694 = vmatpush1.msra.mxu0 %v1167
      %2695 = vmatprep.subr.mxu0 0.0
      %2696 = vmatpush2.msra.mxu0 0.0
      %2697 = vmatprep.subr.mxu0 0.0
      %2698 = vmatpush2.msra.mxu0 0.0
      %2699 = vmatprep.subr.mxu0 0.0
      %2700 = vmatpush2.msra.mxu0 0.0
      %2701 = vmatprep.subr.mxu0 0.0
      %2702 = vmatpush2.msra.mxu0 0.0
      %2703 = vmatprep.subr.mxu0 0.0
      %2704 = vmatpush2.msra.mxu0 0.0
      %2705 = vmatprep.subr.mxu0 0.0
      %2706 = vmatpush2.msra.mxu0 0.0
      %2707 = vmatprep.subr.mxu0 0.0
      %2708 = vmatpush2.msra.mxu0 0.0
      %2709 = vmatprep.subr.mxu0 0.0
      %2710 = vmatpush2.msra.mxu0 0.0
      %2711 = vmatprep.subr.mxu0 0.0
      %2712 = vmatpush2.msra.mxu0 0.0
      %2713 = vmatprep.subr.mxu0 0.0
      %2714 = vmatpush2.msra.mxu0 0.0
      %2715 = vmatprep.subr.mxu0 0.0
      %2716 = vmatpush2.msra.mxu0 0.0
      %2717 = vmatprep.subr.mxu0 0.0
      %2718 = vmatpush2.msra.mxu0 0.0
      %2719 = vmatprep.subr.mxu0 0.0
      %2720 = vmatpush2.msra.mxu0 0.0
      %2721 = vmatprep.subr.mxu0 0.0
      %2722 = vmatpush2.msra.mxu0 0.0
      %2723 = vmatprep.subr.mxu0 0.0
      %2724 = vmatpush2.msra.mxu0 0.0
      %2725 = vmatprep.subr.mxu0 0.0
      %2726 = vmatpush2.msra.mxu0 0.0
      %2727 = vmatprep.mubr.f32.mxu0 0.0
      %2728 = vmatmul.mubr.f32.gmra.mxu0 %v2661
      %v2729 = vpop.f32.mrf.mxu0
      %v2730 = vadd.f32 0.0, %v2729
      %v2731 = vpop.f32.mrf.mxu0
      %2732 = vdwg.mxu0
      %2733 = vmatprep.subr.mxu0 0.0
      %2734 = vmatpush1.msra.mxu0 0.0
      %2735 = vmatprep.subr.mxu0 0.0
      %2736 = vmatpush1.msra.mxu0 0.0
      %2737 = vmatprep.subr.mxu0 0.0
      %2738 = vmatpush1.msra.mxu0 0.0
      %2739 = vmatprep.subr.mxu0 0.0
      %2740 = vmatpush1.msra.mxu0 0.0
      %2741 = vmatprep.subr.mxu0 0.0
      %2742 = vmatpush1.msra.mxu0 0.0
      %2743 = vmatprep.subr.mxu0 0.0
      %2744 = vmatpush1.msra.mxu0 0.0
      %2745 = vmatprep.subr.mxu0 0.0
      %2746 = vmatpush1.msra.mxu0 0.0
      %2747 = vmatprep.subr.mxu0 0.0
      %2748 = vmatpush1.msra.mxu0 0.0
      %2749 = vmatprep.subr.mxu0 0.0
      %2750 = vmatpush1.msra.mxu0 0.0
      %2751 = vmatprep.subr.mxu0 0.0
      %2752 = vmatpush1.msra.mxu0 0.0
      %2753 = vmatprep.subr.mxu0 0.0
      %2754 = vmatpush1.msra.mxu0 0.0
      %2755 = vmatprep.subr.mxu0 0.0
      %2756 = vmatpush1.msra.mxu0 0.0
      %2757 = vmatprep.subr.mxu0 0.0
      %2758 = vmatpush1.msra.mxu0 %v1166
      %2759 = vmatprep.subr.mxu0 0.0
      %2760 = vmatpush1.msra.mxu0 %v1165
      %2761 = vmatprep.subr.mxu0 0.0
      %2762 = vmatpush1.msra.mxu0 %v1164
      %2763 = vmatprep.subr.mxu0 0.0
      %2764 = vmatpush1.msra.mxu0 %v1163
      %2765 = vmatprep.subr.mxu0 0.0
      %2766 = vmatpush2.msra.mxu0 0.0
      %2767 = vmatprep.subr.mxu0 0.0
      %2768 = vmatpush2.msra.mxu0 0.0
      %2769 = vmatprep.subr.mxu0 0.0
      %2770 = vmatpush2.msra.mxu0 0.0
      %2771 = vmatprep.subr.mxu0 0.0
      %2772 = vmatpush2.msra.mxu0 0.0
      %2773 = vmatprep.subr.mxu0 0.0
      %2774 = vmatpush2.msra.mxu0 0.0
      %2775 = vmatprep.subr.mxu0 0.0
      %2776 = vmatpush2.msra.mxu0 0.0
      %2777 = vmatprep.subr.mxu0 0.0
      %2778 = vmatpush2.msra.mxu0 0.0
      %2779 = vmatprep.subr.mxu0 0.0
      %2780 = vmatpush2.msra.mxu0 0.0
      %2781 = vmatprep.subr.mxu0 0.0
      %2782 = vmatpush2.msra.mxu0 0.0
      %2783 = vmatprep.subr.mxu0 0.0
      %2784 = vmatpush2.msra.mxu0 0.0
      %2785 = vmatprep.subr.mxu0 0.0
      %2786 = vmatpush2.msra.mxu0 0.0
      %2787 = vmatprep.subr.mxu0 0.0
      %2788 = vmatpush2.msra.mxu0 0.0
      %2789 = vmatprep.subr.mxu0 0.0
      %2790 = vmatpush2.msra.mxu0 0.0
      %2791 = vmatprep.subr.mxu0 0.0
      %2792 = vmatpush2.msra.mxu0 0.0
      %2793 = vmatprep.subr.mxu0 0.0
      %2794 = vmatpush2.msra.mxu0 0.0
      %2795 = vmatprep.subr.mxu0 0.0
      %2796 = vmatpush2.msra.mxu0 0.0
      %2797 = vmatprep.mubr.f32.mxu0 0.0
      %2798 = vmatmul.mubr.f32.gmra.mxu0 %v2510
      %v2799 = vpop.f32.mrf.mxu0
      %v2800 = vadd.f32 %v2730, %v2799
      %v2801 = vpop.f32.mrf.mxu0
      %2802 = vdwg.mxu0
      %v2803 = vadd.f32 %v2800, %v1680
      %2804 = vmatprep.subr.mxu0 0.0
      %2805 = vmatpush1.msra.mxu0 0.0
      %2806 = vmatprep.subr.mxu0 0.0
      %2807 = vmatpush1.msra.mxu0 0.0
      %2808 = vmatprep.subr.mxu0 0.0
      %2809 = vmatpush1.msra.mxu0 0.0
      %2810 = vmatprep.subr.mxu0 0.0
      %2811 = vmatpush1.msra.mxu0 0.0
      %2812 = vmatprep.subr.mxu0 0.0
      %2813 = vmatpush1.msra.mxu0 0.0
      %2814 = vmatprep.subr.mxu0 0.0
      %2815 = vmatpush1.msra.mxu0 0.0
      %2816 = vmatprep.subr.mxu0 0.0
      %2817 = vmatpush1.msra.mxu0 0.0
      %2818 = vmatprep.subr.mxu0 0.0
      %2819 = vmatpush1.msra.mxu0 0.0
      %2820 = vmatprep.subr.mxu0 0.0
      %2821 = vmatpush1.msra.mxu0 0.0
      %2822 = vmatprep.subr.mxu0 0.0
      %2823 = vmatpush1.msra.mxu0 0.0
      %2824 = vmatprep.subr.mxu0 0.0
      %2825 = vmatpush1.msra.mxu0 0.0
      %2826 = vmatprep.subr.mxu0 0.0
      %2827 = vmatpush1.msra.mxu0 0.0
      %2828 = vmatprep.subr.mxu0 0.0
      %2829 = vmatpush1.msra.mxu0 %v1176
      %2830 = vmatprep.subr.mxu0 0.0
      %2831 = vmatpush1.msra.mxu0 %v1175
      %2832 = vmatprep.subr.mxu0 0.0
      %2833 = vmatpush1.msra.mxu0 %v1174
      %2834 = vmatprep.subr.mxu0 0.0
      %2835 = vmatpush1.msra.mxu0 %v1173
      %2836 = vmatprep.subr.mxu0 0.0
      %2837 = vmatpush2.msra.mxu0 0.0
      %2838 = vmatprep.subr.mxu0 0.0
      %2839 = vmatpush2.msra.mxu0 0.0
      %2840 = vmatprep.subr.mxu0 0.0
      %2841 = vmatpush2.msra.mxu0 0.0
      %2842 = vmatprep.subr.mxu0 0.0
      %2843 = vmatpush2.msra.mxu0 0.0
      %2844 = vmatprep.subr.mxu0 0.0
      %2845 = vmatpush2.msra.mxu0 0.0
      %2846 = vmatprep.subr.mxu0 0.0
      %2847 = vmatpush2.msra.mxu0 0.0
      %2848 = vmatprep.subr.mxu0 0.0
      %2849 = vmatpush2.msra.mxu0 0.0
      %2850 = vmatprep.subr.mxu0 0.0
      %2851 = vmatpush2.msra.mxu0 0.0
      %2852 = vmatprep.subr.mxu0 0.0
      %2853 = vmatpush2.msra.mxu0 0.0
      %2854 = vmatprep.subr.mxu0 0.0
      %2855 = vmatpush2.msra.mxu0 0.0
      %2856 = vmatprep.subr.mxu0 0.0
      %2857 = vmatpush2.msra.mxu0 0.0
      %2858 = vmatprep.subr.mxu0 0.0
      %2859 = vmatpush2.msra.mxu0 0.0
      %2860 = vmatprep.subr.mxu0 0.0
      %2861 = vmatpush2.msra.mxu0 0.0
      %2862 = vmatprep.subr.mxu0 0.0
      %2863 = vmatpush2.msra.mxu0 0.0
      %2864 = vmatprep.subr.mxu0 0.0
      %2865 = vmatpush2.msra.mxu0 0.0
      %2866 = vmatprep.subr.mxu0 0.0
      %2867 = vmatpush2.msra.mxu0 0.0
      %2868 = vmatprep.mubr.f32.mxu0 0.0
      %2869 = vmatmul.mubr.f32.gmra.mxu0 %v1937
      %v2870 = vpop.f32.mrf.mxu0
      %v2871 = vadd.f32 0.0, %v2870
      %v2872 = vpop.f32.mrf.mxu0
      %2873 = vdwg.mxu0
      %v2875 = vsel %vm1224, %v2803, 0
      %2877 = vmatprep.subr.mxu0 0.0
      %2878 = vmatpush1.msra.mxu0 0.0
      %2879 = vmatprep.subr.mxu0 0.0
      %2880 = vmatpush1.msra.mxu0 0.0
      %2881 = vmatprep.subr.mxu0 0.0
      %2882 = vmatpush1.msra.mxu0 0.0
      %2883 = vmatprep.subr.mxu0 0.0
      %2884 = vmatpush1.msra.mxu0 0.0
      %2885 = vmatprep.subr.mxu0 0.0
      %2886 = vmatpush1.msra.mxu0 0.0
      %2887 = vmatprep.subr.mxu0 0.0
      %2888 = vmatpush1.msra.mxu0 0.0
      %2889 = vmatprep.subr.mxu0 0.0
      %2890 = vmatpush1.msra.mxu0 0.0
      %2891 = vmatprep.subr.mxu0 0.0
      %2892 = vmatpush1.msra.mxu0 0.0
      %2893 = vmatprep.subr.mxu0 0.0
      %2894 = vmatpush1.msra.mxu0 0.0
      %2895 = vmatprep.subr.mxu0 0.0
      %2896 = vmatpush1.msra.mxu0 0.0
      %2897 = vmatprep.subr.mxu0 0.0
      %2898 = vmatpush1.msra.mxu0 0.0
      %2899 = vmatprep.subr.mxu0 0.0
      %2900 = vmatpush1.msra.mxu0 0.0
      %2901 = vmatprep.subr.mxu0 0.0
      %2902 = vmatpush1.msra.mxu0 0.0
      %2903 = vmatprep.subr.mxu0 0.0
      %2904 = vmatpush1.msra.mxu0 0.0
      %2905 = vmatprep.subr.mxu0 0.0
      %2906 = vmatpush1.msra.mxu0 0.0
      %2907 = vmatprep.subr.mxu0 0.0
      %2908 = vmatpush1.msra.mxu0 %v1172
      %2909 = vmatprep.subr.mxu0 0.0
      %2910 = vmatpush2.msra.mxu0 0.0
      %2911 = vmatprep.subr.mxu0 0.0
      %2912 = vmatpush2.msra.mxu0 0.0
      %2913 = vmatprep.subr.mxu0 0.0
      %2914 = vmatpush2.msra.mxu0 0.0
      %2915 = vmatprep.subr.mxu0 0.0
      %2916 = vmatpush2.msra.mxu0 0.0
      %2917 = vmatprep.subr.mxu0 0.0
      %2918 = vmatpush2.msra.mxu0 0.0
      %2919 = vmatprep.subr.mxu0 0.0
      %2920 = vmatpush2.msra.mxu0 0.0
      %2921 = vmatprep.subr.mxu0 0.0
      %2922 = vmatpush2.msra.mxu0 0.0
      %2923 = vmatprep.subr.mxu0 0.0
      %2924 = vmatpush2.msra.mxu0 0.0
      %2925 = vmatprep.subr.mxu0 0.0
      %2926 = vmatpush2.msra.mxu0 0.0
      %2927 = vmatprep.subr.mxu0 0.0
      %2928 = vmatpush2.msra.mxu0 0.0
      %2929 = vmatprep.subr.mxu0 0.0
      %2930 = vmatpush2.msra.mxu0 0.0
      %2931 = vmatprep.subr.mxu0 0.0
      %2932 = vmatpush2.msra.mxu0 0.0
      %2933 = vmatprep.subr.mxu0 0.0
      %2934 = vmatpush2.msra.mxu0 0.0
      %2935 = vmatprep.subr.mxu0 0.0
      %2936 = vmatpush2.msra.mxu0 0.0
      %2937 = vmatprep.subr.mxu0 0.0
      %2938 = vmatpush2.msra.mxu0 0.0
      %2939 = vmatprep.subr.mxu0 0.0
      %2940 = vmatpush2.msra.mxu0 0.0
      %2941 = vmatprep.mubr.f32.mxu0 0.0
      %2942 = vmatmul.mubr.f32.gmra.mxu0 %v2875
      %v2943 = vpop.f32.mrf.mxu0
      %v2944 = vadd.f32 %v2871, %v2943
      %v2945 = vpop.f32.mrf.mxu0
      %2946 = vdwg.mxu0
      %v2947 = vadd.f32 %v2944, %v1830
      %v2948 = vxor.u32 %v2947, 2147483648
      %v2949 = vmul.f32 %v2948, 1.442695
      %v2950 = vpow.pop %v2949
      %v2951 = vadd.f32 %v2950, 1.0
      %v2952 = vrcp.pop %v2951
      %v2953 = vmul.f32 1.0, %v2952
      %v2954 = vtanh.pop %v2947
      %v2955 = vmul.f32 %v2953, %v1854
      %2957 = vrot.lane.b32.xlu0 %v2954, 64
      %v2958 = vpop.permute.xlu0 %2957
      %v2960 = vmul.f32 %v2953, %v2958
      %2962 = vrot.lane.b32.xlu0 %v2960, 32
      %v2963 = vpop.permute.xlu0 %2962
      %v2965 = vadd.f32 %v2955, %v2963
      %v2966 = vtanh.pop %v2965
      %2968 = vrot.lane.b32.xlu0 %v2966, 64
      %v2969 = vpop.permute.xlu0 %2968
      %v2971 = vmul.f32 %v2953, %v2969
      %2972 = vmatprep.subr.mxu0 0.0
      %2973 = vmatpush1.msra.mxu0 0.0
      %2974 = vmatprep.subr.mxu0 0.0
      %2975 = vmatpush1.msra.mxu0 0.0
      %2976 = vmatprep.subr.mxu0 0.0
      %2977 = vmatpush1.msra.mxu0 0.0
      %2978 = vmatprep.subr.mxu0 0.0
      %2979 = vmatpush1.msra.mxu0 0.0
      %2980 = vmatprep.subr.mxu0 0.0
      %2981 = vmatpush1.msra.mxu0 0.0
      %2982 = vmatprep.subr.mxu0 0.0
      %2983 = vmatpush1.msra.mxu0 0.0
      %2984 = vmatprep.subr.mxu0 0.0
      %2985 = vmatpush1.msra.mxu0 0.0
      %2986 = vmatprep.subr.mxu0 0.0
      %2987 = vmatpush1.msra.mxu0 0.0
      %2988 = vmatprep.subr.mxu0 0.0
      %2989 = vmatpush1.msra.mxu0 0.0
      %2990 = vmatprep.subr.mxu0 0.0
      %2991 = vmatpush1.msra.mxu0 0.0
      %2992 = vmatprep.subr.mxu0 0.0
      %2993 = vmatpush1.msra.mxu0 0.0
      %2994 = vmatprep.subr.mxu0 0.0
      %2995 = vmatpush1.msra.mxu0 0.0
      %2996 = vmatprep.subr.mxu0 0.0
      %2997 = vmatpush1.msra.mxu0 %v1185
      %2998 = vmatprep.subr.mxu0 0.0
      %2999 = vmatpush1.msra.mxu0 %v1184
      %3000 = vmatprep.subr.mxu0 0.0
      %3001 = vmatpush1.msra.mxu0 %v1183
      %3002 = vmatprep.subr.mxu0 0.0
      %3003 = vmatpush1.msra.mxu0 %v1182
      %3004 = vmatprep.subr.mxu0 0.0
      %3005 = vmatpush2.msra.mxu0 0.0
      %3006 = vmatprep.subr.mxu0 0.0
      %3007 = vmatpush2.msra.mxu0 0.0
      %3008 = vmatprep.subr.mxu0 0.0
      %3009 = vmatpush2.msra.mxu0 0.0
      %3010 = vmatprep.subr.mxu0 0.0
      %3011 = vmatpush2.msra.mxu0 0.0
      %3012 = vmatprep.subr.mxu0 0.0
      %3013 = vmatpush2.msra.mxu0 0.0
      %3014 = vmatprep.subr.mxu0 0.0
      %3015 = vmatpush2.msra.mxu0 0.0
      %3016 = vmatprep.subr.mxu0 0.0
      %3017 = vmatpush2.msra.mxu0 0.0
      %3018 = vmatprep.subr.mxu0 0.0
      %3019 = vmatpush2.msra.mxu0 0.0
      %3020 = vmatprep.subr.mxu0 0.0
      %3021 = vmatpush2.msra.mxu0 0.0
      %3022 = vmatprep.subr.mxu0 0.0
      %3023 = vmatpush2.msra.mxu0 0.0
      %3024 = vmatprep.subr.mxu0 0.0
      %3025 = vmatpush2.msra.mxu0 0.0
      %3026 = vmatprep.subr.mxu0 0.0
      %3027 = vmatpush2.msra.mxu0 0.0
      %3028 = vmatprep.subr.mxu0 0.0
      %3029 = vmatpush2.msra.mxu0 0.0
      %3030 = vmatprep.subr.mxu0 0.0
      %3031 = vmatpush2.msra.mxu0 0.0
      %3032 = vmatprep.subr.mxu0 0.0
      %3033 = vmatpush2.msra.mxu0 0.0
      %3034 = vmatprep.subr.mxu0 0.0
      %3035 = vmatpush2.msra.mxu0 0.0
      %3036 = vmatprep.mubr.f32.mxu0 0.0
      %3037 = vmatmul.mubr.f32.gmra.mxu0 %v2053
      %v3038 = vpop.f32.mrf.mxu0
      %v3039 = vadd.f32 0.0, %v3038
      %v3040 = vpop.f32.mrf.mxu0
      %3041 = vdwg.mxu0
      %3043 = vrot.lane.b32.xlu0 %v2971, 32
      %v3044 = vpop.permute.xlu0 %3043
      %v3045 = vsel %vm1298, %v3044, 0
      %3047 = vmatprep.subr.mxu0 0.0
      %3048 = vmatpush1.msra.mxu0 0.0
      %3049 = vmatprep.subr.mxu0 0.0
      %3050 = vmatpush1.msra.mxu0 0.0
      %3051 = vmatprep.subr.mxu0 0.0
      %3052 = vmatpush1.msra.mxu0 0.0
      %3053 = vmatprep.subr.mxu0 0.0
      %3054 = vmatpush1.msra.mxu0 0.0
      %3055 = vmatprep.subr.mxu0 0.0
      %3056 = vmatpush1.msra.mxu0 0.0
      %3057 = vmatprep.subr.mxu0 0.0
      %3058 = vmatpush1.msra.mxu0 0.0
      %3059 = vmatprep.subr.mxu0 0.0
      %3060 = vmatpush1.msra.mxu0 0.0
      %3061 = vmatprep.subr.mxu0 0.0
      %3062 = vmatpush1.msra.mxu0 0.0
      %3063 = vmatprep.subr.mxu0 0.0
      %3064 = vmatpush1.msra.mxu0 0.0
      %3065 = vmatprep.subr.mxu0 0.0
      %3066 = vmatpush1.msra.mxu0 0.0
      %3067 = vmatprep.subr.mxu0 0.0
      %3068 = vmatpush1.msra.mxu0 0.0
      %3069 = vmatprep.subr.mxu0 0.0
      %3070 = vmatpush1.msra.mxu0 0.0
      %3071 = vmatprep.subr.mxu0 0.0
      %3072 = vmatpush1.msra.mxu0 %v1181
      %3073 = vmatprep.subr.mxu0 0.0
      %3074 = vmatpush1.msra.mxu0 %v1180
      %3075 = vmatprep.subr.mxu0 0.0
      %3076 = vmatpush1.msra.mxu0 %v1179
      %3077 = vmatprep.subr.mxu0 0.0
      %3078 = vmatpush1.msra.mxu0 %v1178
      %3079 = vmatprep.subr.mxu0 0.0
      %3080 = vmatpush2.msra.mxu0 0.0
      %3081 = vmatprep.subr.mxu0 0.0
      %3082 = vmatpush2.msra.mxu0 0.0
      %3083 = vmatprep.subr.mxu0 0.0
      %3084 = vmatpush2.msra.mxu0 0.0
      %3085 = vmatprep.subr.mxu0 0.0
      %3086 = vmatpush2.msra.mxu0 0.0
      %3087 = vmatprep.subr.mxu0 0.0
      %3088 = vmatpush2.msra.mxu0 0.0
      %3089 = vmatprep.subr.mxu0 0.0
      %3090 = vmatpush2.msra.mxu0 0.0
      %3091 = vmatprep.subr.mxu0 0.0
      %3092 = vmatpush2.msra.mxu0 0.0
      %3093 = vmatprep.subr.mxu0 0.0
      %3094 = vmatpush2.msra.mxu0 0.0
      %3095 = vmatprep.subr.mxu0 0.0
      %3096 = vmatpush2.msra.mxu0 0.0
      %3097 = vmatprep.subr.mxu0 0.0
      %3098 = vmatpush2.msra.mxu0 0.0
      %3099 = vmatprep.subr.mxu0 0.0
      %3100 = vmatpush2.msra.mxu0 0.0
      %3101 = vmatprep.subr.mxu0 0.0
      %3102 = vmatpush2.msra.mxu0 0.0
      %3103 = vmatprep.subr.mxu0 0.0
      %3104 = vmatpush2.msra.mxu0 0.0
      %3105 = vmatprep.subr.mxu0 0.0
      %3106 = vmatpush2.msra.mxu0 0.0
      %3107 = vmatprep.subr.mxu0 0.0
      %3108 = vmatpush2.msra.mxu0 0.0
      %3109 = vmatprep.subr.mxu0 0.0
      %3110 = vmatpush2.msra.mxu0 0.0
      %3111 = vmatprep.mubr.f32.mxu0 0.0
      %3112 = vmatmul.mubr.f32.gmra.mxu0 %v3045
      %v3113 = vpop.f32.mrf.mxu0
      %v3114 = vadd.f32 %v3039, %v3113
      %v3115 = vpop.f32.mrf.mxu0
      %3116 = vdwg.mxu0
      %v3117 = vadd.f32 %v3114, %v2013
      %v3118 = vxor.u32 %v3117, 2147483648
      %v3119 = vmul.f32 %v3118, 1.442695
      %v3120 = vpow.pop %v3119
      %v3121 = vadd.f32 %v3120, 1.0
      %v3122 = vrcp.pop %v3121
      %v3123 = vmul.f32 1.0, %v3122
      %v3124 = vtanh.pop %v3117
      %v3125 = vmul.f32 %v3123, %v2037
      %3127 = vrot.lane.b32.xlu0 %v3124, 64
      %v3128 = vpop.permute.xlu0 %3127
      %v3130 = vmul.f32 %v3123, %v3128
      %3132 = vrot.lane.b32.xlu0 %v3130, 32
      %v3133 = vpop.permute.xlu0 %3132
      %v3135 = vadd.f32 %v3125, %v3133
      %v3136 = vtanh.pop %v3135
      %3138 = vrot.lane.b32.xlu0 %v3136, 64
      %v3139 = vpop.permute.xlu0 %3138
      %v3141 = vmul.f32 %v3123, %v3139
      %3143 = vrot.lane.b32.xlu0 %v3141, 32
      %v3144 = vpop.permute.xlu0 %3143
      %v3145 = vsel %vm1298, %v3144, 0
      %3147 = vmatprep.subr.mxu0 0.0
      %3148 = vmatpush1.msra.mxu0 0.0
      %3149 = vmatprep.subr.mxu0 0.0
      %3150 = vmatpush1.msra.mxu0 0.0
      %3151 = vmatprep.subr.mxu0 0.0
      %3152 = vmatpush1.msra.mxu0 0.0
      %3153 = vmatprep.subr.mxu0 0.0
      %3154 = vmatpush1.msra.mxu0 0.0
      %3155 = vmatprep.subr.mxu0 0.0
      %3156 = vmatpush1.msra.mxu0 0.0
      %3157 = vmatprep.subr.mxu0 0.0
      %3158 = vmatpush1.msra.mxu0 0.0
      %3159 = vmatprep.subr.mxu0 0.0
      %3160 = vmatpush1.msra.mxu0 0.0
      %3161 = vmatprep.subr.mxu0 0.0
      %3162 = vmatpush1.msra.mxu0 0.0
      %3163 = vmatprep.subr.mxu0 0.0
      %3164 = vmatpush1.msra.mxu0 0.0
      %3165 = vmatprep.subr.mxu0 0.0
      %3166 = vmatpush1.msra.mxu0 0.0
      %3167 = vmatprep.subr.mxu0 0.0
      %3168 = vmatpush1.msra.mxu0 0.0
      %3169 = vmatprep.subr.mxu0 0.0
      %3170 = vmatpush1.msra.mxu0 0.0
      %3171 = vmatprep.subr.mxu0 0.0
      %3172 = vmatpush1.msra.mxu0 %v1190
      %3173 = vmatprep.subr.mxu0 0.0
      %3174 = vmatpush1.msra.mxu0 %v1189
      %3175 = vmatprep.subr.mxu0 0.0
      %3176 = vmatpush1.msra.mxu0 %v1188
      %3177 = vmatprep.subr.mxu0 0.0
      %3178 = vmatpush1.msra.mxu0 %v1187
      %3179 = vmatprep.subr.mxu0 0.0
      %3180 = vmatpush2.msra.mxu0 0.0
      %3181 = vmatprep.subr.mxu0 0.0
      %3182 = vmatpush2.msra.mxu0 0.0
      %3183 = vmatprep.subr.mxu0 0.0
      %3184 = vmatpush2.msra.mxu0 0.0
      %3185 = vmatprep.subr.mxu0 0.0
      %3186 = vmatpush2.msra.mxu0 0.0
      %3187 = vmatprep.subr.mxu0 0.0
      %3188 = vmatpush2.msra.mxu0 0.0
      %3189 = vmatprep.subr.mxu0 0.0
      %3190 = vmatpush2.msra.mxu0 0.0
      %3191 = vmatprep.subr.mxu0 0.0
      %3192 = vmatpush2.msra.mxu0 0.0
      %3193 = vmatprep.subr.mxu0 0.0
      %3194 = vmatpush2.msra.mxu0 0.0
      %3195 = vmatprep.subr.mxu0 0.0
      %3196 = vmatpush2.msra.mxu0 0.0
      %3197 = vmatprep.subr.mxu0 0.0
      %3198 = vmatpush2.msra.mxu0 0.0
      %3199 = vmatprep.subr.mxu0 0.0
      %3200 = vmatpush2.msra.mxu0 0.0
      %3201 = vmatprep.subr.mxu0 0.0
      %3202 = vmatpush2.msra.mxu0 0.0
      %3203 = vmatprep.subr.mxu0 0.0
      %3204 = vmatpush2.msra.mxu0 0.0
      %3205 = vmatprep.subr.mxu0 0.0
      %3206 = vmatpush2.msra.mxu0 0.0
      %3207 = vmatprep.subr.mxu0 0.0
      %3208 = vmatpush2.msra.mxu0 0.0
      %3209 = vmatprep.subr.mxu0 0.0
      %3210 = vmatpush2.msra.mxu0 0.0
      %3211 = vmatprep.mubr.f32.mxu0 0.0
      %3212 = vmatmul.mubr.f32.gmra.mxu0 %v3145
      %v3213 = vpop.f32.mrf.mxu0
      %v3214 = vadd.f32 %v2048, %v3213
      %v3215 = vpop.f32.mrf.mxu0
      %3216 = vdwg.mxu0
      %v3217 = vmax.f32 %v3214, 0.0
      %v3219 = vsel %vm1298, %v3217, 0
      %3221 = vmatprep.subr.mxu0 0.0
      %3222 = vmatpush1.msra.mxu0 0.0
      %3223 = vmatprep.subr.mxu0 0.0
      %3224 = vmatpush1.msra.mxu0 0.0
      %3225 = vmatprep.subr.mxu0 0.0
      %3226 = vmatpush1.msra.mxu0 0.0
      %3227 = vmatprep.subr.mxu0 0.0
      %3228 = vmatpush1.msra.mxu0 0.0
      %3229 = vmatprep.subr.mxu0 0.0
      %3230 = vmatpush1.msra.mxu0 0.0
      %3231 = vmatprep.subr.mxu0 0.0
      %3232 = vmatpush1.msra.mxu0 0.0
      %3233 = vmatprep.subr.mxu0 0.0
      %3234 = vmatpush1.msra.mxu0 0.0
      %3235 = vmatprep.subr.mxu0 0.0
      %3236 = vmatpush1.msra.mxu0 0.0
      %3237 = vmatprep.subr.mxu0 0.0
      %3238 = vmatpush1.msra.mxu0 0.0
      %3239 = vmatprep.subr.mxu0 0.0
      %3240 = vmatpush1.msra.mxu0 0.0
      %3241 = vmatprep.subr.mxu0 0.0
      %3242 = vmatpush1.msra.mxu0 0.0
      %3243 = vmatprep.subr.mxu0 0.0
      %3244 = vmatpush1.msra.mxu0 0.0
      %3245 = vmatprep.subr.mxu0 0.0
      %3246 = vmatpush1.msra.mxu0 %v1195
      %3247 = vmatprep.subr.mxu0 0.0
      %3248 = vmatpush1.msra.mxu0 %v1194
      %3249 = vmatprep.subr.mxu0 0.0
      %3250 = vmatpush1.msra.mxu0 %v1193
      %3251 = vmatprep.subr.mxu0 0.0
      %3252 = vmatpush1.msra.mxu0 %v1192
      %3253 = vmatprep.subr.mxu0 0.0
      %3254 = vmatpush2.msra.mxu0 0.0
      %3255 = vmatprep.subr.mxu0 0.0
      %3256 = vmatpush2.msra.mxu0 0.0
      %3257 = vmatprep.subr.mxu0 0.0
      %3258 = vmatpush2.msra.mxu0 0.0
      %3259 = vmatprep.subr.mxu0 0.0
      %3260 = vmatpush2.msra.mxu0 0.0
      %3261 = vmatprep.subr.mxu0 0.0
      %3262 = vmatpush2.msra.mxu0 0.0
      %3263 = vmatprep.subr.mxu0 0.0
      %3264 = vmatpush2.msra.mxu0 0.0
      %3265 = vmatprep.subr.mxu0 0.0
      %3266 = vmatpush2.msra.mxu0 0.0
      %3267 = vmatprep.subr.mxu0 0.0
      %3268 = vmatpush2.msra.mxu0 0.0
      %3269 = vmatprep.subr.mxu0 0.0
      %3270 = vmatpush2.msra.mxu0 0.0
      %3271 = vmatprep.subr.mxu0 0.0
      %3272 = vmatpush2.msra.mxu0 0.0
      %3273 = vmatprep.subr.mxu0 0.0
      %3274 = vmatpush2.msra.mxu0 0.0
      %3275 = vmatprep.subr.mxu0 0.0
      %3276 = vmatpush2.msra.mxu0 0.0
      %3277 = vmatprep.subr.mxu0 0.0
      %3278 = vmatpush2.msra.mxu0 0.0
      %3279 = vmatprep.subr.mxu0 0.0
      %3280 = vmatpush2.msra.mxu0 0.0
      %3281 = vmatprep.subr.mxu0 0.0
      %3282 = vmatpush2.msra.mxu0 0.0
      %3283 = vmatprep.subr.mxu0 0.0
      %3284 = vmatpush2.msra.mxu0 0.0
      %3285 = vmatprep.mubr.f32.mxu0 0.0
      %3286 = vmatmul.mubr.f32.gmra.mxu0 %v3219
      %v3287 = vpop.f32.mrf.mxu0
      %v3288 = vadd.f32 %v2130, %v3287
      %v3289 = vpop.f32.mrf.mxu0
      %3290 = vdwg.mxu0
      %v3291 = vmax.f32 %v3288, 0.0
      %v3293 = vsel %vm1298, %v3291, 0
      %3295 = vmatprep.subr.mxu0 0.0
      %3296 = vmatpush1.msra.mxu0 0.0
      %3297 = vmatprep.subr.mxu0 0.0
      %3298 = vmatpush1.msra.mxu0 0.0
      %3299 = vmatprep.subr.mxu0 0.0
      %3300 = vmatpush1.msra.mxu0 0.0
      %3301 = vmatprep.subr.mxu0 0.0
      %3302 = vmatpush1.msra.mxu0 0.0
      %3303 = vmatprep.subr.mxu0 0.0
      %3304 = vmatpush1.msra.mxu0 0.0
      %3305 = vmatprep.subr.mxu0 0.0
      %3306 = vmatpush1.msra.mxu0 0.0
      %3307 = vmatprep.subr.mxu0 0.0
      %3308 = vmatpush1.msra.mxu0 0.0
      %3309 = vmatprep.subr.mxu0 0.0
      %3310 = vmatpush1.msra.mxu0 0.0
      %3311 = vmatprep.subr.mxu0 0.0
      %3312 = vmatpush1.msra.mxu0 0.0
      %3313 = vmatprep.subr.mxu0 0.0
      %3314 = vmatpush1.msra.mxu0 0.0
      %3315 = vmatprep.subr.mxu0 0.0
      %3316 = vmatpush1.msra.mxu0 0.0
      %3317 = vmatprep.subr.mxu0 0.0
      %3318 = vmatpush1.msra.mxu0 0.0
      %3319 = vmatprep.subr.mxu0 0.0
      %3320 = vmatpush1.msra.mxu0 %v1200
      %3321 = vmatprep.subr.mxu0 0.0
      %3322 = vmatpush1.msra.mxu0 %v1199
      %3323 = vmatprep.subr.mxu0 0.0
      %3324 = vmatpush1.msra.mxu0 %v1198
      %3325 = vmatprep.subr.mxu0 0.0
      %3326 = vmatpush1.msra.mxu0 %v1197
      %3327 = vmatprep.subr.mxu0 0.0
      %3328 = vmatpush2.msra.mxu0 0.0
      %3329 = vmatprep.subr.mxu0 0.0
      %3330 = vmatpush2.msra.mxu0 0.0
      %3331 = vmatprep.subr.mxu0 0.0
      %3332 = vmatpush2.msra.mxu0 0.0
      %3333 = vmatprep.subr.mxu0 0.0
      %3334 = vmatpush2.msra.mxu0 0.0
      %3335 = vmatprep.subr.mxu0 0.0
      %3336 = vmatpush2.msra.mxu0 0.0
      %3337 = vmatprep.subr.mxu0 0.0
      %3338 = vmatpush2.msra.mxu0 0.0
      %3339 = vmatprep.subr.mxu0 0.0
      %3340 = vmatpush2.msra.mxu0 0.0
      %3341 = vmatprep.subr.mxu0 0.0
      %3342 = vmatpush2.msra.mxu0 0.0
      %3343 = vmatprep.subr.mxu0 0.0
      %3344 = vmatpush2.msra.mxu0 0.0
      %3345 = vmatprep.subr.mxu0 0.0
      %3346 = vmatpush2.msra.mxu0 0.0
      %3347 = vmatprep.subr.mxu0 0.0
      %3348 = vmatpush2.msra.mxu0 0.0
      %3349 = vmatprep.subr.mxu0 0.0
      %3350 = vmatpush2.msra.mxu0 0.0
      %3351 = vmatprep.subr.mxu0 0.0
      %3352 = vmatpush2.msra.mxu0 0.0
      %3353 = vmatprep.subr.mxu0 0.0
      %3354 = vmatpush2.msra.mxu0 0.0
      %3355 = vmatprep.subr.mxu0 0.0
      %3356 = vmatpush2.msra.mxu0 0.0
      %3357 = vmatprep.subr.mxu0 0.0
      %3358 = vmatpush2.msra.mxu0 0.0
      %3359 = vmatprep.mubr.f32.mxu0 0.0
      %3360 = vmatmul.mubr.f32.gmra.mxu0 %v3293
      %v3361 = vpop.f32.mrf.mxu0
      %v3362 = vadd.f32 %v2210, %v3361
      %v3363 = vpop.f32.mrf.mxu0
      %3364 = vdwg.mxu0
      %v3365 = vmax.f32 %v3362, 0.0
      %v3367 = vsel %vm1298, %v3365, 0
      %3369 = vmatprep.subr.mxu0 0.0
      %3370 = vmatpush1.msra.mxu0 0.0
      %3371 = vmatprep.subr.mxu0 0.0
      %3372 = vmatpush1.msra.mxu0 0.0
      %3373 = vmatprep.subr.mxu0 0.0
      %3374 = vmatpush1.msra.mxu0 0.0
      %3375 = vmatprep.subr.mxu0 0.0
      %3376 = vmatpush1.msra.mxu0 0.0
      %3377 = vmatprep.subr.mxu0 0.0
      %3378 = vmatpush1.msra.mxu0 0.0
      %3379 = vmatprep.subr.mxu0 0.0
      %3380 = vmatpush1.msra.mxu0 0.0
      %3381 = vmatprep.subr.mxu0 0.0
      %3382 = vmatpush1.msra.mxu0 0.0
      %3383 = vmatprep.subr.mxu0 0.0
      %3384 = vmatpush1.msra.mxu0 0.0
      %3385 = vmatprep.subr.mxu0 0.0
      %3386 = vmatpush1.msra.mxu0 0.0
      %3387 = vmatprep.subr.mxu0 0.0
      %3388 = vmatpush1.msra.mxu0 0.0
      %3389 = vmatprep.subr.mxu0 0.0
      %3390 = vmatpush1.msra.mxu0 0.0
      %3391 = vmatprep.subr.mxu0 0.0
      %3392 = vmatpush1.msra.mxu0 0.0
      %3393 = vmatprep.subr.mxu0 0.0
      %3394 = vmatpush1.msra.mxu0 %v1205
      %3395 = vmatprep.subr.mxu0 0.0
      %3396 = vmatpush1.msra.mxu0 %v1204
      %3397 = vmatprep.subr.mxu0 0.0
      %3398 = vmatpush1.msra.mxu0 %v1203
      %3399 = vmatprep.subr.mxu0 0.0
      %3400 = vmatpush1.msra.mxu0 %v1202
      %3401 = vmatprep.subr.mxu0 0.0
      %3402 = vmatpush2.msra.mxu0 0.0
      %3403 = vmatprep.subr.mxu0 0.0
      %3404 = vmatpush2.msra.mxu0 0.0
      %3405 = vmatprep.subr.mxu0 0.0
      %3406 = vmatpush2.msra.mxu0 0.0
      %3407 = vmatprep.subr.mxu0 0.0
      %3408 = vmatpush2.msra.mxu0 0.0
      %3409 = vmatprep.subr.mxu0 0.0
      %3410 = vmatpush2.msra.mxu0 0.0
      %3411 = vmatprep.subr.mxu0 0.0
      %3412 = vmatpush2.msra.mxu0 0.0
      %3413 = vmatprep.subr.mxu0 0.0
      %3414 = vmatpush2.msra.mxu0 0.0
      %3415 = vmatprep.subr.mxu0 0.0
      %3416 = vmatpush2.msra.mxu0 0.0
      %3417 = vmatprep.subr.mxu0 0.0
      %3418 = vmatpush2.msra.mxu0 0.0
      %3419 = vmatprep.subr.mxu0 0.0
      %3420 = vmatpush2.msra.mxu0 0.0
      %3421 = vmatprep.subr.mxu0 0.0
      %3422 = vmatpush2.msra.mxu0 0.0
      %3423 = vmatprep.subr.mxu0 0.0
      %3424 = vmatpush2.msra.mxu0 0.0
      %3425 = vmatprep.subr.mxu0 0.0
      %3426 = vmatpush2.msra.mxu0 0.0
      %3427 = vmatprep.subr.mxu0 0.0
      %3428 = vmatpush2.msra.mxu0 0.0
      %3429 = vmatprep.subr.mxu0 0.0
      %3430 = vmatpush2.msra.mxu0 0.0
      %3431 = vmatprep.subr.mxu0 0.0
      %3432 = vmatpush2.msra.mxu0 0.0
      %3433 = vmatprep.mubr.f32.mxu0 0.0
      %3434 = vmatmul.mubr.f32.gmra.mxu0 %v3367
      %v3435 = vpop.f32.mrf.mxu0
      %v3436 = vadd.f32 %v2290, %v3435
      %v3437 = vpop.f32.mrf.mxu0
      %3438 = vdwg.mxu0
      %s3439 = scalar_lea.vmem %s1151, 4
      %3440 = vst.msk [vmem:[%s3439] sm:$0xf] %vm1452, %v3436
      %v3442 = vsel %vm1224, %v3436, 0
      %3444 = vmatprep.subr.mxu0 0.0
      %3445 = vmatpush1.msra.mxu0 0.0
      %3446 = vmatprep.subr.mxu0 0.0
      %3447 = vmatpush1.msra.mxu0 0.0
      %3448 = vmatprep.subr.mxu0 0.0
      %3449 = vmatpush1.msra.mxu0 0.0
      %3450 = vmatprep.subr.mxu0 0.0
      %3451 = vmatpush1.msra.mxu0 0.0
      %3452 = vmatprep.subr.mxu0 0.0
      %3453 = vmatpush1.msra.mxu0 0.0
      %3454 = vmatprep.subr.mxu0 0.0
      %3455 = vmatpush1.msra.mxu0 0.0
      %3456 = vmatprep.subr.mxu0 0.0
      %3457 = vmatpush1.msra.mxu0 0.0
      %3458 = vmatprep.subr.mxu0 0.0
      %3459 = vmatpush1.msra.mxu0 0.0
      %3460 = vmatprep.subr.mxu0 0.0
      %3461 = vmatpush1.msra.mxu0 0.0
      %3462 = vmatprep.subr.mxu0 0.0
      %3463 = vmatpush1.msra.mxu0 0.0
      %3464 = vmatprep.subr.mxu0 0.0
      %3465 = vmatpush1.msra.mxu0 0.0
      %3466 = vmatprep.subr.mxu0 0.0
      %3467 = vmatpush1.msra.mxu0 0.0
      %3468 = vmatprep.subr.mxu0 0.0
      %3469 = vmatpush1.msra.mxu0 0.0
      %3470 = vmatprep.subr.mxu0 0.0
      %3471 = vmatpush1.msra.mxu0 0.0
      %3472 = vmatprep.subr.mxu0 0.0
      %3473 = vmatpush1.msra.mxu0 0.0
      %3474 = vmatprep.subr.mxu0 0.0
      %3475 = vmatpush1.msra.mxu0 %v1152
      %3476 = vmatprep.subr.mxu0 0.0
      %3477 = vmatpush2.msra.mxu0 0.0
      %3478 = vmatprep.subr.mxu0 0.0
      %3479 = vmatpush2.msra.mxu0 0.0
      %3480 = vmatprep.subr.mxu0 0.0
      %3481 = vmatpush2.msra.mxu0 0.0
      %3482 = vmatprep.subr.mxu0 0.0
      %3483 = vmatpush2.msra.mxu0 0.0
      %3484 = vmatprep.subr.mxu0 0.0
      %3485 = vmatpush2.msra.mxu0 0.0
      %3486 = vmatprep.subr.mxu0 0.0
      %3487 = vmatpush2.msra.mxu0 0.0
      %3488 = vmatprep.subr.mxu0 0.0
      %3489 = vmatpush2.msra.mxu0 0.0
      %3490 = vmatprep.subr.mxu0 0.0
      %3491 = vmatpush2.msra.mxu0 0.0
      %3492 = vmatprep.subr.mxu0 0.0
      %3493 = vmatpush2.msra.mxu0 0.0
      %3494 = vmatprep.subr.mxu0 0.0
      %3495 = vmatpush2.msra.mxu0 0.0
      %3496 = vmatprep.subr.mxu0 0.0
      %3497 = vmatpush2.msra.mxu0 0.0
      %3498 = vmatprep.subr.mxu0 0.0
      %3499 = vmatpush2.msra.mxu0 0.0
      %3500 = vmatprep.subr.mxu0 0.0
      %3501 = vmatpush2.msra.mxu0 0.0
      %3502 = vmatprep.subr.mxu0 0.0
      %3503 = vmatpush2.msra.mxu0 0.0
      %3504 = vmatprep.subr.mxu0 0.0
      %3505 = vmatpush2.msra.mxu0 0.0
      %3506 = vmatprep.subr.mxu0 0.0
      %3507 = vmatpush2.msra.mxu0 0.0
      %3508 = vmatprep.mubr.f32.mxu0 0.0
      %3509 = vmatmul.mubr.f32.gmra.mxu0 %v3442
      %v3510 = vpop.f32.mrf.mxu0
      %v3511 = vadd.f32 %v1222, %v3510
      %v3512 = vpop.f32.mrf.mxu0
      %3513 = vdwg.mxu0
      %3514 = vmatprep.subr.mxu0 0.0
      %3515 = vmatpush1.msra.mxu0 0.0
      %3516 = vmatprep.subr.mxu0 0.0
      %3517 = vmatpush1.msra.mxu0 0.0
      %3518 = vmatprep.subr.mxu0 0.0
      %3519 = vmatpush1.msra.mxu0 0.0
      %3520 = vmatprep.subr.mxu0 0.0
      %3521 = vmatpush1.msra.mxu0 0.0
      %3522 = vmatprep.subr.mxu0 0.0
      %3523 = vmatpush1.msra.mxu0 0.0
      %3524 = vmatprep.subr.mxu0 0.0
      %3525 = vmatpush1.msra.mxu0 0.0
      %3526 = vmatprep.subr.mxu0 0.0
      %3527 = vmatpush1.msra.mxu0 0.0
      %3528 = vmatprep.subr.mxu0 0.0
      %3529 = vmatpush1.msra.mxu0 0.0
      %3530 = vmatprep.subr.mxu0 0.0
      %3531 = vmatpush1.msra.mxu0 0.0
      %3532 = vmatprep.subr.mxu0 0.0
      %3533 = vmatpush1.msra.mxu0 0.0
      %3534 = vmatprep.subr.mxu0 0.0
      %3535 = vmatpush1.msra.mxu0 0.0
      %3536 = vmatprep.subr.mxu0 0.0
      %3537 = vmatpush1.msra.mxu0 0.0
      %3538 = vmatprep.subr.mxu0 0.0
      %3539 = vmatpush1.msra.mxu0 %v1161
      %3540 = vmatprep.subr.mxu0 0.0
      %3541 = vmatpush1.msra.mxu0 %v1160
      %3542 = vmatprep.subr.mxu0 0.0
      %3543 = vmatpush1.msra.mxu0 %v1159
      %3544 = vmatprep.subr.mxu0 0.0
      %3545 = vmatpush1.msra.mxu0 %v1158
      %3546 = vmatprep.subr.mxu0 0.0
      %3547 = vmatpush2.msra.mxu0 0.0
      %3548 = vmatprep.subr.mxu0 0.0
      %3549 = vmatpush2.msra.mxu0 0.0
      %3550 = vmatprep.subr.mxu0 0.0
      %3551 = vmatpush2.msra.mxu0 0.0
      %3552 = vmatprep.subr.mxu0 0.0
      %3553 = vmatpush2.msra.mxu0 0.0
      %3554 = vmatprep.subr.mxu0 0.0
      %3555 = vmatpush2.msra.mxu0 0.0
      %3556 = vmatprep.subr.mxu0 0.0
      %3557 = vmatpush2.msra.mxu0 0.0
      %3558 = vmatprep.subr.mxu0 0.0
      %3559 = vmatpush2.msra.mxu0 0.0
      %3560 = vmatprep.subr.mxu0 0.0
      %3561 = vmatpush2.msra.mxu0 0.0
      %3562 = vmatprep.subr.mxu0 0.0
      %3563 = vmatpush2.msra.mxu0 0.0
      %3564 = vmatprep.subr.mxu0 0.0
      %3565 = vmatpush2.msra.mxu0 0.0
      %3566 = vmatprep.subr.mxu0 0.0
      %3567 = vmatpush2.msra.mxu0 0.0
      %3568 = vmatprep.subr.mxu0 0.0
      %3569 = vmatpush2.msra.mxu0 0.0
      %3570 = vmatprep.subr.mxu0 0.0
      %3571 = vmatpush2.msra.mxu0 0.0
      %3572 = vmatprep.subr.mxu0 0.0
      %3573 = vmatpush2.msra.mxu0 0.0
      %3574 = vmatprep.subr.mxu0 0.0
      %3575 = vmatpush2.msra.mxu0 0.0
      %3576 = vmatprep.subr.mxu0 0.0
      %3577 = vmatpush2.msra.mxu0 0.0
      %3578 = vmatprep.mubr.f32.mxu0 0.0
      %3579 = vmatmul.mubr.f32.gmra.mxu0 %v3045
      %v3580 = vpop.f32.mrf.mxu0
      %v3581 = vadd.f32 0.0, %v3580
      %v3582 = vpop.f32.mrf.mxu0
      %3583 = vdwg.mxu0
      %v3585 = vsel %vm1298, %v3511, 0
      %3587 = vmatprep.subr.mxu0 0.0
      %3588 = vmatpush1.msra.mxu0 0.0
      %3589 = vmatprep.subr.mxu0 0.0
      %3590 = vmatpush1.msra.mxu0 0.0
      %3591 = vmatprep.subr.mxu0 0.0
      %3592 = vmatpush1.msra.mxu0 0.0
      %3593 = vmatprep.subr.mxu0 0.0
      %3594 = vmatpush1.msra.mxu0 0.0
      %3595 = vmatprep.subr.mxu0 0.0
      %3596 = vmatpush1.msra.mxu0 0.0
      %3597 = vmatprep.subr.mxu0 0.0
      %3598 = vmatpush1.msra.mxu0 0.0
      %3599 = vmatprep.subr.mxu0 0.0
      %3600 = vmatpush1.msra.mxu0 0.0
      %3601 = vmatprep.subr.mxu0 0.0
      %3602 = vmatpush1.msra.mxu0 0.0
      %3603 = vmatprep.subr.mxu0 0.0
      %3604 = vmatpush1.msra.mxu0 0.0
      %3605 = vmatprep.subr.mxu0 0.0
      %3606 = vmatpush1.msra.mxu0 0.0
      %3607 = vmatprep.subr.mxu0 0.0
      %3608 = vmatpush1.msra.mxu0 0.0
      %3609 = vmatprep.subr.mxu0 0.0
      %3610 = vmatpush1.msra.mxu0 0.0
      %3611 = vmatprep.subr.mxu0 0.0
      %3612 = vmatpush1.msra.mxu0 %v1157
      %3613 = vmatprep.subr.mxu0 0.0
      %3614 = vmatpush1.msra.mxu0 %v1156
      %3615 = vmatprep.subr.mxu0 0.0
      %3616 = vmatpush1.msra.mxu0 %v1155
      %3617 = vmatprep.subr.mxu0 0.0
      %3618 = vmatpush1.msra.mxu0 %v1154
      %3619 = vmatprep.subr.mxu0 0.0
      %3620 = vmatpush2.msra.mxu0 0.0
      %3621 = vmatprep.subr.mxu0 0.0
      %3622 = vmatpush2.msra.mxu0 0.0
      %3623 = vmatprep.subr.mxu0 0.0
      %3624 = vmatpush2.msra.mxu0 0.0
      %3625 = vmatprep.subr.mxu0 0.0
      %3626 = vmatpush2.msra.mxu0 0.0
      %3627 = vmatprep.subr.mxu0 0.0
      %3628 = vmatpush2.msra.mxu0 0.0
      %3629 = vmatprep.subr.mxu0 0.0
      %3630 = vmatpush2.msra.mxu0 0.0
      %3631 = vmatprep.subr.mxu0 0.0
      %3632 = vmatpush2.msra.mxu0 0.0
      %3633 = vmatprep.subr.mxu0 0.0
      %3634 = vmatpush2.msra.mxu0 0.0
      %3635 = vmatprep.subr.mxu0 0.0
      %3636 = vmatpush2.msra.mxu0 0.0
      %3637 = vmatprep.subr.mxu0 0.0
      %3638 = vmatpush2.msra.mxu0 0.0
      %3639 = vmatprep.subr.mxu0 0.0
      %3640 = vmatpush2.msra.mxu0 0.0
      %3641 = vmatprep.subr.mxu0 0.0
      %3642 = vmatpush2.msra.mxu0 0.0
      %3643 = vmatprep.subr.mxu0 0.0
      %3644 = vmatpush2.msra.mxu0 0.0
      %3645 = vmatprep.subr.mxu0 0.0
      %3646 = vmatpush2.msra.mxu0 0.0
      %3647 = vmatprep.subr.mxu0 0.0
      %3648 = vmatpush2.msra.mxu0 0.0
      %3649 = vmatprep.subr.mxu0 0.0
      %3650 = vmatpush2.msra.mxu0 0.0
      %3651 = vmatprep.mubr.f32.mxu0 0.0
      %3652 = vmatmul.mubr.f32.gmra.mxu0 %v3585
      %v3653 = vpop.f32.mrf.mxu0
      %v3654 = vadd.f32 %v3581, %v3653
      %v3655 = vpop.f32.mrf.mxu0
      %3656 = vdwg.mxu0
      %v3657 = vadd.f32 %v3654, %v1449
      %v3658 = vsel %vm1452, %v3657, -inf
      %3659 = vmax.xlane.f32.xlu0 %v3658
      %v3660 = vpop.xlane.xlu0 %3659
      %v3661 = vsub.f32 %v3657, %v3660
      %v3662 = vmul.f32 %v3661, 1.442695
      %v3663 = vpow.pop %v3662
      %v3664 = vsel %vm1452, %v3663, 0.0
      %3665 = vadd.xlane.f32.xlu0 %v3664
      %v3666 = vpop.xlane.xlu0 %3665
      %v3667 = vrcp.pop %v3666
      %v3668 = vmul.f32 %v3663, %v3667
      %v3669 = vlaneseq
      %v3670 = vshrl.u32 %v3669, 7
      %v3671 = vsub.s32 0, %v3670
      %v3672 = vrot.slane %v3668, %v3671
      %3674 = vbcast.lane.b32.xlu0 %v3672, 256
      %v3675 = vpop.permute.xlu0 %3674
      %v3676 = vlaneseq
      %v3677 = vshrl.u32 %v3676, 7
      %v3678 = vsub.s32 1, %v3677
      %v3679 = vrot.slane %v3668, %v3678
      %3681 = vbcast.lane.b32.xlu0 %v3679, 256
      %v3682 = vpop.permute.xlu0 %3681
      %v3683 = vlaneseq
      %v3684 = vshrl.u32 %v3683, 7
      %v3685 = vsub.s32 2, %v3684
      %v3686 = vrot.slane %v3668, %v3685
      %3688 = vbcast.lane.b32.xlu0 %v3686, 256
      %v3689 = vpop.permute.xlu0 %3688
      %v3690 = vlaneseq
      %v3691 = vshrl.u32 %v3690, 7
      %v3692 = vsub.s32 3, %v3691
      %v3693 = vrot.slane %v3668, %v3692
      %3695 = vbcast.lane.b32.xlu0 %v3693, 256
      %v3696 = vpop.permute.xlu0 %3695
      %v3697 = vmul.f32 %v3675, %v1207
      %v3698 = vmul.f32 %v3682, %v1208
      %v3699 = vmul.f32 %v3689, %v1209
      %v3700 = vmul.f32 %v3696, %v1210
      %v3701 = vsel %vm1298, %v3697, 0.0
      %v3702 = vrot.slane %v3701, 4
      %v3703 = vadd.f32 %v3701, %v3702
      %v3704 = vrot.slane %v3703, 2
      %v3705 = vadd.f32 %v3703, %v3704
      %v3706 = vrot.slane %v3705, 1
      %v3707 = vadd.f32 %v3705, %v3706
      %v3708 = vsel %vm1298, %v3698, 0.0
      %v3709 = vrot.slane %v3708, 4
      %v3710 = vadd.f32 %v3708, %v3709
      %v3711 = vrot.slane %v3710, 2
      %v3712 = vadd.f32 %v3710, %v3711
      %v3713 = vrot.slane %v3712, 1
      %v3714 = vadd.f32 %v3712, %v3713
      %v3715 = vsel %vm1298, %v3699, 0.0
      %v3716 = vrot.slane %v3715, 4
      %v3717 = vadd.f32 %v3715, %v3716
      %v3718 = vrot.slane %v3717, 2
      %v3719 = vadd.f32 %v3717, %v3718
      %v3720 = vrot.slane %v3719, 1
      %v3721 = vadd.f32 %v3719, %v3720
      %v3722 = vsel %vm1298, %v3700, 0.0
      %v3723 = vrot.slane %v3722, 4
      %v3724 = vadd.f32 %v3722, %v3723
      %v3725 = vrot.slane %v3724, 2
      %v3726 = vadd.f32 %v3724, %v3725
      %v3727 = vrot.slane %v3726, 1
      %v3728 = vadd.f32 %v3726, %v3727
      %v3733 = vsel %vm1528, %v3714, %v3707
      %v3734 = vsel %vm1530, %v3721, %v3733
      %v3735 = vsel %vm1532, %v3728, %v3734
      %v3736 = vsel %vm1298, %v3735, 0
      %3738 = vmatprep.subr.mxu0 0.0
      %3739 = vmatpush1.msra.mxu0 0.0
      %3740 = vmatprep.subr.mxu0 0.0
      %3741 = vmatpush1.msra.mxu0 0.0
      %3742 = vmatprep.subr.mxu0 0.0
      %3743 = vmatpush1.msra.mxu0 0.0
      %3744 = vmatprep.subr.mxu0 0.0
      %3745 = vmatpush1.msra.mxu0 0.0
      %3746 = vmatprep.subr.mxu0 0.0
      %3747 = vmatpush1.msra.mxu0 0.0
      %3748 = vmatprep.subr.mxu0 0.0
      %3749 = vmatpush1.msra.mxu0 0.0
      %3750 = vmatprep.subr.mxu0 0.0
      %3751 = vmatpush1.msra.mxu0 0.0
      %3752 = vmatprep.subr.mxu0 0.0
      %3753 = vmatpush1.msra.mxu0 0.0
      %3754 = vmatprep.subr.mxu0 0.0
      %3755 = vmatpush1.msra.mxu0 0.0
      %3756 = vmatprep.subr.mxu0 0.0
      %3757 = vmatpush1.msra.mxu0 0.0
      %3758 = vmatprep.subr.mxu0 0.0
      %3759 = vmatpush1.msra.mxu0 0.0
      %3760 = vmatprep.subr.mxu0 0.0
      %3761 = vmatpush1.msra.mxu0 0.0
      %3762 = vmatprep.subr.mxu0 0.0
      %3763 = vmatpush1.msra.mxu0 %v1170
      %3764 = vmatprep.subr.mxu0 0.0
      %3765 = vmatpush1.msra.mxu0 %v1169
      %3766 = vmatprep.subr.mxu0 0.0
      %3767 = vmatpush1.msra.mxu0 %v1168
      %3768 = vmatprep.subr.mxu0 0.0
      %3769 = vmatpush1.msra.mxu0 %v1167
      %3770 = vmatprep.subr.mxu0 0.0
      %3771 = vmatpush2.msra.mxu0 0.0
      %3772 = vmatprep.subr.mxu0 0.0
      %3773 = vmatpush2.msra.mxu0 0.0
      %3774 = vmatprep.subr.mxu0 0.0
      %3775 = vmatpush2.msra.mxu0 0.0
      %3776 = vmatprep.subr.mxu0 0.0
      %3777 = vmatpush2.msra.mxu0 0.0
      %3778 = vmatprep.subr.mxu0 0.0
      %3779 = vmatpush2.msra.mxu0 0.0
      %3780 = vmatprep.subr.mxu0 0.0
      %3781 = vmatpush2.msra.mxu0 0.0
      %3782 = vmatprep.subr.mxu0 0.0
      %3783 = vmatpush2.msra.mxu0 0.0
      %3784 = vmatprep.subr.mxu0 0.0
      %3785 = vmatpush2.msra.mxu0 0.0
      %3786 = vmatprep.subr.mxu0 0.0
      %3787 = vmatpush2.msra.mxu0 0.0
      %3788 = vmatprep.subr.mxu0 0.0
      %3789 = vmatpush2.msra.mxu0 0.0
      %3790 = vmatprep.subr.mxu0 0.0
      %3791 = vmatpush2.msra.mxu0 0.0
      %3792 = vmatprep.subr.mxu0 0.0
      %3793 = vmatpush2.msra.mxu0 0.0
      %3794 = vmatprep.subr.mxu0 0.0
      %3795 = vmatpush2.msra.mxu0 0.0
      %3796 = vmatprep.subr.mxu0 0.0
      %3797 = vmatpush2.msra.mxu0 0.0
      %3798 = vmatprep.subr.mxu0 0.0
      %3799 = vmatpush2.msra.mxu0 0.0
      %3800 = vmatprep.subr.mxu0 0.0
      %3801 = vmatpush2.msra.mxu0 0.0
      %3802 = vmatprep.mubr.f32.mxu0 0.0
      %3803 = vmatmul.mubr.f32.gmra.mxu0 %v3736
      %v3804 = vpop.f32.mrf.mxu0
      %v3805 = vadd.f32 0.0, %v3804
      %v3806 = vpop.f32.mrf.mxu0
      %3807 = vdwg.mxu0
      %3808 = vmatprep.subr.mxu0 0.0
      %3809 = vmatpush1.msra.mxu0 0.0
      %3810 = vmatprep.subr.mxu0 0.0
      %3811 = vmatpush1.msra.mxu0 0.0
      %3812 = vmatprep.subr.mxu0 0.0
      %3813 = vmatpush1.msra.mxu0 0.0
      %3814 = vmatprep.subr.mxu0 0.0
      %3815 = vmatpush1.msra.mxu0 0.0
      %3816 = vmatprep.subr.mxu0 0.0
      %3817 = vmatpush1.msra.mxu0 0.0
      %3818 = vmatprep.subr.mxu0 0.0
      %3819 = vmatpush1.msra.mxu0 0.0
      %3820 = vmatprep.subr.mxu0 0.0
      %3821 = vmatpush1.msra.mxu0 0.0
      %3822 = vmatprep.subr.mxu0 0.0
      %3823 = vmatpush1.msra.mxu0 0.0
      %3824 = vmatprep.subr.mxu0 0.0
      %3825 = vmatpush1.msra.mxu0 0.0
      %3826 = vmatprep.subr.mxu0 0.0
      %3827 = vmatpush1.msra.mxu0 0.0
      %3828 = vmatprep.subr.mxu0 0.0
      %3829 = vmatpush1.msra.mxu0 0.0
      %3830 = vmatprep.subr.mxu0 0.0
      %3831 = vmatpush1.msra.mxu0 0.0
      %3832 = vmatprep.subr.mxu0 0.0
      %3833 = vmatpush1.msra.mxu0 %v1166
      %3834 = vmatprep.subr.mxu0 0.0
      %3835 = vmatpush1.msra.mxu0 %v1165
      %3836 = vmatprep.subr.mxu0 0.0
      %3837 = vmatpush1.msra.mxu0 %v1164
      %3838 = vmatprep.subr.mxu0 0.0
      %3839 = vmatpush1.msra.mxu0 %v1163
      %3840 = vmatprep.subr.mxu0 0.0
      %3841 = vmatpush2.msra.mxu0 0.0
      %3842 = vmatprep.subr.mxu0 0.0
      %3843 = vmatpush2.msra.mxu0 0.0
      %3844 = vmatprep.subr.mxu0 0.0
      %3845 = vmatpush2.msra.mxu0 0.0
      %3846 = vmatprep.subr.mxu0 0.0
      %3847 = vmatpush2.msra.mxu0 0.0
      %3848 = vmatprep.subr.mxu0 0.0
      %3849 = vmatpush2.msra.mxu0 0.0
      %3850 = vmatprep.subr.mxu0 0.0
      %3851 = vmatpush2.msra.mxu0 0.0
      %3852 = vmatprep.subr.mxu0 0.0
      %3853 = vmatpush2.msra.mxu0 0.0
      %3854 = vmatprep.subr.mxu0 0.0
      %3855 = vmatpush2.msra.mxu0 0.0
      %3856 = vmatprep.subr.mxu0 0.0
      %3857 = vmatpush2.msra.mxu0 0.0
      %3858 = vmatprep.subr.mxu0 0.0
      %3859 = vmatpush2.msra.mxu0 0.0
      %3860 = vmatprep.subr.mxu0 0.0
      %3861 = vmatpush2.msra.mxu0 0.0
      %3862 = vmatprep.subr.mxu0 0.0
      %3863 = vmatpush2.msra.mxu0 0.0
      %3864 = vmatprep.subr.mxu0 0.0
      %3865 = vmatpush2.msra.mxu0 0.0
      %3866 = vmatprep.subr.mxu0 0.0
      %3867 = vmatpush2.msra.mxu0 0.0
      %3868 = vmatprep.subr.mxu0 0.0
      %3869 = vmatpush2.msra.mxu0 0.0
      %3870 = vmatprep.subr.mxu0 0.0
      %3871 = vmatpush2.msra.mxu0 0.0
      %3872 = vmatprep.mubr.f32.mxu0 0.0
      %3873 = vmatmul.mubr.f32.gmra.mxu0 %v3585
      %v3874 = vpop.f32.mrf.mxu0
      %v3875 = vadd.f32 %v3805, %v3874
      %v3876 = vpop.f32.mrf.mxu0
      %3877 = vdwg.mxu0
      %v3878 = vadd.f32 %v3875, %v1680
      %3879 = vmatprep.subr.mxu0 0.0
      %3880 = vmatpush1.msra.mxu0 0.0
      %3881 = vmatprep.subr.mxu0 0.0
      %3882 = vmatpush1.msra.mxu0 0.0
      %3883 = vmatprep.subr.mxu0 0.0
      %3884 = vmatpush1.msra.mxu0 0.0
      %3885 = vmatprep.subr.mxu0 0.0
      %3886 = vmatpush1.msra.mxu0 0.0
      %3887 = vmatprep.subr.mxu0 0.0
      %3888 = vmatpush1.msra.mxu0 0.0
      %3889 = vmatprep.subr.mxu0 0.0
      %3890 = vmatpush1.msra.mxu0 0.0
      %3891 = vmatprep.subr.mxu0 0.0
      %3892 = vmatpush1.msra.mxu0 0.0
      %3893 = vmatprep.subr.mxu0 0.0
      %3894 = vmatpush1.msra.mxu0 0.0
      %3895 = vmatprep.subr.mxu0 0.0
      %3896 = vmatpush1.msra.mxu0 0.0
      %3897 = vmatprep.subr.mxu0 0.0
      %3898 = vmatpush1.msra.mxu0 0.0
      %3899 = vmatprep.subr.mxu0 0.0
      %3900 = vmatpush1.msra.mxu0 0.0
      %3901 = vmatprep.subr.mxu0 0.0
      %3902 = vmatpush1.msra.mxu0 0.0
      %3903 = vmatprep.subr.mxu0 0.0
      %3904 = vmatpush1.msra.mxu0 %v1176
      %3905 = vmatprep.subr.mxu0 0.0
      %3906 = vmatpush1.msra.mxu0 %v1175
      %3907 = vmatprep.subr.mxu0 0.0
      %3908 = vmatpush1.msra.mxu0 %v1174
      %3909 = vmatprep.subr.mxu0 0.0
      %3910 = vmatpush1.msra.mxu0 %v1173
      %3911 = vmatprep.subr.mxu0 0.0
      %3912 = vmatpush2.msra.mxu0 0.0
      %3913 = vmatprep.subr.mxu0 0.0
      %3914 = vmatpush2.msra.mxu0 0.0
      %3915 = vmatprep.subr.mxu0 0.0
      %3916 = vmatpush2.msra.mxu0 0.0
      %3917 = vmatprep.subr.mxu0 0.0
      %3918 = vmatpush2.msra.mxu0 0.0
      %3919 = vmatprep.subr.mxu0 0.0
      %3920 = vmatpush2.msra.mxu0 0.0
      %3921 = vmatprep.subr.mxu0 0.0
      %3922 = vmatpush2.msra.mxu0 0.0
      %3923 = vmatprep.subr.mxu0 0.0
      %3924 = vmatpush2.msra.mxu0 0.0
      %3925 = vmatprep.subr.mxu0 0.0
      %3926 = vmatpush2.msra.mxu0 0.0
      %3927 = vmatprep.subr.mxu0 0.0
      %3928 = vmatpush2.msra.mxu0 0.0
      %3929 = vmatprep.subr.mxu0 0.0
      %3930 = vmatpush2.msra.mxu0 0.0
      %3931 = vmatprep.subr.mxu0 0.0
      %3932 = vmatpush2.msra.mxu0 0.0
      %3933 = vmatprep.subr.mxu0 0.0
      %3934 = vmatpush2.msra.mxu0 0.0
      %3935 = vmatprep.subr.mxu0 0.0
      %3936 = vmatpush2.msra.mxu0 0.0
      %3937 = vmatprep.subr.mxu0 0.0
      %3938 = vmatpush2.msra.mxu0 0.0
      %3939 = vmatprep.subr.mxu0 0.0
      %3940 = vmatpush2.msra.mxu0 0.0
      %3941 = vmatprep.subr.mxu0 0.0
      %3942 = vmatpush2.msra.mxu0 0.0
      %3943 = vmatprep.mubr.f32.mxu0 0.0
      %3944 = vmatmul.mubr.f32.gmra.mxu0 %v3045
      %v3945 = vpop.f32.mrf.mxu0
      %v3946 = vadd.f32 0.0, %v3945
      %v3947 = vpop.f32.mrf.mxu0
      %3948 = vdwg.mxu0
      %v3950 = vsel %vm1224, %v3878, 0
      %3952 = vmatprep.subr.mxu0 0.0
      %3953 = vmatpush1.msra.mxu0 0.0
      %3954 = vmatprep.subr.mxu0 0.0
      %3955 = vmatpush1.msra.mxu0 0.0
      %3956 = vmatprep.subr.mxu0 0.0
      %3957 = vmatpush1.msra.mxu0 0.0
      %3958 = vmatprep.subr.mxu0 0.0
      %3959 = vmatpush1.msra.mxu0 0.0
      %3960 = vmatprep.subr.mxu0 0.0
      %3961 = vmatpush1.msra.mxu0 0.0
      %3962 = vmatprep.subr.mxu0 0.0
      %3963 = vmatpush1.msra.mxu0 0.0
      %3964 = vmatprep.subr.mxu0 0.0
      %3965 = vmatpush1.msra.mxu0 0.0
      %3966 = vmatprep.subr.mxu0 0.0
      %3967 = vmatpush1.msra.mxu0 0.0
      %3968 = vmatprep.subr.mxu0 0.0
      %3969 = vmatpush1.msra.mxu0 0.0
      %3970 = vmatprep.subr.mxu0 0.0
      %3971 = vmatpush1.msra.mxu0 0.0
      %3972 = vmatprep.subr.mxu0 0.0
      %3973 = vmatpush1.msra.mxu0 0.0
      %3974 = vmatprep.subr.mxu0 0.0
      %3975 = vmatpush1.msra.mxu0 0.0
      %3976 = vmatprep.subr.mxu0 0.0
      %3977 = vmatpush1.msra.mxu0 0.0
      %3978 = vmatprep.subr.mxu0 0.0
      %3979 = vmatpush1.msra.mxu0 0.0
      %3980 = vmatprep.subr.mxu0 0.0
      %3981 = vmatpush1.msra.mxu0 0.0
      %3982 = vmatprep.subr.mxu0 0.0
      %3983 = vmatpush1.msra.mxu0 %v1172
      %3984 = vmatprep.subr.mxu0 0.0
      %3985 = vmatpush2.msra.mxu0 0.0
      %3986 = vmatprep.subr.mxu0 0.0
      %3987 = vmatpush2.msra.mxu0 0.0
      %3988 = vmatprep.subr.mxu0 0.0
      %3989 = vmatpush2.msra.mxu0 0.0
      %3990 = vmatprep.subr.mxu0 0.0
      %3991 = vmatpush2.msra.mxu0 0.0
      %3992 = vmatprep.subr.mxu0 0.0
      %3993 = vmatpush2.msra.mxu0 0.0
      %3994 = vmatprep.subr.mxu0 0.0
      %3995 = vmatpush2.msra.mxu0 0.0
      %3996 = vmatprep.subr.mxu0 0.0
      %3997 = vmatpush2.msra.mxu0 0.0
      %3998 = vmatprep.subr.mxu0 0.0
      %3999 = vmatpush2.msra.mxu0 0.0
      %4000 = vmatprep.subr.mxu0 0.0
      %4001 = vmatpush2.msra.mxu0 0.0
      %4002 = vmatprep.subr.mxu0 0.0
      %4003 = vmatpush2.msra.mxu0 0.0
      %4004 = vmatprep.subr.mxu0 0.0
      %4005 = vmatpush2.msra.mxu0 0.0
      %4006 = vmatprep.subr.mxu0 0.0
      %4007 = vmatpush2.msra.mxu0 0.0
      %4008 = vmatprep.subr.mxu0 0.0
      %4009 = vmatpush2.msra.mxu0 0.0
      %4010 = vmatprep.subr.mxu0 0.0
      %4011 = vmatpush2.msra.mxu0 0.0
      %4012 = vmatprep.subr.mxu0 0.0
      %4013 = vmatpush2.msra.mxu0 0.0
      %4014 = vmatprep.subr.mxu0 0.0
      %4015 = vmatpush2.msra.mxu0 0.0
      %4016 = vmatprep.mubr.f32.mxu0 0.0
      %4017 = vmatmul.mubr.f32.gmra.mxu0 %v3950
      %v4018 = vpop.f32.mrf.mxu0
      %v4019 = vadd.f32 %v3946, %v4018
      %v4020 = vpop.f32.mrf.mxu0
      %4021 = vdwg.mxu0
      %v4022 = vadd.f32 %v4019, %v1830
      %v4023 = vxor.u32 %v4022, 2147483648
      %v4024 = vmul.f32 %v4023, 1.442695
      %v4025 = vpow.pop %v4024
      %v4026 = vadd.f32 %v4025, 1.0
      %v4027 = vrcp.pop %v4026
      %v4028 = vmul.f32 1.0, %v4027
      %v4029 = vtanh.pop %v4022
      %v4030 = vmul.f32 %v4028, %v2965
      %4032 = vrot.lane.b32.xlu0 %v4029, 64
      %v4033 = vpop.permute.xlu0 %4032
      %v4035 = vmul.f32 %v4028, %v4033
      %4037 = vrot.lane.b32.xlu0 %v4035, 32
      %v4038 = vpop.permute.xlu0 %4037
      %v4040 = vadd.f32 %v4030, %v4038
      %v4041 = vtanh.pop %v4040
      %4043 = vrot.lane.b32.xlu0 %v4041, 64
      %v4044 = vpop.permute.xlu0 %4043
      %v4046 = vmul.f32 %v4028, %v4044
      %4047 = vmatprep.subr.mxu0 0.0
      %4048 = vmatpush1.msra.mxu0 0.0
      %4049 = vmatprep.subr.mxu0 0.0
      %4050 = vmatpush1.msra.mxu0 0.0
      %4051 = vmatprep.subr.mxu0 0.0
      %4052 = vmatpush1.msra.mxu0 0.0
      %4053 = vmatprep.subr.mxu0 0.0
      %4054 = vmatpush1.msra.mxu0 0.0
      %4055 = vmatprep.subr.mxu0 0.0
      %4056 = vmatpush1.msra.mxu0 0.0
      %4057 = vmatprep.subr.mxu0 0.0
      %4058 = vmatpush1.msra.mxu0 0.0
      %4059 = vmatprep.subr.mxu0 0.0
      %4060 = vmatpush1.msra.mxu0 0.0
      %4061 = vmatprep.subr.mxu0 0.0
      %4062 = vmatpush1.msra.mxu0 0.0
      %4063 = vmatprep.subr.mxu0 0.0
      %4064 = vmatpush1.msra.mxu0 0.0
      %4065 = vmatprep.subr.mxu0 0.0
      %4066 = vmatpush1.msra.mxu0 0.0
      %4067 = vmatprep.subr.mxu0 0.0
      %4068 = vmatpush1.msra.mxu0 0.0
      %4069 = vmatprep.subr.mxu0 0.0
      %4070 = vmatpush1.msra.mxu0 0.0
      %4071 = vmatprep.subr.mxu0 0.0
      %4072 = vmatpush1.msra.mxu0 %v1185
      %4073 = vmatprep.subr.mxu0 0.0
      %4074 = vmatpush1.msra.mxu0 %v1184
      %4075 = vmatprep.subr.mxu0 0.0
      %4076 = vmatpush1.msra.mxu0 %v1183
      %4077 = vmatprep.subr.mxu0 0.0
      %4078 = vmatpush1.msra.mxu0 %v1182
      %4079 = vmatprep.subr.mxu0 0.0
      %4080 = vmatpush2.msra.mxu0 0.0
      %4081 = vmatprep.subr.mxu0 0.0
      %4082 = vmatpush2.msra.mxu0 0.0
      %4083 = vmatprep.subr.mxu0 0.0
      %4084 = vmatpush2.msra.mxu0 0.0
      %4085 = vmatprep.subr.mxu0 0.0
      %4086 = vmatpush2.msra.mxu0 0.0
      %4087 = vmatprep.subr.mxu0 0.0
      %4088 = vmatpush2.msra.mxu0 0.0
      %4089 = vmatprep.subr.mxu0 0.0
      %4090 = vmatpush2.msra.mxu0 0.0
      %4091 = vmatprep.subr.mxu0 0.0
      %4092 = vmatpush2.msra.mxu0 0.0
      %4093 = vmatprep.subr.mxu0 0.0
      %4094 = vmatpush2.msra.mxu0 0.0
      %4095 = vmatprep.subr.mxu0 0.0
      %4096 = vmatpush2.msra.mxu0 0.0
      %4097 = vmatprep.subr.mxu0 0.0
      %4098 = vmatpush2.msra.mxu0 0.0
      %4099 = vmatprep.subr.mxu0 0.0
      %4100 = vmatpush2.msra.mxu0 0.0
      %4101 = vmatprep.subr.mxu0 0.0
      %4102 = vmatpush2.msra.mxu0 0.0
      %4103 = vmatprep.subr.mxu0 0.0
      %4104 = vmatpush2.msra.mxu0 0.0
      %4105 = vmatprep.subr.mxu0 0.0
      %4106 = vmatpush2.msra.mxu0 0.0
      %4107 = vmatprep.subr.mxu0 0.0
      %4108 = vmatpush2.msra.mxu0 0.0
      %4109 = vmatprep.subr.mxu0 0.0
      %4110 = vmatpush2.msra.mxu0 0.0
      %4111 = vmatprep.mubr.f32.mxu0 0.0
      %4112 = vmatmul.mubr.f32.gmra.mxu0 %v3145
      %v4113 = vpop.f32.mrf.mxu0
      %v4114 = vadd.f32 0.0, %v4113
      %v4115 = vpop.f32.mrf.mxu0
      %4116 = vdwg.mxu0
      %4118 = vrot.lane.b32.xlu0 %v4046, 32
      %v4119 = vpop.permute.xlu0 %4118
      %v4120 = vsel %vm1298, %v4119, 0
      %4122 = vmatprep.subr.mxu0 0.0
      %4123 = vmatpush1.msra.mxu0 0.0
      %4124 = vmatprep.subr.mxu0 0.0
      %4125 = vmatpush1.msra.mxu0 0.0
      %4126 = vmatprep.subr.mxu0 0.0
      %4127 = vmatpush1.msra.mxu0 0.0
      %4128 = vmatprep.subr.mxu0 0.0
      %4129 = vmatpush1.msra.mxu0 0.0
      %4130 = vmatprep.subr.mxu0 0.0
      %4131 = vmatpush1.msra.mxu0 0.0
      %4132 = vmatprep.subr.mxu0 0.0
      %4133 = vmatpush1.msra.mxu0 0.0
      %4134 = vmatprep.subr.mxu0 0.0
      %4135 = vmatpush1.msra.mxu0 0.0
      %4136 = vmatprep.subr.mxu0 0.0
      %4137 = vmatpush1.msra.mxu0 0.0
      %4138 = vmatprep.subr.mxu0 0.0
      %4139 = vmatpush1.msra.mxu0 0.0
      %4140 = vmatprep.subr.mxu0 0.0
      %4141 = vmatpush1.msra.mxu0 0.0
      %4142 = vmatprep.subr.mxu0 0.0
      %4143 = vmatpush1.msra.mxu0 0.0
      %4144 = vmatprep.subr.mxu0 0.0
      %4145 = vmatpush1.msra.mxu0 0.0
      %4146 = vmatprep.subr.mxu0 0.0
      %4147 = vmatpush1.msra.mxu0 %v1181
      %4148 = vmatprep.subr.mxu0 0.0
      %4149 = vmatpush1.msra.mxu0 %v1180
      %4150 = vmatprep.subr.mxu0 0.0
      %4151 = vmatpush1.msra.mxu0 %v1179
      %4152 = vmatprep.subr.mxu0 0.0
      %4153 = vmatpush1.msra.mxu0 %v1178
      %4154 = vmatprep.subr.mxu0 0.0
      %4155 = vmatpush2.msra.mxu0 0.0
      %4156 = vmatprep.subr.mxu0 0.0
      %4157 = vmatpush2.msra.mxu0 0.0
      %4158 = vmatprep.subr.mxu0 0.0
      %4159 = vmatpush2.msra.mxu0 0.0
      %4160 = vmatprep.subr.mxu0 0.0
      %4161 = vmatpush2.msra.mxu0 0.0
      %4162 = vmatprep.subr.mxu0 0.0
      %4163 = vmatpush2.msra.mxu0 0.0
      %4164 = vmatprep.subr.mxu0 0.0
      %4165 = vmatpush2.msra.mxu0 0.0
      %4166 = vmatprep.subr.mxu0 0.0
      %4167 = vmatpush2.msra.mxu0 0.0
      %4168 = vmatprep.subr.mxu0 0.0
      %4169 = vmatpush2.msra.mxu0 0.0
      %4170 = vmatprep.subr.mxu0 0.0
      %4171 = vmatpush2.msra.mxu0 0.0
      %4172 = vmatprep.subr.mxu0 0.0
      %4173 = vmatpush2.msra.mxu0 0.0
      %4174 = vmatprep.subr.mxu0 0.0
      %4175 = vmatpush2.msra.mxu0 0.0
      %4176 = vmatprep.subr.mxu0 0.0
      %4177 = vmatpush2.msra.mxu0 0.0
      %4178 = vmatprep.subr.mxu0 0.0
      %4179 = vmatpush2.msra.mxu0 0.0
      %4180 = vmatprep.subr.mxu0 0.0
      %4181 = vmatpush2.msra.mxu0 0.0
      %4182 = vmatprep.subr.mxu0 0.0
      %4183 = vmatpush2.msra.mxu0 0.0
      %4184 = vmatprep.subr.mxu0 0.0
      %4185 = vmatpush2.msra.mxu0 0.0
      %4186 = vmatprep.mubr.f32.mxu0 0.0
      %4187 = vmatmul.mubr.f32.gmra.mxu0 %v4120
      %v4188 = vpop.f32.mrf.mxu0
      %v4189 = vadd.f32 %v4114, %v4188
      %v4190 = vpop.f32.mrf.mxu0
      %4191 = vdwg.mxu0
      %v4192 = vadd.f32 %v4189, %v2013
      %v4193 = vxor.u32 %v4192, 2147483648
      %v4194 = vmul.f32 %v4193, 1.442695
      %v4195 = vpow.pop %v4194
      %v4196 = vadd.f32 %v4195, 1.0
      %v4197 = vrcp.pop %v4196
      %v4198 = vmul.f32 1.0, %v4197
      %v4199 = vtanh.pop %v4192
      %v4200 = vmul.f32 %v4198, %v3135
      %4202 = vrot.lane.b32.xlu0 %v4199, 64
      %v4203 = vpop.permute.xlu0 %4202
      %v4205 = vmul.f32 %v4198, %v4203
      %4207 = vrot.lane.b32.xlu0 %v4205, 32
      %v4208 = vpop.permute.xlu0 %4207
      %v4210 = vadd.f32 %v4200, %v4208
      %v4211 = vtanh.pop %v4210
      %4213 = vrot.lane.b32.xlu0 %v4211, 64
      %v4214 = vpop.permute.xlu0 %4213
      %v4216 = vmul.f32 %v4198, %v4214
      %4218 = vrot.lane.b32.xlu0 %v4216, 32
      %v4219 = vpop.permute.xlu0 %4218
      %v4220 = vsel %vm1298, %v4219, 0
      %4222 = vmatprep.subr.mxu0 0.0
      %4223 = vmatpush1.msra.mxu0 0.0
      %4224 = vmatprep.subr.mxu0 0.0
      %4225 = vmatpush1.msra.mxu0 0.0
      %4226 = vmatprep.subr.mxu0 0.0
      %4227 = vmatpush1.msra.mxu0 0.0
      %4228 = vmatprep.subr.mxu0 0.0
      %4229 = vmatpush1.msra.mxu0 0.0
      %4230 = vmatprep.subr.mxu0 0.0
      %4231 = vmatpush1.msra.mxu0 0.0
      %4232 = vmatprep.subr.mxu0 0.0
      %4233 = vmatpush1.msra.mxu0 0.0
      %4234 = vmatprep.subr.mxu0 0.0
      %4235 = vmatpush1.msra.mxu0 0.0
      %4236 = vmatprep.subr.mxu0 0.0
      %4237 = vmatpush1.msra.mxu0 0.0
      %4238 = vmatprep.subr.mxu0 0.0
      %4239 = vmatpush1.msra.mxu0 0.0
      %4240 = vmatprep.subr.mxu0 0.0
      %4241 = vmatpush1.msra.mxu0 0.0
      %4242 = vmatprep.subr.mxu0 0.0
      %4243 = vmatpush1.msra.mxu0 0.0
      %4244 = vmatprep.subr.mxu0 0.0
      %4245 = vmatpush1.msra.mxu0 0.0
      %4246 = vmatprep.subr.mxu0 0.0
      %4247 = vmatpush1.msra.mxu0 %v1190
      %4248 = vmatprep.subr.mxu0 0.0
      %4249 = vmatpush1.msra.mxu0 %v1189
      %4250 = vmatprep.subr.mxu0 0.0
      %4251 = vmatpush1.msra.mxu0 %v1188
      %4252 = vmatprep.subr.mxu0 0.0
      %4253 = vmatpush1.msra.mxu0 %v1187
      %4254 = vmatprep.subr.mxu0 0.0
      %4255 = vmatpush2.msra.mxu0 0.0
      %4256 = vmatprep.subr.mxu0 0.0
      %4257 = vmatpush2.msra.mxu0 0.0
      %4258 = vmatprep.subr.mxu0 0.0
      %4259 = vmatpush2.msra.mxu0 0.0
      %4260 = vmatprep.subr.mxu0 0.0
      %4261 = vmatpush2.msra.mxu0 0.0
      %4262 = vmatprep.subr.mxu0 0.0
      %4263 = vmatpush2.msra.mxu0 0.0
      %4264 = vmatprep.subr.mxu0 0.0
      %4265 = vmatpush2.msra.mxu0 0.0
      %4266 = vmatprep.subr.mxu0 0.0
      %4267 = vmatpush2.msra.mxu0 0.0
      %4268 = vmatprep.subr.mxu0 0.0
      %4269 = vmatpush2.msra.mxu0 0.0
      %4270 = vmatprep.subr.mxu0 0.0
      %4271 = vmatpush2.msra.mxu0 0.0
      %4272 = vmatprep.subr.mxu0 0.0
      %4273 = vmatpush2.msra.mxu0 0.0
      %4274 = vmatprep.subr.mxu0 0.0
      %4275 = vmatpush2.msra.mxu0 0.0
      %4276 = vmatprep.subr.mxu0 0.0
      %4277 = vmatpush2.msra.mxu0 0.0
      %4278 = vmatprep.subr.mxu0 0.0
      %4279 = vmatpush2.msra.mxu0 0.0
      %4280 = vmatprep.subr.mxu0 0.0
      %4281 = vmatpush2.msra.mxu0 0.0
      %4282 = vmatprep.subr.mxu0 0.0
      %4283 = vmatpush2.msra.mxu0 0.0
      %4284 = vmatprep.subr.mxu0 0.0
      %4285 = vmatpush2.msra.mxu0 0.0
      %4286 = vmatprep.mubr.f32.mxu0 0.0
      %4287 = vmatmul.mubr.f32.gmra.mxu0 %v4220
      %v4288 = vpop.f32.mrf.mxu0
      %v4289 = vadd.f32 %v2048, %v4288
      %v4290 = vpop.f32.mrf.mxu0
      %4291 = vdwg.mxu0
      %v4292 = vmax.f32 %v4289, 0.0
      %v4294 = vsel %vm1298, %v4292, 0
      %4296 = vmatprep.subr.mxu0 0.0
      %4297 = vmatpush1.msra.mxu0 0.0
      %4298 = vmatprep.subr.mxu0 0.0
      %4299 = vmatpush1.msra.mxu0 0.0
      %4300 = vmatprep.subr.mxu0 0.0
      %4301 = vmatpush1.msra.mxu0 0.0
      %4302 = vmatprep.subr.mxu0 0.0
      %4303 = vmatpush1.msra.mxu0 0.0
      %4304 = vmatprep.subr.mxu0 0.0
      %4305 = vmatpush1.msra.mxu0 0.0
      %4306 = vmatprep.subr.mxu0 0.0
      %4307 = vmatpush1.msra.mxu0 0.0
      %4308 = vmatprep.subr.mxu0 0.0
      %4309 = vmatpush1.msra.mxu0 0.0
      %4310 = vmatprep.subr.mxu0 0.0
      %4311 = vmatpush1.msra.mxu0 0.0
      %4312 = vmatprep.subr.mxu0 0.0
      %4313 = vmatpush1.msra.mxu0 0.0
      %4314 = vmatprep.subr.mxu0 0.0
      %4315 = vmatpush1.msra.mxu0 0.0
      %4316 = vmatprep.subr.mxu0 0.0
      %4317 = vmatpush1.msra.mxu0 0.0
      %4318 = vmatprep.subr.mxu0 0.0
      %4319 = vmatpush1.msra.mxu0 0.0
      %4320 = vmatprep.subr.mxu0 0.0
      %4321 = vmatpush1.msra.mxu0 %v1195
      %4322 = vmatprep.subr.mxu0 0.0
      %4323 = vmatpush1.msra.mxu0 %v1194
      %4324 = vmatprep.subr.mxu0 0.0
      %4325 = vmatpush1.msra.mxu0 %v1193
      %4326 = vmatprep.subr.mxu0 0.0
      %4327 = vmatpush1.msra.mxu0 %v1192
      %4328 = vmatprep.subr.mxu0 0.0
      %4329 = vmatpush2.msra.mxu0 0.0
      %4330 = vmatprep.subr.mxu0 0.0
      %4331 = vmatpush2.msra.mxu0 0.0
      %4332 = vmatprep.subr.mxu0 0.0
      %4333 = vmatpush2.msra.mxu0 0.0
      %4334 = vmatprep.subr.mxu0 0.0
      %4335 = vmatpush2.msra.mxu0 0.0
      %4336 = vmatprep.subr.mxu0 0.0
      %4337 = vmatpush2.msra.mxu0 0.0
      %4338 = vmatprep.subr.mxu0 0.0
      %4339 = vmatpush2.msra.mxu0 0.0
      %4340 = vmatprep.subr.mxu0 0.0
      %4341 = vmatpush2.msra.mxu0 0.0
      %4342 = vmatprep.subr.mxu0 0.0
      %4343 = vmatpush2.msra.mxu0 0.0
      %4344 = vmatprep.subr.mxu0 0.0
      %4345 = vmatpush2.msra.mxu0 0.0
      %4346 = vmatprep.subr.mxu0 0.0
      %4347 = vmatpush2.msra.mxu0 0.0
      %4348 = vmatprep.subr.mxu0 0.0
      %4349 = vmatpush2.msra.mxu0 0.0
      %4350 = vmatprep.subr.mxu0 0.0
      %4351 = vmatpush2.msra.mxu0 0.0
      %4352 = vmatprep.subr.mxu0 0.0
      %4353 = vmatpush2.msra.mxu0 0.0
      %4354 = vmatprep.subr.mxu0 0.0
      %4355 = vmatpush2.msra.mxu0 0.0
      %4356 = vmatprep.subr.mxu0 0.0
      %4357 = vmatpush2.msra.mxu0 0.0
      %4358 = vmatprep.subr.mxu0 0.0
      %4359 = vmatpush2.msra.mxu0 0.0
      %4360 = vmatprep.mubr.f32.mxu0 0.0
      %4361 = vmatmul.mubr.f32.gmra.mxu0 %v4294
      %v4362 = vpop.f32.mrf.mxu0
      %v4363 = vadd.f32 %v2130, %v4362
      %v4364 = vpop.f32.mrf.mxu0
      %4365 = vdwg.mxu0
      %v4366 = vmax.f32 %v4363, 0.0
      %v4368 = vsel %vm1298, %v4366, 0
      %4370 = vmatprep.subr.mxu0 0.0
      %4371 = vmatpush1.msra.mxu0 0.0
      %4372 = vmatprep.subr.mxu0 0.0
      %4373 = vmatpush1.msra.mxu0 0.0
      %4374 = vmatprep.subr.mxu0 0.0
      %4375 = vmatpush1.msra.mxu0 0.0
      %4376 = vmatprep.subr.mxu0 0.0
      %4377 = vmatpush1.msra.mxu0 0.0
      %4378 = vmatprep.subr.mxu0 0.0
      %4379 = vmatpush1.msra.mxu0 0.0
      %4380 = vmatprep.subr.mxu0 0.0
      %4381 = vmatpush1.msra.mxu0 0.0
      %4382 = vmatprep.subr.mxu0 0.0
      %4383 = vmatpush1.msra.mxu0 0.0
      %4384 = vmatprep.subr.mxu0 0.0
      %4385 = vmatpush1.msra.mxu0 0.0
      %4386 = vmatprep.subr.mxu0 0.0
      %4387 = vmatpush1.msra.mxu0 0.0
      %4388 = vmatprep.subr.mxu0 0.0
      %4389 = vmatpush1.msra.mxu0 0.0
      %4390 = vmatprep.subr.mxu0 0.0
      %4391 = vmatpush1.msra.mxu0 0.0
      %4392 = vmatprep.subr.mxu0 0.0
      %4393 = vmatpush1.msra.mxu0 0.0
      %4394 = vmatprep.subr.mxu0 0.0
      %4395 = vmatpush1.msra.mxu0 %v1200
      %4396 = vmatprep.subr.mxu0 0.0
      %4397 = vmatpush1.msra.mxu0 %v1199
      %4398 = vmatprep.subr.mxu0 0.0
      %4399 = vmatpush1.msra.mxu0 %v1198
      %4400 = vmatprep.subr.mxu0 0.0
      %4401 = vmatpush1.msra.mxu0 %v1197
      %4402 = vmatprep.subr.mxu0 0.0
      %4403 = vmatpush2.msra.mxu0 0.0
      %4404 = vmatprep.subr.mxu0 0.0
      %4405 = vmatpush2.msra.mxu0 0.0
      %4406 = vmatprep.subr.mxu0 0.0
      %4407 = vmatpush2.msra.mxu0 0.0
      %4408 = vmatprep.subr.mxu0 0.0
      %4409 = vmatpush2.msra.mxu0 0.0
      %4410 = vmatprep.subr.mxu0 0.0
      %4411 = vmatpush2.msra.mxu0 0.0
      %4412 = vmatprep.subr.mxu0 0.0
      %4413 = vmatpush2.msra.mxu0 0.0
      %4414 = vmatprep.subr.mxu0 0.0
      %4415 = vmatpush2.msra.mxu0 0.0
      %4416 = vmatprep.subr.mxu0 0.0
      %4417 = vmatpush2.msra.mxu0 0.0
      %4418 = vmatprep.subr.mxu0 0.0
      %4419 = vmatpush2.msra.mxu0 0.0
      %4420 = vmatprep.subr.mxu0 0.0
      %4421 = vmatpush2.msra.mxu0 0.0
      %4422 = vmatprep.subr.mxu0 0.0
      %4423 = vmatpush2.msra.mxu0 0.0
      %4424 = vmatprep.subr.mxu0 0.0
      %4425 = vmatpush2.msra.mxu0 0.0
      %4426 = vmatprep.subr.mxu0 0.0
      %4427 = vmatpush2.msra.mxu0 0.0
      %4428 = vmatprep.subr.mxu0 0.0
      %4429 = vmatpush2.msra.mxu0 0.0
      %4430 = vmatprep.subr.mxu0 0.0
      %4431 = vmatpush2.msra.mxu0 0.0
      %4432 = vmatprep.subr.mxu0 0.0
      %4433 = vmatpush2.msra.mxu0 0.0
      %4434 = vmatprep.mubr.f32.mxu0 0.0
      %4435 = vmatmul.mubr.f32.gmra.mxu0 %v4368
      %v4436 = vpop.f32.mrf.mxu0
      %v4437 = vadd.f32 %v2210, %v4436
      %v4438 = vpop.f32.mrf.mxu0
      %4439 = vdwg.mxu0
      %v4440 = vmax.f32 %v4437, 0.0
      %v4442 = vsel %vm1298, %v4440, 0
      %4444 = vmatprep.subr.mxu0 0.0
      %4445 = vmatpush1.msra.mxu0 0.0
      %4446 = vmatprep.subr.mxu0 0.0
      %4447 = vmatpush1.msra.mxu0 0.0
      %4448 = vmatprep.subr.mxu0 0.0
      %4449 = vmatpush1.msra.mxu0 0.0
      %4450 = vmatprep.subr.mxu0 0.0
      %4451 = vmatpush1.msra.mxu0 0.0
      %4452 = vmatprep.subr.mxu0 0.0
      %4453 = vmatpush1.msra.mxu0 0.0
      %4454 = vmatprep.subr.mxu0 0.0
      %4455 = vmatpush1.msra.mxu0 0.0
      %4456 = vmatprep.subr.mxu0 0.0
      %4457 = vmatpush1.msra.mxu0 0.0
      %4458 = vmatprep.subr.mxu0 0.0
      %4459 = vmatpush1.msra.mxu0 0.0
      %4460 = vmatprep.subr.mxu0 0.0
      %4461 = vmatpush1.msra.mxu0 0.0
      %4462 = vmatprep.subr.mxu0 0.0
      %4463 = vmatpush1.msra.mxu0 0.0
      %4464 = vmatprep.subr.mxu0 0.0
      %4465 = vmatpush1.msra.mxu0 0.0
      %4466 = vmatprep.subr.mxu0 0.0
      %4467 = vmatpush1.msra.mxu0 0.0
      %4468 = vmatprep.subr.mxu0 0.0
      %4469 = vmatpush1.msra.mxu0 %v1205
      %4470 = vmatprep.subr.mxu0 0.0
      %4471 = vmatpush1.msra.mxu0 %v1204
      %4472 = vmatprep.subr.mxu0 0.0
      %4473 = vmatpush1.msra.mxu0 %v1203
      %4474 = vmatprep.subr.mxu0 0.0
      %4475 = vmatpush1.msra.mxu0 %v1202
      %4476 = vmatprep.subr.mxu0 0.0
      %4477 = vmatpush2.msra.mxu0 0.0
      %4478 = vmatprep.subr.mxu0 0.0
      %4479 = vmatpush2.msra.mxu0 0.0
      %4480 = vmatprep.subr.mxu0 0.0
      %4481 = vmatpush2.msra.mxu0 0.0
      %4482 = vmatprep.subr.mxu0 0.0
      %4483 = vmatpush2.msra.mxu0 0.0
      %4484 = vmatprep.subr.mxu0 0.0
      %4485 = vmatpush2.msra.mxu0 0.0
      %4486 = vmatprep.subr.mxu0 0.0
      %4487 = vmatpush2.msra.mxu0 0.0
      %4488 = vmatprep.subr.mxu0 0.0
      %4489 = vmatpush2.msra.mxu0 0.0
      %4490 = vmatprep.subr.mxu0 0.0
      %4491 = vmatpush2.msra.mxu0 0.0
      %4492 = vmatprep.subr.mxu0 0.0
      %4493 = vmatpush2.msra.mxu0 0.0
      %4494 = vmatprep.subr.mxu0 0.0
      %4495 = vmatpush2.msra.mxu0 0.0
      %4496 = vmatprep.subr.mxu0 0.0
      %4497 = vmatpush2.msra.mxu0 0.0
      %4498 = vmatprep.subr.mxu0 0.0
      %4499 = vmatpush2.msra.mxu0 0.0
      %4500 = vmatprep.subr.mxu0 0.0
      %4501 = vmatpush2.msra.mxu0 0.0
      %4502 = vmatprep.subr.mxu0 0.0
      %4503 = vmatpush2.msra.mxu0 0.0
      %4504 = vmatprep.subr.mxu0 0.0
      %4505 = vmatpush2.msra.mxu0 0.0
      %4506 = vmatprep.subr.mxu0 0.0
      %4507 = vmatpush2.msra.mxu0 0.0
      %4508 = vmatprep.mubr.f32.mxu0 0.0
      %4509 = vmatmul.mubr.f32.gmra.mxu0 %v4442
      %v4510 = vpop.f32.mrf.mxu0
      %v4511 = vadd.f32 %v2290, %v4510
      %v4512 = vpop.f32.mrf.mxu0
      %4513 = vdwg.mxu0
      %s4514 = scalar_lea.vmem %s1151, 8
      %4515 = vst.msk [vmem:[%s4514] sm:$0xf] %vm1452, %v4511
      %v4517 = vsel %vm1224, %v4511, 0
      %4519 = vmatprep.subr.mxu0 0.0
      %4520 = vmatpush1.msra.mxu0 0.0
      %4521 = vmatprep.subr.mxu0 0.0
      %4522 = vmatpush1.msra.mxu0 0.0
      %4523 = vmatprep.subr.mxu0 0.0
      %4524 = vmatpush1.msra.mxu0 0.0
      %4525 = vmatprep.subr.mxu0 0.0
      %4526 = vmatpush1.msra.mxu0 0.0
      %4527 = vmatprep.subr.mxu0 0.0
      %4528 = vmatpush1.msra.mxu0 0.0
      %4529 = vmatprep.subr.mxu0 0.0
      %4530 = vmatpush1.msra.mxu0 0.0
      %4531 = vmatprep.subr.mxu0 0.0
      %4532 = vmatpush1.msra.mxu0 0.0
      %4533 = vmatprep.subr.mxu0 0.0
      %4534 = vmatpush1.msra.mxu0 0.0
      %4535 = vmatprep.subr.mxu0 0.0
      %4536 = vmatpush1.msra.mxu0 0.0
      %4537 = vmatprep.subr.mxu0 0.0
      %4538 = vmatpush1.msra.mxu0 0.0
      %4539 = vmatprep.subr.mxu0 0.0
      %4540 = vmatpush1.msra.mxu0 0.0
      %4541 = vmatprep.subr.mxu0 0.0
      %4542 = vmatpush1.msra.mxu0 0.0
      %4543 = vmatprep.subr.mxu0 0.0
      %4544 = vmatpush1.msra.mxu0 0.0
      %4545 = vmatprep.subr.mxu0 0.0
      %4546 = vmatpush1.msra.mxu0 0.0
      %4547 = vmatprep.subr.mxu0 0.0
      %4548 = vmatpush1.msra.mxu0 0.0
      %4549 = vmatprep.subr.mxu0 0.0
      %4550 = vmatpush1.msra.mxu0 %v1152
      %4551 = vmatprep.subr.mxu0 0.0
      %4552 = vmatpush2.msra.mxu0 0.0
      %4553 = vmatprep.subr.mxu0 0.0
      %4554 = vmatpush2.msra.mxu0 0.0
      %4555 = vmatprep.subr.mxu0 0.0
      %4556 = vmatpush2.msra.mxu0 0.0
      %4557 = vmatprep.subr.mxu0 0.0
      %4558 = vmatpush2.msra.mxu0 0.0
      %4559 = vmatprep.subr.mxu0 0.0
      %4560 = vmatpush2.msra.mxu0 0.0
      %4561 = vmatprep.subr.mxu0 0.0
      %4562 = vmatpush2.msra.mxu0 0.0
      %4563 = vmatprep.subr.mxu0 0.0
      %4564 = vmatpush2.msra.mxu0 0.0
      %4565 = vmatprep.subr.mxu0 0.0
      %4566 = vmatpush2.msra.mxu0 0.0
      %4567 = vmatprep.subr.mxu0 0.0
      %4568 = vmatpush2.msra.mxu0 0.0
      %4569 = vmatprep.subr.mxu0 0.0
      %4570 = vmatpush2.msra.mxu0 0.0
      %4571 = vmatprep.subr.mxu0 0.0
      %4572 = vmatpush2.msra.mxu0 0.0
      %4573 = vmatprep.subr.mxu0 0.0
      %4574 = vmatpush2.msra.mxu0 0.0
      %4575 = vmatprep.subr.mxu0 0.0
      %4576 = vmatpush2.msra.mxu0 0.0
      %4577 = vmatprep.subr.mxu0 0.0
      %4578 = vmatpush2.msra.mxu0 0.0
      %4579 = vmatprep.subr.mxu0 0.0
      %4580 = vmatpush2.msra.mxu0 0.0
      %4581 = vmatprep.subr.mxu0 0.0
      %4582 = vmatpush2.msra.mxu0 0.0
      %4583 = vmatprep.mubr.f32.mxu0 0.0
      %4584 = vmatmul.mubr.f32.gmra.mxu0 %v4517
      %v4585 = vpop.f32.mrf.mxu0
      %v4586 = vadd.f32 %v1222, %v4585
      %v4587 = vpop.f32.mrf.mxu0
      %4588 = vdwg.mxu0
      %4589 = vmatprep.subr.mxu0 0.0
      %4590 = vmatpush1.msra.mxu0 0.0
      %4591 = vmatprep.subr.mxu0 0.0
      %4592 = vmatpush1.msra.mxu0 0.0
      %4593 = vmatprep.subr.mxu0 0.0
      %4594 = vmatpush1.msra.mxu0 0.0
      %4595 = vmatprep.subr.mxu0 0.0
      %4596 = vmatpush1.msra.mxu0 0.0
      %4597 = vmatprep.subr.mxu0 0.0
      %4598 = vmatpush1.msra.mxu0 0.0
      %4599 = vmatprep.subr.mxu0 0.0
      %4600 = vmatpush1.msra.mxu0 0.0
      %4601 = vmatprep.subr.mxu0 0.0
      %4602 = vmatpush1.msra.mxu0 0.0
      %4603 = vmatprep.subr.mxu0 0.0
      %4604 = vmatpush1.msra.mxu0 0.0
      %4605 = vmatprep.subr.mxu0 0.0
      %4606 = vmatpush1.msra.mxu0 0.0
      %4607 = vmatprep.subr.mxu0 0.0
      %4608 = vmatpush1.msra.mxu0 0.0
      %4609 = vmatprep.subr.mxu0 0.0
      %4610 = vmatpush1.msra.mxu0 0.0
      %4611 = vmatprep.subr.mxu0 0.0
      %4612 = vmatpush1.msra.mxu0 0.0
      %4613 = vmatprep.subr.mxu0 0.0
      %4614 = vmatpush1.msra.mxu0 %v1161
      %4615 = vmatprep.subr.mxu0 0.0
      %4616 = vmatpush1.msra.mxu0 %v1160
      %4617 = vmatprep.subr.mxu0 0.0
      %4618 = vmatpush1.msra.mxu0 %v1159
      %4619 = vmatprep.subr.mxu0 0.0
      %4620 = vmatpush1.msra.mxu0 %v1158
      %4621 = vmatprep.subr.mxu0 0.0
      %4622 = vmatpush2.msra.mxu0 0.0
      %4623 = vmatprep.subr.mxu0 0.0
      %4624 = vmatpush2.msra.mxu0 0.0
      %4625 = vmatprep.subr.mxu0 0.0
      %4626 = vmatpush2.msra.mxu0 0.0
      %4627 = vmatprep.subr.mxu0 0.0
      %4628 = vmatpush2.msra.mxu0 0.0
      %4629 = vmatprep.subr.mxu0 0.0
      %4630 = vmatpush2.msra.mxu0 0.0
      %4631 = vmatprep.subr.mxu0 0.0
      %4632 = vmatpush2.msra.mxu0 0.0
      %4633 = vmatprep.subr.mxu0 0.0
      %4634 = vmatpush2.msra.mxu0 0.0
      %4635 = vmatprep.subr.mxu0 0.0
      %4636 = vmatpush2.msra.mxu0 0.0
      %4637 = vmatprep.subr.mxu0 0.0
      %4638 = vmatpush2.msra.mxu0 0.0
      %4639 = vmatprep.subr.mxu0 0.0
      %4640 = vmatpush2.msra.mxu0 0.0
      %4641 = vmatprep.subr.mxu0 0.0
      %4642 = vmatpush2.msra.mxu0 0.0
      %4643 = vmatprep.subr.mxu0 0.0
      %4644 = vmatpush2.msra.mxu0 0.0
      %4645 = vmatprep.subr.mxu0 0.0
      %4646 = vmatpush2.msra.mxu0 0.0
      %4647 = vmatprep.subr.mxu0 0.0
      %4648 = vmatpush2.msra.mxu0 0.0
      %4649 = vmatprep.subr.mxu0 0.0
      %4650 = vmatpush2.msra.mxu0 0.0
      %4651 = vmatprep.subr.mxu0 0.0
      %4652 = vmatpush2.msra.mxu0 0.0
      %4653 = vmatprep.mubr.f32.mxu0 0.0
      %4654 = vmatmul.mubr.f32.gmra.mxu0 %v4120
      %v4655 = vpop.f32.mrf.mxu0
      %v4656 = vadd.f32 0.0, %v4655
      %v4657 = vpop.f32.mrf.mxu0
      %4658 = vdwg.mxu0
      %v4660 = vsel %vm1298, %v4586, 0
      %4662 = vmatprep.subr.mxu0 0.0
      %4663 = vmatpush1.msra.mxu0 0.0
      %4664 = vmatprep.subr.mxu0 0.0
      %4665 = vmatpush1.msra.mxu0 0.0
      %4666 = vmatprep.subr.mxu0 0.0
      %4667 = vmatpush1.msra.mxu0 0.0
      %4668 = vmatprep.subr.mxu0 0.0
      %4669 = vmatpush1.msra.mxu0 0.0
      %4670 = vmatprep.subr.mxu0 0.0
      %4671 = vmatpush1.msra.mxu0 0.0
      %4672 = vmatprep.subr.mxu0 0.0
      %4673 = vmatpush1.msra.mxu0 0.0
      %4674 = vmatprep.subr.mxu0 0.0
      %4675 = vmatpush1.msra.mxu0 0.0
      %4676 = vmatprep.subr.mxu0 0.0
      %4677 = vmatpush1.msra.mxu0 0.0
      %4678 = vmatprep.subr.mxu0 0.0
      %4679 = vmatpush1.msra.mxu0 0.0
      %4680 = vmatprep.subr.mxu0 0.0
      %4681 = vmatpush1.msra.mxu0 0.0
      %4682 = vmatprep.subr.mxu0 0.0
      %4683 = vmatpush1.msra.mxu0 0.0
      %4684 = vmatprep.subr.mxu0 0.0
      %4685 = vmatpush1.msra.mxu0 0.0
      %4686 = vmatprep.subr.mxu0 0.0
      %4687 = vmatpush1.msra.mxu0 %v1157
      %4688 = vmatprep.subr.mxu0 0.0
      %4689 = vmatpush1.msra.mxu0 %v1156
      %4690 = vmatprep.subr.mxu0 0.0
      %4691 = vmatpush1.msra.mxu0 %v1155
      %4692 = vmatprep.subr.mxu0 0.0
      %4693 = vmatpush1.msra.mxu0 %v1154
      %4694 = vmatprep.subr.mxu0 0.0
      %4695 = vmatpush2.msra.mxu0 0.0
      %4696 = vmatprep.subr.mxu0 0.0
      %4697 = vmatpush2.msra.mxu0 0.0
      %4698 = vmatprep.subr.mxu0 0.0
      %4699 = vmatpush2.msra.mxu0 0.0
      %4700 = vmatprep.subr.mxu0 0.0
      %4701 = vmatpush2.msra.mxu0 0.0
      %4702 = vmatprep.subr.mxu0 0.0
      %4703 = vmatpush2.msra.mxu0 0.0
      %4704 = vmatprep.subr.mxu0 0.0
      %4705 = vmatpush2.msra.mxu0 0.0
      %4706 = vmatprep.subr.mxu0 0.0
      %4707 = vmatpush2.msra.mxu0 0.0
      %4708 = vmatprep.subr.mxu0 0.0
      %4709 = vmatpush2.msra.mxu0 0.0
      %4710 = vmatprep.subr.mxu0 0.0
      %4711 = vmatpush2.msra.mxu0 0.0
      %4712 = vmatprep.subr.mxu0 0.0
      %4713 = vmatpush2.msra.mxu0 0.0
      %4714 = vmatprep.subr.mxu0 0.0
      %4715 = vmatpush2.msra.mxu0 0.0
      %4716 = vmatprep.subr.mxu0 0.0
      %4717 = vmatpush2.msra.mxu0 0.0
      %4718 = vmatprep.subr.mxu0 0.0
      %4719 = vmatpush2.msra.mxu0 0.0
      %4720 = vmatprep.subr.mxu0 0.0
      %4721 = vmatpush2.msra.mxu0 0.0
      %4722 = vmatprep.subr.mxu0 0.0
      %4723 = vmatpush2.msra.mxu0 0.0
      %4724 = vmatprep.subr.mxu0 0.0
      %4725 = vmatpush2.msra.mxu0 0.0
      %4726 = vmatprep.mubr.f32.mxu0 0.0
      %4727 = vmatmul.mubr.f32.gmra.mxu0 %v4660
      %v4728 = vpop.f32.mrf.mxu0
      %v4729 = vadd.f32 %v4656, %v4728
      %v4730 = vpop.f32.mrf.mxu0
      %4731 = vdwg.mxu0
      %v4732 = vadd.f32 %v4729, %v1449
      %v4733 = vsel %vm1452, %v4732, -inf
      %4734 = vmax.xlane.f32.xlu0 %v4733
      %v4735 = vpop.xlane.xlu0 %4734
      %v4736 = vsub.f32 %v4732, %v4735
      %v4737 = vmul.f32 %v4736, 1.442695
      %v4738 = vpow.pop %v4737
      %v4739 = vsel %vm1452, %v4738, 0.0
      %4740 = vadd.xlane.f32.xlu0 %v4739
      %v4741 = vpop.xlane.xlu0 %4740
      %v4742 = vrcp.pop %v4741
      %v4743 = vmul.f32 %v4738, %v4742
      %v4744 = vlaneseq
      %v4745 = vshrl.u32 %v4744, 7
      %v4746 = vsub.s32 0, %v4745
      %v4747 = vrot.slane %v4743, %v4746
      %4749 = vbcast.lane.b32.xlu0 %v4747, 256
      %v4750 = vpop.permute.xlu0 %4749
      %v4751 = vlaneseq
      %v4752 = vshrl.u32 %v4751, 7
      %v4753 = vsub.s32 1, %v4752
      %v4754 = vrot.slane %v4743, %v4753
      %4756 = vbcast.lane.b32.xlu0 %v4754, 256
      %v4757 = vpop.permute.xlu0 %4756
      %v4758 = vlaneseq
      %v4759 = vshrl.u32 %v4758, 7
      %v4760 = vsub.s32 2, %v4759
      %v4761 = vrot.slane %v4743, %v4760
      %4763 = vbcast.lane.b32.xlu0 %v4761, 256
      %v4764 = vpop.permute.xlu0 %4763
      %v4765 = vlaneseq
      %v4766 = vshrl.u32 %v4765, 7
      %v4767 = vsub.s32 3, %v4766
      %v4768 = vrot.slane %v4743, %v4767
      %4770 = vbcast.lane.b32.xlu0 %v4768, 256
      %v4771 = vpop.permute.xlu0 %4770
      %v4772 = vmul.f32 %v4750, %v1207
      %v4773 = vmul.f32 %v4757, %v1208
      %v4774 = vmul.f32 %v4764, %v1209
      %v4775 = vmul.f32 %v4771, %v1210
      %v4776 = vsel %vm1298, %v4772, 0.0
      %v4777 = vrot.slane %v4776, 4
      %v4778 = vadd.f32 %v4776, %v4777
      %v4779 = vrot.slane %v4778, 2
      %v4780 = vadd.f32 %v4778, %v4779
      %v4781 = vrot.slane %v4780, 1
      %v4782 = vadd.f32 %v4780, %v4781
      %v4783 = vsel %vm1298, %v4773, 0.0
      %v4784 = vrot.slane %v4783, 4
      %v4785 = vadd.f32 %v4783, %v4784
      %v4786 = vrot.slane %v4785, 2
      %v4787 = vadd.f32 %v4785, %v4786
      %v4788 = vrot.slane %v4787, 1
      %v4789 = vadd.f32 %v4787, %v4788
      %v4790 = vsel %vm1298, %v4774, 0.0
      %v4791 = vrot.slane %v4790, 4
      %v4792 = vadd.f32 %v4790, %v4791
      %v4793 = vrot.slane %v4792, 2
      %v4794 = vadd.f32 %v4792, %v4793
      %v4795 = vrot.slane %v4794, 1
      %v4796 = vadd.f32 %v4794, %v4795
      %v4797 = vsel %vm1298, %v4775, 0.0
      %v4798 = vrot.slane %v4797, 4
      %v4799 = vadd.f32 %v4797, %v4798
      %v4800 = vrot.slane %v4799, 2
      %v4801 = vadd.f32 %v4799, %v4800
      %v4802 = vrot.slane %v4801, 1
      %v4803 = vadd.f32 %v4801, %v4802
      %v4808 = vsel %vm1528, %v4789, %v4782
      %v4809 = vsel %vm1530, %v4796, %v4808
      %v4810 = vsel %vm1532, %v4803, %v4809
      %v4811 = vsel %vm1298, %v4810, 0
      %4813 = vmatprep.subr.mxu0 0.0
      %4814 = vmatpush1.msra.mxu0 0.0
      %4815 = vmatprep.subr.mxu0 0.0
      %4816 = vmatpush1.msra.mxu0 0.0
      %4817 = vmatprep.subr.mxu0 0.0
      %4818 = vmatpush1.msra.mxu0 0.0
      %4819 = vmatprep.subr.mxu0 0.0
      %4820 = vmatpush1.msra.mxu0 0.0
      %4821 = vmatprep.subr.mxu0 0.0
      %4822 = vmatpush1.msra.mxu0 0.0
      %4823 = vmatprep.subr.mxu0 0.0
      %4824 = vmatpush1.msra.mxu0 0.0
      %4825 = vmatprep.subr.mxu0 0.0
      %4826 = vmatpush1.msra.mxu0 0.0
      %4827 = vmatprep.subr.mxu0 0.0
      %4828 = vmatpush1.msra.mxu0 0.0
      %4829 = vmatprep.subr.mxu0 0.0
      %4830 = vmatpush1.msra.mxu0 0.0
      %4831 = vmatprep.subr.mxu0 0.0
      %4832 = vmatpush1.msra.mxu0 0.0
      %4833 = vmatprep.subr.mxu0 0.0
      %4834 = vmatpush1.msra.mxu0 0.0
      %4835 = vmatprep.subr.mxu0 0.0
      %4836 = vmatpush1.msra.mxu0 0.0
      %4837 = vmatprep.subr.mxu0 0.0
      %4838 = vmatpush1.msra.mxu0 %v1170
      %4839 = vmatprep.subr.mxu0 0.0
      %4840 = vmatpush1.msra.mxu0 %v1169
      %4841 = vmatprep.subr.mxu0 0.0
      %4842 = vmatpush1.msra.mxu0 %v1168
      %4843 = vmatprep.subr.mxu0 0.0
      %4844 = vmatpush1.msra.mxu0 %v1167
      %4845 = vmatprep.subr.mxu0 0.0
      %4846 = vmatpush2.msra.mxu0 0.0
      %4847 = vmatprep.subr.mxu0 0.0
      %4848 = vmatpush2.msra.mxu0 0.0
      %4849 = vmatprep.subr.mxu0 0.0
      %4850 = vmatpush2.msra.mxu0 0.0
      %4851 = vmatprep.subr.mxu0 0.0
      %4852 = vmatpush2.msra.mxu0 0.0
      %4853 = vmatprep.subr.mxu0 0.0
      %4854 = vmatpush2.msra.mxu0 0.0
      %4855 = vmatprep.subr.mxu0 0.0
      %4856 = vmatpush2.msra.mxu0 0.0
      %4857 = vmatprep.subr.mxu0 0.0
      %4858 = vmatpush2.msra.mxu0 0.0
      %4859 = vmatprep.subr.mxu0 0.0
      %4860 = vmatpush2.msra.mxu0 0.0
      %4861 = vmatprep.subr.mxu0 0.0
      %4862 = vmatpush2.msra.mxu0 0.0
      %4863 = vmatprep.subr.mxu0 0.0
      %4864 = vmatpush2.msra.mxu0 0.0
      %4865 = vmatprep.subr.mxu0 0.0
      %4866 = vmatpush2.msra.mxu0 0.0
      %4867 = vmatprep.subr.mxu0 0.0
      %4868 = vmatpush2.msra.mxu0 0.0
      %4869 = vmatprep.subr.mxu0 0.0
      %4870 = vmatpush2.msra.mxu0 0.0
      %4871 = vmatprep.subr.mxu0 0.0
      %4872 = vmatpush2.msra.mxu0 0.0
      %4873 = vmatprep.subr.mxu0 0.0
      %4874 = vmatpush2.msra.mxu0 0.0
      %4875 = vmatprep.subr.mxu0 0.0
      %4876 = vmatpush2.msra.mxu0 0.0
      %4877 = vmatprep.mubr.f32.mxu0 0.0
      %4878 = vmatmul.mubr.f32.gmra.mxu0 %v4811
      %v4879 = vpop.f32.mrf.mxu0
      %v4880 = vadd.f32 0.0, %v4879
      %v4881 = vpop.f32.mrf.mxu0
      %4882 = vdwg.mxu0
      %4883 = vmatprep.subr.mxu0 0.0
      %4884 = vmatpush1.msra.mxu0 0.0
      %4885 = vmatprep.subr.mxu0 0.0
      %4886 = vmatpush1.msra.mxu0 0.0
      %4887 = vmatprep.subr.mxu0 0.0
      %4888 = vmatpush1.msra.mxu0 0.0
      %4889 = vmatprep.subr.mxu0 0.0
      %4890 = vmatpush1.msra.mxu0 0.0
      %4891 = vmatprep.subr.mxu0 0.0
      %4892 = vmatpush1.msra.mxu0 0.0
      %4893 = vmatprep.subr.mxu0 0.0
      %4894 = vmatpush1.msra.mxu0 0.0
      %4895 = vmatprep.subr.mxu0 0.0
      %4896 = vmatpush1.msra.mxu0 0.0
      %4897 = vmatprep.subr.mxu0 0.0
      %4898 = vmatpush1.msra.mxu0 0.0
      %4899 = vmatprep.subr.mxu0 0.0
      %4900 = vmatpush1.msra.mxu0 0.0
      %4901 = vmatprep.subr.mxu0 0.0
      %4902 = vmatpush1.msra.mxu0 0.0
      %4903 = vmatprep.subr.mxu0 0.0
      %4904 = vmatpush1.msra.mxu0 0.0
      %4905 = vmatprep.subr.mxu0 0.0
      %4906 = vmatpush1.msra.mxu0 0.0
      %4907 = vmatprep.subr.mxu0 0.0
      %4908 = vmatpush1.msra.mxu0 %v1166
      %4909 = vmatprep.subr.mxu0 0.0
      %4910 = vmatpush1.msra.mxu0 %v1165
      %4911 = vmatprep.subr.mxu0 0.0
      %4912 = vmatpush1.msra.mxu0 %v1164
      %4913 = vmatprep.subr.mxu0 0.0
      %4914 = vmatpush1.msra.mxu0 %v1163
      %4915 = vmatprep.subr.mxu0 0.0
      %4916 = vmatpush2.msra.mxu0 0.0
      %4917 = vmatprep.subr.mxu0 0.0
      %4918 = vmatpush2.msra.mxu0 0.0
      %4919 = vmatprep.subr.mxu0 0.0
      %4920 = vmatpush2.msra.mxu0 0.0
      %4921 = vmatprep.subr.mxu0 0.0
      %4922 = vmatpush2.msra.mxu0 0.0
      %4923 = vmatprep.subr.mxu0 0.0
      %4924 = vmatpush2.msra.mxu0 0.0
      %4925 = vmatprep.subr.mxu0 0.0
      %4926 = vmatpush2.msra.mxu0 0.0
      %4927 = vmatprep.subr.mxu0 0.0
      %4928 = vmatpush2.msra.mxu0 0.0
      %4929 = vmatprep.subr.mxu0 0.0
      %4930 = vmatpush2.msra.mxu0 0.0
      %4931 = vmatprep.subr.mxu0 0.0
      %4932 = vmatpush2.msra.mxu0 0.0
      %4933 = vmatprep.subr.mxu0 0.0
      %4934 = vmatpush2.msra.mxu0 0.0
      %4935 = vmatprep.subr.mxu0 0.0
      %4936 = vmatpush2.msra.mxu0 0.0
      %4937 = vmatprep.subr.mxu0 0.0
      %4938 = vmatpush2.msra.mxu0 0.0
      %4939 = vmatprep.subr.mxu0 0.0
      %4940 = vmatpush2.msra.mxu0 0.0
      %4941 = vmatprep.subr.mxu0 0.0
      %4942 = vmatpush2.msra.mxu0 0.0
      %4943 = vmatprep.subr.mxu0 0.0
      %4944 = vmatpush2.msra.mxu0 0.0
      %4945 = vmatprep.subr.mxu0 0.0
      %4946 = vmatpush2.msra.mxu0 0.0
      %4947 = vmatprep.mubr.f32.mxu0 0.0
      %4948 = vmatmul.mubr.f32.gmra.mxu0 %v4660
      %v4949 = vpop.f32.mrf.mxu0
      %v4950 = vadd.f32 %v4880, %v4949
      %v4951 = vpop.f32.mrf.mxu0
      %4952 = vdwg.mxu0
      %v4953 = vadd.f32 %v4950, %v1680
      %4954 = vmatprep.subr.mxu0 0.0
      %4955 = vmatpush1.msra.mxu0 0.0
      %4956 = vmatprep.subr.mxu0 0.0
      %4957 = vmatpush1.msra.mxu0 0.0
      %4958 = vmatprep.subr.mxu0 0.0
      %4959 = vmatpush1.msra.mxu0 0.0
      %4960 = vmatprep.subr.mxu0 0.0
      %4961 = vmatpush1.msra.mxu0 0.0
      %4962 = vmatprep.subr.mxu0 0.0
      %4963 = vmatpush1.msra.mxu0 0.0
      %4964 = vmatprep.subr.mxu0 0.0
      %4965 = vmatpush1.msra.mxu0 0.0
      %4966 = vmatprep.subr.mxu0 0.0
      %4967 = vmatpush1.msra.mxu0 0.0
      %4968 = vmatprep.subr.mxu0 0.0
      %4969 = vmatpush1.msra.mxu0 0.0
      %4970 = vmatprep.subr.mxu0 0.0
      %4971 = vmatpush1.msra.mxu0 0.0
      %4972 = vmatprep.subr.mxu0 0.0
      %4973 = vmatpush1.msra.mxu0 0.0
      %4974 = vmatprep.subr.mxu0 0.0
      %4975 = vmatpush1.msra.mxu0 0.0
      %4976 = vmatprep.subr.mxu0 0.0
      %4977 = vmatpush1.msra.mxu0 0.0
      %4978 = vmatprep.subr.mxu0 0.0
      %4979 = vmatpush1.msra.mxu0 %v1176
      %4980 = vmatprep.subr.mxu0 0.0
      %4981 = vmatpush1.msra.mxu0 %v1175
      %4982 = vmatprep.subr.mxu0 0.0
      %4983 = vmatpush1.msra.mxu0 %v1174
      %4984 = vmatprep.subr.mxu0 0.0
      %4985 = vmatpush1.msra.mxu0 %v1173
      %4986 = vmatprep.subr.mxu0 0.0
      %4987 = vmatpush2.msra.mxu0 0.0
      %4988 = vmatprep.subr.mxu0 0.0
      %4989 = vmatpush2.msra.mxu0 0.0
      %4990 = vmatprep.subr.mxu0 0.0
      %4991 = vmatpush2.msra.mxu0 0.0
      %4992 = vmatprep.subr.mxu0 0.0
      %4993 = vmatpush2.msra.mxu0 0.0
      %4994 = vmatprep.subr.mxu0 0.0
      %4995 = vmatpush2.msra.mxu0 0.0
      %4996 = vmatprep.subr.mxu0 0.0
      %4997 = vmatpush2.msra.mxu0 0.0
      %4998 = vmatprep.subr.mxu0 0.0
      %4999 = vmatpush2.msra.mxu0 0.0
      %5000 = vmatprep.subr.mxu0 0.0
      %5001 = vmatpush2.msra.mxu0 0.0
      %5002 = vmatprep.subr.mxu0 0.0
      %5003 = vmatpush2.msra.mxu0 0.0
      %5004 = vmatprep.subr.mxu0 0.0
      %5005 = vmatpush2.msra.mxu0 0.0
      %5006 = vmatprep.subr.mxu0 0.0
      %5007 = vmatpush2.msra.mxu0 0.0
      %5008 = vmatprep.subr.mxu0 0.0
      %5009 = vmatpush2.msra.mxu0 0.0
      %5010 = vmatprep.subr.mxu0 0.0
      %5011 = vmatpush2.msra.mxu0 0.0
      %5012 = vmatprep.subr.mxu0 0.0
      %5013 = vmatpush2.msra.mxu0 0.0
      %5014 = vmatprep.subr.mxu0 0.0
      %5015 = vmatpush2.msra.mxu0 0.0
      %5016 = vmatprep.subr.mxu0 0.0
      %5017 = vmatpush2.msra.mxu0 0.0
      %5018 = vmatprep.mubr.f32.mxu0 0.0
      %5019 = vmatmul.mubr.f32.gmra.mxu0 %v4120
      %v5020 = vpop.f32.mrf.mxu0
      %v5021 = vadd.f32 0.0, %v5020
      %v5022 = vpop.f32.mrf.mxu0
      %5023 = vdwg.mxu0
      %v5025 = vsel %vm1224, %v4953, 0
      %5027 = vmatprep.subr.mxu0 0.0
      %5028 = vmatpush1.msra.mxu0 0.0
      %5029 = vmatprep.subr.mxu0 0.0
      %5030 = vmatpush1.msra.mxu0 0.0
      %5031 = vmatprep.subr.mxu0 0.0
      %5032 = vmatpush1.msra.mxu0 0.0
      %5033 = vmatprep.subr.mxu0 0.0
      %5034 = vmatpush1.msra.mxu0 0.0
      %5035 = vmatprep.subr.mxu0 0.0
      %5036 = vmatpush1.msra.mxu0 0.0
      %5037 = vmatprep.subr.mxu0 0.0
      %5038 = vmatpush1.msra.mxu0 0.0
      %5039 = vmatprep.subr.mxu0 0.0
      %5040 = vmatpush1.msra.mxu0 0.0
      %5041 = vmatprep.subr.mxu0 0.0
      %5042 = vmatpush1.msra.mxu0 0.0
      %5043 = vmatprep.subr.mxu0 0.0
      %5044 = vmatpush1.msra.mxu0 0.0
      %5045 = vmatprep.subr.mxu0 0.0
      %5046 = vmatpush1.msra.mxu0 0.0
      %5047 = vmatprep.subr.mxu0 0.0
      %5048 = vmatpush1.msra.mxu0 0.0
      %5049 = vmatprep.subr.mxu0 0.0
      %5050 = vmatpush1.msra.mxu0 0.0
      %5051 = vmatprep.subr.mxu0 0.0
      %5052 = vmatpush1.msra.mxu0 0.0
      %5053 = vmatprep.subr.mxu0 0.0
      %5054 = vmatpush1.msra.mxu0 0.0
      %5055 = vmatprep.subr.mxu0 0.0
      %5056 = vmatpush1.msra.mxu0 0.0
      %5057 = vmatprep.subr.mxu0 0.0
      %5058 = vmatpush1.msra.mxu0 %v1172
      %5059 = vmatprep.subr.mxu0 0.0
      %5060 = vmatpush2.msra.mxu0 0.0
      %5061 = vmatprep.subr.mxu0 0.0
      %5062 = vmatpush2.msra.mxu0 0.0
      %5063 = vmatprep.subr.mxu0 0.0
      %5064 = vmatpush2.msra.mxu0 0.0
      %5065 = vmatprep.subr.mxu0 0.0
      %5066 = vmatpush2.msra.mxu0 0.0
      %5067 = vmatprep.subr.mxu0 0.0
      %5068 = vmatpush2.msra.mxu0 0.0
      %5069 = vmatprep.subr.mxu0 0.0
      %5070 = vmatpush2.msra.mxu0 0.0
      %5071 = vmatprep.subr.mxu0 0.0
      %5072 = vmatpush2.msra.mxu0 0.0
      %5073 = vmatprep.subr.mxu0 0.0
      %5074 = vmatpush2.msra.mxu0 0.0
      %5075 = vmatprep.subr.mxu0 0.0
      %5076 = vmatpush2.msra.mxu0 0.0
      %5077 = vmatprep.subr.mxu0 0.0
      %5078 = vmatpush2.msra.mxu0 0.0
      %5079 = vmatprep.subr.mxu0 0.0
      %5080 = vmatpush2.msra.mxu0 0.0
      %5081 = vmatprep.subr.mxu0 0.0
      %5082 = vmatpush2.msra.mxu0 0.0
      %5083 = vmatprep.subr.mxu0 0.0
      %5084 = vmatpush2.msra.mxu0 0.0
      %5085 = vmatprep.subr.mxu0 0.0
      %5086 = vmatpush2.msra.mxu0 0.0
      %5087 = vmatprep.subr.mxu0 0.0
      %5088 = vmatpush2.msra.mxu0 0.0
      %5089 = vmatprep.subr.mxu0 0.0
      %5090 = vmatpush2.msra.mxu0 0.0
      %5091 = vmatprep.mubr.f32.mxu0 0.0
      %5092 = vmatmul.mubr.f32.gmra.mxu0 %v5025
      %v5093 = vpop.f32.mrf.mxu0
      %v5094 = vadd.f32 %v5021, %v5093
      %v5095 = vpop.f32.mrf.mxu0
      %5096 = vdwg.mxu0
      %v5097 = vadd.f32 %v5094, %v1830
      %v5098 = vxor.u32 %v5097, 2147483648
      %v5099 = vmul.f32 %v5098, 1.442695
      %v5100 = vpow.pop %v5099
      %v5101 = vadd.f32 %v5100, 1.0
      %v5102 = vrcp.pop %v5101
      %v5103 = vmul.f32 1.0, %v5102
      %v5104 = vtanh.pop %v5097
      %v5105 = vmul.f32 %v5103, %v4040
      %5107 = vrot.lane.b32.xlu0 %v5104, 64
      %v5108 = vpop.permute.xlu0 %5107
      %v5110 = vmul.f32 %v5103, %v5108
      %5112 = vrot.lane.b32.xlu0 %v5110, 32
      %v5113 = vpop.permute.xlu0 %5112
      %v5115 = vadd.f32 %v5105, %v5113
      %v5116 = vtanh.pop %v5115
      %5118 = vrot.lane.b32.xlu0 %v5116, 64
      %v5119 = vpop.permute.xlu0 %5118
      %v5121 = vmul.f32 %v5103, %v5119
      %5122 = vmatprep.subr.mxu0 0.0
      %5123 = vmatpush1.msra.mxu0 0.0
      %5124 = vmatprep.subr.mxu0 0.0
      %5125 = vmatpush1.msra.mxu0 0.0
      %5126 = vmatprep.subr.mxu0 0.0
      %5127 = vmatpush1.msra.mxu0 0.0
      %5128 = vmatprep.subr.mxu0 0.0
      %5129 = vmatpush1.msra.mxu0 0.0
      %5130 = vmatprep.subr.mxu0 0.0
      %5131 = vmatpush1.msra.mxu0 0.0
      %5132 = vmatprep.subr.mxu0 0.0
      %5133 = vmatpush1.msra.mxu0 0.0
      %5134 = vmatprep.subr.mxu0 0.0
      %5135 = vmatpush1.msra.mxu0 0.0
      %5136 = vmatprep.subr.mxu0 0.0
      %5137 = vmatpush1.msra.mxu0 0.0
      %5138 = vmatprep.subr.mxu0 0.0
      %5139 = vmatpush1.msra.mxu0 0.0
      %5140 = vmatprep.subr.mxu0 0.0
      %5141 = vmatpush1.msra.mxu0 0.0
      %5142 = vmatprep.subr.mxu0 0.0
      %5143 = vmatpush1.msra.mxu0 0.0
      %5144 = vmatprep.subr.mxu0 0.0
      %5145 = vmatpush1.msra.mxu0 0.0
      %5146 = vmatprep.subr.mxu0 0.0
      %5147 = vmatpush1.msra.mxu0 %v1185
      %5148 = vmatprep.subr.mxu0 0.0
      %5149 = vmatpush1.msra.mxu0 %v1184
      %5150 = vmatprep.subr.mxu0 0.0
      %5151 = vmatpush1.msra.mxu0 %v1183
      %5152 = vmatprep.subr.mxu0 0.0
      %5153 = vmatpush1.msra.mxu0 %v1182
      %5154 = vmatprep.subr.mxu0 0.0
      %5155 = vmatpush2.msra.mxu0 0.0
      %5156 = vmatprep.subr.mxu0 0.0
      %5157 = vmatpush2.msra.mxu0 0.0
      %5158 = vmatprep.subr.mxu0 0.0
      %5159 = vmatpush2.msra.mxu0 0.0
      %5160 = vmatprep.subr.mxu0 0.0
      %5161 = vmatpush2.msra.mxu0 0.0
      %5162 = vmatprep.subr.mxu0 0.0
      %5163 = vmatpush2.msra.mxu0 0.0
      %5164 = vmatprep.subr.mxu0 0.0
      %5165 = vmatpush2.msra.mxu0 0.0
      %5166 = vmatprep.subr.mxu0 0.0
      %5167 = vmatpush2.msra.mxu0 0.0
      %5168 = vmatprep.subr.mxu0 0.0
      %5169 = vmatpush2.msra.mxu0 0.0
      %5170 = vmatprep.subr.mxu0 0.0
      %5171 = vmatpush2.msra.mxu0 0.0
      %5172 = vmatprep.subr.mxu0 0.0
      %5173 = vmatpush2.msra.mxu0 0.0
      %5174 = vmatprep.subr.mxu0 0.0
      %5175 = vmatpush2.msra.mxu0 0.0
      %5176 = vmatprep.subr.mxu0 0.0
      %5177 = vmatpush2.msra.mxu0 0.0
      %5178 = vmatprep.subr.mxu0 0.0
      %5179 = vmatpush2.msra.mxu0 0.0
      %5180 = vmatprep.subr.mxu0 0.0
      %5181 = vmatpush2.msra.mxu0 0.0
      %5182 = vmatprep.subr.mxu0 0.0
      %5183 = vmatpush2.msra.mxu0 0.0
      %5184 = vmatprep.subr.mxu0 0.0
      %5185 = vmatpush2.msra.mxu0 0.0
      %5186 = vmatprep.mubr.f32.mxu0 0.0
      %5187 = vmatmul.mubr.f32.gmra.mxu0 %v4220
      %v5188 = vpop.f32.mrf.mxu0
      %v5189 = vadd.f32 0.0, %v5188
      %v5190 = vpop.f32.mrf.mxu0
      %5191 = vdwg.mxu0
      %5193 = vrot.lane.b32.xlu0 %v5121, 32
      %v5194 = vpop.permute.xlu0 %5193
      %v5195 = vsel %vm1298, %v5194, 0
      %5197 = vmatprep.subr.mxu0 0.0
      %5198 = vmatpush1.msra.mxu0 0.0
      %5199 = vmatprep.subr.mxu0 0.0
      %5200 = vmatpush1.msra.mxu0 0.0
      %5201 = vmatprep.subr.mxu0 0.0
      %5202 = vmatpush1.msra.mxu0 0.0
      %5203 = vmatprep.subr.mxu0 0.0
      %5204 = vmatpush1.msra.mxu0 0.0
      %5205 = vmatprep.subr.mxu0 0.0
      %5206 = vmatpush1.msra.mxu0 0.0
      %5207 = vmatprep.subr.mxu0 0.0
      %5208 = vmatpush1.msra.mxu0 0.0
      %5209 = vmatprep.subr.mxu0 0.0
      %5210 = vmatpush1.msra.mxu0 0.0
      %5211 = vmatprep.subr.mxu0 0.0
      %5212 = vmatpush1.msra.mxu0 0.0
      %5213 = vmatprep.subr.mxu0 0.0
      %5214 = vmatpush1.msra.mxu0 0.0
      %5215 = vmatprep.subr.mxu0 0.0
      %5216 = vmatpush1.msra.mxu0 0.0
      %5217 = vmatprep.subr.mxu0 0.0
      %5218 = vmatpush1.msra.mxu0 0.0
      %5219 = vmatprep.subr.mxu0 0.0
      %5220 = vmatpush1.msra.mxu0 0.0
      %5221 = vmatprep.subr.mxu0 0.0
      %5222 = vmatpush1.msra.mxu0 %v1181
      %5223 = vmatprep.subr.mxu0 0.0
      %5224 = vmatpush1.msra.mxu0 %v1180
      %5225 = vmatprep.subr.mxu0 0.0
      %5226 = vmatpush1.msra.mxu0 %v1179
      %5227 = vmatprep.subr.mxu0 0.0
      %5228 = vmatpush1.msra.mxu0 %v1178
      %5229 = vmatprep.subr.mxu0 0.0
      %5230 = vmatpush2.msra.mxu0 0.0
      %5231 = vmatprep.subr.mxu0 0.0
      %5232 = vmatpush2.msra.mxu0 0.0
      %5233 = vmatprep.subr.mxu0 0.0
      %5234 = vmatpush2.msra.mxu0 0.0
      %5235 = vmatprep.subr.mxu0 0.0
      %5236 = vmatpush2.msra.mxu0 0.0
      %5237 = vmatprep.subr.mxu0 0.0
      %5238 = vmatpush2.msra.mxu0 0.0
      %5239 = vmatprep.subr.mxu0 0.0
      %5240 = vmatpush2.msra.mxu0 0.0
      %5241 = vmatprep.subr.mxu0 0.0
      %5242 = vmatpush2.msra.mxu0 0.0
      %5243 = vmatprep.subr.mxu0 0.0
      %5244 = vmatpush2.msra.mxu0 0.0
      %5245 = vmatprep.subr.mxu0 0.0
      %5246 = vmatpush2.msra.mxu0 0.0
      %5247 = vmatprep.subr.mxu0 0.0
      %5248 = vmatpush2.msra.mxu0 0.0
      %5249 = vmatprep.subr.mxu0 0.0
      %5250 = vmatpush2.msra.mxu0 0.0
      %5251 = vmatprep.subr.mxu0 0.0
      %5252 = vmatpush2.msra.mxu0 0.0
      %5253 = vmatprep.subr.mxu0 0.0
      %5254 = vmatpush2.msra.mxu0 0.0
      %5255 = vmatprep.subr.mxu0 0.0
      %5256 = vmatpush2.msra.mxu0 0.0
      %5257 = vmatprep.subr.mxu0 0.0
      %5258 = vmatpush2.msra.mxu0 0.0
      %5259 = vmatprep.subr.mxu0 0.0
      %5260 = vmatpush2.msra.mxu0 0.0
      %5261 = vmatprep.mubr.f32.mxu0 0.0
      %5262 = vmatmul.mubr.f32.gmra.mxu0 %v5195
      %v5263 = vpop.f32.mrf.mxu0
      %v5264 = vadd.f32 %v5189, %v5263
      %v5265 = vpop.f32.mrf.mxu0
      %5266 = vdwg.mxu0
      %v5267 = vadd.f32 %v5264, %v2013
      %v5268 = vxor.u32 %v5267, 2147483648
      %v5269 = vmul.f32 %v5268, 1.442695
      %v5270 = vpow.pop %v5269
      %v5271 = vadd.f32 %v5270, 1.0
      %v5272 = vrcp.pop %v5271
      %v5273 = vmul.f32 1.0, %v5272
      %v5274 = vtanh.pop %v5267
      %v5275 = vmul.f32 %v5273, %v4210
      %5277 = vrot.lane.b32.xlu0 %v5274, 64
      %v5278 = vpop.permute.xlu0 %5277
      %v5280 = vmul.f32 %v5273, %v5278
      %5282 = vrot.lane.b32.xlu0 %v5280, 32
      %v5283 = vpop.permute.xlu0 %5282
      %v5285 = vadd.f32 %v5275, %v5283
      %v5286 = vtanh.pop %v5285
      %5288 = vrot.lane.b32.xlu0 %v5286, 64
      %v5289 = vpop.permute.xlu0 %5288
      %v5291 = vmul.f32 %v5273, %v5289
      %5293 = vrot.lane.b32.xlu0 %v5291, 32
      %v5294 = vpop.permute.xlu0 %5293
      %v5295 = vsel %vm1298, %v5294, 0
      %5297 = vmatprep.subr.mxu0 0.0
      %5298 = vmatpush1.msra.mxu0 0.0
      %5299 = vmatprep.subr.mxu0 0.0
      %5300 = vmatpush1.msra.mxu0 0.0
      %5301 = vmatprep.subr.mxu0 0.0
      %5302 = vmatpush1.msra.mxu0 0.0
      %5303 = vmatprep.subr.mxu0 0.0
      %5304 = vmatpush1.msra.mxu0 0.0
      %5305 = vmatprep.subr.mxu0 0.0
      %5306 = vmatpush1.msra.mxu0 0.0
      %5307 = vmatprep.subr.mxu0 0.0
      %5308 = vmatpush1.msra.mxu0 0.0
      %5309 = vmatprep.subr.mxu0 0.0
      %5310 = vmatpush1.msra.mxu0 0.0
      %5311 = vmatprep.subr.mxu0 0.0
      %5312 = vmatpush1.msra.mxu0 0.0
      %5313 = vmatprep.subr.mxu0 0.0
      %5314 = vmatpush1.msra.mxu0 0.0
      %5315 = vmatprep.subr.mxu0 0.0
      %5316 = vmatpush1.msra.mxu0 0.0
      %5317 = vmatprep.subr.mxu0 0.0
      %5318 = vmatpush1.msra.mxu0 0.0
      %5319 = vmatprep.subr.mxu0 0.0
      %5320 = vmatpush1.msra.mxu0 0.0
      %5321 = vmatprep.subr.mxu0 0.0
      %5322 = vmatpush1.msra.mxu0 %v1190
      %5323 = vmatprep.subr.mxu0 0.0
      %5324 = vmatpush1.msra.mxu0 %v1189
      %5325 = vmatprep.subr.mxu0 0.0
      %5326 = vmatpush1.msra.mxu0 %v1188
      %5327 = vmatprep.subr.mxu0 0.0
      %5328 = vmatpush1.msra.mxu0 %v1187
      %5329 = vmatprep.subr.mxu0 0.0
      %5330 = vmatpush2.msra.mxu0 0.0
      %5331 = vmatprep.subr.mxu0 0.0
      %5332 = vmatpush2.msra.mxu0 0.0
      %5333 = vmatprep.subr.mxu0 0.0
      %5334 = vmatpush2.msra.mxu0 0.0
      %5335 = vmatprep.subr.mxu0 0.0
      %5336 = vmatpush2.msra.mxu0 0.0
      %5337 = vmatprep.subr.mxu0 0.0
      %5338 = vmatpush2.msra.mxu0 0.0
      %5339 = vmatprep.subr.mxu0 0.0
      %5340 = vmatpush2.msra.mxu0 0.0
      %5341 = vmatprep.subr.mxu0 0.0
      %5342 = vmatpush2.msra.mxu0 0.0
      %5343 = vmatprep.subr.mxu0 0.0
      %5344 = vmatpush2.msra.mxu0 0.0
      %5345 = vmatprep.subr.mxu0 0.0
      %5346 = vmatpush2.msra.mxu0 0.0
      %5347 = vmatprep.subr.mxu0 0.0
      %5348 = vmatpush2.msra.mxu0 0.0
      %5349 = vmatprep.subr.mxu0 0.0
      %5350 = vmatpush2.msra.mxu0 0.0
      %5351 = vmatprep.subr.mxu0 0.0
      %5352 = vmatpush2.msra.mxu0 0.0
      %5353 = vmatprep.subr.mxu0 0.0
      %5354 = vmatpush2.msra.mxu0 0.0
      %5355 = vmatprep.subr.mxu0 0.0
      %5356 = vmatpush2.msra.mxu0 0.0
      %5357 = vmatprep.subr.mxu0 0.0
      %5358 = vmatpush2.msra.mxu0 0.0
      %5359 = vmatprep.subr.mxu0 0.0
      %5360 = vmatpush2.msra.mxu0 0.0
      %5361 = vmatprep.mubr.f32.mxu0 0.0
      %5362 = vmatmul.mubr.f32.gmra.mxu0 %v5295
      %v5363 = vpop.f32.mrf.mxu0
      %v5364 = vadd.f32 %v2048, %v5363
      %v5365 = vpop.f32.mrf.mxu0
      %5366 = vdwg.mxu0
      %v5367 = vmax.f32 %v5364, 0.0
      %v5369 = vsel %vm1298, %v5367, 0
      %5371 = vmatprep.subr.mxu0 0.0
      %5372 = vmatpush1.msra.mxu0 0.0
      %5373 = vmatprep.subr.mxu0 0.0
      %5374 = vmatpush1.msra.mxu0 0.0
      %5375 = vmatprep.subr.mxu0 0.0
      %5376 = vmatpush1.msra.mxu0 0.0
      %5377 = vmatprep.subr.mxu0 0.0
      %5378 = vmatpush1.msra.mxu0 0.0
      %5379 = vmatprep.subr.mxu0 0.0
      %5380 = vmatpush1.msra.mxu0 0.0
      %5381 = vmatprep.subr.mxu0 0.0
      %5382 = vmatpush1.msra.mxu0 0.0
      %5383 = vmatprep.subr.mxu0 0.0
      %5384 = vmatpush1.msra.mxu0 0.0
      %5385 = vmatprep.subr.mxu0 0.0
      %5386 = vmatpush1.msra.mxu0 0.0
      %5387 = vmatprep.subr.mxu0 0.0
      %5388 = vmatpush1.msra.mxu0 0.0
      %5389 = vmatprep.subr.mxu0 0.0
      %5390 = vmatpush1.msra.mxu0 0.0
      %5391 = vmatprep.subr.mxu0 0.0
      %5392 = vmatpush1.msra.mxu0 0.0
      %5393 = vmatprep.subr.mxu0 0.0
      %5394 = vmatpush1.msra.mxu0 0.0
      %5395 = vmatprep.subr.mxu0 0.0
      %5396 = vmatpush1.msra.mxu0 %v1195
      %5397 = vmatprep.subr.mxu0 0.0
      %5398 = vmatpush1.msra.mxu0 %v1194
      %5399 = vmatprep.subr.mxu0 0.0
      %5400 = vmatpush1.msra.mxu0 %v1193
      %5401 = vmatprep.subr.mxu0 0.0
      %5402 = vmatpush1.msra.mxu0 %v1192
      %5403 = vmatprep.subr.mxu0 0.0
      %5404 = vmatpush2.msra.mxu0 0.0
      %5405 = vmatprep.subr.mxu0 0.0
      %5406 = vmatpush2.msra.mxu0 0.0
      %5407 = vmatprep.subr.mxu0 0.0
      %5408 = vmatpush2.msra.mxu0 0.0
      %5409 = vmatprep.subr.mxu0 0.0
      %5410 = vmatpush2.msra.mxu0 0.0
      %5411 = vmatprep.subr.mxu0 0.0
      %5412 = vmatpush2.msra.mxu0 0.0
      %5413 = vmatprep.subr.mxu0 0.0
      %5414 = vmatpush2.msra.mxu0 0.0
      %5415 = vmatprep.subr.mxu0 0.0
      %5416 = vmatpush2.msra.mxu0 0.0
      %5417 = vmatprep.subr.mxu0 0.0
      %5418 = vmatpush2.msra.mxu0 0.0
      %5419 = vmatprep.subr.mxu0 0.0
      %5420 = vmatpush2.msra.mxu0 0.0
      %5421 = vmatprep.subr.mxu0 0.0
      %5422 = vmatpush2.msra.mxu0 0.0
      %5423 = vmatprep.subr.mxu0 0.0
      %5424 = vmatpush2.msra.mxu0 0.0
      %5425 = vmatprep.subr.mxu0 0.0
      %5426 = vmatpush2.msra.mxu0 0.0
      %5427 = vmatprep.subr.mxu0 0.0
      %5428 = vmatpush2.msra.mxu0 0.0
      %5429 = vmatprep.subr.mxu0 0.0
      %5430 = vmatpush2.msra.mxu0 0.0
      %5431 = vmatprep.subr.mxu0 0.0
      %5432 = vmatpush2.msra.mxu0 0.0
      %5433 = vmatprep.subr.mxu0 0.0
      %5434 = vmatpush2.msra.mxu0 0.0
      %5435 = vmatprep.mubr.f32.mxu0 0.0
      %5436 = vmatmul.mubr.f32.gmra.mxu0 %v5369
      %v5437 = vpop.f32.mrf.mxu0
      %v5438 = vadd.f32 %v2130, %v5437
      %v5439 = vpop.f32.mrf.mxu0
      %5440 = vdwg.mxu0
      %v5441 = vmax.f32 %v5438, 0.0
      %v5443 = vsel %vm1298, %v5441, 0
      %5445 = vmatprep.subr.mxu0 0.0
      %5446 = vmatpush1.msra.mxu0 0.0
      %5447 = vmatprep.subr.mxu0 0.0
      %5448 = vmatpush1.msra.mxu0 0.0
      %5449 = vmatprep.subr.mxu0 0.0
      %5450 = vmatpush1.msra.mxu0 0.0
      %5451 = vmatprep.subr.mxu0 0.0
      %5452 = vmatpush1.msra.mxu0 0.0
      %5453 = vmatprep.subr.mxu0 0.0
      %5454 = vmatpush1.msra.mxu0 0.0
      %5455 = vmatprep.subr.mxu0 0.0
      %5456 = vmatpush1.msra.mxu0 0.0
      %5457 = vmatprep.subr.mxu0 0.0
      %5458 = vmatpush1.msra.mxu0 0.0
      %5459 = vmatprep.subr.mxu0 0.0
      %5460 = vmatpush1.msra.mxu0 0.0
      %5461 = vmatprep.subr.mxu0 0.0
      %5462 = vmatpush1.msra.mxu0 0.0
      %5463 = vmatprep.subr.mxu0 0.0
      %5464 = vmatpush1.msra.mxu0 0.0
      %5465 = vmatprep.subr.mxu0 0.0
      %5466 = vmatpush1.msra.mxu0 0.0
      %5467 = vmatprep.subr.mxu0 0.0
      %5468 = vmatpush1.msra.mxu0 0.0
      %5469 = vmatprep.subr.mxu0 0.0
      %5470 = vmatpush1.msra.mxu0 %v1200
      %5471 = vmatprep.subr.mxu0 0.0
      %5472 = vmatpush1.msra.mxu0 %v1199
      %5473 = vmatprep.subr.mxu0 0.0
      %5474 = vmatpush1.msra.mxu0 %v1198
      %5475 = vmatprep.subr.mxu0 0.0
      %5476 = vmatpush1.msra.mxu0 %v1197
      %5477 = vmatprep.subr.mxu0 0.0
      %5478 = vmatpush2.msra.mxu0 0.0
      %5479 = vmatprep.subr.mxu0 0.0
      %5480 = vmatpush2.msra.mxu0 0.0
      %5481 = vmatprep.subr.mxu0 0.0
      %5482 = vmatpush2.msra.mxu0 0.0
      %5483 = vmatprep.subr.mxu0 0.0
      %5484 = vmatpush2.msra.mxu0 0.0
      %5485 = vmatprep.subr.mxu0 0.0
      %5486 = vmatpush2.msra.mxu0 0.0
      %5487 = vmatprep.subr.mxu0 0.0
      %5488 = vmatpush2.msra.mxu0 0.0
      %5489 = vmatprep.subr.mxu0 0.0
      %5490 = vmatpush2.msra.mxu0 0.0
      %5491 = vmatprep.subr.mxu0 0.0
      %5492 = vmatpush2.msra.mxu0 0.0
      %5493 = vmatprep.subr.mxu0 0.0
      %5494 = vmatpush2.msra.mxu0 0.0
      %5495 = vmatprep.subr.mxu0 0.0
      %5496 = vmatpush2.msra.mxu0 0.0
      %5497 = vmatprep.subr.mxu0 0.0
      %5498 = vmatpush2.msra.mxu0 0.0
      %5499 = vmatprep.subr.mxu0 0.0
      %5500 = vmatpush2.msra.mxu0 0.0
      %5501 = vmatprep.subr.mxu0 0.0
      %5502 = vmatpush2.msra.mxu0 0.0
      %5503 = vmatprep.subr.mxu0 0.0
      %5504 = vmatpush2.msra.mxu0 0.0
      %5505 = vmatprep.subr.mxu0 0.0
      %5506 = vmatpush2.msra.mxu0 0.0
      %5507 = vmatprep.subr.mxu0 0.0
      %5508 = vmatpush2.msra.mxu0 0.0
      %5509 = vmatprep.mubr.f32.mxu0 0.0
      %5510 = vmatmul.mubr.f32.gmra.mxu0 %v5443
      %v5511 = vpop.f32.mrf.mxu0
      %v5512 = vadd.f32 %v2210, %v5511
      %v5513 = vpop.f32.mrf.mxu0
      %5514 = vdwg.mxu0
      %v5515 = vmax.f32 %v5512, 0.0
      %v5517 = vsel %vm1298, %v5515, 0
      %5519 = vmatprep.subr.mxu0 0.0
      %5520 = vmatpush1.msra.mxu0 0.0
      %5521 = vmatprep.subr.mxu0 0.0
      %5522 = vmatpush1.msra.mxu0 0.0
      %5523 = vmatprep.subr.mxu0 0.0
      %5524 = vmatpush1.msra.mxu0 0.0
      %5525 = vmatprep.subr.mxu0 0.0
      %5526 = vmatpush1.msra.mxu0 0.0
      %5527 = vmatprep.subr.mxu0 0.0
      %5528 = vmatpush1.msra.mxu0 0.0
      %5529 = vmatprep.subr.mxu0 0.0
      %5530 = vmatpush1.msra.mxu0 0.0
      %5531 = vmatprep.subr.mxu0 0.0
      %5532 = vmatpush1.msra.mxu0 0.0
      %5533 = vmatprep.subr.mxu0 0.0
      %5534 = vmatpush1.msra.mxu0 0.0
      %5535 = vmatprep.subr.mxu0 0.0
      %5536 = vmatpush1.msra.mxu0 0.0
      %5537 = vmatprep.subr.mxu0 0.0
      %5538 = vmatpush1.msra.mxu0 0.0
      %5539 = vmatprep.subr.mxu0 0.0
      %5540 = vmatpush1.msra.mxu0 0.0
      %5541 = vmatprep.subr.mxu0 0.0
      %5542 = vmatpush1.msra.mxu0 0.0
      %5543 = vmatprep.subr.mxu0 0.0
      %5544 = vmatpush1.msra.mxu0 %v1205
      %5545 = vmatprep.subr.mxu0 0.0
      %5546 = vmatpush1.msra.mxu0 %v1204
      %5547 = vmatprep.subr.mxu0 0.0
      %5548 = vmatpush1.msra.mxu0 %v1203
      %5549 = vmatprep.subr.mxu0 0.0
      %5550 = vmatpush1.msra.mxu0 %v1202
      %5551 = vmatprep.subr.mxu0 0.0
      %5552 = vmatpush2.msra.mxu0 0.0
      %5553 = vmatprep.subr.mxu0 0.0
      %5554 = vmatpush2.msra.mxu0 0.0
      %5555 = vmatprep.subr.mxu0 0.0
      %5556 = vmatpush2.msra.mxu0 0.0
      %5557 = vmatprep.subr.mxu0 0.0
      %5558 = vmatpush2.msra.mxu0 0.0
      %5559 = vmatprep.subr.mxu0 0.0
      %5560 = vmatpush2.msra.mxu0 0.0
      %5561 = vmatprep.subr.mxu0 0.0
      %5562 = vmatpush2.msra.mxu0 0.0
      %5563 = vmatprep.subr.mxu0 0.0
      %5564 = vmatpush2.msra.mxu0 0.0
      %5565 = vmatprep.subr.mxu0 0.0
      %5566 = vmatpush2.msra.mxu0 0.0
      %5567 = vmatprep.subr.mxu0 0.0
      %5568 = vmatpush2.msra.mxu0 0.0
      %5569 = vmatprep.subr.mxu0 0.0
      %5570 = vmatpush2.msra.mxu0 0.0
      %5571 = vmatprep.subr.mxu0 0.0
      %5572 = vmatpush2.msra.mxu0 0.0
      %5573 = vmatprep.subr.mxu0 0.0
      %5574 = vmatpush2.msra.mxu0 0.0
      %5575 = vmatprep.subr.mxu0 0.0
      %5576 = vmatpush2.msra.mxu0 0.0
      %5577 = vmatprep.subr.mxu0 0.0
      %5578 = vmatpush2.msra.mxu0 0.0
      %5579 = vmatprep.subr.mxu0 0.0
      %5580 = vmatpush2.msra.mxu0 0.0
      %5581 = vmatprep.subr.mxu0 0.0
      %5582 = vmatpush2.msra.mxu0 0.0
      %5583 = vmatprep.mubr.f32.mxu0 0.0
      %5584 = vmatmul.mubr.f32.gmra.mxu0 %v5517
      %v5585 = vpop.f32.mrf.mxu0
      %v5586 = vadd.f32 %v2290, %v5585
      %v5587 = vpop.f32.mrf.mxu0
      %5588 = vdwg.mxu0
      %s5589 = scalar_lea.vmem %s1151, 12
      %5590 = vst.msk [vmem:[%s5589] sm:$0xf] %vm1452, %v5586
      %v5592 = vsel %vm1224, %v5586, 0
      %5594 = vmatprep.subr.mxu0 0.0
      %5595 = vmatpush1.msra.mxu0 0.0
      %5596 = vmatprep.subr.mxu0 0.0
      %5597 = vmatpush1.msra.mxu0 0.0
      %5598 = vmatprep.subr.mxu0 0.0
      %5599 = vmatpush1.msra.mxu0 0.0
      %5600 = vmatprep.subr.mxu0 0.0
      %5601 = vmatpush1.msra.mxu0 0.0
      %5602 = vmatprep.subr.mxu0 0.0
      %5603 = vmatpush1.msra.mxu0 0.0
      %5604 = vmatprep.subr.mxu0 0.0
      %5605 = vmatpush1.msra.mxu0 0.0
      %5606 = vmatprep.subr.mxu0 0.0
      %5607 = vmatpush1.msra.mxu0 0.0
      %5608 = vmatprep.subr.mxu0 0.0
      %5609 = vmatpush1.msra.mxu0 0.0
      %5610 = vmatprep.subr.mxu0 0.0
      %5611 = vmatpush1.msra.mxu0 0.0
      %5612 = vmatprep.subr.mxu0 0.0
      %5613 = vmatpush1.msra.mxu0 0.0
      %5614 = vmatprep.subr.mxu0 0.0
      %5615 = vmatpush1.msra.mxu0 0.0
      %5616 = vmatprep.subr.mxu0 0.0
      %5617 = vmatpush1.msra.mxu0 0.0
      %5618 = vmatprep.subr.mxu0 0.0
      %5619 = vmatpush1.msra.mxu0 0.0
      %5620 = vmatprep.subr.mxu0 0.0
      %5621 = vmatpush1.msra.mxu0 0.0
      %5622 = vmatprep.subr.mxu0 0.0
      %5623 = vmatpush1.msra.mxu0 0.0
      %5624 = vmatprep.subr.mxu0 0.0
      %5625 = vmatpush1.msra.mxu0 %v1152
      %5626 = vmatprep.subr.mxu0 0.0
      %5627 = vmatpush2.msra.mxu0 0.0
      %5628 = vmatprep.subr.mxu0 0.0
      %5629 = vmatpush2.msra.mxu0 0.0
      %5630 = vmatprep.subr.mxu0 0.0
      %5631 = vmatpush2.msra.mxu0 0.0
      %5632 = vmatprep.subr.mxu0 0.0
      %5633 = vmatpush2.msra.mxu0 0.0
      %5634 = vmatprep.subr.mxu0 0.0
      %5635 = vmatpush2.msra.mxu0 0.0
      %5636 = vmatprep.subr.mxu0 0.0
      %5637 = vmatpush2.msra.mxu0 0.0
      %5638 = vmatprep.subr.mxu0 0.0
      %5639 = vmatpush2.msra.mxu0 0.0
      %5640 = vmatprep.subr.mxu0 0.0
      %5641 = vmatpush2.msra.mxu0 0.0
      %5642 = vmatprep.subr.mxu0 0.0
      %5643 = vmatpush2.msra.mxu0 0.0
      %5644 = vmatprep.subr.mxu0 0.0
      %5645 = vmatpush2.msra.mxu0 0.0
      %5646 = vmatprep.subr.mxu0 0.0
      %5647 = vmatpush2.msra.mxu0 0.0
      %5648 = vmatprep.subr.mxu0 0.0
      %5649 = vmatpush2.msra.mxu0 0.0
      %5650 = vmatprep.subr.mxu0 0.0
      %5651 = vmatpush2.msra.mxu0 0.0
      %5652 = vmatprep.subr.mxu0 0.0
      %5653 = vmatpush2.msra.mxu0 0.0
      %5654 = vmatprep.subr.mxu0 0.0
      %5655 = vmatpush2.msra.mxu0 0.0
      %5656 = vmatprep.subr.mxu0 0.0
      %5657 = vmatpush2.msra.mxu0 0.0
      %5658 = vmatprep.mubr.f32.mxu0 0.0
      %5659 = vmatmul.mubr.f32.gmra.mxu0 %v5592
      %v5660 = vpop.f32.mrf.mxu0
      %v5661 = vadd.f32 %v1222, %v5660
      %v5662 = vpop.f32.mrf.mxu0
      %5663 = vdwg.mxu0
      %5664 = vmatprep.subr.mxu0 0.0
      %5665 = vmatpush1.msra.mxu0 0.0
      %5666 = vmatprep.subr.mxu0 0.0
      %5667 = vmatpush1.msra.mxu0 0.0
      %5668 = vmatprep.subr.mxu0 0.0
      %5669 = vmatpush1.msra.mxu0 0.0
      %5670 = vmatprep.subr.mxu0 0.0
      %5671 = vmatpush1.msra.mxu0 0.0
      %5672 = vmatprep.subr.mxu0 0.0
      %5673 = vmatpush1.msra.mxu0 0.0
      %5674 = vmatprep.subr.mxu0 0.0
      %5675 = vmatpush1.msra.mxu0 0.0
      %5676 = vmatprep.subr.mxu0 0.0
      %5677 = vmatpush1.msra.mxu0 0.0
      %5678 = vmatprep.subr.mxu0 0.0
      %5679 = vmatpush1.msra.mxu0 0.0
      %5680 = vmatprep.subr.mxu0 0.0
      %5681 = vmatpush1.msra.mxu0 0.0
      %5682 = vmatprep.subr.mxu0 0.0
      %5683 = vmatpush1.msra.mxu0 0.0
      %5684 = vmatprep.subr.mxu0 0.0
      %5685 = vmatpush1.msra.mxu0 0.0
      %5686 = vmatprep.subr.mxu0 0.0
      %5687 = vmatpush1.msra.mxu0 0.0
      %5688 = vmatprep.subr.mxu0 0.0
      %5689 = vmatpush1.msra.mxu0 %v1161
      %5690 = vmatprep.subr.mxu0 0.0
      %5691 = vmatpush1.msra.mxu0 %v1160
      %5692 = vmatprep.subr.mxu0 0.0
      %5693 = vmatpush1.msra.mxu0 %v1159
      %5694 = vmatprep.subr.mxu0 0.0
      %5695 = vmatpush1.msra.mxu0 %v1158
      %5696 = vmatprep.subr.mxu0 0.0
      %5697 = vmatpush2.msra.mxu0 0.0
      %5698 = vmatprep.subr.mxu0 0.0
      %5699 = vmatpush2.msra.mxu0 0.0
      %5700 = vmatprep.subr.mxu0 0.0
      %5701 = vmatpush2.msra.mxu0 0.0
      %5702 = vmatprep.subr.mxu0 0.0
      %5703 = vmatpush2.msra.mxu0 0.0
      %5704 = vmatprep.subr.mxu0 0.0
      %5705 = vmatpush2.msra.mxu0 0.0
      %5706 = vmatprep.subr.mxu0 0.0
      %5707 = vmatpush2.msra.mxu0 0.0
      %5708 = vmatprep.subr.mxu0 0.0
      %5709 = vmatpush2.msra.mxu0 0.0
      %5710 = vmatprep.subr.mxu0 0.0
      %5711 = vmatpush2.msra.mxu0 0.0
      %5712 = vmatprep.subr.mxu0 0.0
      %5713 = vmatpush2.msra.mxu0 0.0
      %5714 = vmatprep.subr.mxu0 0.0
      %5715 = vmatpush2.msra.mxu0 0.0
      %5716 = vmatprep.subr.mxu0 0.0
      %5717 = vmatpush2.msra.mxu0 0.0
      %5718 = vmatprep.subr.mxu0 0.0
      %5719 = vmatpush2.msra.mxu0 0.0
      %5720 = vmatprep.subr.mxu0 0.0
      %5721 = vmatpush2.msra.mxu0 0.0
      %5722 = vmatprep.subr.mxu0 0.0
      %5723 = vmatpush2.msra.mxu0 0.0
      %5724 = vmatprep.subr.mxu0 0.0
      %5725 = vmatpush2.msra.mxu0 0.0
      %5726 = vmatprep.subr.mxu0 0.0
      %5727 = vmatpush2.msra.mxu0 0.0
      %5728 = vmatprep.mubr.f32.mxu0 0.0
      %5729 = vmatmul.mubr.f32.gmra.mxu0 %v5195
      %v5730 = vpop.f32.mrf.mxu0
      %v5731 = vadd.f32 0.0, %v5730
      %v5732 = vpop.f32.mrf.mxu0
      %5733 = vdwg.mxu0
      %v5735 = vsel %vm1298, %v5661, 0
      %5737 = vmatprep.subr.mxu0 0.0
      %5738 = vmatpush1.msra.mxu0 0.0
      %5739 = vmatprep.subr.mxu0 0.0
      %5740 = vmatpush1.msra.mxu0 0.0
      %5741 = vmatprep.subr.mxu0 0.0
      %5742 = vmatpush1.msra.mxu0 0.0
      %5743 = vmatprep.subr.mxu0 0.0
      %5744 = vmatpush1.msra.mxu0 0.0
      %5745 = vmatprep.subr.mxu0 0.0
      %5746 = vmatpush1.msra.mxu0 0.0
      %5747 = vmatprep.subr.mxu0 0.0
      %5748 = vmatpush1.msra.mxu0 0.0
      %5749 = vmatprep.subr.mxu0 0.0
      %5750 = vmatpush1.msra.mxu0 0.0
      %5751 = vmatprep.subr.mxu0 0.0
      %5752 = vmatpush1.msra.mxu0 0.0
      %5753 = vmatprep.subr.mxu0 0.0
      %5754 = vmatpush1.msra.mxu0 0.0
      %5755 = vmatprep.subr.mxu0 0.0
      %5756 = vmatpush1.msra.mxu0 0.0
      %5757 = vmatprep.subr.mxu0 0.0
      %5758 = vmatpush1.msra.mxu0 0.0
      %5759 = vmatprep.subr.mxu0 0.0
      %5760 = vmatpush1.msra.mxu0 0.0
      %5761 = vmatprep.subr.mxu0 0.0
      %5762 = vmatpush1.msra.mxu0 %v1157
      %5763 = vmatprep.subr.mxu0 0.0
      %5764 = vmatpush1.msra.mxu0 %v1156
      %5765 = vmatprep.subr.mxu0 0.0
      %5766 = vmatpush1.msra.mxu0 %v1155
      %5767 = vmatprep.subr.mxu0 0.0
      %5768 = vmatpush1.msra.mxu0 %v1154
      %5769 = vmatprep.subr.mxu0 0.0
      %5770 = vmatpush2.msra.mxu0 0.0
      %5771 = vmatprep.subr.mxu0 0.0
      %5772 = vmatpush2.msra.mxu0 0.0
      %5773 = vmatprep.subr.mxu0 0.0
      %5774 = vmatpush2.msra.mxu0 0.0
      %5775 = vmatprep.subr.mxu0 0.0
      %5776 = vmatpush2.msra.mxu0 0.0
      %5777 = vmatprep.subr.mxu0 0.0
      %5778 = vmatpush2.msra.mxu0 0.0
      %5779 = vmatprep.subr.mxu0 0.0
      %5780 = vmatpush2.msra.mxu0 0.0
      %5781 = vmatprep.subr.mxu0 0.0
      %5782 = vmatpush2.msra.mxu0 0.0
      %5783 = vmatprep.subr.mxu0 0.0
      %5784 = vmatpush2.msra.mxu0 0.0
      %5785 = vmatprep.subr.mxu0 0.0
      %5786 = vmatpush2.msra.mxu0 0.0
      %5787 = vmatprep.subr.mxu0 0.0
      %5788 = vmatpush2.msra.mxu0 0.0
      %5789 = vmatprep.subr.mxu0 0.0
      %5790 = vmatpush2.msra.mxu0 0.0
      %5791 = vmatprep.subr.mxu0 0.0
      %5792 = vmatpush2.msra.mxu0 0.0
      %5793 = vmatprep.subr.mxu0 0.0
      %5794 = vmatpush2.msra.mxu0 0.0
      %5795 = vmatprep.subr.mxu0 0.0
      %5796 = vmatpush2.msra.mxu0 0.0
      %5797 = vmatprep.subr.mxu0 0.0
      %5798 = vmatpush2.msra.mxu0 0.0
      %5799 = vmatprep.subr.mxu0 0.0
      %5800 = vmatpush2.msra.mxu0 0.0
      %5801 = vmatprep.mubr.f32.mxu0 0.0
      %5802 = vmatmul.mubr.f32.gmra.mxu0 %v5735
      %v5803 = vpop.f32.mrf.mxu0
      %v5804 = vadd.f32 %v5731, %v5803
      %v5805 = vpop.f32.mrf.mxu0
      %5806 = vdwg.mxu0
      %v5807 = vadd.f32 %v5804, %v1449
      %v5808 = vsel %vm1452, %v5807, -inf
      %5809 = vmax.xlane.f32.xlu0 %v5808
      %v5810 = vpop.xlane.xlu0 %5809
      %v5811 = vsub.f32 %v5807, %v5810
      %v5812 = vmul.f32 %v5811, 1.442695
      %v5813 = vpow.pop %v5812
      %v5814 = vsel %vm1452, %v5813, 0.0
      %5815 = vadd.xlane.f32.xlu0 %v5814
      %v5816 = vpop.xlane.xlu0 %5815
      %v5817 = vrcp.pop %v5816
      %v5818 = vmul.f32 %v5813, %v5817
      %v5819 = vlaneseq
      %v5820 = vshrl.u32 %v5819, 7
      %v5821 = vsub.s32 0, %v5820
      %v5822 = vrot.slane %v5818, %v5821
      %5824 = vbcast.lane.b32.xlu0 %v5822, 256
      %v5825 = vpop.permute.xlu0 %5824
      %v5826 = vlaneseq
      %v5827 = vshrl.u32 %v5826, 7
      %v5828 = vsub.s32 1, %v5827
      %v5829 = vrot.slane %v5818, %v5828
      %5831 = vbcast.lane.b32.xlu0 %v5829, 256
      %v5832 = vpop.permute.xlu0 %5831
      %v5833 = vlaneseq
      %v5834 = vshrl.u32 %v5833, 7
      %v5835 = vsub.s32 2, %v5834
      %v5836 = vrot.slane %v5818, %v5835
      %5838 = vbcast.lane.b32.xlu0 %v5836, 256
      %v5839 = vpop.permute.xlu0 %5838
      %v5840 = vlaneseq
      %v5841 = vshrl.u32 %v5840, 7
      %v5842 = vsub.s32 3, %v5841
      %v5843 = vrot.slane %v5818, %v5842
      %5845 = vbcast.lane.b32.xlu0 %v5843, 256
      %v5846 = vpop.permute.xlu0 %5845
      %v5847 = vmul.f32 %v5825, %v1207
      %v5848 = vmul.f32 %v5832, %v1208
      %v5849 = vmul.f32 %v5839, %v1209
      %v5850 = vmul.f32 %v5846, %v1210
      %v5851 = vsel %vm1298, %v5847, 0.0
      %v5852 = vrot.slane %v5851, 4
      %v5853 = vadd.f32 %v5851, %v5852
      %v5854 = vrot.slane %v5853, 2
      %v5855 = vadd.f32 %v5853, %v5854
      %v5856 = vrot.slane %v5855, 1
      %v5857 = vadd.f32 %v5855, %v5856
      %v5858 = vsel %vm1298, %v5848, 0.0
      %v5859 = vrot.slane %v5858, 4
      %v5860 = vadd.f32 %v5858, %v5859
      %v5861 = vrot.slane %v5860, 2
      %v5862 = vadd.f32 %v5860, %v5861
      %v5863 = vrot.slane %v5862, 1
      %v5864 = vadd.f32 %v5862, %v5863
      %v5865 = vsel %vm1298, %v5849, 0.0
      %v5866 = vrot.slane %v5865, 4
      %v5867 = vadd.f32 %v5865, %v5866
      %v5868 = vrot.slane %v5867, 2
      %v5869 = vadd.f32 %v5867, %v5868
      %v5870 = vrot.slane %v5869, 1
      %v5871 = vadd.f32 %v5869, %v5870
      %v5872 = vsel %vm1298, %v5850, 0.0
      %v5873 = vrot.slane %v5872, 4
      %v5874 = vadd.f32 %v5872, %v5873
      %v5875 = vrot.slane %v5874, 2
      %v5876 = vadd.f32 %v5874, %v5875
      %v5877 = vrot.slane %v5876, 1
      %v5878 = vadd.f32 %v5876, %v5877
      %v5883 = vsel %vm1528, %v5864, %v5857
      %v5884 = vsel %vm1530, %v5871, %v5883
      %v5885 = vsel %vm1532, %v5878, %v5884
      %v5886 = vsel %vm1298, %v5885, 0
      %5888 = vmatprep.subr.mxu0 0.0
      %5889 = vmatpush1.msra.mxu0 0.0
      %5890 = vmatprep.subr.mxu0 0.0
      %5891 = vmatpush1.msra.mxu0 0.0
      %5892 = vmatprep.subr.mxu0 0.0
      %5893 = vmatpush1.msra.mxu0 0.0
      %5894 = vmatprep.subr.mxu0 0.0
      %5895 = vmatpush1.msra.mxu0 0.0
      %5896 = vmatprep.subr.mxu0 0.0
      %5897 = vmatpush1.msra.mxu0 0.0
      %5898 = vmatprep.subr.mxu0 0.0
      %5899 = vmatpush1.msra.mxu0 0.0
      %5900 = vmatprep.subr.mxu0 0.0
      %5901 = vmatpush1.msra.mxu0 0.0
      %5902 = vmatprep.subr.mxu0 0.0
      %5903 = vmatpush1.msra.mxu0 0.0
      %5904 = vmatprep.subr.mxu0 0.0
      %5905 = vmatpush1.msra.mxu0 0.0
      %5906 = vmatprep.subr.mxu0 0.0
      %5907 = vmatpush1.msra.mxu0 0.0
      %5908 = vmatprep.subr.mxu0 0.0
      %5909 = vmatpush1.msra.mxu0 0.0
      %5910 = vmatprep.subr.mxu0 0.0
      %5911 = vmatpush1.msra.mxu0 0.0
      %5912 = vmatprep.subr.mxu0 0.0
      %5913 = vmatpush1.msra.mxu0 %v1170
      %5914 = vmatprep.subr.mxu0 0.0
      %5915 = vmatpush1.msra.mxu0 %v1169
      %5916 = vmatprep.subr.mxu0 0.0
      %5917 = vmatpush1.msra.mxu0 %v1168
      %5918 = vmatprep.subr.mxu0 0.0
      %5919 = vmatpush1.msra.mxu0 %v1167
      %5920 = vmatprep.subr.mxu0 0.0
      %5921 = vmatpush2.msra.mxu0 0.0
      %5922 = vmatprep.subr.mxu0 0.0
      %5923 = vmatpush2.msra.mxu0 0.0
      %5924 = vmatprep.subr.mxu0 0.0
      %5925 = vmatpush2.msra.mxu0 0.0
      %5926 = vmatprep.subr.mxu0 0.0
      %5927 = vmatpush2.msra.mxu0 0.0
      %5928 = vmatprep.subr.mxu0 0.0
      %5929 = vmatpush2.msra.mxu0 0.0
      %5930 = vmatprep.subr.mxu0 0.0
      %5931 = vmatpush2.msra.mxu0 0.0
      %5932 = vmatprep.subr.mxu0 0.0
      %5933 = vmatpush2.msra.mxu0 0.0
      %5934 = vmatprep.subr.mxu0 0.0
      %5935 = vmatpush2.msra.mxu0 0.0
      %5936 = vmatprep.subr.mxu0 0.0
      %5937 = vmatpush2.msra.mxu0 0.0
      %5938 = vmatprep.subr.mxu0 0.0
      %5939 = vmatpush2.msra.mxu0 0.0
      %5940 = vmatprep.subr.mxu0 0.0
      %5941 = vmatpush2.msra.mxu0 0.0
      %5942 = vmatprep.subr.mxu0 0.0
      %5943 = vmatpush2.msra.mxu0 0.0
      %5944 = vmatprep.subr.mxu0 0.0
      %5945 = vmatpush2.msra.mxu0 0.0
      %5946 = vmatprep.subr.mxu0 0.0
      %5947 = vmatpush2.msra.mxu0 0.0
      %5948 = vmatprep.subr.mxu0 0.0
      %5949 = vmatpush2.msra.mxu0 0.0
      %5950 = vmatprep.subr.mxu0 0.0
      %5951 = vmatpush2.msra.mxu0 0.0
      %5952 = vmatprep.mubr.f32.mxu0 0.0
      %5953 = vmatmul.mubr.f32.gmra.mxu0 %v5886
      %v5954 = vpop.f32.mrf.mxu0
      %v5955 = vadd.f32 0.0, %v5954
      %v5956 = vpop.f32.mrf.mxu0
      %5957 = vdwg.mxu0
      %5958 = vmatprep.subr.mxu0 0.0
      %5959 = vmatpush1.msra.mxu0 0.0
      %5960 = vmatprep.subr.mxu0 0.0
      %5961 = vmatpush1.msra.mxu0 0.0
      %5962 = vmatprep.subr.mxu0 0.0
      %5963 = vmatpush1.msra.mxu0 0.0
      %5964 = vmatprep.subr.mxu0 0.0
      %5965 = vmatpush1.msra.mxu0 0.0
      %5966 = vmatprep.subr.mxu0 0.0
      %5967 = vmatpush1.msra.mxu0 0.0
      %5968 = vmatprep.subr.mxu0 0.0
      %5969 = vmatpush1.msra.mxu0 0.0
      %5970 = vmatprep.subr.mxu0 0.0
      %5971 = vmatpush1.msra.mxu0 0.0
      %5972 = vmatprep.subr.mxu0 0.0
      %5973 = vmatpush1.msra.mxu0 0.0
      %5974 = vmatprep.subr.mxu0 0.0
      %5975 = vmatpush1.msra.mxu0 0.0
      %5976 = vmatprep.subr.mxu0 0.0
      %5977 = vmatpush1.msra.mxu0 0.0
      %5978 = vmatprep.subr.mxu0 0.0
      %5979 = vmatpush1.msra.mxu0 0.0
      %5980 = vmatprep.subr.mxu0 0.0
      %5981 = vmatpush1.msra.mxu0 0.0
      %5982 = vmatprep.subr.mxu0 0.0
      %5983 = vmatpush1.msra.mxu0 %v1166
      %5984 = vmatprep.subr.mxu0 0.0
      %5985 = vmatpush1.msra.mxu0 %v1165
      %5986 = vmatprep.subr.mxu0 0.0
      %5987 = vmatpush1.msra.mxu0 %v1164
      %5988 = vmatprep.subr.mxu0 0.0
      %5989 = vmatpush1.msra.mxu0 %v1163
      %5990 = vmatprep.subr.mxu0 0.0
      %5991 = vmatpush2.msra.mxu0 0.0
      %5992 = vmatprep.subr.mxu0 0.0
      %5993 = vmatpush2.msra.mxu0 0.0
      %5994 = vmatprep.subr.mxu0 0.0
      %5995 = vmatpush2.msra.mxu0 0.0
      %5996 = vmatprep.subr.mxu0 0.0
      %5997 = vmatpush2.msra.mxu0 0.0
      %5998 = vmatprep.subr.mxu0 0.0
      %5999 = vmatpush2.msra.mxu0 0.0
      %6000 = vmatprep.subr.mxu0 0.0
      %6001 = vmatpush2.msra.mxu0 0.0
      %6002 = vmatprep.subr.mxu0 0.0
      %6003 = vmatpush2.msra.mxu0 0.0
      %6004 = vmatprep.subr.mxu0 0.0
      %6005 = vmatpush2.msra.mxu0 0.0
      %6006 = vmatprep.subr.mxu0 0.0
      %6007 = vmatpush2.msra.mxu0 0.0
      %6008 = vmatprep.subr.mxu0 0.0
      %6009 = vmatpush2.msra.mxu0 0.0
      %6010 = vmatprep.subr.mxu0 0.0
      %6011 = vmatpush2.msra.mxu0 0.0
      %6012 = vmatprep.subr.mxu0 0.0
      %6013 = vmatpush2.msra.mxu0 0.0
      %6014 = vmatprep.subr.mxu0 0.0
      %6015 = vmatpush2.msra.mxu0 0.0
      %6016 = vmatprep.subr.mxu0 0.0
      %6017 = vmatpush2.msra.mxu0 0.0
      %6018 = vmatprep.subr.mxu0 0.0
      %6019 = vmatpush2.msra.mxu0 0.0
      %6020 = vmatprep.subr.mxu0 0.0
      %6021 = vmatpush2.msra.mxu0 0.0
      %6022 = vmatprep.mubr.f32.mxu0 0.0
      %6023 = vmatmul.mubr.f32.gmra.mxu0 %v5735
      %v6024 = vpop.f32.mrf.mxu0
      %v6025 = vadd.f32 %v5955, %v6024
      %v6026 = vpop.f32.mrf.mxu0
      %6027 = vdwg.mxu0
      %v6028 = vadd.f32 %v6025, %v1680
      %6029 = vmatprep.subr.mxu0 0.0
      %6030 = vmatpush1.msra.mxu0 0.0
      %6031 = vmatprep.subr.mxu0 0.0
      %6032 = vmatpush1.msra.mxu0 0.0
      %6033 = vmatprep.subr.mxu0 0.0
      %6034 = vmatpush1.msra.mxu0 0.0
      %6035 = vmatprep.subr.mxu0 0.0
      %6036 = vmatpush1.msra.mxu0 0.0
      %6037 = vmatprep.subr.mxu0 0.0
      %6038 = vmatpush1.msra.mxu0 0.0
      %6039 = vmatprep.subr.mxu0 0.0
      %6040 = vmatpush1.msra.mxu0 0.0
      %6041 = vmatprep.subr.mxu0 0.0
      %6042 = vmatpush1.msra.mxu0 0.0
      %6043 = vmatprep.subr.mxu0 0.0
      %6044 = vmatpush1.msra.mxu0 0.0
      %6045 = vmatprep.subr.mxu0 0.0
      %6046 = vmatpush1.msra.mxu0 0.0
      %6047 = vmatprep.subr.mxu0 0.0
      %6048 = vmatpush1.msra.mxu0 0.0
      %6049 = vmatprep.subr.mxu0 0.0
      %6050 = vmatpush1.msra.mxu0 0.0
      %6051 = vmatprep.subr.mxu0 0.0
      %6052 = vmatpush1.msra.mxu0 0.0
      %6053 = vmatprep.subr.mxu0 0.0
      %6054 = vmatpush1.msra.mxu0 %v1176
      %6055 = vmatprep.subr.mxu0 0.0
      %6056 = vmatpush1.msra.mxu0 %v1175
      %6057 = vmatprep.subr.mxu0 0.0
      %6058 = vmatpush1.msra.mxu0 %v1174
      %6059 = vmatprep.subr.mxu0 0.0
      %6060 = vmatpush1.msra.mxu0 %v1173
      %6061 = vmatprep.subr.mxu0 0.0
      %6062 = vmatpush2.msra.mxu0 0.0
      %6063 = vmatprep.subr.mxu0 0.0
      %6064 = vmatpush2.msra.mxu0 0.0
      %6065 = vmatprep.subr.mxu0 0.0
      %6066 = vmatpush2.msra.mxu0 0.0
      %6067 = vmatprep.subr.mxu0 0.0
      %6068 = vmatpush2.msra.mxu0 0.0
      %6069 = vmatprep.subr.mxu0 0.0
      %6070 = vmatpush2.msra.mxu0 0.0
      %6071 = vmatprep.subr.mxu0 0.0
      %6072 = vmatpush2.msra.mxu0 0.0
      %6073 = vmatprep.subr.mxu0 0.0
      %6074 = vmatpush2.msra.mxu0 0.0
      %6075 = vmatprep.subr.mxu0 0.0
      %6076 = vmatpush2.msra.mxu0 0.0
      %6077 = vmatprep.subr.mxu0 0.0
      %6078 = vmatpush2.msra.mxu0 0.0
      %6079 = vmatprep.subr.mxu0 0.0
      %6080 = vmatpush2.msra.mxu0 0.0
      %6081 = vmatprep.subr.mxu0 0.0
      %6082 = vmatpush2.msra.mxu0 0.0
      %6083 = vmatprep.subr.mxu0 0.0
      %6084 = vmatpush2.msra.mxu0 0.0
      %6085 = vmatprep.subr.mxu0 0.0
      %6086 = vmatpush2.msra.mxu0 0.0
      %6087 = vmatprep.subr.mxu0 0.0
      %6088 = vmatpush2.msra.mxu0 0.0
      %6089 = vmatprep.subr.mxu0 0.0
      %6090 = vmatpush2.msra.mxu0 0.0
      %6091 = vmatprep.subr.mxu0 0.0
      %6092 = vmatpush2.msra.mxu0 0.0
      %6093 = vmatprep.mubr.f32.mxu0 0.0
      %6094 = vmatmul.mubr.f32.gmra.mxu0 %v5195
      %v6095 = vpop.f32.mrf.mxu0
      %v6096 = vadd.f32 0.0, %v6095
      %v6097 = vpop.f32.mrf.mxu0
      %6098 = vdwg.mxu0
      %v6100 = vsel %vm1224, %v6028, 0
      %6102 = vmatprep.subr.mxu0 0.0
      %6103 = vmatpush1.msra.mxu0 0.0
      %6104 = vmatprep.subr.mxu0 0.0
      %6105 = vmatpush1.msra.mxu0 0.0
      %6106 = vmatprep.subr.mxu0 0.0
      %6107 = vmatpush1.msra.mxu0 0.0
      %6108 = vmatprep.subr.mxu0 0.0
      %6109 = vmatpush1.msra.mxu0 0.0
      %6110 = vmatprep.subr.mxu0 0.0
      %6111 = vmatpush1.msra.mxu0 0.0
      %6112 = vmatprep.subr.mxu0 0.0
      %6113 = vmatpush1.msra.mxu0 0.0
      %6114 = vmatprep.subr.mxu0 0.0
      %6115 = vmatpush1.msra.mxu0 0.0
      %6116 = vmatprep.subr.mxu0 0.0
      %6117 = vmatpush1.msra.mxu0 0.0
      %6118 = vmatprep.subr.mxu0 0.0
      %6119 = vmatpush1.msra.mxu0 0.0
      %6120 = vmatprep.subr.mxu0 0.0
      %6121 = vmatpush1.msra.mxu0 0.0
      %6122 = vmatprep.subr.mxu0 0.0
      %6123 = vmatpush1.msra.mxu0 0.0
      %6124 = vmatprep.subr.mxu0 0.0
      %6125 = vmatpush1.msra.mxu0 0.0
      %6126 = vmatprep.subr.mxu0 0.0
      %6127 = vmatpush1.msra.mxu0 0.0
      %6128 = vmatprep.subr.mxu0 0.0
      %6129 = vmatpush1.msra.mxu0 0.0
      %6130 = vmatprep.subr.mxu0 0.0
      %6131 = vmatpush1.msra.mxu0 0.0
      %6132 = vmatprep.subr.mxu0 0.0
      %6133 = vmatpush1.msra.mxu0 %v1172
      %6134 = vmatprep.subr.mxu0 0.0
      %6135 = vmatpush2.msra.mxu0 0.0
      %6136 = vmatprep.subr.mxu0 0.0
      %6137 = vmatpush2.msra.mxu0 0.0
      %6138 = vmatprep.subr.mxu0 0.0
      %6139 = vmatpush2.msra.mxu0 0.0
      %6140 = vmatprep.subr.mxu0 0.0
      %6141 = vmatpush2.msra.mxu0 0.0
      %6142 = vmatprep.subr.mxu0 0.0
      %6143 = vmatpush2.msra.mxu0 0.0
      %6144 = vmatprep.subr.mxu0 0.0
      %6145 = vmatpush2.msra.mxu0 0.0
      %6146 = vmatprep.subr.mxu0 0.0
      %6147 = vmatpush2.msra.mxu0 0.0
      %6148 = vmatprep.subr.mxu0 0.0
      %6149 = vmatpush2.msra.mxu0 0.0
      %6150 = vmatprep.subr.mxu0 0.0
      %6151 = vmatpush2.msra.mxu0 0.0
      %6152 = vmatprep.subr.mxu0 0.0
      %6153 = vmatpush2.msra.mxu0 0.0
      %6154 = vmatprep.subr.mxu0 0.0
      %6155 = vmatpush2.msra.mxu0 0.0
      %6156 = vmatprep.subr.mxu0 0.0
      %6157 = vmatpush2.msra.mxu0 0.0
      %6158 = vmatprep.subr.mxu0 0.0
      %6159 = vmatpush2.msra.mxu0 0.0
      %6160 = vmatprep.subr.mxu0 0.0
      %6161 = vmatpush2.msra.mxu0 0.0
      %6162 = vmatprep.subr.mxu0 0.0
      %6163 = vmatpush2.msra.mxu0 0.0
      %6164 = vmatprep.subr.mxu0 0.0
      %6165 = vmatpush2.msra.mxu0 0.0
      %6166 = vmatprep.mubr.f32.mxu0 0.0
      %6167 = vmatmul.mubr.f32.gmra.mxu0 %v6100
      %v6168 = vpop.f32.mrf.mxu0
      %v6169 = vadd.f32 %v6096, %v6168
      %v6170 = vpop.f32.mrf.mxu0
      %6171 = vdwg.mxu0
      %v6172 = vadd.f32 %v6169, %v1830
      %v6173 = vxor.u32 %v6172, 2147483648
      %v6174 = vmul.f32 %v6173, 1.442695
      %v6175 = vpow.pop %v6174
      %v6176 = vadd.f32 %v6175, 1.0
      %v6177 = vrcp.pop %v6176
      %v6178 = vmul.f32 1.0, %v6177
      %v6179 = vtanh.pop %v6172
      %v6180 = vmul.f32 %v6178, %v5115
      %6182 = vrot.lane.b32.xlu0 %v6179, 64
      %v6183 = vpop.permute.xlu0 %6182
      %v6185 = vmul.f32 %v6178, %v6183
      %6187 = vrot.lane.b32.xlu0 %v6185, 32
      %v6188 = vpop.permute.xlu0 %6187
      %v6190 = vadd.f32 %v6180, %v6188
      %v6191 = vtanh.pop %v6190
      %6193 = vrot.lane.b32.xlu0 %v6191, 64
      %v6194 = vpop.permute.xlu0 %6193
      %v6196 = vmul.f32 %v6178, %v6194
      %6197 = vmatprep.subr.mxu0 0.0
      %6198 = vmatpush1.msra.mxu0 0.0
      %6199 = vmatprep.subr.mxu0 0.0
      %6200 = vmatpush1.msra.mxu0 0.0
      %6201 = vmatprep.subr.mxu0 0.0
      %6202 = vmatpush1.msra.mxu0 0.0
      %6203 = vmatprep.subr.mxu0 0.0
      %6204 = vmatpush1.msra.mxu0 0.0
      %6205 = vmatprep.subr.mxu0 0.0
      %6206 = vmatpush1.msra.mxu0 0.0
      %6207 = vmatprep.subr.mxu0 0.0
      %6208 = vmatpush1.msra.mxu0 0.0
      %6209 = vmatprep.subr.mxu0 0.0
      %6210 = vmatpush1.msra.mxu0 0.0
      %6211 = vmatprep.subr.mxu0 0.0
      %6212 = vmatpush1.msra.mxu0 0.0
      %6213 = vmatprep.subr.mxu0 0.0
      %6214 = vmatpush1.msra.mxu0 0.0
      %6215 = vmatprep.subr.mxu0 0.0
      %6216 = vmatpush1.msra.mxu0 0.0
      %6217 = vmatprep.subr.mxu0 0.0
      %6218 = vmatpush1.msra.mxu0 0.0
      %6219 = vmatprep.subr.mxu0 0.0
      %6220 = vmatpush1.msra.mxu0 0.0
      %6221 = vmatprep.subr.mxu0 0.0
      %6222 = vmatpush1.msra.mxu0 %v1185
      %6223 = vmatprep.subr.mxu0 0.0
      %6224 = vmatpush1.msra.mxu0 %v1184
      %6225 = vmatprep.subr.mxu0 0.0
      %6226 = vmatpush1.msra.mxu0 %v1183
      %6227 = vmatprep.subr.mxu0 0.0
      %6228 = vmatpush1.msra.mxu0 %v1182
      %6229 = vmatprep.subr.mxu0 0.0
      %6230 = vmatpush2.msra.mxu0 0.0
      %6231 = vmatprep.subr.mxu0 0.0
      %6232 = vmatpush2.msra.mxu0 0.0
      %6233 = vmatprep.subr.mxu0 0.0
      %6234 = vmatpush2.msra.mxu0 0.0
      %6235 = vmatprep.subr.mxu0 0.0
      %6236 = vmatpush2.msra.mxu0 0.0
      %6237 = vmatprep.subr.mxu0 0.0
      %6238 = vmatpush2.msra.mxu0 0.0
      %6239 = vmatprep.subr.mxu0 0.0
      %6240 = vmatpush2.msra.mxu0 0.0
      %6241 = vmatprep.subr.mxu0 0.0
      %6242 = vmatpush2.msra.mxu0 0.0
      %6243 = vmatprep.subr.mxu0 0.0
      %6244 = vmatpush2.msra.mxu0 0.0
      %6245 = vmatprep.subr.mxu0 0.0
      %6246 = vmatpush2.msra.mxu0 0.0
      %6247 = vmatprep.subr.mxu0 0.0
      %6248 = vmatpush2.msra.mxu0 0.0
      %6249 = vmatprep.subr.mxu0 0.0
      %6250 = vmatpush2.msra.mxu0 0.0
      %6251 = vmatprep.subr.mxu0 0.0
      %6252 = vmatpush2.msra.mxu0 0.0
      %6253 = vmatprep.subr.mxu0 0.0
      %6254 = vmatpush2.msra.mxu0 0.0
      %6255 = vmatprep.subr.mxu0 0.0
      %6256 = vmatpush2.msra.mxu0 0.0
      %6257 = vmatprep.subr.mxu0 0.0
      %6258 = vmatpush2.msra.mxu0 0.0
      %6259 = vmatprep.subr.mxu0 0.0
      %6260 = vmatpush2.msra.mxu0 0.0
      %6261 = vmatprep.mubr.f32.mxu0 0.0
      %6262 = vmatmul.mubr.f32.gmra.mxu0 %v5295
      %v6263 = vpop.f32.mrf.mxu0
      %v6264 = vadd.f32 0.0, %v6263
      %v6265 = vpop.f32.mrf.mxu0
      %6266 = vdwg.mxu0
      %6268 = vrot.lane.b32.xlu0 %v6196, 32
      %v6269 = vpop.permute.xlu0 %6268
      %v6270 = vsel %vm1298, %v6269, 0
      %6272 = vmatprep.subr.mxu0 0.0
      %6273 = vmatpush1.msra.mxu0 0.0
      %6274 = vmatprep.subr.mxu0 0.0
      %6275 = vmatpush1.msra.mxu0 0.0
      %6276 = vmatprep.subr.mxu0 0.0
      %6277 = vmatpush1.msra.mxu0 0.0
      %6278 = vmatprep.subr.mxu0 0.0
      %6279 = vmatpush1.msra.mxu0 0.0
      %6280 = vmatprep.subr.mxu0 0.0
      %6281 = vmatpush1.msra.mxu0 0.0
      %6282 = vmatprep.subr.mxu0 0.0
      %6283 = vmatpush1.msra.mxu0 0.0
      %6284 = vmatprep.subr.mxu0 0.0
      %6285 = vmatpush1.msra.mxu0 0.0
      %6286 = vmatprep.subr.mxu0 0.0
      %6287 = vmatpush1.msra.mxu0 0.0
      %6288 = vmatprep.subr.mxu0 0.0
      %6289 = vmatpush1.msra.mxu0 0.0
      %6290 = vmatprep.subr.mxu0 0.0
      %6291 = vmatpush1.msra.mxu0 0.0
      %6292 = vmatprep.subr.mxu0 0.0
      %6293 = vmatpush1.msra.mxu0 0.0
      %6294 = vmatprep.subr.mxu0 0.0
      %6295 = vmatpush1.msra.mxu0 0.0
      %6296 = vmatprep.subr.mxu0 0.0
      %6297 = vmatpush1.msra.mxu0 %v1181
      %6298 = vmatprep.subr.mxu0 0.0
      %6299 = vmatpush1.msra.mxu0 %v1180
      %6300 = vmatprep.subr.mxu0 0.0
      %6301 = vmatpush1.msra.mxu0 %v1179
      %6302 = vmatprep.subr.mxu0 0.0
      %6303 = vmatpush1.msra.mxu0 %v1178
      %6304 = vmatprep.subr.mxu0 0.0
      %6305 = vmatpush2.msra.mxu0 0.0
      %6306 = vmatprep.subr.mxu0 0.0
      %6307 = vmatpush2.msra.mxu0 0.0
      %6308 = vmatprep.subr.mxu0 0.0
      %6309 = vmatpush2.msra.mxu0 0.0
      %6310 = vmatprep.subr.mxu0 0.0
      %6311 = vmatpush2.msra.mxu0 0.0
      %6312 = vmatprep.subr.mxu0 0.0
      %6313 = vmatpush2.msra.mxu0 0.0
      %6314 = vmatprep.subr.mxu0 0.0
      %6315 = vmatpush2.msra.mxu0 0.0
      %6316 = vmatprep.subr.mxu0 0.0
      %6317 = vmatpush2.msra.mxu0 0.0
      %6318 = vmatprep.subr.mxu0 0.0
      %6319 = vmatpush2.msra.mxu0 0.0
      %6320 = vmatprep.subr.mxu0 0.0
      %6321 = vmatpush2.msra.mxu0 0.0
      %6322 = vmatprep.subr.mxu0 0.0
      %6323 = vmatpush2.msra.mxu0 0.0
      %6324 = vmatprep.subr.mxu0 0.0
      %6325 = vmatpush2.msra.mxu0 0.0
      %6326 = vmatprep.subr.mxu0 0.0
      %6327 = vmatpush2.msra.mxu0 0.0
      %6328 = vmatprep.subr.mxu0 0.0
      %6329 = vmatpush2.msra.mxu0 0.0
      %6330 = vmatprep.subr.mxu0 0.0
      %6331 = vmatpush2.msra.mxu0 0.0
      %6332 = vmatprep.subr.mxu0 0.0
      %6333 = vmatpush2.msra.mxu0 0.0
      %6334 = vmatprep.subr.mxu0 0.0
      %6335 = vmatpush2.msra.mxu0 0.0
      %6336 = vmatprep.mubr.f32.mxu0 0.0
      %6337 = vmatmul.mubr.f32.gmra.mxu0 %v6270
      %v6338 = vpop.f32.mrf.mxu0
      %v6339 = vadd.f32 %v6264, %v6338
      %v6340 = vpop.f32.mrf.mxu0
      %6341 = vdwg.mxu0
      %v6342 = vadd.f32 %v6339, %v2013
      %v6343 = vxor.u32 %v6342, 2147483648
      %v6344 = vmul.f32 %v6343, 1.442695
      %v6345 = vpow.pop %v6344
      %v6346 = vadd.f32 %v6345, 1.0
      %v6347 = vrcp.pop %v6346
      %v6348 = vmul.f32 1.0, %v6347
      %v6349 = vtanh.pop %v6342
      %v6350 = vmul.f32 %v6348, %v5285
      %6352 = vrot.lane.b32.xlu0 %v6349, 64
      %v6353 = vpop.permute.xlu0 %6352
      %v6355 = vmul.f32 %v6348, %v6353
      %6357 = vrot.lane.b32.xlu0 %v6355, 32
      %v6358 = vpop.permute.xlu0 %6357
      %v6360 = vadd.f32 %v6350, %v6358
      %v6361 = vtanh.pop %v6360
      %6363 = vrot.lane.b32.xlu0 %v6361, 64
      %v6364 = vpop.permute.xlu0 %6363
      %v6366 = vmul.f32 %v6348, %v6364
      %6368 = vrot.lane.b32.xlu0 %v6366, 32
      %v6369 = vpop.permute.xlu0 %6368
      %v6370 = vsel %vm1298, %v6369, 0
      %6372 = vmatprep.subr.mxu0 0.0
      %6373 = vmatpush1.msra.mxu0 0.0
      %6374 = vmatprep.subr.mxu0 0.0
      %6375 = vmatpush1.msra.mxu0 0.0
      %6376 = vmatprep.subr.mxu0 0.0
      %6377 = vmatpush1.msra.mxu0 0.0
      %6378 = vmatprep.subr.mxu0 0.0
      %6379 = vmatpush1.msra.mxu0 0.0
      %6380 = vmatprep.subr.mxu0 0.0
      %6381 = vmatpush1.msra.mxu0 0.0
      %6382 = vmatprep.subr.mxu0 0.0
      %6383 = vmatpush1.msra.mxu0 0.0
      %6384 = vmatprep.subr.mxu0 0.0
      %6385 = vmatpush1.msra.mxu0 0.0
      %6386 = vmatprep.subr.mxu0 0.0
      %6387 = vmatpush1.msra.mxu0 0.0
      %6388 = vmatprep.subr.mxu0 0.0
      %6389 = vmatpush1.msra.mxu0 0.0
      %6390 = vmatprep.subr.mxu0 0.0
      %6391 = vmatpush1.msra.mxu0 0.0
      %6392 = vmatprep.subr.mxu0 0.0
      %6393 = vmatpush1.msra.mxu0 0.0
      %6394 = vmatprep.subr.mxu0 0.0
      %6395 = vmatpush1.msra.mxu0 0.0
      %6396 = vmatprep.subr.mxu0 0.0
      %6397 = vmatpush1.msra.mxu0 %v1190
      %6398 = vmatprep.subr.mxu0 0.0
      %6399 = vmatpush1.msra.mxu0 %v1189
      %6400 = vmatprep.subr.mxu0 0.0
      %6401 = vmatpush1.msra.mxu0 %v1188
      %6402 = vmatprep.subr.mxu0 0.0
      %6403 = vmatpush1.msra.mxu0 %v1187
      %6404 = vmatprep.subr.mxu0 0.0
      %6405 = vmatpush2.msra.mxu0 0.0
      %6406 = vmatprep.subr.mxu0 0.0
      %6407 = vmatpush2.msra.mxu0 0.0
      %6408 = vmatprep.subr.mxu0 0.0
      %6409 = vmatpush2.msra.mxu0 0.0
      %6410 = vmatprep.subr.mxu0 0.0
      %6411 = vmatpush2.msra.mxu0 0.0
      %6412 = vmatprep.subr.mxu0 0.0
      %6413 = vmatpush2.msra.mxu0 0.0
      %6414 = vmatprep.subr.mxu0 0.0
      %6415 = vmatpush2.msra.mxu0 0.0
      %6416 = vmatprep.subr.mxu0 0.0
      %6417 = vmatpush2.msra.mxu0 0.0
      %6418 = vmatprep.subr.mxu0 0.0
      %6419 = vmatpush2.msra.mxu0 0.0
      %6420 = vmatprep.subr.mxu0 0.0
      %6421 = vmatpush2.msra.mxu0 0.0
      %6422 = vmatprep.subr.mxu0 0.0
      %6423 = vmatpush2.msra.mxu0 0.0
      %6424 = vmatprep.subr.mxu0 0.0
      %6425 = vmatpush2.msra.mxu0 0.0
      %6426 = vmatprep.subr.mxu0 0.0
      %6427 = vmatpush2.msra.mxu0 0.0
      %6428 = vmatprep.subr.mxu0 0.0
      %6429 = vmatpush2.msra.mxu0 0.0
      %6430 = vmatprep.subr.mxu0 0.0
      %6431 = vmatpush2.msra.mxu0 0.0
      %6432 = vmatprep.subr.mxu0 0.0
      %6433 = vmatpush2.msra.mxu0 0.0
      %6434 = vmatprep.subr.mxu0 0.0
      %6435 = vmatpush2.msra.mxu0 0.0
      %6436 = vmatprep.mubr.f32.mxu0 0.0
      %6437 = vmatmul.mubr.f32.gmra.mxu0 %v6370
      %v6438 = vpop.f32.mrf.mxu0
      %v6439 = vadd.f32 %v2048, %v6438
      %v6440 = vpop.f32.mrf.mxu0
      %6441 = vdwg.mxu0
      %v6442 = vmax.f32 %v6439, 0.0
      %v6444 = vsel %vm1298, %v6442, 0
      %6446 = vmatprep.subr.mxu0 0.0
      %6447 = vmatpush1.msra.mxu0 0.0
      %6448 = vmatprep.subr.mxu0 0.0
      %6449 = vmatpush1.msra.mxu0 0.0
      %6450 = vmatprep.subr.mxu0 0.0
      %6451 = vmatpush1.msra.mxu0 0.0
      %6452 = vmatprep.subr.mxu0 0.0
      %6453 = vmatpush1.msra.mxu0 0.0
      %6454 = vmatprep.subr.mxu0 0.0
      %6455 = vmatpush1.msra.mxu0 0.0
      %6456 = vmatprep.subr.mxu0 0.0
      %6457 = vmatpush1.msra.mxu0 0.0
      %6458 = vmatprep.subr.mxu0 0.0
      %6459 = vmatpush1.msra.mxu0 0.0
      %6460 = vmatprep.subr.mxu0 0.0
      %6461 = vmatpush1.msra.mxu0 0.0
      %6462 = vmatprep.subr.mxu0 0.0
      %6463 = vmatpush1.msra.mxu0 0.0
      %6464 = vmatprep.subr.mxu0 0.0
      %6465 = vmatpush1.msra.mxu0 0.0
      %6466 = vmatprep.subr.mxu0 0.0
      %6467 = vmatpush1.msra.mxu0 0.0
      %6468 = vmatprep.subr.mxu0 0.0
      %6469 = vmatpush1.msra.mxu0 0.0
      %6470 = vmatprep.subr.mxu0 0.0
      %6471 = vmatpush1.msra.mxu0 %v1195
      %6472 = vmatprep.subr.mxu0 0.0
      %6473 = vmatpush1.msra.mxu0 %v1194
      %6474 = vmatprep.subr.mxu0 0.0
      %6475 = vmatpush1.msra.mxu0 %v1193
      %6476 = vmatprep.subr.mxu0 0.0
      %6477 = vmatpush1.msra.mxu0 %v1192
      %6478 = vmatprep.subr.mxu0 0.0
      %6479 = vmatpush2.msra.mxu0 0.0
      %6480 = vmatprep.subr.mxu0 0.0
      %6481 = vmatpush2.msra.mxu0 0.0
      %6482 = vmatprep.subr.mxu0 0.0
      %6483 = vmatpush2.msra.mxu0 0.0
      %6484 = vmatprep.subr.mxu0 0.0
      %6485 = vmatpush2.msra.mxu0 0.0
      %6486 = vmatprep.subr.mxu0 0.0
      %6487 = vmatpush2.msra.mxu0 0.0
      %6488 = vmatprep.subr.mxu0 0.0
      %6489 = vmatpush2.msra.mxu0 0.0
      %6490 = vmatprep.subr.mxu0 0.0
      %6491 = vmatpush2.msra.mxu0 0.0
      %6492 = vmatprep.subr.mxu0 0.0
      %6493 = vmatpush2.msra.mxu0 0.0
      %6494 = vmatprep.subr.mxu0 0.0
      %6495 = vmatpush2.msra.mxu0 0.0
      %6496 = vmatprep.subr.mxu0 0.0
      %6497 = vmatpush2.msra.mxu0 0.0
      %6498 = vmatprep.subr.mxu0 0.0
      %6499 = vmatpush2.msra.mxu0 0.0
      %6500 = vmatprep.subr.mxu0 0.0
      %6501 = vmatpush2.msra.mxu0 0.0
      %6502 = vmatprep.subr.mxu0 0.0
      %6503 = vmatpush2.msra.mxu0 0.0
      %6504 = vmatprep.subr.mxu0 0.0
      %6505 = vmatpush2.msra.mxu0 0.0
      %6506 = vmatprep.subr.mxu0 0.0
      %6507 = vmatpush2.msra.mxu0 0.0
      %6508 = vmatprep.subr.mxu0 0.0
      %6509 = vmatpush2.msra.mxu0 0.0
      %6510 = vmatprep.mubr.f32.mxu0 0.0
      %6511 = vmatmul.mubr.f32.gmra.mxu0 %v6444
      %v6512 = vpop.f32.mrf.mxu0
      %v6513 = vadd.f32 %v2130, %v6512
      %v6514 = vpop.f32.mrf.mxu0
      %6515 = vdwg.mxu0
      %v6516 = vmax.f32 %v6513, 0.0
      %v6518 = vsel %vm1298, %v6516, 0
      %6520 = vmatprep.subr.mxu0 0.0
      %6521 = vmatpush1.msra.mxu0 0.0
      %6522 = vmatprep.subr.mxu0 0.0
      %6523 = vmatpush1.msra.mxu0 0.0
      %6524 = vmatprep.subr.mxu0 0.0
      %6525 = vmatpush1.msra.mxu0 0.0
      %6526 = vmatprep.subr.mxu0 0.0
      %6527 = vmatpush1.msra.mxu0 0.0
      %6528 = vmatprep.subr.mxu0 0.0
      %6529 = vmatpush1.msra.mxu0 0.0
      %6530 = vmatprep.subr.mxu0 0.0
      %6531 = vmatpush1.msra.mxu0 0.0
      %6532 = vmatprep.subr.mxu0 0.0
      %6533 = vmatpush1.msra.mxu0 0.0
      %6534 = vmatprep.subr.mxu0 0.0
      %6535 = vmatpush1.msra.mxu0 0.0
      %6536 = vmatprep.subr.mxu0 0.0
      %6537 = vmatpush1.msra.mxu0 0.0
      %6538 = vmatprep.subr.mxu0 0.0
      %6539 = vmatpush1.msra.mxu0 0.0
      %6540 = vmatprep.subr.mxu0 0.0
      %6541 = vmatpush1.msra.mxu0 0.0
      %6542 = vmatprep.subr.mxu0 0.0
      %6543 = vmatpush1.msra.mxu0 0.0
      %6544 = vmatprep.subr.mxu0 0.0
      %6545 = vmatpush1.msra.mxu0 %v1200
      %6546 = vmatprep.subr.mxu0 0.0
      %6547 = vmatpush1.msra.mxu0 %v1199
      %6548 = vmatprep.subr.mxu0 0.0
      %6549 = vmatpush1.msra.mxu0 %v1198
      %6550 = vmatprep.subr.mxu0 0.0
      %6551 = vmatpush1.msra.mxu0 %v1197
      %6552 = vmatprep.subr.mxu0 0.0
      %6553 = vmatpush2.msra.mxu0 0.0
      %6554 = vmatprep.subr.mxu0 0.0
      %6555 = vmatpush2.msra.mxu0 0.0
      %6556 = vmatprep.subr.mxu0 0.0
      %6557 = vmatpush2.msra.mxu0 0.0
      %6558 = vmatprep.subr.mxu0 0.0
      %6559 = vmatpush2.msra.mxu0 0.0
      %6560 = vmatprep.subr.mxu0 0.0
      %6561 = vmatpush2.msra.mxu0 0.0
      %6562 = vmatprep.subr.mxu0 0.0
      %6563 = vmatpush2.msra.mxu0 0.0
      %6564 = vmatprep.subr.mxu0 0.0
      %6565 = vmatpush2.msra.mxu0 0.0
      %6566 = vmatprep.subr.mxu0 0.0
      %6567 = vmatpush2.msra.mxu0 0.0
      %6568 = vmatprep.subr.mxu0 0.0
      %6569 = vmatpush2.msra.mxu0 0.0
      %6570 = vmatprep.subr.mxu0 0.0
      %6571 = vmatpush2.msra.mxu0 0.0
      %6572 = vmatprep.subr.mxu0 0.0
      %6573 = vmatpush2.msra.mxu0 0.0
      %6574 = vmatprep.subr.mxu0 0.0
      %6575 = vmatpush2.msra.mxu0 0.0
      %6576 = vmatprep.subr.mxu0 0.0
      %6577 = vmatpush2.msra.mxu0 0.0
      %6578 = vmatprep.subr.mxu0 0.0
      %6579 = vmatpush2.msra.mxu0 0.0
      %6580 = vmatprep.subr.mxu0 0.0
      %6581 = vmatpush2.msra.mxu0 0.0
      %6582 = vmatprep.subr.mxu0 0.0
      %6583 = vmatpush2.msra.mxu0 0.0
      %6584 = vmatprep.mubr.f32.mxu0 0.0
      %6585 = vmatmul.mubr.f32.gmra.mxu0 %v6518
      %v6586 = vpop.f32.mrf.mxu0
      %v6587 = vadd.f32 %v2210, %v6586
      %v6588 = vpop.f32.mrf.mxu0
      %6589 = vdwg.mxu0
      %v6590 = vmax.f32 %v6587, 0.0
      %v6592 = vsel %vm1298, %v6590, 0
      %6594 = vmatprep.subr.mxu0 0.0
      %6595 = vmatpush1.msra.mxu0 0.0
      %6596 = vmatprep.subr.mxu0 0.0
      %6597 = vmatpush1.msra.mxu0 0.0
      %6598 = vmatprep.subr.mxu0 0.0
      %6599 = vmatpush1.msra.mxu0 0.0
      %6600 = vmatprep.subr.mxu0 0.0
      %6601 = vmatpush1.msra.mxu0 0.0
      %6602 = vmatprep.subr.mxu0 0.0
      %6603 = vmatpush1.msra.mxu0 0.0
      %6604 = vmatprep.subr.mxu0 0.0
      %6605 = vmatpush1.msra.mxu0 0.0
      %6606 = vmatprep.subr.mxu0 0.0
      %6607 = vmatpush1.msra.mxu0 0.0
      %6608 = vmatprep.subr.mxu0 0.0
      %6609 = vmatpush1.msra.mxu0 0.0
      %6610 = vmatprep.subr.mxu0 0.0
      %6611 = vmatpush1.msra.mxu0 0.0
      %6612 = vmatprep.subr.mxu0 0.0
      %6613 = vmatpush1.msra.mxu0 0.0
      %6614 = vmatprep.subr.mxu0 0.0
      %6615 = vmatpush1.msra.mxu0 0.0
      %6616 = vmatprep.subr.mxu0 0.0
      %6617 = vmatpush1.msra.mxu0 0.0
      %6618 = vmatprep.subr.mxu0 0.0
      %6619 = vmatpush1.msra.mxu0 %v1205
      %6620 = vmatprep.subr.mxu0 0.0
      %6621 = vmatpush1.msra.mxu0 %v1204
      %6622 = vmatprep.subr.mxu0 0.0
      %6623 = vmatpush1.msra.mxu0 %v1203
      %6624 = vmatprep.subr.mxu0 0.0
      %6625 = vmatpush1.msra.mxu0 %v1202
      %6626 = vmatprep.subr.mxu0 0.0
      %6627 = vmatpush2.msra.mxu0 0.0
      %6628 = vmatprep.subr.mxu0 0.0
      %6629 = vmatpush2.msra.mxu0 0.0
      %6630 = vmatprep.subr.mxu0 0.0
      %6631 = vmatpush2.msra.mxu0 0.0
      %6632 = vmatprep.subr.mxu0 0.0
      %6633 = vmatpush2.msra.mxu0 0.0
      %6634 = vmatprep.subr.mxu0 0.0
      %6635 = vmatpush2.msra.mxu0 0.0
      %6636 = vmatprep.subr.mxu0 0.0
      %6637 = vmatpush2.msra.mxu0 0.0
      %6638 = vmatprep.subr.mxu0 0.0
      %6639 = vmatpush2.msra.mxu0 0.0
      %6640 = vmatprep.subr.mxu0 0.0
      %6641 = vmatpush2.msra.mxu0 0.0
      %6642 = vmatprep.subr.mxu0 0.0
      %6643 = vmatpush2.msra.mxu0 0.0
      %6644 = vmatprep.subr.mxu0 0.0
      %6645 = vmatpush2.msra.mxu0 0.0
      %6646 = vmatprep.subr.mxu0 0.0
      %6647 = vmatpush2.msra.mxu0 0.0
      %6648 = vmatprep.subr.mxu0 0.0
      %6649 = vmatpush2.msra.mxu0 0.0
      %6650 = vmatprep.subr.mxu0 0.0
      %6651 = vmatpush2.msra.mxu0 0.0
      %6652 = vmatprep.subr.mxu0 0.0
      %6653 = vmatpush2.msra.mxu0 0.0
      %6654 = vmatprep.subr.mxu0 0.0
      %6655 = vmatpush2.msra.mxu0 0.0
      %6656 = vmatprep.subr.mxu0 0.0
      %6657 = vmatpush2.msra.mxu0 0.0
      %6658 = vmatprep.mubr.f32.mxu0 0.0
      %6659 = vmatmul.mubr.f32.gmra.mxu0 %v6592
      %v6660 = vpop.f32.mrf.mxu0
      %v6661 = vadd.f32 %v2290, %v6660
      %v6662 = vpop.f32.mrf.mxu0
      %6663 = vdwg.mxu0
      %s6664 = scalar_lea.vmem %s1151, 16
      %6665 = vst.msk [vmem:[%s6664] sm:$0xf] %vm1452, %v6661
      %p6666 = scmp.lt.s32.totalorder %s37, 1
      %s6667 = scalar_select %p6666, %s37, 1
      %s6668 = smul.addr %s6667, 5
      %s6669 = smul.addr %s6668, 4
      %s6670 = scalar_lea.vmem %s26, %s6669
      // Predicated region
      $region125: #{encoder_decoder_forward.3} parent=123 // pred_check
        %p6671 = pneg %p711
      $region126: #{encoder_decoder_forward.3} parent=123 // pred_check_branch
        %6673 = sbr.rel (%p6671) target = $region128
      $region127: #{encoder_decoder_forward.3} parent=123 // pred_region
        _
      $region128: #{encoder_decoder_forward.3} parent=123 // pred_fallthru
        _
    $region124: #{encoder_decoder_forward.3} parent=5 // pred_fallthru
      _
    %p6674 = scmp.le.s32.totalorder 2, %s32
    // Predicated region
    $region129: #{encoder_decoder_forward.3} parent=5 // pred_check
      %p6675 = pneg %p6674
    $region130: #{encoder_decoder_forward.3} parent=5 // pred_check_branch
      %6677 = sbr.rel (%p6675) target = $region132
    $region131: #{encoder_decoder_forward.3} parent=5 // pred_region
      %s6678 = ssub.s32 %s32, 2
      // Predicated region
      $region133: #{encoder_decoder_forward.3} parent=131 // pred_check
        %p6679 = pneg %p717
      $region134: #{encoder_decoder_forward.3} parent=131 // pred_check_branch
        %6681 = sbr.rel (%p6679) target = $region136
      $region135: #{encoder_decoder_forward.3} parent=131 // pred_region
        %p6682 = scmp.lt.s32.totalorder %s38, 1
        %s6683 = scalar_select %p6682, %s38, 1
        %s6684 = smul.addr %s6683, 5
        %s6685 = smul.addr %s6684, 4
        %s6686 = scalar_lea.vmem %s26, %s6685
      $region136: #{encoder_decoder_forward.3} parent=131 // pred_fallthru
        _
    $region132: #{encoder_decoder_forward.3} parent=5 // pred_fallthru
      _
  $region6: #{encoder_decoder_forward.3} parent=0 // loop_footer
    %s36 = sadd.s32 1, %s32
  $region7: #{encoder_decoder_forward.3} parent=0 // loop_footer_branch
    %31 = sbr.rel target = $region3
  $region8: #{encoder_decoder_forward.3} parent=0 // loop_exit
    _

</llo_original>
